<compile_context>
chip_gen: v7x
topology: tpu7x:2x2x1
jax: 0.10.0
libtpu: 0.0.40
codegen_flags: <defaults>
</compile_context>

<pallas_src>
import jax
import jax.numpy as jnp
import numpy as np
from jax.experimental import pallas as pl
from jax.experimental.pallas import tpu as pltpu

# ----------------------------------------------------------------------------
# Config: HetGnnEncoder(in_features=32, hidden_dims=[32], fanouts=[[5], [3]])
# ----------------------------------------------------------------------------
IN_FEATURES = 32
HIDDEN_DIMS = [32]
OUT_DIM = HIDDEN_DIMS[-1]
H = OUT_DIM // 2                 # per-direction LSTM hidden size (16)
FANOUTS = [[5], [3]]
FANOUT_SIZES = [f[0] for f in FANOUTS]
NUM_FANOUTS = len(FANOUTS)
B_TOTAL = 256                    # seed nodes per call
NEG_SLOPE = 0.01                 # torch leaky_relu default


# ----------------------------------------------------------------------------
# Kernel
# ----------------------------------------------------------------------------
def _make_kernel(fanout_sizes, b_tile):
    F = IN_FEATURES
    NF = len(fanout_sizes)
    HW = 2 * H * NF              # fused hidden width  = 64  (lanes: [f0_f f0_b f1_f f1_b])
    GW = 4 * HW                  # fused gate width    = 256 (gate-major: [i|f|g|o] x HW)
    Ts = [f + 1 for f in fanout_sizes]
    T_max = max(Ts)
    k_bias = int(np.argmax(Ts))  # bias folded into the longest fanout's projection
                                 # (active at every step, so every step sees the bias)

    def kernel(*refs):
        node_ref = refs[0]
        neigh_refs = refs[1:1 + NF]
        w_ih_ref, w_hh_ref, b_ref, att_w_ref, att_b_ref = refs[1 + NF:1 + NF + 5]
        out_ref = refs[-1]

        node = node_ref[...]                                   # (b, F) f32
        node_bf = node.astype(jnp.bfloat16)
        w_hh = w_hh_ref[...]                                   # (HW, GW) bf16
        bias = b_ref[...]                                      # (1, GW) f32

        # ---- batched, lane-aligned input projections (one matmul per fanout) ----
        # LHS per step is [x_fwd | x_bwd]; the (2F, GW) weight routes rows 0..F-1 to the
        # forward-direction columns and rows F..2F-1 to the backward columns, so the
        # per-timestep fwd/bwd select vanishes.  All timesteps share one matmul.
        gx_list = []                                           # gx_list[k]: (T_k*b, GW) f32
        for k in range(NF):
            T = Ts[k]
            nref = neigh_refs[k]                               # (fanout_k, b, F)
            seq = [node_bf] + [nref[t].astype(jnp.bfloat16) for t in range(T - 1)]
            x_f = jnp.concatenate(seq, axis=0)                 # (T*b, F)   fwd consumes x[s]
            x_b = jnp.concatenate(seq[::-1], axis=0)           # (T*b, F)   bwd consumes x[T-1-s]
            x2 = jnp.concatenate([x_f, x_b], axis=1)           # (T*b, 2F)  bf16
            gx = jnp.dot(x2, w_ih_ref[k], preferred_element_type=jnp.float32)
            if k == k_bias:
                gx = gx + bias                                 # one broadcast add, in prologue
            gx_list.append(gx)

        # g-gate (cell-candidate) lane mask for the single full-width tanh (hoisted).
        lane = jax.lax.broadcasted_iota(jnp.int32, (b_tile, GW), 1)
        g_mask = jnp.logical_and(lane >= 2 * HW, lane < 3 * HW)

        # ---- fused serial recurrence: ONE (b, HW)x(HW, GW) matmul per step ----
        h = jnp.zeros((b_tile, HW), jnp.float32)
        c = jnp.zeros((b_tile, HW), jnp.float32)
        h_sum = jnp.zeros((b_tile, HW), jnp.float32)
        embeds = [None] * NF
        for s in range(T_max):                                 # static unroll (T_max small)
            gx = None
            for k in range(NF):
                if s < Ts[k]:                                  # inactive fanout lanes: harmless
                    sl = gx_list[k][s * b_tile:(s + 1) * b_tile]
                    gx = sl if gx is None else gx + sl
            gates = gx + jnp.dot(h.astype(jnp.bfloat16), w_hh,
                                 preferred_element_type=jnp.float32)   # (b, GW)
            # one dense tanh on all GW lanes; sigmoid lanes use 0.5*(tanh(z/2)+1)
            z = jnp.where(g_mask, gates, 0.5 * gates)
            t = jnp.tanh(z)
            act = jnp.where(g_mask, t, 0.5 * t + 0.5)
            i_g = act[:, 0 * HW:1 * HW]
            f_g = act[:, 1 * HW:2 * HW]
            g_g = act[:, 2 * HW:3 * HW]
            o_g = act[:, 3 * HW:4 * HW]
            c = f_g * c + i_g * g_g
            h = o_g * jnp.tanh(c)
            h_sum = h_sum + h
            # snapshot finished fanouts: mean over time, lanes already [mean_fwd | mean_bwd]
            for k in range(NF):
                if s == Ts[k] - 1:
                    embeds[k] = h_sum[:, k * 2 * H:(k + 1) * 2 * H] * (1.0 / Ts[k])

        # in_features == OUT_DIM -> seed-node embedding passes through unchanged.
        embed_list = embeds + [node]

        # ---- attention: VPU multiply + lane reduce (no 1-lane MXU results) ----
        att_w = att_w_ref[...]                                 # (1, 2*OUT_DIM) f32
        w_node = att_w[:, :OUT_DIM]
        w_emb = att_w[:, OUT_DIM:]
        att_b = att_b_ref[0, 0]                                # SMEM scalar
        s_node = jnp.sum(node * w_node, axis=1, keepdims=True)        # (b, 1)
        scores = []
        for emb in embed_list:
            sc = s_node + jnp.sum(emb * w_emb, axis=1, keepdims=True) + att_b
            scores.append(jnp.where(sc >= 0, sc, NEG_SLOPE * sc))     # leaky_relu
        m = scores[0]
        for sc in scores[1:]:
            m = jnp.maximum(m, sc)
        es = [jnp.exp(sc - m) for sc in scores]
        denom = es[0]
        for e in es[1:]:
            denom = denom + e
        inv = pl.reciprocal(denom, approx=True)                # EUP, no VALU divides
        out = jnp.zeros((b_tile, OUT_DIM), jnp.float32)
        for e, emb in zip(es, embed_list):
            out = out + (e * inv) * emb
        out_ref[...] = out

    return kernel


# ----------------------------------------------------------------------------
# Host-side weight packing (one-time layout transform, done outside the jit)
# ----------------------------------------------------------------------------
def pack_params(params):
    """torch-layout per-direction weights -> fused lane-dense kernel layout.

    Gate lane layout (GW = 128*NF lanes): gate-major blocks [i | f | g | o], each block
    HW = 32*NF lanes ordered [fanout0_fwd, fanout0_bwd, fanout1_fwd, fanout1_bwd, ...].
    Hidden/cell state uses the same HW-lane order, so W_hh is block-diagonal per
    (fanout, direction) and the per-fanout embedding is a contiguous 32-lane slice.
    """
    w_ih, w_hh, b, att_w, att_b = params   # (NF,2,F,4H), (NF,2,H,4H), (NF,2,1,4H), (2D,1), (1,1)
    w_ih = np.asarray(w_ih); w_hh = np.asarray(w_hh); b = np.asarray(b)
    NF = w_ih.shape[0]
    F = IN_FEATURES
    HW = 2 * H * NF
    GW = 4 * HW

    def col(gate, k, d):
        return gate * HW + k * 2 * H + d * H

    w_ih2 = np.zeros((NF, 2 * F, GW), np.float32)   # rows [x_fwd | x_bwd]
    w_hh2 = np.zeros((HW, GW), np.float32)          # block-diagonal recurrent weight
    b2 = np.zeros((1, GW), np.float32)
    for k in range(NF):
        for d in range(2):                           # 0 = fwd, 1 = bwd
            r0 = k * 2 * H + d * H
            for g in range(4):                       # torch gate order: i, f, g, o
                c0 = col(g, k, d)
                w_ih2[k, d * F:(d + 1) * F, c0:c0 + H] = w_ih[k, d, :, g * H:(g + 1) * H]
                w_hh2[r0:r0 + H, c0:c0 + H] = w_hh[k, d, :, g * H:(g + 1) * H]
                b2[0, c0:c0 + H] = b[k, d, 0, g * H:(g + 1) * H]
    att_w_row = np.asarray(att_w).T.astype(np.float32)            # (1, 2*OUT_DIM)
    return (jnp.asarray(w_ih2, jnp.bfloat16), jnp.asarray(w_hh2, jnp.bfloat16),
            jnp.asarray(b2, jnp.float32), jnp.asarray(att_w_row, jnp.float32),
            jnp.asarray(att_b, jnp.float32))


# ----------------------------------------------------------------------------
# Pallas wrapper
# ----------------------------------------------------------------------------
def _pick_b_tile(batch):
    # Single-TC chips (v5e/v6e): one big tile (no grid overhead, M=256 fills the MXU).
    # v7x megacore: keep >= 2 grid steps so the "parallel" axis can split across cores.
    try:
        kind = jax.devices()[0].device_kind.lower()
    except Exception:
        kind = ""
    single_tc = any(s in kind for s in ("v5e", "v5 lite", "v5lite", "v6e", "v6 lite", "v6lite"))
    bt = 256 if single_tc else 128
    bt = min(bt, batch)
    while batch % bt:
        bt //= 2
    return max(bt, 8)


def hetgnn_forward(node, neighbor_feats, packed_params, b_tile=None):
    """neighbor_feats[i]: (B * fanout_i, IN_FEATURES), flattened as in torch."""
    w_ih2, w_hh2, b2, att_w_row, att_b = packed_params
    bn = node.shape[0]
    if b_tile is None:
        b_tile = _pick_b_tile(bn)
    assert bn % b_tile == 0
    # Present neighbors as (fanout, B, F): lane-aligned (b_tile, F) slabs per timestep
    # (layout plumbing in the wrapper; kills in-kernel 32/64/96-lane sub-slices).
    neighs = [nf.reshape(bn, FANOUT_SIZES[k], IN_FEATURES).transpose(1, 0, 2)
              for k, nf in enumerate(neighbor_feats)]

    def full_spec(shape):   # whole array, constant index map -> resident across grid steps
        zeros = (0,) * len(shape)
        return pl.BlockSpec(shape, lambda i, _z=zeros: _z)

    in_specs = (
        [pl.BlockSpec((b_tile, IN_FEATURES), lambda i: (i, 0))]
        + [pl.BlockSpec((FANOUT_SIZES[k], b_tile, IN_FEATURES), lambda i: (0, i, 0))
           for k in range(NUM_FANOUTS)]
        + [full_spec(w_ih2.shape), full_spec(w_hh2.shape),
           full_spec(b2.shape), full_spec(att_w_row.shape),
           pl.BlockSpec((1, 1), lambda i: (0, 0),
                        memory_space=pltpu.MemorySpace.SMEM)]
    )
    return pl.pallas_call(
        _make_kernel(FANOUT_SIZES, b_tile),
        out_shape=jax.ShapeDtypeStruct((bn, OUT_DIM), jnp.float32),
        grid=(bn // b_tile,),
        in_specs=in_specs,
        out_specs=pl.BlockSpec((b_tile, OUT_DIM), lambda i: (i, 0)),
        compiler_params=pltpu.CompilerParams(
            dimension_semantics=("parallel",)),      # megacore sharding on v7x
    )(node, *neighs, w_ih2, w_hh2, b2, att_w_row, att_b)


# ----------------------------------------------------------------------------
# Pure-JAX reference mirroring the PyTorch forward (f32, HIGHEST precision)
# ----------------------------------------------------------------------------
def _lstm_direction_ref(get_x, T, w_ih, w_hh, b, reverse, bn):
    prec = jax.lax.Precision.HIGHEST
    h = jnp.zeros((bn, H), jnp.float32)
    c = jnp.zeros((bn, H), jnp.float32)
    outs = [None] * T
    ts = range(T - 1, -1, -1) if reverse else range(T)
    for t in ts:
        x = get_x(t)
        gates = (jnp.dot(x, w_ih, precision=prec, preferred_element_type=jnp.float32)
                 + jnp.dot(h, w_hh, precision=prec, preferred_element_type=jnp.float32)
                 + b)
        i_g = jax.nn.sigmoid(gates[:, 0 * H:1 * H])
        f_g = jax.nn.sigmoid(gates[:, 1 * H:2 * H])
        g_g = jnp.tanh(gates[:, 2 * H:3 * H])
        o_g = jax.nn.sigmoid(gates[:, 3 * H:4 * H])
        c = f_g * c + i_g * g_g
        h = o_g * jnp.tanh(c)
        outs[t] = h
    return outs


def hetgnn_reference(node, neighbor_feats, params):
    w_ih, w_hh, b, att_w, att_b = params
    bn = node.shape[0]
    embed_list = []
    for i, nf in enumerate(neighbor_feats):
        neigh = nf.reshape(bn, FANOUT_SIZES[i], IN_FEATURES)
        T = FANOUT_SIZES[i] + 1
        get_x = lambda t, _n=neigh: node if t == 0 else _n[:, t - 1, :]
        h_f = _lstm_direction_ref(get_x, T, w_ih[i, 0], w_hh[i, 0], b[i, 0], False, bn)
        h_b = _lstm_direction_ref(get_x, T, w_ih[i, 1], w_hh[i, 1], b[i, 1], True, bn)
        embed_list.append(jnp.concatenate([sum(h_f) / T, sum(h_b) / T], axis=1))
    embed_list.append(node)
    K = len(embed_list)
    emb = jnp.stack(embed_list, axis=1)                                   # (B, K, D)
    cat = jnp.concatenate(
        [jnp.broadcast_to(node[:, None, :], (bn, K, OUT_DIM)), emb], axis=-1)
    s = jnp.einsum('bkd,do->bko', cat, att_w,
                   precision=jax.lax.Precision.HIGHEST) + att_b[0, 0]
    s = jnp.where(s >= 0, s, NEG_SLOPE * s)
    attn = jax.nn.softmax(s, axis=1)                                      # (B, K, 1)
    return jnp.sum(attn * emb, axis=1)                                    # (B, D)


if __name__ == "__main__":
    key = jax.random.PRNGKey(0)
    ks = jax.random.split(key, 8)
    scale = float(1.0 / np.sqrt(H))

    # Deterministic synthetic parameters (shapes implied by HetGnnEncoder.__init__):
    #   2 x nn.LSTM(IN_FEATURES, OUT_DIM//2, bidirectional=True)  (transposed, b = b_ih+b_hh)
    #   nn.Linear(2*OUT_DIM, 1) attention layer
    w_ih = (scale * jax.random.normal(ks[0], (NUM_FANOUTS, 2, IN_FEATURES, 4 * H))
            ).astype(jnp.float32)
    w_hh = (scale * jax.random.normal(ks[1], (NUM_FANOUTS, 2, H, 4 * H))).astype(jnp.float32)
    bias = (scale * jax.random.normal(ks[2], (NUM_FANOUTS, 2, 1, 4 * H))).astype(jnp.float32)
    att_w = (0.1 * jax.random.normal(ks[3], (2 * OUT_DIM, 1))).astype(jnp.float32)
    att_b = (0.1 * jax.random.normal(ks[4], (1, 1))).astype(jnp.float32)
    params = (w_ih, w_hh, bias, att_w, att_b)
    packed = pack_params(params)     # one-time lane-dense fused weight layout (outside jit)

    # Inputs: samples[0][0] (seed nodes), samples[i+1][0] (flattened neighbor feats)
    node = jax.random.normal(ks[5], (B_TOTAL, IN_FEATURES), jnp.float32)
    neighbor_feats = [
        jax.random.normal(ks[6], (B_TOTAL * FANOUT_SIZES[0], IN_FEATURES), jnp.float32),
        jax.random.normal(ks[7], (B_TOTAL * FANOUT_SIZES[1], IN_FEATURES), jnp.float32),
    ]

    out = jax.jit(hetgnn_forward)(node, neighbor_feats, packed)
    out = jax.block_until_ready(out)

    # Kernel uses bf16 MXU inputs with f32 accumulation (+ approx reciprocal in softmax);
    # reference is full f32/HIGHEST, so tolerance is loosened accordingly.
    ref = hetgnn_reference(node, neighbor_feats, params)
    np.testing.assert_allclose(np.asarray(out), np.asarray(ref), rtol=5e-2, atol=2e-2)
    print("KERNEL_OK")
</pallas_src>

<mosaic_0001>
module attributes {stable_mosaic.version = 11 : i64} {
  func.func @kernel(%arg0: i32, %arg1: memref<128x32xf32, #tpu.memory_space<vmem>>, %arg2: memref<5x128x32xf32, #tpu.memory_space<vmem>>, %arg3: memref<3x128x32xf32, #tpu.memory_space<vmem>>, %arg4: memref<2x64x256xbf16, #tpu.memory_space<vmem>>, %arg5: memref<64x256xbf16, #tpu.memory_space<vmem>>, %arg6: memref<1x256xf32, #tpu.memory_space<vmem>>, %arg7: memref<1x64xf32, #tpu.memory_space<vmem>>, %arg8: memref<1x1xf32, #tpu.memory_space<smem>>, %arg9: memref<128x32xf32, #tpu.memory_space<vmem>>) attributes {dimension_semantics = [#tpu.dimension_semantics<parallel>], iteration_bounds = array<i64: 2>, scalar_prefetch = 0 : i64, scratch_operands = 0 : i64, tpu.core_type = #tpu.core_type<tc>, window_params = [{transform_indices = @transform_0, window_bounds = array<i64: 128, 32>}, {transform_indices = @transform_1, window_bounds = array<i64: 5, 128, 32>}, {transform_indices = @transform_2, window_bounds = array<i64: 3, 128, 32>}, {pipeline_mode = #tpu.pipeline_mode<synchronous>, transform_indices = @transform_3, window_bounds = array<i64: 2, 64, 256>}, {pipeline_mode = #tpu.pipeline_mode<synchronous>, transform_indices = @transform_4, window_bounds = array<i64: 64, 256>}, {pipeline_mode = #tpu.pipeline_mode<synchronous>, transform_indices = @transform_5, window_bounds = array<i64: 1, 256>}, {pipeline_mode = #tpu.pipeline_mode<synchronous>, transform_indices = @transform_6, window_bounds = array<i64: 1, 64>}, {transform_indices = @transform_7, window_bounds = array<i64: 1, 1>}, {transform_indices = @transform_8, window_bounds = array<i64: 128, 32>}]} {
    %c0 = arith.constant 0 : index
    %c0_0 = arith.constant 0 : index
    %0 = vector.load %arg1[%c0, %c0_0] : memref<128x32xf32, #tpu.memory_space<vmem>>, vector<128x32xf32>
    %1 = arith.truncf %0 : vector<128x32xf32> to vector<128x32xbf16>
    %c0_1 = arith.constant 0 : index
    %c0_2 = arith.constant 0 : index
    %2 = vector.load %arg5[%c0_1, %c0_2] : memref<64x256xbf16, #tpu.memory_space<vmem>>, vector<64x256xbf16>
    %c0_3 = arith.constant 0 : index
    %c0_4 = arith.constant 0 : index
    %3 = vector.load %arg6[%c0_3, %c0_4] : memref<1x256xf32, #tpu.memory_space<vmem>>, vector<1x256xf32>
    %c0_5 = arith.constant 0 : index
    %c0_6 = arith.constant 0 : index
    %c0_7 = arith.constant 0 : index
    %4 = vector.load %arg2[%c0_5, %c0_6, %c0_7] : memref<5x128x32xf32, #tpu.memory_space<vmem>>, vector<1x128x32xf32>
    %5 = vector.shape_cast %4 : vector<1x128x32xf32> to vector<128x32xf32>
    %6 = arith.truncf %5 : vector<128x32xf32> to vector<128x32xbf16>
    %c1 = arith.constant 1 : index
    %c0_8 = arith.constant 0 : index
    %c0_9 = arith.constant 0 : index
    %7 = vector.load %arg2[%c1, %c0_8, %c0_9] : memref<5x128x32xf32, #tpu.memory_space<vmem>>, vector<1x128x32xf32>
    %8 = vector.shape_cast %7 : vector<1x128x32xf32> to vector<128x32xf32>
    %9 = arith.truncf %8 : vector<128x32xf32> to vector<128x32xbf16>
    %c2 = arith.constant 2 : index
    %c0_10 = arith.constant 0 : index
    %c0_11 = arith.constant 0 : index
    %10 = vector.load %arg2[%c2, %c0_10, %c0_11] : memref<5x128x32xf32, #tpu.memory_space<vmem>>, vector<1x128x32xf32>
    %11 = vector.shape_cast %10 : vector<1x128x32xf32> to vector<128x32xf32>
    %12 = arith.truncf %11 : vector<128x32xf32> to vector<128x32xbf16>
    %c3 = arith.constant 3 : index
    %c0_12 = arith.constant 0 : index
    %c0_13 = arith.constant 0 : index
    %13 = vector.load %arg2[%c3, %c0_12, %c0_13] : memref<5x128x32xf32, #tpu.memory_space<vmem>>, vector<1x128x32xf32>
    %14 = vector.shape_cast %13 : vector<1x128x32xf32> to vector<128x32xf32>
    %15 = arith.truncf %14 : vector<128x32xf32> to vector<128x32xbf16>
    %c4 = arith.constant 4 : index
    %c0_14 = arith.constant 0 : index
    %c0_15 = arith.constant 0 : index
    %16 = vector.load %arg2[%c4, %c0_14, %c0_15] : memref<5x128x32xf32, #tpu.memory_space<vmem>>, vector<1x128x32xf32>
    %17 = vector.shape_cast %16 : vector<1x128x32xf32> to vector<128x32xf32>
    %18 = arith.truncf %17 : vector<128x32xf32> to vector<128x32xbf16>
    %19 = tpu.concatenate %1, %6, %9, %12, %15, %18 in 0 : vector<128x32xbf16>, vector<128x32xbf16>, vector<128x32xbf16>, vector<128x32xbf16>, vector<128x32xbf16>, vector<128x32xbf16> -> vector<768x32xbf16>
    %20 = tpu.concatenate %18, %15, %12, %9, %6, %1 in 0 : vector<128x32xbf16>, vector<128x32xbf16>, vector<128x32xbf16>, vector<128x32xbf16>, vector<128x32xbf16>, vector<128x32xbf16> -> vector<768x32xbf16>
    %21 = tpu.concatenate %19, %20 in 1 : vector<768x32xbf16>, vector<768x32xbf16> -> vector<768x64xbf16>
    %c0_16 = arith.constant 0 : index
    %c0_17 = arith.constant 0 : index
    %c0_18 = arith.constant 0 : index
    %22 = vector.load %arg4[%c0_16, %c0_17, %c0_18] : memref<2x64x256xbf16, #tpu.memory_space<vmem>>, vector<1x64x256xbf16>
    %23 = vector.shape_cast %22 : vector<1x64x256xbf16> to vector<64x256xbf16>
    %cst = arith.constant dense<0.000000e+00> : vector<768x256xf32>
    %24 = tpu.matmul %21, %23, %cst {dimension_numbers = #tpu.dot_dimension_numbers<[1], [0], [0], [1], [0, 0, 1, 1], [], []>} : vector<768x64xbf16>, vector<64x256xbf16>, vector<768x256xf32> -> vector<768x256xf32>
    %25 = vector.broadcast %3 : vector<1x256xf32> to vector<768x256xf32>
    %26 = arith.addf %24, %25 : vector<768x256xf32>
    %c0_19 = arith.constant 0 : index
    %c0_20 = arith.constant 0 : index
    %c0_21 = arith.constant 0 : index
    %27 = vector.load %arg3[%c0_19, %c0_20, %c0_21] : memref<3x128x32xf32, #tpu.memory_space<vmem>>, vector<1x128x32xf32>
    %28 = vector.shape_cast %27 : vector<1x128x32xf32> to vector<128x32xf32>
    %29 = arith.truncf %28 : vector<128x32xf32> to vector<128x32xbf16>
    %c1_22 = arith.constant 1 : index
    %c0_23 = arith.constant 0 : index
    %c0_24 = arith.constant 0 : index
    %30 = vector.load %arg3[%c1_22, %c0_23, %c0_24] : memref<3x128x32xf32, #tpu.memory_space<vmem>>, vector<1x128x32xf32>
    %31 = vector.shape_cast %30 : vector<1x128x32xf32> to vector<128x32xf32>
    %32 = arith.truncf %31 : vector<128x32xf32> to vector<128x32xbf16>
    %c2_25 = arith.constant 2 : index
    %c0_26 = arith.constant 0 : index
    %c0_27 = arith.constant 0 : index
    %33 = vector.load %arg3[%c2_25, %c0_26, %c0_27] : memref<3x128x32xf32, #tpu.memory_space<vmem>>, vector<1x128x32xf32>
    %34 = vector.shape_cast %33 : vector<1x128x32xf32> to vector<128x32xf32>
    %35 = arith.truncf %34 : vector<128x32xf32> to vector<128x32xbf16>
    %36 = tpu.concatenate %1, %29, %32, %35 in 0 : vector<128x32xbf16>, vector<128x32xbf16>, vector<128x32xbf16>, vector<128x32xbf16> -> vector<512x32xbf16>
    %37 = tpu.concatenate %35, %32, %29, %1 in 0 : vector<128x32xbf16>, vector<128x32xbf16>, vector<128x32xbf16>, vector<128x32xbf16> -> vector<512x32xbf16>
    %38 = tpu.concatenate %36, %37 in 1 : vector<512x32xbf16>, vector<512x32xbf16> -> vector<512x64xbf16>
    %c1_28 = arith.constant 1 : index
    %c0_29 = arith.constant 0 : index
    %c0_30 = arith.constant 0 : index
    %39 = vector.load %arg4[%c1_28, %c0_29, %c0_30] : memref<2x64x256xbf16, #tpu.memory_space<vmem>>, vector<1x64x256xbf16>
    %40 = vector.shape_cast %39 : vector<1x64x256xbf16> to vector<64x256xbf16>
    %cst_31 = arith.constant dense<0.000000e+00> : vector<512x256xf32>
    %41 = tpu.matmul %38, %40, %cst_31 {dimension_numbers = #tpu.dot_dimension_numbers<[1], [0], [0], [1], [0, 0, 1, 1], [], []>} : vector<512x64xbf16>, vector<64x256xbf16>, vector<512x256xf32> -> vector<512x256xf32>
    %42 = tpu.iota {dimensions = array<i32: 1>} : vector<128x256xi32>
    %c128_i32 = arith.constant 128 : i32
    %43 = vector.broadcast %c128_i32 : i32 to vector<128x256xi32>
    %44 = arith.cmpi sge, %42, %43 : vector<128x256xi32>
    %c192_i32 = arith.constant 192 : i32
    %45 = vector.broadcast %c192_i32 : i32 to vector<128x256xi32>
    %46 = arith.cmpi slt, %42, %45 : vector<128x256xi32>
    %47 = arith.andi %44, %46 : vector<128x256xi1>
    %cst_32 = arith.constant 0.000000e+00 : f32
    %48 = vector.broadcast %cst_32 : f32 to vector<128x64xf32>
    %cst_33 = arith.constant 0.000000e+00 : f32
    %49 = vector.broadcast %cst_33 : f32 to vector<128x64xf32>
    %cst_34 = arith.constant 0.000000e+00 : f32
    %50 = vector.broadcast %cst_34 : f32 to vector<128x64xf32>
    %51 = vector.extract_strided_slice %26 {offsets = [0, 0], sizes = [128, 256], strides = [1, 1]} : vector<768x256xf32> to vector<128x256xf32>
    %52 = vector.extract_strided_slice %41 {offsets = [0, 0], sizes = [128, 256], strides = [1, 1]} : vector<512x256xf32> to vector<128x256xf32>
    %53 = arith.addf %51, %52 : vector<128x256xf32>
    %54 = arith.truncf %48 : vector<128x64xf32> to vector<128x64xbf16>
    %cst_35 = arith.constant dense<0.000000e+00> : vector<128x256xf32>
    %55 = tpu.matmul %54, %2, %cst_35 {dimension_numbers = #tpu.dot_dimension_numbers<[1], [0], [0], [1], [0, 0, 1, 1], [], []>} : vector<128x64xbf16>, vector<64x256xbf16>, vector<128x256xf32> -> vector<128x256xf32>
    %56 = arith.addf %53, %55 : vector<128x256xf32>
    %cst_36 = arith.constant 5.000000e-01 : f32
    %57 = vector.broadcast %cst_36 : f32 to vector<128x256xf32>
    %58 = arith.mulf %57, %56 : vector<128x256xf32>
    %59 = arith.select %47, %56, %58 : vector<128x256xi1>, vector<128x256xf32>
    %60 = math.tanh %59 : vector<128x256xf32>
    %cst_37 = arith.constant 5.000000e-01 : f32
    %61 = vector.broadcast %cst_37 : f32 to vector<128x256xf32>
    %62 = arith.mulf %61, %60 : vector<128x256xf32>
    %cst_38 = arith.constant 5.000000e-01 : f32
    %63 = vector.broadcast %cst_38 : f32 to vector<128x256xf32>
    %64 = arith.addf %62, %63 : vector<128x256xf32>
    %65 = arith.select %47, %60, %64 : vector<128x256xi1>, vector<128x256xf32>
    %66 = vector.extract_strided_slice %65 {offsets = [0, 0], sizes = [128, 64], strides = [1, 1]} : vector<128x256xf32> to vector<128x64xf32>
    %67 = vector.extract_strided_slice %65 {offsets = [0, 64], sizes = [128, 64], strides = [1, 1]} : vector<128x256xf32> to vector<128x64xf32>
    %68 = vector.extract_strided_slice %65 {offsets = [0, 128], sizes = [128, 64], strides = [1, 1]} : vector<128x256xf32> to vector<128x64xf32>
    %69 = vector.extract_strided_slice %65 {offsets = [0, 192], sizes = [128, 64], strides = [1, 1]} : vector<128x256xf32> to vector<128x64xf32>
    %70 = arith.mulf %67, %49 : vector<128x64xf32>
    %71 = arith.mulf %66, %68 : vector<128x64xf32>
    %72 = arith.addf %70, %71 : vector<128x64xf32>
    %73 = math.tanh %72 : vector<128x64xf32>
    %74 = arith.mulf %69, %73 : vector<128x64xf32>
    %75 = arith.addf %50, %74 : vector<128x64xf32>
    %76 = vector.extract_strided_slice %26 {offsets = [128, 0], sizes = [128, 256], strides = [1, 1]} : vector<768x256xf32> to vector<128x256xf32>
    %77 = vector.extract_strided_slice %41 {offsets = [128, 0], sizes = [128, 256], strides = [1, 1]} : vector<512x256xf32> to vector<128x256xf32>
    %78 = arith.addf %76, %77 : vector<128x256xf32>
    %79 = arith.truncf %74 : vector<128x64xf32> to vector<128x64xbf16>
    %cst_39 = arith.constant dense<0.000000e+00> : vector<128x256xf32>
    %80 = tpu.matmul %79, %2, %cst_39 {dimension_numbers = #tpu.dot_dimension_numbers<[1], [0], [0], [1], [0, 0, 1, 1], [], []>} : vector<128x64xbf16>, vector<64x256xbf16>, vector<128x256xf32> -> vector<128x256xf32>
    %81 = arith.addf %78, %80 : vector<128x256xf32>
    %cst_40 = arith.constant 5.000000e-01 : f32
    %82 = vector.broadcast %cst_40 : f32 to vector<128x256xf32>
    %83 = arith.mulf %82, %81 : vector<128x256xf32>
    %84 = arith.select %47, %81, %83 : vector<128x256xi1>, vector<128x256xf32>
    %85 = math.tanh %84 : vector<128x256xf32>
    %cst_41 = arith.constant 5.000000e-01 : f32
    %86 = vector.broadcast %cst_41 : f32 to vector<128x256xf32>
    %87 = arith.mulf %86, %85 : vector<128x256xf32>
    %cst_42 = arith.constant 5.000000e-01 : f32
    %88 = vector.broadcast %cst_42 : f32 to vector<128x256xf32>
    %89 = arith.addf %87, %88 : vector<128x256xf32>
    %90 = arith.select %47, %85, %89 : vector<128x256xi1>, vector<128x256xf32>
    %91 = vector.extract_strided_slice %90 {offsets = [0, 0], sizes = [128, 64], strides = [1, 1]} : vector<128x256xf32> to vector<128x64xf32>
    %92 = vector.extract_strided_slice %90 {offsets = [0, 64], sizes = [128, 64], strides = [1, 1]} : vector<128x256xf32> to vector<128x64xf32>
    %93 = vector.extract_strided_slice %90 {offsets = [0, 128], sizes = [128, 64], strides = [1, 1]} : vector<128x256xf32> to vector<128x64xf32>
    %94 = vector.extract_strided_slice %90 {offsets = [0, 192], sizes = [128, 64], strides = [1, 1]} : vector<128x256xf32> to vector<128x64xf32>
    %95 = arith.mulf %92, %72 : vector<128x64xf32>
    %96 = arith.mulf %91, %93 : vector<128x64xf32>
    %97 = arith.addf %95, %96 : vector<128x64xf32>
    %98 = math.tanh %97 : vector<128x64xf32>
    %99 = arith.mulf %94, %98 : vector<128x64xf32>
    %100 = arith.addf %75, %99 : vector<128x64xf32>
    %101 = vector.extract_strided_slice %26 {offsets = [256, 0], sizes = [128, 256], strides = [1, 1]} : vector<768x256xf32> to vector<128x256xf32>
    %102 = vector.extract_strided_slice %41 {offsets = [256, 0], sizes = [128, 256], strides = [1, 1]} : vector<512x256xf32> to vector<128x256xf32>
    %103 = arith.addf %101, %102 : vector<128x256xf32>
    %104 = arith.truncf %99 : vector<128x64xf32> to vector<128x64xbf16>
    %cst_43 = arith.constant dense<0.000000e+00> : vector<128x256xf32>
    %105 = tpu.matmul %104, %2, %cst_43 {dimension_numbers = #tpu.dot_dimension_numbers<[1], [0], [0], [1], [0, 0, 1, 1], [], []>} : vector<128x64xbf16>, vector<64x256xbf16>, vector<128x256xf32> -> vector<128x256xf32>
    %106 = arith.addf %103, %105 : vector<128x256xf32>
    %cst_44 = arith.constant 5.000000e-01 : f32
    %107 = vector.broadcast %cst_44 : f32 to vector<128x256xf32>
    %108 = arith.mulf %107, %106 : vector<128x256xf32>
    %109 = arith.select %47, %106, %108 : vector<128x256xi1>, vector<128x256xf32>
    %110 = math.tanh %109 : vector<128x256xf32>
    %cst_45 = arith.constant 5.000000e-01 : f32
    %111 = vector.broadcast %cst_45 : f32 to vector<128x256xf32>
    %112 = arith.mulf %111, %110 : vector<128x256xf32>
    %cst_46 = arith.constant 5.000000e-01 : f32
    %113 = vector.broadcast %cst_46 : f32 to vector<128x256xf32>
    %114 = arith.addf %112, %113 : vector<128x256xf32>
    %115 = arith.select %47, %110, %114 : vector<128x256xi1>, vector<128x256xf32>
    %116 = vector.extract_strided_slice %115 {offsets = [0, 0], sizes = [128, 64], strides = [1, 1]} : vector<128x256xf32> to vector<128x64xf32>
    %117 = vector.extract_strided_slice %115 {offsets = [0, 64], sizes = [128, 64], strides = [1, 1]} : vector<128x256xf32> to vector<128x64xf32>
    %118 = vector.extract_strided_slice %115 {offsets = [0, 128], sizes = [128, 64], strides = [1, 1]} : vector<128x256xf32> to vector<128x64xf32>
    %119 = vector.extract_strided_slice %115 {offsets = [0, 192], sizes = [128, 64], strides = [1, 1]} : vector<128x256xf32> to vector<128x64xf32>
    %120 = arith.mulf %117, %97 : vector<128x64xf32>
    %121 = arith.mulf %116, %118 : vector<128x64xf32>
    %122 = arith.addf %120, %121 : vector<128x64xf32>
    %123 = math.tanh %122 : vector<128x64xf32>
    %124 = arith.mulf %119, %123 : vector<128x64xf32>
    %125 = arith.addf %100, %124 : vector<128x64xf32>
    %126 = vector.extract_strided_slice %26 {offsets = [384, 0], sizes = [128, 256], strides = [1, 1]} : vector<768x256xf32> to vector<128x256xf32>
    %127 = vector.extract_strided_slice %41 {offsets = [384, 0], sizes = [128, 256], strides = [1, 1]} : vector<512x256xf32> to vector<128x256xf32>
    %128 = arith.addf %126, %127 : vector<128x256xf32>
    %129 = arith.truncf %124 : vector<128x64xf32> to vector<128x64xbf16>
    %cst_47 = arith.constant dense<0.000000e+00> : vector<128x256xf32>
    %130 = tpu.matmul %129, %2, %cst_47 {dimension_numbers = #tpu.dot_dimension_numbers<[1], [0], [0], [1], [0, 0, 1, 1], [], []>} : vector<128x64xbf16>, vector<64x256xbf16>, vector<128x256xf32> -> vector<128x256xf32>
    %131 = arith.addf %128, %130 : vector<128x256xf32>
    %cst_48 = arith.constant 5.000000e-01 : f32
    %132 = vector.broadcast %cst_48 : f32 to vector<128x256xf32>
    %133 = arith.mulf %132, %131 : vector<128x256xf32>
    %134 = arith.select %47, %131, %133 : vector<128x256xi1>, vector<128x256xf32>
    %135 = math.tanh %134 : vector<128x256xf32>
    %cst_49 = arith.constant 5.000000e-01 : f32
    %136 = vector.broadcast %cst_49 : f32 to vector<128x256xf32>
    %137 = arith.mulf %136, %135 : vector<128x256xf32>
    %cst_50 = arith.constant 5.000000e-01 : f32
    %138 = vector.broadcast %cst_50 : f32 to vector<128x256xf32>
    %139 = arith.addf %137, %138 : vector<128x256xf32>
    %140 = arith.select %47, %135, %139 : vector<128x256xi1>, vector<128x256xf32>
    %141 = vector.extract_strided_slice %140 {offsets = [0, 0], sizes = [128, 64], strides = [1, 1]} : vector<128x256xf32> to vector<128x64xf32>
    %142 = vector.extract_strided_slice %140 {offsets = [0, 64], sizes = [128, 64], strides = [1, 1]} : vector<128x256xf32> to vector<128x64xf32>
    %143 = vector.extract_strided_slice %140 {offsets = [0, 128], sizes = [128, 64], strides = [1, 1]} : vector<128x256xf32> to vector<128x64xf32>
    %144 = vector.extract_strided_slice %140 {offsets = [0, 192], sizes = [128, 64], strides = [1, 1]} : vector<128x256xf32> to vector<128x64xf32>
    %145 = arith.mulf %142, %122 : vector<128x64xf32>
    %146 = arith.mulf %141, %143 : vector<128x64xf32>
    %147 = arith.addf %145, %146 : vector<128x64xf32>
    %148 = math.tanh %147 : vector<128x64xf32>
    %149 = arith.mulf %144, %148 : vector<128x64xf32>
    %150 = arith.addf %125, %149 : vector<128x64xf32>
    %151 = vector.extract_strided_slice %150 {offsets = [0, 32], sizes = [128, 32], strides = [1, 1]} : vector<128x64xf32> to vector<128x32xf32>
    %cst_51 = arith.constant 2.500000e-01 : f32
    %152 = vector.broadcast %cst_51 : f32 to vector<128x32xf32>
    %153 = arith.mulf %151, %152 : vector<128x32xf32>
    %154 = vector.extract_strided_slice %26 {offsets = [512, 0], sizes = [128, 256], strides = [1, 1]} : vector<768x256xf32> to vector<128x256xf32>
    %155 = arith.truncf %149 : vector<128x64xf32> to vector<128x64xbf16>
    %cst_52 = arith.constant dense<0.000000e+00> : vector<128x256xf32>
    %156 = tpu.matmul %155, %2, %cst_52 {dimension_numbers = #tpu.dot_dimension_numbers<[1], [0], [0], [1], [0, 0, 1, 1], [], []>} : vector<128x64xbf16>, vector<64x256xbf16>, vector<128x256xf32> -> vector<128x256xf32>
    %157 = arith.addf %154, %156 : vector<128x256xf32>
    %cst_53 = arith.constant 5.000000e-01 : f32
    %158 = vector.broadcast %cst_53 : f32 to vector<128x256xf32>
    %159 = arith.mulf %158, %157 : vector<128x256xf32>
    %160 = arith.select %47, %157, %159 : vector<128x256xi1>, vector<128x256xf32>
    %161 = math.tanh %160 : vector<128x256xf32>
    %cst_54 = arith.constant 5.000000e-01 : f32
    %162 = vector.broadcast %cst_54 : f32 to vector<128x256xf32>
    %163 = arith.mulf %162, %161 : vector<128x256xf32>
    %cst_55 = arith.constant 5.000000e-01 : f32
    %164 = vector.broadcast %cst_55 : f32 to vector<128x256xf32>
    %165 = arith.addf %163, %164 : vector<128x256xf32>
    %166 = arith.select %47, %161, %165 : vector<128x256xi1>, vector<128x256xf32>
    %167 = vector.extract_strided_slice %166 {offsets = [0, 0], sizes = [128, 64], strides = [1, 1]} : vector<128x256xf32> to vector<128x64xf32>
    %168 = vector.extract_strided_slice %166 {offsets = [0, 64], sizes = [128, 64], strides = [1, 1]} : vector<128x256xf32> to vector<128x64xf32>
    %169 = vector.extract_strided_slice %166 {offsets = [0, 128], sizes = [128, 64], strides = [1, 1]} : vector<128x256xf32> to vector<128x64xf32>
    %170 = vector.extract_strided_slice %166 {offsets = [0, 192], sizes = [128, 64], strides = [1, 1]} : vector<128x256xf32> to vector<128x64xf32>
    %171 = arith.mulf %168, %147 : vector<128x64xf32>
    %172 = arith.mulf %167, %169 : vector<128x64xf32>
    %173 = arith.addf %171, %172 : vector<128x64xf32>
    %174 = math.tanh %173 : vector<128x64xf32>
    %175 = arith.mulf %170, %174 : vector<128x64xf32>
    %176 = arith.addf %150, %175 : vector<128x64xf32>
    %177 = vector.extract_strided_slice %26 {offsets = [640, 0], sizes = [128, 256], strides = [1, 1]} : vector<768x256xf32> to vector<128x256xf32>
    %178 = arith.truncf %175 : vector<128x64xf32> to vector<128x64xbf16>
    %cst_56 = arith.constant dense<0.000000e+00> : vector<128x256xf32>
    %179 = tpu.matmul %178, %2, %cst_56 {dimension_numbers = #tpu.dot_dimension_numbers<[1], [0], [0], [1], [0, 0, 1, 1], [], []>} : vector<128x64xbf16>, vector<64x256xbf16>, vector<128x256xf32> -> vector<128x256xf32>
    %180 = arith.addf %177, %179 : vector<128x256xf32>
    %cst_57 = arith.constant 5.000000e-01 : f32
    %181 = vector.broadcast %cst_57 : f32 to vector<128x256xf32>
    %182 = arith.mulf %181, %180 : vector<128x256xf32>
    %183 = arith.select %47, %180, %182 : vector<128x256xi1>, vector<128x256xf32>
    %184 = math.tanh %183 : vector<128x256xf32>
    %cst_58 = arith.constant 5.000000e-01 : f32
    %185 = vector.broadcast %cst_58 : f32 to vector<128x256xf32>
    %186 = arith.mulf %185, %184 : vector<128x256xf32>
    %cst_59 = arith.constant 5.000000e-01 : f32
    %187 = vector.broadcast %cst_59 : f32 to vector<128x256xf32>
    %188 = arith.addf %186, %187 : vector<128x256xf32>
    %189 = arith.select %47, %184, %188 : vector<128x256xi1>, vector<128x256xf32>
    %190 = vector.extract_strided_slice %189 {offsets = [0, 0], sizes = [128, 64], strides = [1, 1]} : vector<128x256xf32> to vector<128x64xf32>
    %191 = vector.extract_strided_slice %189 {offsets = [0, 64], sizes = [128, 64], strides = [1, 1]} : vector<128x256xf32> to vector<128x64xf32>
    %192 = vector.extract_strided_slice %189 {offsets = [0, 128], sizes = [128, 64], strides = [1, 1]} : vector<128x256xf32> to vector<128x64xf32>
    %193 = vector.extract_strided_slice %189 {offsets = [0, 192], sizes = [128, 64], strides = [1, 1]} : vector<128x256xf32> to vector<128x64xf32>
    %194 = arith.mulf %191, %173 : vector<128x64xf32>
    %195 = arith.mulf %190, %192 : vector<128x64xf32>
    %196 = arith.addf %194, %195 : vector<128x64xf32>
    %197 = math.tanh %196 : vector<128x64xf32>
    %198 = arith.mulf %193, %197 : vector<128x64xf32>
    %199 = arith.addf %176, %198 : vector<128x64xf32>
    %200 = vector.extract_strided_slice %199 {offsets = [0, 0], sizes = [128, 32], strides = [1, 1]} : vector<128x64xf32> to vector<128x32xf32>
    %cst_60 = arith.constant 0.166666672 : f32
    %201 = vector.broadcast %cst_60 : f32 to vector<128x32xf32>
    %202 = arith.mulf %200, %201 : vector<128x32xf32>
    %c0_61 = arith.constant 0 : index
    %c0_62 = arith.constant 0 : index
    %203 = vector.load %arg7[%c0_61, %c0_62] : memref<1x64xf32, #tpu.memory_space<vmem>>, vector<1x64xf32>
    %204 = vector.extract_strided_slice %203 {offsets = [0, 0], sizes = [1, 32], strides = [1, 1]} : vector<1x64xf32> to vector<1x32xf32>
    %205 = vector.extract_strided_slice %203 {offsets = [0, 32], sizes = [1, 32], strides = [1, 1]} : vector<1x64xf32> to vector<1x32xf32>
    %c0_63 = arith.constant 0 : index
    %c0_64 = arith.constant 0 : index
    %206 = memref.load %arg8[%c0_63, %c0_64] : memref<1x1xf32, #tpu.memory_space<smem>>
    %207 = vector.broadcast %204 : vector<1x32xf32> to vector<128x32xf32>
    %208 = arith.mulf %0, %207 : vector<128x32xf32>
    %cst_65 = arith.constant dense<0.000000e+00> : vector<128xf32>
    %209 = vector.multi_reduction <add>, %208, %cst_65 [1] : vector<128x32xf32> to vector<128xf32>
    %210 = vector.shape_cast %209 : vector<128xf32> to vector<128x1xf32>
    %211 = vector.broadcast %205 : vector<1x32xf32> to vector<128x32xf32>
    %212 = arith.mulf %202, %211 : vector<128x32xf32>
    %cst_66 = arith.constant dense<0.000000e+00> : vector<128xf32>
    %213 = vector.multi_reduction <add>, %212, %cst_66 [1] : vector<128x32xf32> to vector<128xf32>
    %214 = vector.shape_cast %213 : vector<128xf32> to vector<128x1xf32>
    %215 = arith.addf %210, %214 : vector<128x1xf32>
    %216 = vector.broadcast %206 : f32 to vector<128x1xf32>
    %217 = arith.addf %215, %216 : vector<128x1xf32>
    %cst_67 = arith.constant 0.000000e+00 : f32
    %218 = vector.broadcast %cst_67 : f32 to vector<128x1xf32>
    %219 = arith.cmpf oge, %217, %218 : vector<128x1xf32>
    %cst_68 = arith.constant 0.00999999977 : f32
    %220 = vector.broadcast %cst_68 : f32 to vector<128x1xf32>
    %221 = arith.mulf %220, %217 : vector<128x1xf32>
    %222 = arith.select %219, %217, %221 : vector<128x1xi1>, vector<128x1xf32>
    %223 = vector.broadcast %205 : vector<1x32xf32> to vector<128x32xf32>
    %224 = arith.mulf %153, %223 : vector<128x32xf32>
    %cst_69 = arith.constant dense<0.000000e+00> : vector<128xf32>
    %225 = vector.multi_reduction <add>, %224, %cst_69 [1] : vector<128x32xf32> to vector<128xf32>
    %226 = vector.shape_cast %225 : vector<128xf32> to vector<128x1xf32>
    %227 = arith.addf %210, %226 : vector<128x1xf32>
    %228 = vector.broadcast %206 : f32 to vector<128x1xf32>
    %229 = arith.addf %227, %228 : vector<128x1xf32>
    %cst_70 = arith.constant 0.000000e+00 : f32
    %230 = vector.broadcast %cst_70 : f32 to vector<128x1xf32>
    %231 = arith.cmpf oge, %229, %230 : vector<128x1xf32>
    %cst_71 = arith.constant 0.00999999977 : f32
    %232 = vector.broadcast %cst_71 : f32 to vector<128x1xf32>
    %233 = arith.mulf %232, %229 : vector<128x1xf32>
    %234 = arith.select %231, %229, %233 : vector<128x1xi1>, vector<128x1xf32>
    %235 = vector.broadcast %205 : vector<1x32xf32> to vector<128x32xf32>
    %236 = arith.mulf %0, %235 : vector<128x32xf32>
    %cst_72 = arith.constant dense<0.000000e+00> : vector<128xf32>
    %237 = vector.multi_reduction <add>, %236, %cst_72 [1] : vector<128x32xf32> to vector<128xf32>
    %238 = vector.shape_cast %237 : vector<128xf32> to vector<128x1xf32>
    %239 = arith.addf %210, %238 : vector<128x1xf32>
    %240 = vector.broadcast %206 : f32 to vector<128x1xf32>
    %241 = arith.addf %239, %240 : vector<128x1xf32>
    %cst_73 = arith.constant 0.000000e+00 : f32
    %242 = vector.broadcast %cst_73 : f32 to vector<128x1xf32>
    %243 = arith.cmpf oge, %241, %242 : vector<128x1xf32>
    %cst_74 = arith.constant 0.00999999977 : f32
    %244 = vector.broadcast %cst_74 : f32 to vector<128x1xf32>
    %245 = arith.mulf %244, %241 : vector<128x1xf32>
    %246 = arith.select %243, %241, %245 : vector<128x1xi1>, vector<128x1xf32>
    %247 = arith.maximumf %222, %234 : vector<128x1xf32>
    %248 = arith.maximumf %247, %246 : vector<128x1xf32>
    %249 = arith.subf %222, %248 : vector<128x1xf32>
    %250 = math.exp %249 : vector<128x1xf32>
    %251 = arith.subf %234, %248 : vector<128x1xf32>
    %252 = math.exp %251 : vector<128x1xf32>
    %253 = arith.subf %246, %248 : vector<128x1xf32>
    %254 = math.exp %253 : vector<128x1xf32>
    %255 = arith.addf %250, %252 : vector<128x1xf32>
    %256 = arith.addf %255, %254 : vector<128x1xf32>
    %257 = tpu.reciprocal %256 {approx = true} : vector<128x1xf32> -> vector<128x1xf32>
    %cst_75 = arith.constant 0.000000e+00 : f32
    %258 = vector.broadcast %cst_75 : f32 to vector<128x32xf32>
    %259 = arith.mulf %250, %257 : vector<128x1xf32>
    %260 = vector.broadcast %259 : vector<128x1xf32> to vector<128x32xf32>
    %261 = arith.mulf %260, %202 : vector<128x32xf32>
    %262 = arith.addf %258, %261 : vector<128x32xf32>
    %263 = arith.mulf %252, %257 : vector<128x1xf32>
    %264 = vector.broadcast %263 : vector<128x1xf32> to vector<128x32xf32>
    %265 = arith.mulf %264, %153 : vector<128x32xf32>
    %266 = arith.addf %262, %265 : vector<128x32xf32>
    %267 = arith.mulf %254, %257 : vector<128x1xf32>
    %268 = vector.broadcast %267 : vector<128x1xf32> to vector<128x32xf32>
    %269 = arith.mulf %268, %0 : vector<128x32xf32>
    %270 = arith.addf %266, %269 : vector<128x32xf32>
    %c0_76 = arith.constant 0 : index
    %c0_77 = arith.constant 0 : index
    %271 = vector.load %arg9[%c0_76, %c0_77] : memref<128x32xf32, #tpu.memory_space<vmem>>, vector<128x32xf32>
    tpu.vector_store %arg9[%c0_76, %c0_77], %270 {strides = array<i32>} : memref<128x32xf32, #tpu.memory_space<vmem>>, vector<128x32xf32>,
    return
  }
  func.func @transform_0(%arg0: i32) -> (i32, i32) {
    %c0_i32 = arith.constant 0 : i32
    %c0_i32_0 = arith.constant 0 : i32
    return %arg0, %c0_i32 : i32, i32
  }
  func.func @transform_1(%arg0: i32) -> (i32, i32, i32) {
    %c0_i32 = arith.constant 0 : i32
    %c0_i32_0 = arith.constant 0 : i32
    %c0_i32_1 = arith.constant 0 : i32
    return %c0_i32, %arg0, %c0_i32_0 : i32, i32, i32
  }
  func.func @transform_2(%arg0: i32) -> (i32, i32, i32) {
    %c0_i32 = arith.constant 0 : i32
    %c0_i32_0 = arith.constant 0 : i32
    %c0_i32_1 = arith.constant 0 : i32
    return %c0_i32, %arg0, %c0_i32_0 : i32, i32, i32
  }
  func.func @transform_3(%arg0: i32) -> (i32, i32, i32) {
    %c0_i32 = arith.constant 0 : i32
    %c0_i32_0 = arith.constant 0 : i32
    %c0_i32_1 = arith.constant 0 : i32
    %c0_i32_2 = arith.constant 0 : i32
    return %c0_i32, %c0_i32_0, %c0_i32_1 : i32, i32, i32
  }
  func.func @transform_4(%arg0: i32) -> (i32, i32) {
    %c0_i32 = arith.constant 0 : i32
    %c0_i32_0 = arith.constant 0 : i32
    %c0_i32_1 = arith.constant 0 : i32
    return %c0_i32, %c0_i32_0 : i32, i32
  }
  func.func @transform_5(%arg0: i32) -> (i32, i32) {
    %c0_i32 = arith.constant 0 : i32
    %c0_i32_0 = arith.constant 0 : i32
    %c0_i32_1 = arith.constant 0 : i32
    return %c0_i32, %c0_i32_0 : i32, i32
  }
  func.func @transform_6(%arg0: i32) -> (i32, i32) {
    %c0_i32 = arith.constant 0 : i32
    %c0_i32_0 = arith.constant 0 : i32
    %c0_i32_1 = arith.constant 0 : i32
    return %c0_i32, %c0_i32_0 : i32, i32
  }
  func.func @transform_7(%arg0: i32) -> (i32, i32) {
    %c0_i32 = arith.constant 0 : i32
    %c0_i32_0 = arith.constant 0 : i32
    %c0_i32_1 = arith.constant 0 : i32
    return %c0_i32, %c0_i32_0 : i32, i32
  }
  func.func @transform_8(%arg0: i32) -> (i32, i32) {
    %c0_i32 = arith.constant 0 : i32
    %c0_i32_0 = arith.constant 0 : i32
    return %arg0, %c0_i32 : i32, i32
  }
}

</mosaic_0001>

<llo_original>
// kernel: hetgnn_forward.1
$region0: #{hetgnn_forward.1}
  #allocation0 [shape = 'u32[]', space=smem, size = 0x4, offset = 0x4, fixed_abs, tag = 'smem constant byte address 0x4 - core index']
  #allocation1 [shape = 'u32[144,128]{1,0:T(1,128)}', space=vmem, size = 0x12000, scoped, tag = 'internal scratch']
  #allocation2 [shape = 'f32[1,1]{1,0:T(1,128)S(6)}', space=smem, size = 0x200, scoped, tag = 'scoped memory for hetgnn_forward.1']
  %s0 = inlined_call_operand.vmem [shape: f32[256,32], index: 0, kind: input, shape index: {}]
  %s1 = inlined_call_operand.vmem [shape: f32[5,256,32], index: 1, kind: input, shape index: {}]
  %s2 = inlined_call_operand.vmem [shape: f32[3,256,32], index: 2, kind: input, shape index: {}]
  %s3 = inlined_call_operand.vmem [shape: bf16[2,64,256], index: 3, kind: input, shape index: {}]
  %s4 = inlined_call_operand.vmem [shape: bf16[64,256], index: 4, kind: input, shape index: {}]
  %s5 = inlined_call_operand.vmem [shape: f32[1,256], index: 5, kind: input, shape index: {}]
  %s6 = inlined_call_operand.vmem [shape: f32[1,64], index: 6, kind: input, shape index: {}]
  %s7 = inlined_call_operand.<no memory space> [shape: f32[1,1], index: 7, kind: input, shape index: {}]
  %s8 = inlined_call_operand.vmem [shape: f32[256,32], index: 8, kind: output, shape index: {}]
  %s9 = sld [smem:[#allocation0]]
  $region141: #{hetgnn_forward.1} parent=0
    _
  %s11 = ssub.s32 1, %s9
  %s12 = scalar_select 0, %s11, %s9
  %13 = sst [smem:[#allocation2]] %s7
  $region1: #{hetgnn_forward.1} parent=0
    #allocation3 [shape = 'u8[655360]{0}', space=vmem, size = 0xa0000, scoped, tag = 'input window, operand 1']
    #allocation4 [shape = 'u8[393216]{0}', space=vmem, size = 0x60000, scoped, tag = 'input window, operand 2']
    loop: start=0, step=1, limit=4
    $region2: #{hetgnn_forward.1} parent=1 // loop_pre_header
      _
    $region3: #{hetgnn_forward.1} parent=1 // loop_header
      %s15 = sphi 0, %s19
      %p16 = scmp.ge.s32.totalorder %s15, 4
      %s25 = sphi 0, %s27
      %s28 = sphi 0, %s25
      %s29 = sphi 0, %s28
      %s45 = sphi 0, %s29
      %s51 = sphi 0, %s53
      %s54 = sphi 0, %s51
      %s55 = sphi 0, %s54
      %s71 = sphi 0, %s55
      %s77 = sphi 0, %s79
      %s80 = sphi 0, %s77
      %s81 = sphi 0, %s80
      %s97 = sphi 0, %s81
      %s101 = sphi 0, %s101
      %s103 = sphi 0, %s101
      %s104 = sphi 0, %s103
      %s118 = sphi 0, %s104
      %s122 = sphi 0, %s122
      %s124 = sphi 0, %s122
      %s125 = sphi 0, %s124
      %s139 = sphi 0, %s125
      %s143 = sphi 0, %s143
      %s145 = sphi 0, %s143
      %s146 = sphi 0, %s145
      %s160 = sphi 0, %s146
      %s164 = sphi 0, %s164
      %s166 = sphi 0, %s164
      %s167 = sphi 0, %s166
      %s181 = sphi 0, %s167
      %s185 = sphi 0, %s185
      %s187 = sphi 0, %s185
      %s188 = sphi 0, %s187
      %s202 = sphi 0, %s188
      %s208 = sphi 0, %s210
      %s211 = sphi 0, %s208
      %s212 = sphi 0, %s211
      %s228 = sphi 0, %s212
    $region4: #{hetgnn_forward.1} parent=1 // loop_header_branch
      %18 = sbr.rel (%p16) target = $region8
    $region5: #{hetgnn_forward.1} parent=1 // loop_body
      %s20 = ssub.s32 %s15, 1
      %s21 = ssub.s32 %s15, 2
      %s22 = sadd.s32 %s15, 1
      %s23 = ssub.s32 %s15, %s22
      %p24 = scmp.eq.s32.totalorder %s23, 0
      %s26 = sadd.s32 %s25, 1
      %s27 = scalar_select %p24, %s25, %s26
      %p30 = pneg %p24
      %p31 = scmp.eq.s32.totalorder %s15, 1
      %p32 = por %p30, %p31
      %p33 = scmp.ne.s32.totalorder %s25, %s28
      %p34 = scmp.eq.s32.totalorder %s15, 0
      %p35 = por %p33, %p34
      %p36 = scmp.ne.s32.totalorder %s25, %s28
      %p37 = scmp.eq.s32.totalorder %s20, 1
      %p38 = por %p36, %p37
      %p39 = scmp.ne.s32.totalorder %s28, %s29
      %p40 = scmp.eq.s32.totalorder %s20, 0
      %p41 = por %p39, %p40
      %p42 = scmp.ne.s32.totalorder %s28, %s29
      %p43 = scmp.eq.s32.totalorder %s21, 1
      %p44 = por %p42, %p43
      %p46 = scmp.ne.s32.totalorder %s29, %s45
      %p47 = scmp.eq.s32.totalorder %s21, 0
      %p48 = por %p46, %p47
      %s49 = ssub.s32 %s15, %s22
      %p50 = scmp.eq.s32.totalorder %s49, 0
      %s52 = sadd.s32 %s51, 1
      %s53 = scalar_select %p50, %s51, %s52
      %p56 = pneg %p50
      %p57 = scmp.eq.s32.totalorder %s15, 1
      %p58 = por %p56, %p57
      %p59 = scmp.ne.s32.totalorder %s51, %s54
      %p60 = scmp.eq.s32.totalorder %s15, 0
      %p61 = por %p59, %p60
      %p62 = scmp.ne.s32.totalorder %s51, %s54
      %p63 = scmp.eq.s32.totalorder %s20, 1
      %p64 = por %p62, %p63
      %p65 = scmp.ne.s32.totalorder %s54, %s55
      %p66 = scmp.eq.s32.totalorder %s20, 0
      %p67 = por %p65, %p66
      %p68 = scmp.ne.s32.totalorder %s54, %s55
      %p69 = scmp.eq.s32.totalorder %s21, 1
      %p70 = por %p68, %p69
      %p72 = scmp.ne.s32.totalorder %s55, %s71
      %p73 = scmp.eq.s32.totalorder %s21, 0
      %p74 = por %p72, %p73
      %s75 = ssub.s32 %s15, %s22
      %p76 = scmp.eq.s32.totalorder %s75, 0
      %s78 = sadd.s32 %s77, 1
      %s79 = scalar_select %p76, %s77, %s78
      %p82 = pneg %p76
      %p83 = scmp.eq.s32.totalorder %s15, 1
      %p84 = por %p82, %p83
      %p85 = scmp.ne.s32.totalorder %s77, %s80
      %p86 = scmp.eq.s32.totalorder %s15, 0
      %p87 = por %p85, %p86
      %p88 = scmp.ne.s32.totalorder %s77, %s80
      %p89 = scmp.eq.s32.totalorder %s20, 1
      %p90 = por %p88, %p89
      %p91 = scmp.ne.s32.totalorder %s80, %s81
      %p92 = scmp.eq.s32.totalorder %s20, 0
      %p93 = por %p91, %p92
      %p94 = scmp.ne.s32.totalorder %s80, %s81
      %p95 = scmp.eq.s32.totalorder %s21, 1
      %p96 = por %p94, %p95
      %p98 = scmp.ne.s32.totalorder %s81, %s97
      %p99 = scmp.eq.s32.totalorder %s21, 0
      %p100 = por %p98, %p99
      %s102 = sadd.s32 %s101, 1
      %p105 = scmp.eq.s32.totalorder %s15, 1
      %p106 = scmp.ne.s32.totalorder %s101, %s103
      %p107 = scmp.eq.s32.totalorder %s15, 0
      %p108 = por %p106, %p107
      %p109 = scmp.ne.s32.totalorder %s101, %s103
      %p110 = scmp.eq.s32.totalorder %s20, 1
      %p111 = por %p109, %p110
      %p112 = scmp.ne.s32.totalorder %s103, %s104
      %p113 = scmp.eq.s32.totalorder %s20, 0
      %p114 = por %p112, %p113
      %p115 = scmp.ne.s32.totalorder %s103, %s104
      %p116 = scmp.eq.s32.totalorder %s21, 1
      %p117 = por %p115, %p116
      %p119 = scmp.ne.s32.totalorder %s104, %s118
      %p120 = scmp.eq.s32.totalorder %s21, 0
      %p121 = por %p119, %p120
      %s123 = sadd.s32 %s122, 1
      %p126 = scmp.eq.s32.totalorder %s15, 1
      %p127 = scmp.ne.s32.totalorder %s122, %s124
      %p128 = scmp.eq.s32.totalorder %s15, 0
      %p129 = por %p127, %p128
      %p130 = scmp.ne.s32.totalorder %s122, %s124
      %p131 = scmp.eq.s32.totalorder %s20, 1
      %p132 = por %p130, %p131
      %p133 = scmp.ne.s32.totalorder %s124, %s125
      %p134 = scmp.eq.s32.totalorder %s20, 0
      %p135 = por %p133, %p134
      %p136 = scmp.ne.s32.totalorder %s124, %s125
      %p137 = scmp.eq.s32.totalorder %s21, 1
      %p138 = por %p136, %p137
      %p140 = scmp.ne.s32.totalorder %s125, %s139
      %p141 = scmp.eq.s32.totalorder %s21, 0
      %p142 = por %p140, %p141
      %s144 = sadd.s32 %s143, 1
      %p147 = scmp.eq.s32.totalorder %s15, 1
      %p148 = scmp.ne.s32.totalorder %s143, %s145
      %p149 = scmp.eq.s32.totalorder %s15, 0
      %p150 = por %p148, %p149
      %p151 = scmp.ne.s32.totalorder %s143, %s145
      %p152 = scmp.eq.s32.totalorder %s20, 1
      %p153 = por %p151, %p152
      %p154 = scmp.ne.s32.totalorder %s145, %s146
      %p155 = scmp.eq.s32.totalorder %s20, 0
      %p156 = por %p154, %p155
      %p157 = scmp.ne.s32.totalorder %s145, %s146
      %p158 = scmp.eq.s32.totalorder %s21, 1
      %p159 = por %p157, %p158
      %p161 = scmp.ne.s32.totalorder %s146, %s160
      %p162 = scmp.eq.s32.totalorder %s21, 0
      %p163 = por %p161, %p162
      %s165 = sadd.s32 %s164, 1
      %p168 = scmp.eq.s32.totalorder %s15, 1
      %p169 = scmp.ne.s32.totalorder %s164, %s166
      %p170 = scmp.eq.s32.totalorder %s15, 0
      %p171 = por %p169, %p170
      %p172 = scmp.ne.s32.totalorder %s164, %s166
      %p173 = scmp.eq.s32.totalorder %s20, 1
      %p174 = por %p172, %p173
      %p175 = scmp.ne.s32.totalorder %s166, %s167
      %p176 = scmp.eq.s32.totalorder %s20, 0
      %p177 = por %p175, %p176
      %p178 = scmp.ne.s32.totalorder %s166, %s167
      %p179 = scmp.eq.s32.totalorder %s21, 1
      %p180 = por %p178, %p179
      %p182 = scmp.ne.s32.totalorder %s167, %s181
      %p183 = scmp.eq.s32.totalorder %s21, 0
      %p184 = por %p182, %p183
      %s186 = sadd.s32 %s185, 1
      %p189 = scmp.eq.s32.totalorder %s15, 1
      %p190 = scmp.ne.s32.totalorder %s185, %s187
      %p191 = scmp.eq.s32.totalorder %s15, 0
      %p192 = por %p190, %p191
      %p193 = scmp.ne.s32.totalorder %s185, %s187
      %p194 = scmp.eq.s32.totalorder %s20, 1
      %p195 = por %p193, %p194
      %p196 = scmp.ne.s32.totalorder %s187, %s188
      %p197 = scmp.eq.s32.totalorder %s20, 0
      %p198 = por %p196, %p197
      %p199 = scmp.ne.s32.totalorder %s187, %s188
      %p200 = scmp.eq.s32.totalorder %s21, 1
      %p201 = por %p199, %p200
      %p203 = scmp.ne.s32.totalorder %s188, %s202
      %p204 = scmp.eq.s32.totalorder %s21, 0
      %p205 = por %p203, %p204
      %s206 = ssub.s32 %s15, %s22
      %p207 = scmp.eq.s32.totalorder %s206, 0
      %s209 = sadd.s32 %s208, 1
      %s210 = scalar_select %p207, %s208, %s209
      %p213 = pneg %p207
      %p214 = scmp.eq.s32.totalorder %s15, 1
      %p215 = por %p213, %p214
      %p216 = scmp.ne.s32.totalorder %s208, %s211
      %p217 = scmp.eq.s32.totalorder %s15, 0
      %p218 = por %p216, %p217
      %p219 = scmp.ne.s32.totalorder %s208, %s211
      %p220 = scmp.eq.s32.totalorder %s20, 1
      %p221 = por %p219, %p220
      %p222 = scmp.ne.s32.totalorder %s211, %s212
      %p223 = scmp.eq.s32.totalorder %s20, 0
      %p224 = por %p222, %p223
      %p225 = scmp.ne.s32.totalorder %s211, %s212
      %p226 = scmp.eq.s32.totalorder %s21, 1
      %p227 = por %p225, %p226
      %p229 = scmp.ne.s32.totalorder %s212, %s228
      %p230 = scmp.eq.s32.totalorder %s21, 0
      %p231 = por %p229, %p230
      %p232 = scmp.le.s32.totalorder 1, %s15
      %p233 = scmp.lt.s32.totalorder %s15, 3
      %p234 = pnand %p232, %p233
      %p235 = pneg %p234
      // Predicated region
      $region9: #{hetgnn_forward.1} parent=5 // pred_check
        _
      $region10: #{hetgnn_forward.1} parent=5 // pred_check_branch
        %237 = sbr.rel (%p234) target = $region12
      $region11: #{hetgnn_forward.1} parent=5 // pred_region
        %s238 = ssub.s32 %s15, 1
        // Predicated region
        $region13: #{hetgnn_forward.1} parent=11 // pred_check
          %p239 = pneg %p114
        $region14: #{hetgnn_forward.1} parent=11 // pred_check_branch
          %241 = sbr.rel (%p239) target = $region16
        $region15: #{hetgnn_forward.1} parent=11 // pred_region
          _
        $region16: #{hetgnn_forward.1} parent=11 // pred_fallthru
          _
        // Predicated region
        $region17: #{hetgnn_forward.1} parent=11 // pred_check
          %p242 = pneg %p135
        $region18: #{hetgnn_forward.1} parent=11 // pred_check_branch
          %244 = sbr.rel (%p242) target = $region20
        $region19: #{hetgnn_forward.1} parent=11 // pred_region
          _
        $region20: #{hetgnn_forward.1} parent=11 // pred_fallthru
          _
        // Predicated region
        $region21: #{hetgnn_forward.1} parent=11 // pred_check
          %p245 = pneg %p156
        $region22: #{hetgnn_forward.1} parent=11 // pred_check_branch
          %247 = sbr.rel (%p245) target = $region24
        $region23: #{hetgnn_forward.1} parent=11 // pred_region
          _
        $region24: #{hetgnn_forward.1} parent=11 // pred_fallthru
          _
        // Predicated region
        $region25: #{hetgnn_forward.1} parent=11 // pred_check
          %p248 = pneg %p177
        $region26: #{hetgnn_forward.1} parent=11 // pred_check_branch
          %250 = sbr.rel (%p248) target = $region28
        $region27: #{hetgnn_forward.1} parent=11 // pred_region
          _
        $region28: #{hetgnn_forward.1} parent=11 // pred_fallthru
          _
        // Predicated region
        $region29: #{hetgnn_forward.1} parent=11 // pred_check
          %p251 = pneg %p198
        $region30: #{hetgnn_forward.1} parent=11 // pred_check_branch
          %253 = sbr.rel (%p251) target = $region32
        $region31: #{hetgnn_forward.1} parent=11 // pred_region
          _
        $region32: #{hetgnn_forward.1} parent=11 // pred_fallthru
          _
      $region12: #{hetgnn_forward.1} parent=5 // pred_fallthru
        _
      %p254 = scmp.lt.s32.totalorder %s15, 2
      // Predicated region
      $region33: #{hetgnn_forward.1} parent=5 // pred_check
        %p255 = pneg %p254
      $region34: #{hetgnn_forward.1} parent=5 // pred_check_branch
        %257 = sbr.rel (%p255) target = $region36
      $region35: #{hetgnn_forward.1} parent=5 // pred_region
        // Predicated region
        $region37: #{hetgnn_forward.1} parent=35 // pred_check
          %p258 = pneg %p35
        $region38: #{hetgnn_forward.1} parent=35 // pred_check_branch
          %260 = sbr.rel (%p258) target = $region40
        $region39: #{hetgnn_forward.1} parent=35 // pred_region
          %s261 = smul.u32 16, %s15
          %p262 = scmp.lt.s32.totalorder %s261, 31
          %s263 = scalar_select %p262, %s261, 31
          %s264 = smul.addr %s263, 8
          %s265 = scalar_lea.vmem %s0, %s264
          %s266 = smul.u32 16, %s15
        $region40: #{hetgnn_forward.1} parent=35 // pred_fallthru
          _
        // Predicated region
        $region41: #{hetgnn_forward.1} parent=35 // pred_check
          %p267 = pneg %p61
        $region42: #{hetgnn_forward.1} parent=35 // pred_check_branch
          %269 = sbr.rel (%p267) target = $region44
        $region43: #{hetgnn_forward.1} parent=35 // pred_region
          %s270 = sand.u32 %s51, 1
          %s271 = sand.u32 %s51, 1
          %s272 = smul.addr %s271, 640
          %s273 = scalar_lea.vmem [#allocation3], %s272
          %s274 = smul.u32 16, %s15
          %s275 = smul.addr %s274, 8
          %s276 = scalar_lea.vmem %s1, %s275
          // Predicated region
          $region45: #{hetgnn_forward.1} parent=43 // pred_check
            _
          $region46: #{hetgnn_forward.1} parent=43 // pred_check_branch
            %278 = sbr.rel (0) target = $region48
          $region47: #{hetgnn_forward.1} parent=43 // pred_region
            // Predicated region
            $region49: #{hetgnn_forward.1} parent=47 // pred_check
              _
            $region50: #{hetgnn_forward.1} parent=47 // pred_check_branch
              %280 = sbr.rel (0) target = $region52
            $region51: #{hetgnn_forward.1} parent=47 // pred_region
              // Predicated region
              $region64: #{hetgnn_forward.1} parent=51 // pred_check
                _
              $region65: #{hetgnn_forward.1} parent=51 // pred_check_branch
                %453 = sbr.rel (0) target = $region67
              $region66: #{hetgnn_forward.1} parent=51 // pred_region
                loop: start=0, step=1, limit=1
                $region68: #{hetgnn_forward.1} parent=66 // loop_pre_header
                  _
                $region69: #{hetgnn_forward.1} parent=66 // loop_header
                  %s455 = sphi 0, %s459
                  %p456 = scmp.ge.s32.totalorder %s455, 1
                  %s460 = sphi %s276, %s276
                  %s461 = sphi %s273, %s273
                $region70: #{hetgnn_forward.1} parent=66 // loop_header_branch
                  %458 = sbr.rel (%p456) target = $region74
                $region71: #{hetgnn_forward.1} parent=66 // loop_body
                  %v462 = vld [vmem:[%s460] sm:$0xff]
                  %463 = vst [vmem:[%s461] sm:$0xff] %v462
                  %v464 = vld [vmem:[%s460 + $0x8] sm:$0xff]
                  %465 = vst [vmem:[%s461 + $0x8] sm:$0xff] %v464
                  %v466 = vld [vmem:[%s460 + $0x10] sm:$0xff]
                  %467 = vst [vmem:[%s461 + $0x10] sm:$0xff] %v466
                  %v468 = vld [vmem:[%s460 + $0x18] sm:$0xff]
                  %469 = vst [vmem:[%s461 + $0x18] sm:$0xff] %v468
                  %v470 = vld [vmem:[%s460 + $0x20] sm:$0xff]
                  %471 = vst [vmem:[%s461 + $0x20] sm:$0xff] %v470
                  %v472 = vld [vmem:[%s460 + $0x28] sm:$0xff]
                  %473 = vst [vmem:[%s461 + $0x28] sm:$0xff] %v472
                  %v474 = vld [vmem:[%s460 + $0x30] sm:$0xff]
                  %475 = vst [vmem:[%s461 + $0x30] sm:$0xff] %v474
                  %v476 = vld [vmem:[%s460 + $0x38] sm:$0xff]
                  %477 = vst [vmem:[%s461 + $0x38] sm:$0xff] %v476
                  %v478 = vld [vmem:[%s460 + $0x40] sm:$0xff]
                  %479 = vst [vmem:[%s461 + $0x40] sm:$0xff] %v478
                  %v480 = vld [vmem:[%s460 + $0x48] sm:$0xff]
                  %481 = vst [vmem:[%s461 + $0x48] sm:$0xff] %v480
                  %v482 = vld [vmem:[%s460 + $0x50] sm:$0xff]
                  %483 = vst [vmem:[%s461 + $0x50] sm:$0xff] %v482
                  %v484 = vld [vmem:[%s460 + $0x58] sm:$0xff]
                  %485 = vst [vmem:[%s461 + $0x58] sm:$0xff] %v484
                  %v486 = vld [vmem:[%s460 + $0x60] sm:$0xff]
                  %487 = vst [vmem:[%s461 + $0x60] sm:$0xff] %v486
                  %v488 = vld [vmem:[%s460 + $0x68] sm:$0xff]
                  %489 = vst [vmem:[%s461 + $0x68] sm:$0xff] %v488
                  %v490 = vld [vmem:[%s460 + $0x70] sm:$0xff]
                  %491 = vst [vmem:[%s461 + $0x70] sm:$0xff] %v490
                  %v492 = vld [vmem:[%s460 + $0x78] sm:$0xff]
                  %493 = vst [vmem:[%s461 + $0x78] sm:$0xff] %v492
                  %v494 = vld [vmem:[%s460 + $0x100] sm:$0xff]
                  %495 = vst [vmem:[%s461 + $0x80] sm:$0xff] %v494
                  %v496 = vld [vmem:[%s460 + $0x108] sm:$0xff]
                  %497 = vst [vmem:[%s461 + $0x88] sm:$0xff] %v496
                  %v498 = vld [vmem:[%s460 + $0x110] sm:$0xff]
                  %499 = vst [vmem:[%s461 + $0x90] sm:$0xff] %v498
                  %v500 = vld [vmem:[%s460 + $0x118] sm:$0xff]
                  %501 = vst [vmem:[%s461 + $0x98] sm:$0xff] %v500
                  %v502 = vld [vmem:[%s460 + $0x120] sm:$0xff]
                  %503 = vst [vmem:[%s461 + $0xa0] sm:$0xff] %v502
                  %v504 = vld [vmem:[%s460 + $0x128] sm:$0xff]
                  %505 = vst [vmem:[%s461 + $0xa8] sm:$0xff] %v504
                  %v506 = vld [vmem:[%s460 + $0x130] sm:$0xff]
                  %507 = vst [vmem:[%s461 + $0xb0] sm:$0xff] %v506
                  %v508 = vld [vmem:[%s460 + $0x138] sm:$0xff]
                  %509 = vst [vmem:[%s461 + $0xb8] sm:$0xff] %v508
                  %v510 = vld [vmem:[%s460 + $0x140] sm:$0xff]
                  %511 = vst [vmem:[%s461 + $0xc0] sm:$0xff] %v510
                  %v512 = vld [vmem:[%s460 + $0x148] sm:$0xff]
                  %513 = vst [vmem:[%s461 + $0xc8] sm:$0xff] %v512
                  %v514 = vld [vmem:[%s460 + $0x150] sm:$0xff]
                  %515 = vst [vmem:[%s461 + $0xd0] sm:$0xff] %v514
                  %v516 = vld [vmem:[%s460 + $0x158] sm:$0xff]
                  %517 = vst [vmem:[%s461 + $0xd8] sm:$0xff] %v516
                  %v518 = vld [vmem:[%s460 + $0x160] sm:$0xff]
                  %519 = vst [vmem:[%s461 + $0xe0] sm:$0xff] %v518
                  %v520 = vld [vmem:[%s460 + $0x168] sm:$0xff]
                  %521 = vst [vmem:[%s461 + $0xe8] sm:$0xff] %v520
                  %v522 = vld [vmem:[%s460 + $0x170] sm:$0xff]
                  %523 = vst [vmem:[%s461 + $0xf0] sm:$0xff] %v522
                  %v524 = vld [vmem:[%s460 + $0x178] sm:$0xff]
                  %525 = vst [vmem:[%s461 + $0xf8] sm:$0xff] %v524
                  %v526 = vld [vmem:[%s460 + $0x200] sm:$0xff]
                  %527 = vst [vmem:[%s461 + $0x100] sm:$0xff] %v526
                  %v528 = vld [vmem:[%s460 + $0x208] sm:$0xff]
                  %529 = vst [vmem:[%s461 + $0x108] sm:$0xff] %v528
                  %v530 = vld [vmem:[%s460 + $0x210] sm:$0xff]
                  %531 = vst [vmem:[%s461 + $0x110] sm:$0xff] %v530
                  %v532 = vld [vmem:[%s460 + $0x218] sm:$0xff]
                  %533 = vst [vmem:[%s461 + $0x118] sm:$0xff] %v532
                  %v534 = vld [vmem:[%s460 + $0x220] sm:$0xff]
                  %535 = vst [vmem:[%s461 + $0x120] sm:$0xff] %v534
                  %v536 = vld [vmem:[%s460 + $0x228] sm:$0xff]
                  %537 = vst [vmem:[%s461 + $0x128] sm:$0xff] %v536
                  %v538 = vld [vmem:[%s460 + $0x230] sm:$0xff]
                  %539 = vst [vmem:[%s461 + $0x130] sm:$0xff] %v538
                  %v540 = vld [vmem:[%s460 + $0x238] sm:$0xff]
                  %541 = vst [vmem:[%s461 + $0x138] sm:$0xff] %v540
                  %v542 = vld [vmem:[%s460 + $0x240] sm:$0xff]
                  %543 = vst [vmem:[%s461 + $0x140] sm:$0xff] %v542
                  %v544 = vld [vmem:[%s460 + $0x248] sm:$0xff]
                  %545 = vst [vmem:[%s461 + $0x148] sm:$0xff] %v544
                  %v546 = vld [vmem:[%s460 + $0x250] sm:$0xff]
                  %547 = vst [vmem:[%s461 + $0x150] sm:$0xff] %v546
                  %v548 = vld [vmem:[%s460 + $0x258] sm:$0xff]
                  %549 = vst [vmem:[%s461 + $0x158] sm:$0xff] %v548
                  %v550 = vld [vmem:[%s460 + $0x260] sm:$0xff]
                  %551 = vst [vmem:[%s461 + $0x160] sm:$0xff] %v550
                  %v552 = vld [vmem:[%s460 + $0x268] sm:$0xff]
                  %553 = vst [vmem:[%s461 + $0x168] sm:$0xff] %v552
                  %v554 = vld [vmem:[%s460 + $0x270] sm:$0xff]
                  %555 = vst [vmem:[%s461 + $0x170] sm:$0xff] %v554
                  %v556 = vld [vmem:[%s460 + $0x278] sm:$0xff]
                  %557 = vst [vmem:[%s461 + $0x178] sm:$0xff] %v556
                  %v558 = vld [vmem:[%s460 + $0x300] sm:$0xff]
                  %559 = vst [vmem:[%s461 + $0x180] sm:$0xff] %v558
                  %v560 = vld [vmem:[%s460 + $0x308] sm:$0xff]
                  %561 = vst [vmem:[%s461 + $0x188] sm:$0xff] %v560
                  %v562 = vld [vmem:[%s460 + $0x310] sm:$0xff]
                  %563 = vst [vmem:[%s461 + $0x190] sm:$0xff] %v562
                  %v564 = vld [vmem:[%s460 + $0x318] sm:$0xff]
                  %565 = vst [vmem:[%s461 + $0x198] sm:$0xff] %v564
                  %v566 = vld [vmem:[%s460 + $0x320] sm:$0xff]
                  %567 = vst [vmem:[%s461 + $0x1a0] sm:$0xff] %v566
                  %v568 = vld [vmem:[%s460 + $0x328] sm:$0xff]
                  %569 = vst [vmem:[%s461 + $0x1a8] sm:$0xff] %v568
                  %v570 = vld [vmem:[%s460 + $0x330] sm:$0xff]
                  %571 = vst [vmem:[%s461 + $0x1b0] sm:$0xff] %v570
                  %v572 = vld [vmem:[%s460 + $0x338] sm:$0xff]
                  %573 = vst [vmem:[%s461 + $0x1b8] sm:$0xff] %v572
                  %v574 = vld [vmem:[%s460 + $0x340] sm:$0xff]
                  %575 = vst [vmem:[%s461 + $0x1c0] sm:$0xff] %v574
                  %v576 = vld [vmem:[%s460 + $0x348] sm:$0xff]
                  %577 = vst [vmem:[%s461 + $0x1c8] sm:$0xff] %v576
                  %v578 = vld [vmem:[%s460 + $0x350] sm:$0xff]
                  %579 = vst [vmem:[%s461 + $0x1d0] sm:$0xff] %v578
                  %v580 = vld [vmem:[%s460 + $0x358] sm:$0xff]
                  %581 = vst [vmem:[%s461 + $0x1d8] sm:$0xff] %v580
                  %v582 = vld [vmem:[%s460 + $0x360] sm:$0xff]
                  %583 = vst [vmem:[%s461 + $0x1e0] sm:$0xff] %v582
                  %v584 = vld [vmem:[%s460 + $0x368] sm:$0xff]
                  %585 = vst [vmem:[%s461 + $0x1e8] sm:$0xff] %v584
                  %v586 = vld [vmem:[%s460 + $0x370] sm:$0xff]
                  %587 = vst [vmem:[%s461 + $0x1f0] sm:$0xff] %v586
                  %v588 = vld [vmem:[%s460 + $0x378] sm:$0xff]
                  %589 = vst [vmem:[%s461 + $0x1f8] sm:$0xff] %v588
                  %v590 = vld [vmem:[%s460 + $0x400] sm:$0xff]
                  %591 = vst [vmem:[%s461 + $0x200] sm:$0xff] %v590
                  %v592 = vld [vmem:[%s460 + $0x408] sm:$0xff]
                  %593 = vst [vmem:[%s461 + $0x208] sm:$0xff] %v592
                  %v594 = vld [vmem:[%s460 + $0x410] sm:$0xff]
                  %595 = vst [vmem:[%s461 + $0x210] sm:$0xff] %v594
                  %v596 = vld [vmem:[%s460 + $0x418] sm:$0xff]
                  %597 = vst [vmem:[%s461 + $0x218] sm:$0xff] %v596
                  %v598 = vld [vmem:[%s460 + $0x420] sm:$0xff]
                  %599 = vst [vmem:[%s461 + $0x220] sm:$0xff] %v598
                  %v600 = vld [vmem:[%s460 + $0x428] sm:$0xff]
                  %601 = vst [vmem:[%s461 + $0x228] sm:$0xff] %v600
                  %v602 = vld [vmem:[%s460 + $0x430] sm:$0xff]
                  %603 = vst [vmem:[%s461 + $0x230] sm:$0xff] %v602
                  %v604 = vld [vmem:[%s460 + $0x438] sm:$0xff]
                  %605 = vst [vmem:[%s461 + $0x238] sm:$0xff] %v604
                  %v606 = vld [vmem:[%s460 + $0x440] sm:$0xff]
                  %607 = vst [vmem:[%s461 + $0x240] sm:$0xff] %v606
                  %v608 = vld [vmem:[%s460 + $0x448] sm:$0xff]
                  %609 = vst [vmem:[%s461 + $0x248] sm:$0xff] %v608
                  %v610 = vld [vmem:[%s460 + $0x450] sm:$0xff]
                  %611 = vst [vmem:[%s461 + $0x250] sm:$0xff] %v610
                  %v612 = vld [vmem:[%s460 + $0x458] sm:$0xff]
                  %613 = vst [vmem:[%s461 + $0x258] sm:$0xff] %v612
                  %v614 = vld [vmem:[%s460 + $0x460] sm:$0xff]
                  %615 = vst [vmem:[%s461 + $0x260] sm:$0xff] %v614
                  %v616 = vld [vmem:[%s460 + $0x468] sm:$0xff]
                  %617 = vst [vmem:[%s461 + $0x268] sm:$0xff] %v616
                  %v618 = vld [vmem:[%s460 + $0x470] sm:$0xff]
                  %619 = vst [vmem:[%s461 + $0x270] sm:$0xff] %v618
                  %v620 = vld [vmem:[%s460 + $0x478] sm:$0xff]
                  %621 = vst [vmem:[%s461 + $0x278] sm:$0xff] %v620
                $region72: #{hetgnn_forward.1} parent=66 // loop_footer
                  %s459 = sadd.s32 1, %s455
                $region73: #{hetgnn_forward.1} parent=66 // loop_footer_branch
                  %454 = sbr.rel target = $region69
                $region74: #{hetgnn_forward.1} parent=66 // loop_exit
                  _
              $region67: #{hetgnn_forward.1} parent=51 // pred_fallthru
                _
              // Predicated region
              $region75: #{hetgnn_forward.1} parent=51 // pred_check
                _
              $region76: #{hetgnn_forward.1} parent=51 // pred_check_branch
                %623 = sbr.rel target = $region78
              $region77: #{hetgnn_forward.1} parent=51 // pred_region
                _
              $region78: #{hetgnn_forward.1} parent=51 // pred_fallthru
                _
            $region52: #{hetgnn_forward.1} parent=47 // pred_fallthru
              _
            // Predicated region
            $region53: #{hetgnn_forward.1} parent=47 // pred_check
              _
            $region54: #{hetgnn_forward.1} parent=47 // pred_check_branch
              %282 = sbr.rel target = $region56
            $region55: #{hetgnn_forward.1} parent=47 // pred_region
              loop: start=0, step=1, limit=1
              $region57: #{hetgnn_forward.1} parent=55 // loop_pre_header
                _
              $region58: #{hetgnn_forward.1} parent=55 // loop_header
                %s285 = sphi 0, %s289
                %p286 = scmp.ge.s32.totalorder %s285, 1
                %s290 = sphi %s276, %s276
                %s291 = sphi %s273, %s273
              $region59: #{hetgnn_forward.1} parent=55 // loop_header_branch
                %288 = sbr.rel (%p286) target = $region63
              $region60: #{hetgnn_forward.1} parent=55 // loop_body
                %v292 = vld [vmem:[%s290] sm:$0xff]
                %293 = vst [vmem:[%s291] sm:$0xff] %v292
                %v294 = vld [vmem:[%s290 + $0x8] sm:$0xff]
                %295 = vst [vmem:[%s291 + $0x8] sm:$0xff] %v294
                %v296 = vld [vmem:[%s290 + $0x10] sm:$0xff]
                %297 = vst [vmem:[%s291 + $0x10] sm:$0xff] %v296
                %v298 = vld [vmem:[%s290 + $0x18] sm:$0xff]
                %299 = vst [vmem:[%s291 + $0x18] sm:$0xff] %v298
                %v300 = vld [vmem:[%s290 + $0x20] sm:$0xff]
                %301 = vst [vmem:[%s291 + $0x20] sm:$0xff] %v300
                %v302 = vld [vmem:[%s290 + $0x28] sm:$0xff]
                %303 = vst [vmem:[%s291 + $0x28] sm:$0xff] %v302
                %v304 = vld [vmem:[%s290 + $0x30] sm:$0xff]
                %305 = vst [vmem:[%s291 + $0x30] sm:$0xff] %v304
                %v306 = vld [vmem:[%s290 + $0x38] sm:$0xff]
                %307 = vst [vmem:[%s291 + $0x38] sm:$0xff] %v306
                %v308 = vld [vmem:[%s290 + $0x40] sm:$0xff]
                %309 = vst [vmem:[%s291 + $0x40] sm:$0xff] %v308
                %v310 = vld [vmem:[%s290 + $0x48] sm:$0xff]
                %311 = vst [vmem:[%s291 + $0x48] sm:$0xff] %v310
                %v312 = vld [vmem:[%s290 + $0x50] sm:$0xff]
                %313 = vst [vmem:[%s291 + $0x50] sm:$0xff] %v312
                %v314 = vld [vmem:[%s290 + $0x58] sm:$0xff]
                %315 = vst [vmem:[%s291 + $0x58] sm:$0xff] %v314
                %v316 = vld [vmem:[%s290 + $0x60] sm:$0xff]
                %317 = vst [vmem:[%s291 + $0x60] sm:$0xff] %v316
                %v318 = vld [vmem:[%s290 + $0x68] sm:$0xff]
                %319 = vst [vmem:[%s291 + $0x68] sm:$0xff] %v318
                %v320 = vld [vmem:[%s290 + $0x70] sm:$0xff]
                %321 = vst [vmem:[%s291 + $0x70] sm:$0xff] %v320
                %v322 = vld [vmem:[%s290 + $0x78] sm:$0xff]
                %323 = vst [vmem:[%s291 + $0x78] sm:$0xff] %v322
                %v324 = vld [vmem:[%s290 + $0x100] sm:$0xff]
                %325 = vst [vmem:[%s291 + $0x80] sm:$0xff] %v324
                %v326 = vld [vmem:[%s290 + $0x108] sm:$0xff]
                %327 = vst [vmem:[%s291 + $0x88] sm:$0xff] %v326
                %v328 = vld [vmem:[%s290 + $0x110] sm:$0xff]
                %329 = vst [vmem:[%s291 + $0x90] sm:$0xff] %v328
                %v330 = vld [vmem:[%s290 + $0x118] sm:$0xff]
                %331 = vst [vmem:[%s291 + $0x98] sm:$0xff] %v330
                %v332 = vld [vmem:[%s290 + $0x120] sm:$0xff]
                %333 = vst [vmem:[%s291 + $0xa0] sm:$0xff] %v332
                %v334 = vld [vmem:[%s290 + $0x128] sm:$0xff]
                %335 = vst [vmem:[%s291 + $0xa8] sm:$0xff] %v334
                %v336 = vld [vmem:[%s290 + $0x130] sm:$0xff]
                %337 = vst [vmem:[%s291 + $0xb0] sm:$0xff] %v336
                %v338 = vld [vmem:[%s290 + $0x138] sm:$0xff]
                %339 = vst [vmem:[%s291 + $0xb8] sm:$0xff] %v338
                %v340 = vld [vmem:[%s290 + $0x140] sm:$0xff]
                %341 = vst [vmem:[%s291 + $0xc0] sm:$0xff] %v340
                %v342 = vld [vmem:[%s290 + $0x148] sm:$0xff]
                %343 = vst [vmem:[%s291 + $0xc8] sm:$0xff] %v342
                %v344 = vld [vmem:[%s290 + $0x150] sm:$0xff]
                %345 = vst [vmem:[%s291 + $0xd0] sm:$0xff] %v344
                %v346 = vld [vmem:[%s290 + $0x158] sm:$0xff]
                %347 = vst [vmem:[%s291 + $0xd8] sm:$0xff] %v346
                %v348 = vld [vmem:[%s290 + $0x160] sm:$0xff]
                %349 = vst [vmem:[%s291 + $0xe0] sm:$0xff] %v348
                %v350 = vld [vmem:[%s290 + $0x168] sm:$0xff]
                %351 = vst [vmem:[%s291 + $0xe8] sm:$0xff] %v350
                %v352 = vld [vmem:[%s290 + $0x170] sm:$0xff]
                %353 = vst [vmem:[%s291 + $0xf0] sm:$0xff] %v352
                %v354 = vld [vmem:[%s290 + $0x178] sm:$0xff]
                %355 = vst [vmem:[%s291 + $0xf8] sm:$0xff] %v354
                %v356 = vld [vmem:[%s290 + $0x200] sm:$0xff]
                %357 = vst [vmem:[%s291 + $0x100] sm:$0xff] %v356
                %v358 = vld [vmem:[%s290 + $0x208] sm:$0xff]
                %359 = vst [vmem:[%s291 + $0x108] sm:$0xff] %v358
                %v360 = vld [vmem:[%s290 + $0x210] sm:$0xff]
                %361 = vst [vmem:[%s291 + $0x110] sm:$0xff] %v360
                %v362 = vld [vmem:[%s290 + $0x218] sm:$0xff]
                %363 = vst [vmem:[%s291 + $0x118] sm:$0xff] %v362
                %v364 = vld [vmem:[%s290 + $0x220] sm:$0xff]
                %365 = vst [vmem:[%s291 + $0x120] sm:$0xff] %v364
                %v366 = vld [vmem:[%s290 + $0x228] sm:$0xff]
                %367 = vst [vmem:[%s291 + $0x128] sm:$0xff] %v366
                %v368 = vld [vmem:[%s290 + $0x230] sm:$0xff]
                %369 = vst [vmem:[%s291 + $0x130] sm:$0xff] %v368
                %v370 = vld [vmem:[%s290 + $0x238] sm:$0xff]
                %371 = vst [vmem:[%s291 + $0x138] sm:$0xff] %v370
                %v372 = vld [vmem:[%s290 + $0x240] sm:$0xff]
                %373 = vst [vmem:[%s291 + $0x140] sm:$0xff] %v372
                %v374 = vld [vmem:[%s290 + $0x248] sm:$0xff]
                %375 = vst [vmem:[%s291 + $0x148] sm:$0xff] %v374
                %v376 = vld [vmem:[%s290 + $0x250] sm:$0xff]
                %377 = vst [vmem:[%s291 + $0x150] sm:$0xff] %v376
                %v378 = vld [vmem:[%s290 + $0x258] sm:$0xff]
                %379 = vst [vmem:[%s291 + $0x158] sm:$0xff] %v378
                %v380 = vld [vmem:[%s290 + $0x260] sm:$0xff]
                %381 = vst [vmem:[%s291 + $0x160] sm:$0xff] %v380
                %v382 = vld [vmem:[%s290 + $0x268] sm:$0xff]
                %383 = vst [vmem:[%s291 + $0x168] sm:$0xff] %v382
                %v384 = vld [vmem:[%s290 + $0x270] sm:$0xff]
                %385 = vst [vmem:[%s291 + $0x170] sm:$0xff] %v384
                %v386 = vld [vmem:[%s290 + $0x278] sm:$0xff]
                %387 = vst [vmem:[%s291 + $0x178] sm:$0xff] %v386
                %v388 = vld [vmem:[%s290 + $0x300] sm:$0xff]
                %389 = vst [vmem:[%s291 + $0x180] sm:$0xff] %v388
                %v390 = vld [vmem:[%s290 + $0x308] sm:$0xff]
                %391 = vst [vmem:[%s291 + $0x188] sm:$0xff] %v390
                %v392 = vld [vmem:[%s290 + $0x310] sm:$0xff]
                %393 = vst [vmem:[%s291 + $0x190] sm:$0xff] %v392
                %v394 = vld [vmem:[%s290 + $0x318] sm:$0xff]
                %395 = vst [vmem:[%s291 + $0x198] sm:$0xff] %v394
                %v396 = vld [vmem:[%s290 + $0x320] sm:$0xff]
                %397 = vst [vmem:[%s291 + $0x1a0] sm:$0xff] %v396
                %v398 = vld [vmem:[%s290 + $0x328] sm:$0xff]
                %399 = vst [vmem:[%s291 + $0x1a8] sm:$0xff] %v398
                %v400 = vld [vmem:[%s290 + $0x330] sm:$0xff]
                %401 = vst [vmem:[%s291 + $0x1b0] sm:$0xff] %v400
                %v402 = vld [vmem:[%s290 + $0x338] sm:$0xff]
                %403 = vst [vmem:[%s291 + $0x1b8] sm:$0xff] %v402
                %v404 = vld [vmem:[%s290 + $0x340] sm:$0xff]
                %405 = vst [vmem:[%s291 + $0x1c0] sm:$0xff] %v404
                %v406 = vld [vmem:[%s290 + $0x348] sm:$0xff]
                %407 = vst [vmem:[%s291 + $0x1c8] sm:$0xff] %v406
                %v408 = vld [vmem:[%s290 + $0x350] sm:$0xff]
                %409 = vst [vmem:[%s291 + $0x1d0] sm:$0xff] %v408
                %v410 = vld [vmem:[%s290 + $0x358] sm:$0xff]
                %411 = vst [vmem:[%s291 + $0x1d8] sm:$0xff] %v410
                %v412 = vld [vmem:[%s290 + $0x360] sm:$0xff]
                %413 = vst [vmem:[%s291 + $0x1e0] sm:$0xff] %v412
                %v414 = vld [vmem:[%s290 + $0x368] sm:$0xff]
                %415 = vst [vmem:[%s291 + $0x1e8] sm:$0xff] %v414
                %v416 = vld [vmem:[%s290 + $0x370] sm:$0xff]
                %417 = vst [vmem:[%s291 + $0x1f0] sm:$0xff] %v416
                %v418 = vld [vmem:[%s290 + $0x378] sm:$0xff]
                %419 = vst [vmem:[%s291 + $0x1f8] sm:$0xff] %v418
                %v420 = vld [vmem:[%s290 + $0x400] sm:$0xff]
                %421 = vst [vmem:[%s291 + $0x200] sm:$0xff] %v420
                %v422 = vld [vmem:[%s290 + $0x408] sm:$0xff]
                %423 = vst [vmem:[%s291 + $0x208] sm:$0xff] %v422
                %v424 = vld [vmem:[%s290 + $0x410] sm:$0xff]
                %425 = vst [vmem:[%s291 + $0x210] sm:$0xff] %v424
                %v426 = vld [vmem:[%s290 + $0x418] sm:$0xff]
                %427 = vst [vmem:[%s291 + $0x218] sm:$0xff] %v426
                %v428 = vld [vmem:[%s290 + $0x420] sm:$0xff]
                %429 = vst [vmem:[%s291 + $0x220] sm:$0xff] %v428
                %v430 = vld [vmem:[%s290 + $0x428] sm:$0xff]
                %431 = vst [vmem:[%s291 + $0x228] sm:$0xff] %v430
                %v432 = vld [vmem:[%s290 + $0x430] sm:$0xff]
                %433 = vst [vmem:[%s291 + $0x230] sm:$0xff] %v432
                %v434 = vld [vmem:[%s290 + $0x438] sm:$0xff]
                %435 = vst [vmem:[%s291 + $0x238] sm:$0xff] %v434
                %v436 = vld [vmem:[%s290 + $0x440] sm:$0xff]
                %437 = vst [vmem:[%s291 + $0x240] sm:$0xff] %v436
                %v438 = vld [vmem:[%s290 + $0x448] sm:$0xff]
                %439 = vst [vmem:[%s291 + $0x248] sm:$0xff] %v438
                %v440 = vld [vmem:[%s290 + $0x450] sm:$0xff]
                %441 = vst [vmem:[%s291 + $0x250] sm:$0xff] %v440
                %v442 = vld [vmem:[%s290 + $0x458] sm:$0xff]
                %443 = vst [vmem:[%s291 + $0x258] sm:$0xff] %v442
                %v444 = vld [vmem:[%s290 + $0x460] sm:$0xff]
                %445 = vst [vmem:[%s291 + $0x260] sm:$0xff] %v444
                %v446 = vld [vmem:[%s290 + $0x468] sm:$0xff]
                %447 = vst [vmem:[%s291 + $0x268] sm:$0xff] %v446
                %v448 = vld [vmem:[%s290 + $0x470] sm:$0xff]
                %449 = vst [vmem:[%s291 + $0x270] sm:$0xff] %v448
                %v450 = vld [vmem:[%s290 + $0x478] sm:$0xff]
                %451 = vst [vmem:[%s291 + $0x278] sm:$0xff] %v450
              $region61: #{hetgnn_forward.1} parent=55 // loop_footer
                %s289 = sadd.s32 1, %s285
              $region62: #{hetgnn_forward.1} parent=55 // loop_footer_branch
                %284 = sbr.rel target = $region58
              $region63: #{hetgnn_forward.1} parent=55 // loop_exit
                _
            $region56: #{hetgnn_forward.1} parent=47 // pred_fallthru
              _
          $region48: #{hetgnn_forward.1} parent=43 // pred_fallthru
            _
          %624 = vnop
        $region44: #{hetgnn_forward.1} parent=35 // pred_fallthru
          _
        // Predicated region
        $region79: #{hetgnn_forward.1} parent=35 // pred_check
          %p625 = pneg %p87
        $region80: #{hetgnn_forward.1} parent=35 // pred_check_branch
          %627 = sbr.rel (%p625) target = $region82
        $region81: #{hetgnn_forward.1} parent=35 // pred_region
          %s628 = sand.u32 %s77, 1
          %s629 = sand.u32 %s77, 1
          %s630 = smul.addr %s629, 384
          %s631 = scalar_lea.vmem [#allocation4], %s630
          %s632 = smul.u32 16, %s15
          %s633 = smul.addr %s632, 8
          %s634 = scalar_lea.vmem %s2, %s633
          // Predicated region
          $region83: #{hetgnn_forward.1} parent=81 // pred_check
            _
          $region84: #{hetgnn_forward.1} parent=81 // pred_check_branch
            %636 = sbr.rel (0) target = $region86
          $region85: #{hetgnn_forward.1} parent=81 // pred_region
            // Predicated region
            $region87: #{hetgnn_forward.1} parent=85 // pred_check
              _
            $region88: #{hetgnn_forward.1} parent=85 // pred_check_branch
              %638 = sbr.rel (0) target = $region90
            $region89: #{hetgnn_forward.1} parent=85 // pred_region
              // Predicated region
              $region102: #{hetgnn_forward.1} parent=89 // pred_check
                _
              $region103: #{hetgnn_forward.1} parent=89 // pred_check_branch
                %747 = sbr.rel (0) target = $region105
              $region104: #{hetgnn_forward.1} parent=89 // pred_region
                loop: start=0, step=1, limit=1
                $region106: #{hetgnn_forward.1} parent=104 // loop_pre_header
                  _
                $region107: #{hetgnn_forward.1} parent=104 // loop_header
                  %s749 = sphi 0, %s753
                  %p750 = scmp.ge.s32.totalorder %s749, 1
                  %s754 = sphi %s634, %s634
                  %s755 = sphi %s631, %s631
                $region108: #{hetgnn_forward.1} parent=104 // loop_header_branch
                  %752 = sbr.rel (%p750) target = $region112
                $region109: #{hetgnn_forward.1} parent=104 // loop_body
                  %v756 = vld [vmem:[%s754] sm:$0xff]
                  %757 = vst [vmem:[%s755] sm:$0xff] %v756
                  %v758 = vld [vmem:[%s754 + $0x8] sm:$0xff]
                  %759 = vst [vmem:[%s755 + $0x8] sm:$0xff] %v758
                  %v760 = vld [vmem:[%s754 + $0x10] sm:$0xff]
                  %761 = vst [vmem:[%s755 + $0x10] sm:$0xff] %v760
                  %v762 = vld [vmem:[%s754 + $0x18] sm:$0xff]
                  %763 = vst [vmem:[%s755 + $0x18] sm:$0xff] %v762
                  %v764 = vld [vmem:[%s754 + $0x20] sm:$0xff]
                  %765 = vst [vmem:[%s755 + $0x20] sm:$0xff] %v764
                  %v766 = vld [vmem:[%s754 + $0x28] sm:$0xff]
                  %767 = vst [vmem:[%s755 + $0x28] sm:$0xff] %v766
                  %v768 = vld [vmem:[%s754 + $0x30] sm:$0xff]
                  %769 = vst [vmem:[%s755 + $0x30] sm:$0xff] %v768
                  %v770 = vld [vmem:[%s754 + $0x38] sm:$0xff]
                  %771 = vst [vmem:[%s755 + $0x38] sm:$0xff] %v770
                  %v772 = vld [vmem:[%s754 + $0x40] sm:$0xff]
                  %773 = vst [vmem:[%s755 + $0x40] sm:$0xff] %v772
                  %v774 = vld [vmem:[%s754 + $0x48] sm:$0xff]
                  %775 = vst [vmem:[%s755 + $0x48] sm:$0xff] %v774
                  %v776 = vld [vmem:[%s754 + $0x50] sm:$0xff]
                  %777 = vst [vmem:[%s755 + $0x50] sm:$0xff] %v776
                  %v778 = vld [vmem:[%s754 + $0x58] sm:$0xff]
                  %779 = vst [vmem:[%s755 + $0x58] sm:$0xff] %v778
                  %v780 = vld [vmem:[%s754 + $0x60] sm:$0xff]
                  %781 = vst [vmem:[%s755 + $0x60] sm:$0xff] %v780
                  %v782 = vld [vmem:[%s754 + $0x68] sm:$0xff]
                  %783 = vst [vmem:[%s755 + $0x68] sm:$0xff] %v782
                  %v784 = vld [vmem:[%s754 + $0x70] sm:$0xff]
                  %785 = vst [vmem:[%s755 + $0x70] sm:$0xff] %v784
                  %v786 = vld [vmem:[%s754 + $0x78] sm:$0xff]
                  %787 = vst [vmem:[%s755 + $0x78] sm:$0xff] %v786
                  %v788 = vld [vmem:[%s754 + $0x100] sm:$0xff]
                  %789 = vst [vmem:[%s755 + $0x80] sm:$0xff] %v788
                  %v790 = vld [vmem:[%s754 + $0x108] sm:$0xff]
                  %791 = vst [vmem:[%s755 + $0x88] sm:$0xff] %v790
                  %v792 = vld [vmem:[%s754 + $0x110] sm:$0xff]
                  %793 = vst [vmem:[%s755 + $0x90] sm:$0xff] %v792
                  %v794 = vld [vmem:[%s754 + $0x118] sm:$0xff]
                  %795 = vst [vmem:[%s755 + $0x98] sm:$0xff] %v794
                  %v796 = vld [vmem:[%s754 + $0x120] sm:$0xff]
                  %797 = vst [vmem:[%s755 + $0xa0] sm:$0xff] %v796
                  %v798 = vld [vmem:[%s754 + $0x128] sm:$0xff]
                  %799 = vst [vmem:[%s755 + $0xa8] sm:$0xff] %v798
                  %v800 = vld [vmem:[%s754 + $0x130] sm:$0xff]
                  %801 = vst [vmem:[%s755 + $0xb0] sm:$0xff] %v800
                  %v802 = vld [vmem:[%s754 + $0x138] sm:$0xff]
                  %803 = vst [vmem:[%s755 + $0xb8] sm:$0xff] %v802
                  %v804 = vld [vmem:[%s754 + $0x140] sm:$0xff]
                  %805 = vst [vmem:[%s755 + $0xc0] sm:$0xff] %v804
                  %v806 = vld [vmem:[%s754 + $0x148] sm:$0xff]
                  %807 = vst [vmem:[%s755 + $0xc8] sm:$0xff] %v806
                  %v808 = vld [vmem:[%s754 + $0x150] sm:$0xff]
                  %809 = vst [vmem:[%s755 + $0xd0] sm:$0xff] %v808
                  %v810 = vld [vmem:[%s754 + $0x158] sm:$0xff]
                  %811 = vst [vmem:[%s755 + $0xd8] sm:$0xff] %v810
                  %v812 = vld [vmem:[%s754 + $0x160] sm:$0xff]
                  %813 = vst [vmem:[%s755 + $0xe0] sm:$0xff] %v812
                  %v814 = vld [vmem:[%s754 + $0x168] sm:$0xff]
                  %815 = vst [vmem:[%s755 + $0xe8] sm:$0xff] %v814
                  %v816 = vld [vmem:[%s754 + $0x170] sm:$0xff]
                  %817 = vst [vmem:[%s755 + $0xf0] sm:$0xff] %v816
                  %v818 = vld [vmem:[%s754 + $0x178] sm:$0xff]
                  %819 = vst [vmem:[%s755 + $0xf8] sm:$0xff] %v818
                  %v820 = vld [vmem:[%s754 + $0x200] sm:$0xff]
                  %821 = vst [vmem:[%s755 + $0x100] sm:$0xff] %v820
                  %v822 = vld [vmem:[%s754 + $0x208] sm:$0xff]
                  %823 = vst [vmem:[%s755 + $0x108] sm:$0xff] %v822
                  %v824 = vld [vmem:[%s754 + $0x210] sm:$0xff]
                  %825 = vst [vmem:[%s755 + $0x110] sm:$0xff] %v824
                  %v826 = vld [vmem:[%s754 + $0x218] sm:$0xff]
                  %827 = vst [vmem:[%s755 + $0x118] sm:$0xff] %v826
                  %v828 = vld [vmem:[%s754 + $0x220] sm:$0xff]
                  %829 = vst [vmem:[%s755 + $0x120] sm:$0xff] %v828
                  %v830 = vld [vmem:[%s754 + $0x228] sm:$0xff]
                  %831 = vst [vmem:[%s755 + $0x128] sm:$0xff] %v830
                  %v832 = vld [vmem:[%s754 + $0x230] sm:$0xff]
                  %833 = vst [vmem:[%s755 + $0x130] sm:$0xff] %v832
                  %v834 = vld [vmem:[%s754 + $0x238] sm:$0xff]
                  %835 = vst [vmem:[%s755 + $0x138] sm:$0xff] %v834
                  %v836 = vld [vmem:[%s754 + $0x240] sm:$0xff]
                  %837 = vst [vmem:[%s755 + $0x140] sm:$0xff] %v836
                  %v838 = vld [vmem:[%s754 + $0x248] sm:$0xff]
                  %839 = vst [vmem:[%s755 + $0x148] sm:$0xff] %v838
                  %v840 = vld [vmem:[%s754 + $0x250] sm:$0xff]
                  %841 = vst [vmem:[%s755 + $0x150] sm:$0xff] %v840
                  %v842 = vld [vmem:[%s754 + $0x258] sm:$0xff]
                  %843 = vst [vmem:[%s755 + $0x158] sm:$0xff] %v842
                  %v844 = vld [vmem:[%s754 + $0x260] sm:$0xff]
                  %845 = vst [vmem:[%s755 + $0x160] sm:$0xff] %v844
                  %v846 = vld [vmem:[%s754 + $0x268] sm:$0xff]
                  %847 = vst [vmem:[%s755 + $0x168] sm:$0xff] %v846
                  %v848 = vld [vmem:[%s754 + $0x270] sm:$0xff]
                  %849 = vst [vmem:[%s755 + $0x170] sm:$0xff] %v848
                  %v850 = vld [vmem:[%s754 + $0x278] sm:$0xff]
                  %851 = vst [vmem:[%s755 + $0x178] sm:$0xff] %v850
                $region110: #{hetgnn_forward.1} parent=104 // loop_footer
                  %s753 = sadd.s32 1, %s749
                $region111: #{hetgnn_forward.1} parent=104 // loop_footer_branch
                  %748 = sbr.rel target = $region107
                $region112: #{hetgnn_forward.1} parent=104 // loop_exit
                  _
              $region105: #{hetgnn_forward.1} parent=89 // pred_fallthru
                _
              // Predicated region
              $region113: #{hetgnn_forward.1} parent=89 // pred_check
                _
              $region114: #{hetgnn_forward.1} parent=89 // pred_check_branch
                %853 = sbr.rel target = $region116
              $region115: #{hetgnn_forward.1} parent=89 // pred_region
                _
              $region116: #{hetgnn_forward.1} parent=89 // pred_fallthru
                _
            $region90: #{hetgnn_forward.1} parent=85 // pred_fallthru
              _
            // Predicated region
            $region91: #{hetgnn_forward.1} parent=85 // pred_check
              _
            $region92: #{hetgnn_forward.1} parent=85 // pred_check_branch
              %640 = sbr.rel target = $region94
            $region93: #{hetgnn_forward.1} parent=85 // pred_region
              loop: start=0, step=1, limit=1
              $region95: #{hetgnn_forward.1} parent=93 // loop_pre_header
                _
              $region96: #{hetgnn_forward.1} parent=93 // loop_header
                %s643 = sphi 0, %s647
                %p644 = scmp.ge.s32.totalorder %s643, 1
                %s648 = sphi %s634, %s634
                %s649 = sphi %s631, %s631
              $region97: #{hetgnn_forward.1} parent=93 // loop_header_branch
                %646 = sbr.rel (%p644) target = $region101
              $region98: #{hetgnn_forward.1} parent=93 // loop_body
                %v650 = vld [vmem:[%s648] sm:$0xff]
                %651 = vst [vmem:[%s649] sm:$0xff] %v650
                %v652 = vld [vmem:[%s648 + $0x8] sm:$0xff]
                %653 = vst [vmem:[%s649 + $0x8] sm:$0xff] %v652
                %v654 = vld [vmem:[%s648 + $0x10] sm:$0xff]
                %655 = vst [vmem:[%s649 + $0x10] sm:$0xff] %v654
                %v656 = vld [vmem:[%s648 + $0x18] sm:$0xff]
                %657 = vst [vmem:[%s649 + $0x18] sm:$0xff] %v656
                %v658 = vld [vmem:[%s648 + $0x20] sm:$0xff]
                %659 = vst [vmem:[%s649 + $0x20] sm:$0xff] %v658
                %v660 = vld [vmem:[%s648 + $0x28] sm:$0xff]
                %661 = vst [vmem:[%s649 + $0x28] sm:$0xff] %v660
                %v662 = vld [vmem:[%s648 + $0x30] sm:$0xff]
                %663 = vst [vmem:[%s649 + $0x30] sm:$0xff] %v662
                %v664 = vld [vmem:[%s648 + $0x38] sm:$0xff]
                %665 = vst [vmem:[%s649 + $0x38] sm:$0xff] %v664
                %v666 = vld [vmem:[%s648 + $0x40] sm:$0xff]
                %667 = vst [vmem:[%s649 + $0x40] sm:$0xff] %v666
                %v668 = vld [vmem:[%s648 + $0x48] sm:$0xff]
                %669 = vst [vmem:[%s649 + $0x48] sm:$0xff] %v668
                %v670 = vld [vmem:[%s648 + $0x50] sm:$0xff]
                %671 = vst [vmem:[%s649 + $0x50] sm:$0xff] %v670
                %v672 = vld [vmem:[%s648 + $0x58] sm:$0xff]
                %673 = vst [vmem:[%s649 + $0x58] sm:$0xff] %v672
                %v674 = vld [vmem:[%s648 + $0x60] sm:$0xff]
                %675 = vst [vmem:[%s649 + $0x60] sm:$0xff] %v674
                %v676 = vld [vmem:[%s648 + $0x68] sm:$0xff]
                %677 = vst [vmem:[%s649 + $0x68] sm:$0xff] %v676
                %v678 = vld [vmem:[%s648 + $0x70] sm:$0xff]
                %679 = vst [vmem:[%s649 + $0x70] sm:$0xff] %v678
                %v680 = vld [vmem:[%s648 + $0x78] sm:$0xff]
                %681 = vst [vmem:[%s649 + $0x78] sm:$0xff] %v680
                %v682 = vld [vmem:[%s648 + $0x100] sm:$0xff]
                %683 = vst [vmem:[%s649 + $0x80] sm:$0xff] %v682
                %v684 = vld [vmem:[%s648 + $0x108] sm:$0xff]
                %685 = vst [vmem:[%s649 + $0x88] sm:$0xff] %v684
                %v686 = vld [vmem:[%s648 + $0x110] sm:$0xff]
                %687 = vst [vmem:[%s649 + $0x90] sm:$0xff] %v686
                %v688 = vld [vmem:[%s648 + $0x118] sm:$0xff]
                %689 = vst [vmem:[%s649 + $0x98] sm:$0xff] %v688
                %v690 = vld [vmem:[%s648 + $0x120] sm:$0xff]
                %691 = vst [vmem:[%s649 + $0xa0] sm:$0xff] %v690
                %v692 = vld [vmem:[%s648 + $0x128] sm:$0xff]
                %693 = vst [vmem:[%s649 + $0xa8] sm:$0xff] %v692
                %v694 = vld [vmem:[%s648 + $0x130] sm:$0xff]
                %695 = vst [vmem:[%s649 + $0xb0] sm:$0xff] %v694
                %v696 = vld [vmem:[%s648 + $0x138] sm:$0xff]
                %697 = vst [vmem:[%s649 + $0xb8] sm:$0xff] %v696
                %v698 = vld [vmem:[%s648 + $0x140] sm:$0xff]
                %699 = vst [vmem:[%s649 + $0xc0] sm:$0xff] %v698
                %v700 = vld [vmem:[%s648 + $0x148] sm:$0xff]
                %701 = vst [vmem:[%s649 + $0xc8] sm:$0xff] %v700
                %v702 = vld [vmem:[%s648 + $0x150] sm:$0xff]
                %703 = vst [vmem:[%s649 + $0xd0] sm:$0xff] %v702
                %v704 = vld [vmem:[%s648 + $0x158] sm:$0xff]
                %705 = vst [vmem:[%s649 + $0xd8] sm:$0xff] %v704
                %v706 = vld [vmem:[%s648 + $0x160] sm:$0xff]
                %707 = vst [vmem:[%s649 + $0xe0] sm:$0xff] %v706
                %v708 = vld [vmem:[%s648 + $0x168] sm:$0xff]
                %709 = vst [vmem:[%s649 + $0xe8] sm:$0xff] %v708
                %v710 = vld [vmem:[%s648 + $0x170] sm:$0xff]
                %711 = vst [vmem:[%s649 + $0xf0] sm:$0xff] %v710
                %v712 = vld [vmem:[%s648 + $0x178] sm:$0xff]
                %713 = vst [vmem:[%s649 + $0xf8] sm:$0xff] %v712
                %v714 = vld [vmem:[%s648 + $0x200] sm:$0xff]
                %715 = vst [vmem:[%s649 + $0x100] sm:$0xff] %v714
                %v716 = vld [vmem:[%s648 + $0x208] sm:$0xff]
                %717 = vst [vmem:[%s649 + $0x108] sm:$0xff] %v716
                %v718 = vld [vmem:[%s648 + $0x210] sm:$0xff]
                %719 = vst [vmem:[%s649 + $0x110] sm:$0xff] %v718
                %v720 = vld [vmem:[%s648 + $0x218] sm:$0xff]
                %721 = vst [vmem:[%s649 + $0x118] sm:$0xff] %v720
                %v722 = vld [vmem:[%s648 + $0x220] sm:$0xff]
                %723 = vst [vmem:[%s649 + $0x120] sm:$0xff] %v722
                %v724 = vld [vmem:[%s648 + $0x228] sm:$0xff]
                %725 = vst [vmem:[%s649 + $0x128] sm:$0xff] %v724
                %v726 = vld [vmem:[%s648 + $0x230] sm:$0xff]
                %727 = vst [vmem:[%s649 + $0x130] sm:$0xff] %v726
                %v728 = vld [vmem:[%s648 + $0x238] sm:$0xff]
                %729 = vst [vmem:[%s649 + $0x138] sm:$0xff] %v728
                %v730 = vld [vmem:[%s648 + $0x240] sm:$0xff]
                %731 = vst [vmem:[%s649 + $0x140] sm:$0xff] %v730
                %v732 = vld [vmem:[%s648 + $0x248] sm:$0xff]
                %733 = vst [vmem:[%s649 + $0x148] sm:$0xff] %v732
                %v734 = vld [vmem:[%s648 + $0x250] sm:$0xff]
                %735 = vst [vmem:[%s649 + $0x150] sm:$0xff] %v734
                %v736 = vld [vmem:[%s648 + $0x258] sm:$0xff]
                %737 = vst [vmem:[%s649 + $0x158] sm:$0xff] %v736
                %v738 = vld [vmem:[%s648 + $0x260] sm:$0xff]
                %739 = vst [vmem:[%s649 + $0x160] sm:$0xff] %v738
                %v740 = vld [vmem:[%s648 + $0x268] sm:$0xff]
                %741 = vst [vmem:[%s649 + $0x168] sm:$0xff] %v740
                %v742 = vld [vmem:[%s648 + $0x270] sm:$0xff]
                %743 = vst [vmem:[%s649 + $0x170] sm:$0xff] %v742
                %v744 = vld [vmem:[%s648 + $0x278] sm:$0xff]
                %745 = vst [vmem:[%s649 + $0x178] sm:$0xff] %v744
              $region99: #{hetgnn_forward.1} parent=93 // loop_footer
                %s647 = sadd.s32 1, %s643
              $region100: #{hetgnn_forward.1} parent=93 // loop_footer_branch
                %642 = sbr.rel target = $region96
              $region101: #{hetgnn_forward.1} parent=93 // loop_exit
                _
            $region94: #{hetgnn_forward.1} parent=85 // pred_fallthru
              _
          $region86: #{hetgnn_forward.1} parent=81 // pred_fallthru
            _
          %854 = vnop
        $region82: #{hetgnn_forward.1} parent=35 // pred_fallthru
          _
      $region36: #{hetgnn_forward.1} parent=5 // pred_fallthru
        _
      %p855 = scmp.le.s32.totalorder 1, %s15
      %p856 = scmp.lt.s32.totalorder %s15, 3
      %p857 = pnand %p855, %p856
      %p858 = pneg %p857
      // Predicated region
      $region117: #{hetgnn_forward.1} parent=5 // pred_check
        _
      $region118: #{hetgnn_forward.1} parent=5 // pred_check_branch
        %860 = sbr.rel (%p857) target = $region120
      $region119: #{hetgnn_forward.1} parent=5 // pred_region
        %s861 = ssub.s32 %s15, 1
        %s862 = sand.u32 %s54, 1
        %s863 = sand.u32 %s54, 1
        %s864 = smul.addr %s863, 640
        %s865 = scalar_lea.vmem [#allocation3], %s864
        // Predicated region
        $region121: #{hetgnn_forward.1} parent=119 // pred_check
          %p866 = pneg %p67
        $region122: #{hetgnn_forward.1} parent=119 // pred_check_branch
          %868 = sbr.rel (%p866) target = $region124
        $region123: #{hetgnn_forward.1} parent=119 // pred_region
          _
        $region124: #{hetgnn_forward.1} parent=119 // pred_fallthru
          _
        %s869 = sand.u32 %s80, 1
        %s870 = sand.u32 %s80, 1
        %s871 = smul.addr %s870, 384
        %s872 = scalar_lea.vmem [#allocation4], %s871
        // Predicated region
        $region125: #{hetgnn_forward.1} parent=119 // pred_check
          %p873 = pneg %p93
        $region126: #{hetgnn_forward.1} parent=119 // pred_check_branch
          %875 = sbr.rel (%p873) target = $region128
        $region127: #{hetgnn_forward.1} parent=119 // pred_region
          _
        $region128: #{hetgnn_forward.1} parent=119 // pred_fallthru
          _
        %s876 = smul.u32 16, %s20
        %p877 = scmp.lt.s32.totalorder %s876, 31
        %s878 = scalar_select %p877, %s876, 31
        %s879 = smul.addr %s878, 8
        %s880 = scalar_lea.vmem %s0, %s879
        %p881 = pneg %p41
        %p882 = pneg %p38
        %s883 = sand.u32 %s54, 1
        %s884 = sand.u32 %s54, 1
        %s885 = smul.addr %s884, 640
        %s886 = scalar_lea.vmem [#allocation3], %s885
        %p887 = pneg %p67
        %p888 = pneg %p64
        %s889 = sand.u32 %s80, 1
        %s890 = sand.u32 %s80, 1
        %s891 = smul.addr %s890, 384
        %s892 = scalar_lea.vmem [#allocation4], %s891
        %p893 = pneg %p93
        %p894 = pneg %p90
        %p895 = pneg %p114
        %p896 = pneg %p111
        %p897 = pneg %p135
        %p898 = pneg %p132
        %p899 = pneg %p156
        %p900 = pneg %p153
        %p901 = pneg %p177
        %p902 = pneg %p174
        %p903 = pneg %p198
        %p904 = pneg %p195
        %p905 = pneg %p224
        %p906 = pneg %p221
        %s907 = smul.u32 16, %s20
        %p908 = scmp.lt.s32.totalorder %s907, 31
        %s909 = scalar_select %p908, %s907, 31
        %s910 = smul.addr %s909, 8
        %s911 = scalar_lea.vmem %s8, %s910
        %s912 = smul.u32 16, %s20
        %p913 = scmp.lt.s32.totalorder %s912, 31
        %s914 = scalar_select %p913, %s912, 31
        %s915 = smul.addr %s914, 8
        %s916 = scalar_lea.vmem %s0, %s915
        %s917 = smul.u32 16, %s20
        %s918 = smul.u32 16, %s20
        %s919 = smul.u32 16, %s20
        %s920 = smul.u32 16, %s20
        %p921 = scmp.lt.s32.totalorder %s920, 31
        %s922 = scalar_select %p921, %s920, 31
        %s923 = smul.addr %s922, 8
        %s924 = scalar_lea.vmem %s8, %s923
        %s925 = smul.u32 16, %s20
        %v927 = vld [vmem:[%s916] sm:$0xff]
        %v928 = vld [vmem:[%s916 + $0x8] sm:$0xff]
        %v929 = vld [vmem:[%s916 + $0x10] sm:$0xff]
        %v930 = vld [vmem:[%s916 + $0x18] sm:$0xff]
        %v931 = vld [vmem:[%s916 + $0x20] sm:$0xff]
        %v932 = vld [vmem:[%s916 + $0x28] sm:$0xff]
        %v933 = vld [vmem:[%s916 + $0x30] sm:$0xff]
        %v934 = vld [vmem:[%s916 + $0x38] sm:$0xff]
        %v935 = vld [vmem:[%s916 + $0x40] sm:$0xff]
        %v936 = vld [vmem:[%s916 + $0x48] sm:$0xff]
        %v937 = vld [vmem:[%s916 + $0x50] sm:$0xff]
        %v938 = vld [vmem:[%s916 + $0x58] sm:$0xff]
        %v939 = vld [vmem:[%s916 + $0x60] sm:$0xff]
        %v940 = vld [vmem:[%s916 + $0x68] sm:$0xff]
        %v941 = vld [vmem:[%s916 + $0x70] sm:$0xff]
        %v942 = vld [vmem:[%s916 + $0x78] sm:$0xff]
        %v943 = vpack.c.bf16 %v928, %v927
        %v944 = vpack.c.bf16 %v930, %v929
        %v945 = vpack.c.bf16 %v932, %v931
        %v946 = vpack.c.bf16 %v934, %v933
        %v947 = vpack.c.bf16 %v936, %v935
        %v948 = vpack.c.bf16 %v938, %v937
        %v949 = vpack.c.bf16 %v940, %v939
        %v950 = vpack.c.bf16 %v942, %v941
        %v951 = vld [vmem:[%s4] sm:$0xff]
        %v952 = vld [vmem:[%s4 + $0x8] sm:$0xff]
        %v953 = vld [vmem:[%s4 + $0x10] sm:$0xff]
        %v954 = vld [vmem:[%s4 + $0x18] sm:$0xff]
        %v955 = vld [vmem:[%s4 + $0x20] sm:$0xff]
        %v956 = vld [vmem:[%s4 + $0x28] sm:$0xff]
        %v957 = vld [vmem:[%s4 + $0x30] sm:$0xff]
        %v958 = vld [vmem:[%s4 + $0x38] sm:$0xff]
        %v959 = vld [vmem:[%s5] sm:$0x3]
        %v960 = vld [vmem:[%s865] sm:$0xff]
        %v961 = vld [vmem:[%s865 + $0x8] sm:$0xff]
        %v962 = vld [vmem:[%s865 + $0x10] sm:$0xff]
        %v963 = vld [vmem:[%s865 + $0x18] sm:$0xff]
        %v964 = vld [vmem:[%s865 + $0x20] sm:$0xff]
        %v965 = vld [vmem:[%s865 + $0x28] sm:$0xff]
        %v966 = vld [vmem:[%s865 + $0x30] sm:$0xff]
        %v967 = vld [vmem:[%s865 + $0x38] sm:$0xff]
        %v968 = vld [vmem:[%s865 + $0x40] sm:$0xff]
        %v969 = vld [vmem:[%s865 + $0x48] sm:$0xff]
        %v970 = vld [vmem:[%s865 + $0x50] sm:$0xff]
        %v971 = vld [vmem:[%s865 + $0x58] sm:$0xff]
        %v972 = vld [vmem:[%s865 + $0x60] sm:$0xff]
        %v973 = vld [vmem:[%s865 + $0x68] sm:$0xff]
        %v974 = vld [vmem:[%s865 + $0x70] sm:$0xff]
        %v975 = vld [vmem:[%s865 + $0x78] sm:$0xff]
        %v976 = vpack.c.bf16 %v961, %v960
        %v977 = vpack.c.bf16 %v963, %v962
        %v978 = vpack.c.bf16 %v965, %v964
        %v979 = vpack.c.bf16 %v967, %v966
        %v980 = vpack.c.bf16 %v969, %v968
        %v981 = vpack.c.bf16 %v971, %v970
        %v982 = vpack.c.bf16 %v973, %v972
        %v983 = vpack.c.bf16 %v975, %v974
        %s984 = scalar_lea.vmem %s865, 128 [#allocation3]
        %v985 = vld [vmem:[%s984] sm:$0xff]
        %v986 = vld [vmem:[%s984 + $0x8] sm:$0xff]
        %v987 = vld [vmem:[%s984 + $0x10] sm:$0xff]
        %v988 = vld [vmem:[%s984 + $0x18] sm:$0xff]
        %v989 = vld [vmem:[%s984 + $0x20] sm:$0xff]
        %v990 = vld [vmem:[%s984 + $0x28] sm:$0xff]
        %v991 = vld [vmem:[%s984 + $0x30] sm:$0xff]
        %v992 = vld [vmem:[%s984 + $0x38] sm:$0xff]
        %v993 = vld [vmem:[%s984 + $0x40] sm:$0xff]
        %v994 = vld [vmem:[%s984 + $0x48] sm:$0xff]
        %v995 = vld [vmem:[%s984 + $0x50] sm:$0xff]
        %v996 = vld [vmem:[%s984 + $0x58] sm:$0xff]
        %v997 = vld [vmem:[%s984 + $0x60] sm:$0xff]
        %v998 = vld [vmem:[%s984 + $0x68] sm:$0xff]
        %v999 = vld [vmem:[%s984 + $0x70] sm:$0xff]
        %v1000 = vld [vmem:[%s984 + $0x78] sm:$0xff]
        %v1001 = vpack.c.bf16 %v986, %v985
        %v1002 = vpack.c.bf16 %v988, %v987
        %v1003 = vpack.c.bf16 %v990, %v989
        %v1004 = vpack.c.bf16 %v992, %v991
        %v1005 = vpack.c.bf16 %v994, %v993
        %v1006 = vpack.c.bf16 %v996, %v995
        %v1007 = vpack.c.bf16 %v998, %v997
        %v1008 = vpack.c.bf16 %v1000, %v999
        %s1009 = scalar_lea.vmem %s865, 256 [#allocation3]
        %v1010 = vld [vmem:[%s1009] sm:$0xff]
        %v1011 = vld [vmem:[%s1009 + $0x8] sm:$0xff]
        %v1012 = vld [vmem:[%s1009 + $0x10] sm:$0xff]
        %v1013 = vld [vmem:[%s1009 + $0x18] sm:$0xff]
        %v1014 = vld [vmem:[%s1009 + $0x20] sm:$0xff]
        %v1015 = vld [vmem:[%s1009 + $0x28] sm:$0xff]
        %v1016 = vld [vmem:[%s1009 + $0x30] sm:$0xff]
        %v1017 = vld [vmem:[%s1009 + $0x38] sm:$0xff]
        %v1018 = vld [vmem:[%s1009 + $0x40] sm:$0xff]
        %v1019 = vld [vmem:[%s1009 + $0x48] sm:$0xff]
        %v1020 = vld [vmem:[%s1009 + $0x50] sm:$0xff]
        %v1021 = vld [vmem:[%s1009 + $0x58] sm:$0xff]
        %v1022 = vld [vmem:[%s1009 + $0x60] sm:$0xff]
        %v1023 = vld [vmem:[%s1009 + $0x68] sm:$0xff]
        %v1024 = vld [vmem:[%s1009 + $0x70] sm:$0xff]
        %v1025 = vld [vmem:[%s1009 + $0x78] sm:$0xff]
        %v1026 = vpack.c.bf16 %v1011, %v1010
        %v1027 = vpack.c.bf16 %v1013, %v1012
        %v1028 = vpack.c.bf16 %v1015, %v1014
        %v1029 = vpack.c.bf16 %v1017, %v1016
        %v1030 = vpack.c.bf16 %v1019, %v1018
        %v1031 = vpack.c.bf16 %v1021, %v1020
        %v1032 = vpack.c.bf16 %v1023, %v1022
        %v1033 = vpack.c.bf16 %v1025, %v1024
        %s1034 = scalar_lea.vmem %s865, 384 [#allocation3]
        %v1035 = vld [vmem:[%s1034] sm:$0xff]
        %v1036 = vld [vmem:[%s1034 + $0x8] sm:$0xff]
        %v1037 = vld [vmem:[%s1034 + $0x10] sm:$0xff]
        %v1038 = vld [vmem:[%s1034 + $0x18] sm:$0xff]
        %v1039 = vld [vmem:[%s1034 + $0x20] sm:$0xff]
        %v1040 = vld [vmem:[%s1034 + $0x28] sm:$0xff]
        %v1041 = vld [vmem:[%s1034 + $0x30] sm:$0xff]
        %v1042 = vld [vmem:[%s1034 + $0x38] sm:$0xff]
        %v1043 = vld [vmem:[%s1034 + $0x40] sm:$0xff]
        %v1044 = vld [vmem:[%s1034 + $0x48] sm:$0xff]
        %v1045 = vld [vmem:[%s1034 + $0x50] sm:$0xff]
        %v1046 = vld [vmem:[%s1034 + $0x58] sm:$0xff]
        %v1047 = vld [vmem:[%s1034 + $0x60] sm:$0xff]
        %v1048 = vld [vmem:[%s1034 + $0x68] sm:$0xff]
        %v1049 = vld [vmem:[%s1034 + $0x70] sm:$0xff]
        %v1050 = vld [vmem:[%s1034 + $0x78] sm:$0xff]
        %v1051 = vpack.c.bf16 %v1036, %v1035
        %v1052 = vpack.c.bf16 %v1038, %v1037
        %v1053 = vpack.c.bf16 %v1040, %v1039
        %v1054 = vpack.c.bf16 %v1042, %v1041
        %v1055 = vpack.c.bf16 %v1044, %v1043
        %v1056 = vpack.c.bf16 %v1046, %v1045
        %v1057 = vpack.c.bf16 %v1048, %v1047
        %v1058 = vpack.c.bf16 %v1050, %v1049
        %s1059 = scalar_lea.vmem %s865, 512 [#allocation3]
        %v1060 = vld [vmem:[%s1059] sm:$0xff]
        %v1061 = vld [vmem:[%s1059 + $0x8] sm:$0xff]
        %v1062 = vld [vmem:[%s1059 + $0x10] sm:$0xff]
        %v1063 = vld [vmem:[%s1059 + $0x18] sm:$0xff]
        %v1064 = vld [vmem:[%s1059 + $0x20] sm:$0xff]
        %v1065 = vld [vmem:[%s1059 + $0x28] sm:$0xff]
        %v1066 = vld [vmem:[%s1059 + $0x30] sm:$0xff]
        %v1067 = vld [vmem:[%s1059 + $0x38] sm:$0xff]
        %v1068 = vld [vmem:[%s1059 + $0x40] sm:$0xff]
        %v1069 = vld [vmem:[%s1059 + $0x48] sm:$0xff]
        %v1070 = vld [vmem:[%s1059 + $0x50] sm:$0xff]
        %v1071 = vld [vmem:[%s1059 + $0x58] sm:$0xff]
        %v1072 = vld [vmem:[%s1059 + $0x60] sm:$0xff]
        %v1073 = vld [vmem:[%s1059 + $0x68] sm:$0xff]
        %v1074 = vld [vmem:[%s1059 + $0x70] sm:$0xff]
        %v1075 = vld [vmem:[%s1059 + $0x78] sm:$0xff]
        %v1076 = vpack.c.bf16 %v1061, %v1060
        %v1077 = vpack.c.bf16 %v1063, %v1062
        %v1078 = vpack.c.bf16 %v1065, %v1064
        %v1079 = vpack.c.bf16 %v1067, %v1066
        %v1080 = vpack.c.bf16 %v1069, %v1068
        %v1081 = vpack.c.bf16 %v1071, %v1070
        %v1082 = vpack.c.bf16 %v1073, %v1072
        %v1083 = vpack.c.bf16 %v1075, %v1074
        %1132 = vrot.lane.b32.xlu0 %v1076, 32
        %v1133 = vpop.permute.xlu0 %1132
        %1134 = vrot.lane.b32.xlu0 %v1077, 32
        %v1135 = vpop.permute.xlu0 %1134
        %1136 = vrot.lane.b32.xlu0 %v1078, 32
        %v1137 = vpop.permute.xlu0 %1136
        %1138 = vrot.lane.b32.xlu0 %v1079, 32
        %v1139 = vpop.permute.xlu0 %1138
        %1140 = vrot.lane.b32.xlu0 %v1080, 32
        %v1141 = vpop.permute.xlu0 %1140
        %1142 = vrot.lane.b32.xlu0 %v1081, 32
        %v1143 = vpop.permute.xlu0 %1142
        %1144 = vrot.lane.b32.xlu0 %v1082, 32
        %v1145 = vpop.permute.xlu0 %1144
        %1146 = vrot.lane.b32.xlu0 %v1083, 32
        %v1147 = vpop.permute.xlu0 %1146
        %1148 = vrot.lane.b32.xlu0 %v1051, 32
        %v1149 = vpop.permute.xlu0 %1148
        %1150 = vrot.lane.b32.xlu0 %v1052, 32
        %v1151 = vpop.permute.xlu0 %1150
        %1152 = vrot.lane.b32.xlu0 %v1053, 32
        %v1153 = vpop.permute.xlu0 %1152
        %1154 = vrot.lane.b32.xlu0 %v1054, 32
        %v1155 = vpop.permute.xlu0 %1154
        %1156 = vrot.lane.b32.xlu0 %v1055, 32
        %v1157 = vpop.permute.xlu0 %1156
        %1158 = vrot.lane.b32.xlu0 %v1056, 32
        %v1159 = vpop.permute.xlu0 %1158
        %1160 = vrot.lane.b32.xlu0 %v1057, 32
        %v1161 = vpop.permute.xlu0 %1160
        %1162 = vrot.lane.b32.xlu0 %v1058, 32
        %v1163 = vpop.permute.xlu0 %1162
        %1164 = vrot.lane.b32.xlu0 %v1026, 32
        %v1165 = vpop.permute.xlu0 %1164
        %1166 = vrot.lane.b32.xlu0 %v1027, 32
        %v1167 = vpop.permute.xlu0 %1166
        %1168 = vrot.lane.b32.xlu0 %v1028, 32
        %v1169 = vpop.permute.xlu0 %1168
        %1170 = vrot.lane.b32.xlu0 %v1029, 32
        %v1171 = vpop.permute.xlu0 %1170
        %1172 = vrot.lane.b32.xlu0 %v1030, 32
        %v1173 = vpop.permute.xlu0 %1172
        %1174 = vrot.lane.b32.xlu0 %v1031, 32
        %v1175 = vpop.permute.xlu0 %1174
        %1176 = vrot.lane.b32.xlu0 %v1032, 32
        %v1177 = vpop.permute.xlu0 %1176
        %1178 = vrot.lane.b32.xlu0 %v1033, 32
        %v1179 = vpop.permute.xlu0 %1178
        %1180 = vrot.lane.b32.xlu0 %v1001, 32
        %v1181 = vpop.permute.xlu0 %1180
        %1182 = vrot.lane.b32.xlu0 %v1002, 32
        %v1183 = vpop.permute.xlu0 %1182
        %1184 = vrot.lane.b32.xlu0 %v1003, 32
        %v1185 = vpop.permute.xlu0 %1184
        %1186 = vrot.lane.b32.xlu0 %v1004, 32
        %v1187 = vpop.permute.xlu0 %1186
        %1188 = vrot.lane.b32.xlu0 %v1005, 32
        %v1189 = vpop.permute.xlu0 %1188
        %1190 = vrot.lane.b32.xlu0 %v1006, 32
        %v1191 = vpop.permute.xlu0 %1190
        %1192 = vrot.lane.b32.xlu0 %v1007, 32
        %v1193 = vpop.permute.xlu0 %1192
        %1194 = vrot.lane.b32.xlu0 %v1008, 32
        %v1195 = vpop.permute.xlu0 %1194
        %1196 = vrot.lane.b32.xlu0 %v976, 32
        %v1197 = vpop.permute.xlu0 %1196
        %1198 = vrot.lane.b32.xlu0 %v977, 32
        %v1199 = vpop.permute.xlu0 %1198
        %1200 = vrot.lane.b32.xlu0 %v978, 32
        %v1201 = vpop.permute.xlu0 %1200
        %1202 = vrot.lane.b32.xlu0 %v979, 32
        %v1203 = vpop.permute.xlu0 %1202
        %1204 = vrot.lane.b32.xlu0 %v980, 32
        %v1205 = vpop.permute.xlu0 %1204
        %1206 = vrot.lane.b32.xlu0 %v981, 32
        %v1207 = vpop.permute.xlu0 %1206
        %1208 = vrot.lane.b32.xlu0 %v982, 32
        %v1209 = vpop.permute.xlu0 %1208
        %1210 = vrot.lane.b32.xlu0 %v983, 32
        %v1211 = vpop.permute.xlu0 %1210
        %1212 = vrot.lane.b32.xlu0 %v943, 32
        %v1213 = vpop.permute.xlu0 %1212
        %1214 = vrot.lane.b32.xlu0 %v944, 32
        %v1215 = vpop.permute.xlu0 %1214
        %1216 = vrot.lane.b32.xlu0 %v945, 32
        %v1217 = vpop.permute.xlu0 %1216
        %1218 = vrot.lane.b32.xlu0 %v946, 32
        %v1219 = vpop.permute.xlu0 %1218
        %1220 = vrot.lane.b32.xlu0 %v947, 32
        %v1221 = vpop.permute.xlu0 %1220
        %1222 = vrot.lane.b32.xlu0 %v948, 32
        %v1223 = vpop.permute.xlu0 %1222
        %1224 = vrot.lane.b32.xlu0 %v949, 32
        %v1225 = vpop.permute.xlu0 %1224
        %1226 = vrot.lane.b32.xlu0 %v950, 32
        %v1227 = vpop.permute.xlu0 %1226
        %vm1228 = vcmask 261120
        %v1231 = vsel %vm1228, %v943, %v1133
        %v1234 = vsel %vm1228, %v944, %v1135
        %v1237 = vsel %vm1228, %v945, %v1137
        %v1240 = vsel %vm1228, %v946, %v1139
        %v1243 = vsel %vm1228, %v947, %v1141
        %v1246 = vsel %vm1228, %v948, %v1143
        %v1249 = vsel %vm1228, %v949, %v1145
        %v1252 = vsel %vm1228, %v950, %v1147
        %v1255 = vsel %vm1228, %v976, %v1149
        %v1258 = vsel %vm1228, %v977, %v1151
        %v1261 = vsel %vm1228, %v978, %v1153
        %v1264 = vsel %vm1228, %v979, %v1155
        %v1267 = vsel %vm1228, %v980, %v1157
        %v1270 = vsel %vm1228, %v981, %v1159
        %v1273 = vsel %vm1228, %v982, %v1161
        %v1276 = vsel %vm1228, %v983, %v1163
        %v1279 = vsel %vm1228, %v1001, %v1165
        %v1282 = vsel %vm1228, %v1002, %v1167
        %v1285 = vsel %vm1228, %v1003, %v1169
        %v1288 = vsel %vm1228, %v1004, %v1171
        %v1291 = vsel %vm1228, %v1005, %v1173
        %v1294 = vsel %vm1228, %v1006, %v1175
        %v1297 = vsel %vm1228, %v1007, %v1177
        %v1300 = vsel %vm1228, %v1008, %v1179
        %v1303 = vsel %vm1228, %v1026, %v1181
        %v1306 = vsel %vm1228, %v1027, %v1183
        %v1309 = vsel %vm1228, %v1028, %v1185
        %v1312 = vsel %vm1228, %v1029, %v1187
        %v1315 = vsel %vm1228, %v1030, %v1189
        %v1318 = vsel %vm1228, %v1031, %v1191
        %v1321 = vsel %vm1228, %v1032, %v1193
        %v1324 = vsel %vm1228, %v1033, %v1195
        %v1327 = vsel %vm1228, %v1051, %v1197
        %v1330 = vsel %vm1228, %v1052, %v1199
        %v1333 = vsel %vm1228, %v1053, %v1201
        %v1336 = vsel %vm1228, %v1054, %v1203
        %v1339 = vsel %vm1228, %v1055, %v1205
        %v1342 = vsel %vm1228, %v1056, %v1207
        %v1345 = vsel %vm1228, %v1057, %v1209
        %v1348 = vsel %vm1228, %v1058, %v1211
        %v1351 = vsel %vm1228, %v1076, %v1213
        %v1354 = vsel %vm1228, %v1077, %v1215
        %v1357 = vsel %vm1228, %v1078, %v1217
        %v1360 = vsel %vm1228, %v1079, %v1219
        %v1363 = vsel %vm1228, %v1080, %v1221
        %v1366 = vsel %vm1228, %v1081, %v1223
        %v1369 = vsel %vm1228, %v1082, %v1225
        %v1372 = vsel %vm1228, %v1083, %v1227
        %v1373 = vld [vmem:[%s3] sm:$0xff]
        %v1374 = vld [vmem:[%s3 + $0x8] sm:$0xff]
        %v1375 = vld [vmem:[%s3 + $0x10] sm:$0xff]
        %v1376 = vld [vmem:[%s3 + $0x18] sm:$0xff]
        %v1377 = vld [vmem:[%s3 + $0x20] sm:$0xff]
        %v1378 = vld [vmem:[%s3 + $0x28] sm:$0xff]
        %v1379 = vld [vmem:[%s3 + $0x30] sm:$0xff]
        %v1380 = vld [vmem:[%s3 + $0x38] sm:$0xff]
        %v1382 = vlaneseq
        %v1383 = vshrl.u32 %v1382, 7
        %v1384 = vsub.s32 0, %v1383
        %v1385 = vrot.slane %v959, %v1384
        %v1386 = vlaneseq
        %v1387 = vshrl.u32 %v1386, 7
        %v1388 = vsub.s32 1, %v1387
        %v1389 = vrot.slane %v959, %v1388
        %v1400 = vunpack.c.l.b16 %v1373
        %v1401 = vunpack.c.h.b16 %v1373
        %v1402 = vunpack.c.l.b16 %v1374
        %v1403 = vunpack.c.h.b16 %v1374
        %v1404 = vunpack.c.l.b16 %v1375
        %v1405 = vunpack.c.h.b16 %v1375
        %v1406 = vunpack.c.l.b16 %v1376
        %v1407 = vunpack.c.h.b16 %v1376
        %v1408 = vunpack.c.l.b16 %v1377
        %v1409 = vunpack.c.h.b16 %v1377
        %v1410 = vunpack.c.l.b16 %v1378
        %v1411 = vunpack.c.h.b16 %v1378
        %v1412 = vunpack.c.l.b16 %v1379
        %v1413 = vunpack.c.h.b16 %v1379
        %v1414 = vunpack.c.l.b16 %v1380
        %v1415 = vunpack.c.h.b16 %v1380
        %v1416 = vpack.c.b16 %v1402, %v1400
        %v1417 = vpack.c.b16 %v1403, %v1401
        %v1418 = vpack.c.b16 %v1406, %v1404
        %v1419 = vpack.c.b16 %v1407, %v1405
        %v1420 = vpack.c.b16 %v1410, %v1408
        %v1421 = vpack.c.b16 %v1411, %v1409
        %v1422 = vpack.c.b16 %v1414, %v1412
        %v1423 = vpack.c.b16 %v1415, %v1413
        %vm1432 = vcmask 523264
        %v1433 = vsel %vm1432, %v1231, 0
        %v1435 = vsel %vm1432, %v1234, 0
        %v1437 = vsel %vm1432, %v1237, 0
        %v1439 = vsel %vm1432, %v1240, 0
        %v1441 = vsel %vm1432, %v1243, 0
        %v1443 = vsel %vm1432, %v1246, 0
        %v1445 = vsel %vm1432, %v1249, 0
        %v1447 = vsel %vm1432, %v1252, 0
        %v1449 = vsel %vm1432, %v1255, 0
        %v1451 = vsel %vm1432, %v1258, 0
        %v1453 = vsel %vm1432, %v1261, 0
        %v1455 = vsel %vm1432, %v1264, 0
        %v1457 = vsel %vm1432, %v1267, 0
        %v1459 = vsel %vm1432, %v1270, 0
        %v1461 = vsel %vm1432, %v1273, 0
        %v1463 = vsel %vm1432, %v1276, 0
        %v1465 = vsel %vm1432, %v1279, 0
        %v1467 = vsel %vm1432, %v1282, 0
        %v1469 = vsel %vm1432, %v1285, 0
        %v1471 = vsel %vm1432, %v1288, 0
        %v1473 = vsel %vm1432, %v1291, 0
        %v1475 = vsel %vm1432, %v1294, 0
        %v1477 = vsel %vm1432, %v1297, 0
        %v1479 = vsel %vm1432, %v1300, 0
        %v1481 = vsel %vm1432, %v1303, 0
        %v1483 = vsel %vm1432, %v1306, 0
        %v1485 = vsel %vm1432, %v1309, 0
        %v1487 = vsel %vm1432, %v1312, 0
        %v1489 = vsel %vm1432, %v1315, 0
        %v1491 = vsel %vm1432, %v1318, 0
        %v1493 = vsel %vm1432, %v1321, 0
        %v1495 = vsel %vm1432, %v1324, 0
        %v1497 = vsel %vm1432, %v1327, 0
        %v1499 = vsel %vm1432, %v1330, 0
        %v1501 = vsel %vm1432, %v1333, 0
        %v1503 = vsel %vm1432, %v1336, 0
        %v1505 = vsel %vm1432, %v1339, 0
        %v1507 = vsel %vm1432, %v1342, 0
        %v1509 = vsel %vm1432, %v1345, 0
        %v1511 = vsel %vm1432, %v1348, 0
        %v1513 = vsel %vm1432, %v1351, 0
        %v1515 = vsel %vm1432, %v1354, 0
        %v1517 = vsel %vm1432, %v1357, 0
        %v1519 = vsel %vm1432, %v1360, 0
        %v1521 = vsel %vm1432, %v1363, 0
        %v1523 = vsel %vm1432, %v1366, 0
        %v1525 = vsel %vm1432, %v1369, 0
        %v1527 = vsel %vm1432, %v1372, 0
        %1529 = vmatprep.subr.bf16.mxu0 %v1417
        %1530 = vmatpush1.bf16.msra.mxu0 %v1416
        %1531 = vmatprep.subr.bf16.mxu0 %v1419
        %1532 = vmatpush1.bf16.msra.mxu0 %v1418
        %1533 = vmatprep.subr.bf16.mxu0 %v1421
        %1534 = vmatpush1.bf16.msra.mxu0 %v1420
        %1535 = vmatprep.subr.bf16.mxu0 %v1423
        %1536 = vmatpush1.bf16.msra.mxu0 %v1422
        %1537 = vmatprep.subr.bf16.mxu0 0
        %1538 = vmatpush1.bf16.msra.mxu0 0
        %1539 = vmatprep.subr.bf16.mxu0 0
        %1540 = vmatpush1.bf16.msra.mxu0 0
        %1541 = vmatprep.subr.bf16.mxu0 0
        %1542 = vmatpush1.bf16.msra.mxu0 0
        %1543 = vmatprep.subr.bf16.mxu0 0
        %1544 = vmatpush1.bf16.msra.mxu0 0
        %1545 = vmatprep.subr.bf16.mxu0 0
        %1546 = vmatpush1.bf16.msra.mxu0 0
        %1547 = vmatprep.subr.bf16.mxu0 0
        %1548 = vmatpush1.bf16.msra.mxu0 0
        %1549 = vmatprep.subr.bf16.mxu0 0
        %1550 = vmatpush1.bf16.msra.mxu0 0
        %1551 = vmatprep.subr.bf16.mxu0 0
        %1552 = vmatpush1.bf16.msra.mxu0 0
        %1553 = vmatprep.subr.bf16.mxu0 0
        %1554 = vmatpush1.bf16.msra.mxu0 0
        %1555 = vmatprep.subr.bf16.mxu0 0
        %1556 = vmatpush1.bf16.msra.mxu0 0
        %1557 = vmatprep.subr.bf16.mxu0 0
        %1558 = vmatpush1.bf16.msra.mxu0 0
        %1559 = vmatprep.subr.bf16.mxu0 0
        %1560 = vmatpush1.bf16.msra.mxu0 0
        %1561 = vmatprep.mubr.bf16.mxu0 0
        %1562 = vmatmul.mubr.bf16.gmra.mrb[0].mxu0 %v1433
        %v1563 = vpop.f32.mrb[0].mxu0
        %v1564 = vadd.f32 %v1385, %v1563
        %v1565 = vpop.f32.mrb[0].mxu0
        %v1566 = vadd.f32 %v1389, %v1565
        %v1567 = vpop.f32.mrb[0].mxu0
        %v1568 = vadd.f32 %v1385, %v1567
        %v1569 = vpop.f32.mrb[0].mxu0
        %v1570 = vadd.f32 %v1389, %v1569
        %1571 = vmatprep.mubr.bf16.mxu0 0
        %1572 = vmatmul.mubr.bf16.gmra.mrb[0].mxu0 %v1435
        %v1573 = vpop.f32.mrb[0].mxu0
        %v1574 = vadd.f32 %v1385, %v1573
        %v1575 = vpop.f32.mrb[0].mxu0
        %v1576 = vadd.f32 %v1389, %v1575
        %v1577 = vpop.f32.mrb[0].mxu0
        %v1578 = vadd.f32 %v1385, %v1577
        %v1579 = vpop.f32.mrb[0].mxu0
        %v1580 = vadd.f32 %v1389, %v1579
        %1581 = vmatprep.mubr.bf16.mxu0 0
        %1582 = vmatmul.mubr.bf16.gmra.mrb[0].mxu0 %v1437
        %v1583 = vpop.f32.mrb[0].mxu0
        %v1584 = vadd.f32 %v1385, %v1583
        %v1585 = vpop.f32.mrb[0].mxu0
        %v1586 = vadd.f32 %v1389, %v1585
        %v1587 = vpop.f32.mrb[0].mxu0
        %v1588 = vadd.f32 %v1385, %v1587
        %v1589 = vpop.f32.mrb[0].mxu0
        %v1590 = vadd.f32 %v1389, %v1589
        %1591 = vmatprep.mubr.bf16.mxu0 0
        %1592 = vmatmul.mubr.bf16.gmra.mrb[0].mxu0 %v1439
        %v1593 = vpop.f32.mrb[0].mxu0
        %v1594 = vadd.f32 %v1385, %v1593
        %v1595 = vpop.f32.mrb[0].mxu0
        %v1596 = vadd.f32 %v1389, %v1595
        %v1597 = vpop.f32.mrb[0].mxu0
        %v1598 = vadd.f32 %v1385, %v1597
        %v1599 = vpop.f32.mrb[0].mxu0
        %v1600 = vadd.f32 %v1389, %v1599
        %1601 = vmatprep.mubr.bf16.mxu0 0
        %1602 = vmatmul.mubr.bf16.gmra.mrb[0].mxu0 %v1441
        %v1603 = vpop.f32.mrb[0].mxu0
        %v1604 = vadd.f32 %v1385, %v1603
        %v1605 = vpop.f32.mrb[0].mxu0
        %v1606 = vadd.f32 %v1389, %v1605
        %v1607 = vpop.f32.mrb[0].mxu0
        %v1608 = vadd.f32 %v1385, %v1607
        %v1609 = vpop.f32.mrb[0].mxu0
        %v1610 = vadd.f32 %v1389, %v1609
        %1611 = vmatprep.mubr.bf16.mxu0 0
        %1612 = vmatmul.mubr.bf16.gmra.mrb[0].mxu0 %v1443
        %v1613 = vpop.f32.mrb[0].mxu0
        %v1614 = vadd.f32 %v1385, %v1613
        %v1615 = vpop.f32.mrb[0].mxu0
        %v1616 = vadd.f32 %v1389, %v1615
        %v1617 = vpop.f32.mrb[0].mxu0
        %v1618 = vadd.f32 %v1385, %v1617
        %v1619 = vpop.f32.mrb[0].mxu0
        %v1620 = vadd.f32 %v1389, %v1619
        %1621 = vmatprep.mubr.bf16.mxu0 0
        %1622 = vmatmul.mubr.bf16.gmra.mrb[0].mxu0 %v1445
        %v1623 = vpop.f32.mrb[0].mxu0
        %v1624 = vadd.f32 %v1385, %v1623
        %v1625 = vpop.f32.mrb[0].mxu0
        %v1626 = vadd.f32 %v1389, %v1625
        %v1627 = vpop.f32.mrb[0].mxu0
        %v1628 = vadd.f32 %v1385, %v1627
        %v1629 = vpop.f32.mrb[0].mxu0
        %v1630 = vadd.f32 %v1389, %v1629
        %1631 = vmatprep.mubr.bf16.mxu0 0
        %1632 = vmatmul.mubr.bf16.gmra.mrb[0].mxu0 %v1447
        %v1633 = vpop.f32.mrb[0].mxu0
        %v1634 = vadd.f32 %v1385, %v1633
        %v1635 = vpop.f32.mrb[0].mxu0
        %v1636 = vadd.f32 %v1389, %v1635
        %v1637 = vpop.f32.mrb[0].mxu0
        %v1638 = vadd.f32 %v1385, %v1637
        %v1639 = vpop.f32.mrb[0].mxu0
        %v1640 = vadd.f32 %v1389, %v1639
        %1641 = vmatprep.mubr.bf16.mxu0 0
        %1642 = vmatmul.mubr.bf16.gmra.mrb[0].mxu0 %v1449
        %v1643 = vpop.f32.mrb[0].mxu0
        %v1644 = vadd.f32 %v1385, %v1643
        %v1645 = vpop.f32.mrb[0].mxu0
        %v1646 = vadd.f32 %v1389, %v1645
        %v1647 = vpop.f32.mrb[0].mxu0
        %v1648 = vadd.f32 %v1385, %v1647
        %v1649 = vpop.f32.mrb[0].mxu0
        %v1650 = vadd.f32 %v1389, %v1649
        %1651 = vmatprep.mubr.bf16.mxu0 0
        %1652 = vmatmul.mubr.bf16.gmra.mrb[0].mxu0 %v1451
        %v1653 = vpop.f32.mrb[0].mxu0
        %v1654 = vadd.f32 %v1385, %v1653
        %v1655 = vpop.f32.mrb[0].mxu0
        %v1656 = vadd.f32 %v1389, %v1655
        %v1657 = vpop.f32.mrb[0].mxu0
        %v1658 = vadd.f32 %v1385, %v1657
        %v1659 = vpop.f32.mrb[0].mxu0
        %v1660 = vadd.f32 %v1389, %v1659
        %1661 = vmatprep.mubr.bf16.mxu0 0
        %1662 = vmatmul.mubr.bf16.gmra.mrb[0].mxu0 %v1453
        %v1663 = vpop.f32.mrb[0].mxu0
        %v1664 = vadd.f32 %v1385, %v1663
        %v1665 = vpop.f32.mrb[0].mxu0
        %v1666 = vadd.f32 %v1389, %v1665
        %v1667 = vpop.f32.mrb[0].mxu0
        %v1668 = vadd.f32 %v1385, %v1667
        %v1669 = vpop.f32.mrb[0].mxu0
        %v1670 = vadd.f32 %v1389, %v1669
        %1671 = vmatprep.mubr.bf16.mxu0 0
        %1672 = vmatmul.mubr.bf16.gmra.mrb[0].mxu0 %v1455
        %v1673 = vpop.f32.mrb[0].mxu0
        %v1674 = vadd.f32 %v1385, %v1673
        %v1675 = vpop.f32.mrb[0].mxu0
        %v1676 = vadd.f32 %v1389, %v1675
        %v1677 = vpop.f32.mrb[0].mxu0
        %v1678 = vadd.f32 %v1385, %v1677
        %v1679 = vpop.f32.mrb[0].mxu0
        %v1680 = vadd.f32 %v1389, %v1679
        %1681 = vmatprep.mubr.bf16.mxu0 0
        %1682 = vmatmul.mubr.bf16.gmra.mrb[0].mxu0 %v1457
        %v1683 = vpop.f32.mrb[0].mxu0
        %v1684 = vadd.f32 %v1385, %v1683
        %v1685 = vpop.f32.mrb[0].mxu0
        %v1686 = vadd.f32 %v1389, %v1685
        %v1687 = vpop.f32.mrb[0].mxu0
        %v1688 = vadd.f32 %v1385, %v1687
        %v1689 = vpop.f32.mrb[0].mxu0
        %v1690 = vadd.f32 %v1389, %v1689
        %1691 = vmatprep.mubr.bf16.mxu0 0
        %1692 = vmatmul.mubr.bf16.gmra.mrb[0].mxu0 %v1459
        %v1693 = vpop.f32.mrb[0].mxu0
        %v1694 = vadd.f32 %v1385, %v1693
        %v1695 = vpop.f32.mrb[0].mxu0
        %v1696 = vadd.f32 %v1389, %v1695
        %v1697 = vpop.f32.mrb[0].mxu0
        %v1698 = vadd.f32 %v1385, %v1697
        %v1699 = vpop.f32.mrb[0].mxu0
        %v1700 = vadd.f32 %v1389, %v1699
        %1701 = vmatprep.mubr.bf16.mxu0 0
        %1702 = vmatmul.mubr.bf16.gmra.mrb[0].mxu0 %v1461
        %v1703 = vpop.f32.mrb[0].mxu0
        %v1704 = vadd.f32 %v1385, %v1703
        %v1705 = vpop.f32.mrb[0].mxu0
        %v1706 = vadd.f32 %v1389, %v1705
        %v1707 = vpop.f32.mrb[0].mxu0
        %v1708 = vadd.f32 %v1385, %v1707
        %v1709 = vpop.f32.mrb[0].mxu0
        %v1710 = vadd.f32 %v1389, %v1709
        %1711 = vmatprep.mubr.bf16.mxu0 0
        %1712 = vmatmul.mubr.bf16.gmra.mrb[0].mxu0 %v1463
        %v1713 = vpop.f32.mrb[0].mxu0
        %v1714 = vadd.f32 %v1385, %v1713
        %v1715 = vpop.f32.mrb[0].mxu0
        %v1716 = vadd.f32 %v1389, %v1715
        %v1717 = vpop.f32.mrb[0].mxu0
        %v1718 = vadd.f32 %v1385, %v1717
        %v1719 = vpop.f32.mrb[0].mxu0
        %v1720 = vadd.f32 %v1389, %v1719
        %1721 = vmatprep.mubr.bf16.mxu0 0
        %1722 = vmatmul.mubr.bf16.gmra.mrb[0].mxu0 %v1465
        %v1723 = vpop.f32.mrb[0].mxu0
        %v1724 = vadd.f32 %v1385, %v1723
        %v1725 = vpop.f32.mrb[0].mxu0
        %v1726 = vadd.f32 %v1389, %v1725
        %v1727 = vpop.f32.mrb[0].mxu0
        %v1728 = vadd.f32 %v1385, %v1727
        %v1729 = vpop.f32.mrb[0].mxu0
        %v1730 = vadd.f32 %v1389, %v1729
        %1731 = vmatprep.mubr.bf16.mxu0 0
        %1732 = vmatmul.mubr.bf16.gmra.mrb[0].mxu0 %v1467
        %v1733 = vpop.f32.mrb[0].mxu0
        %v1734 = vadd.f32 %v1385, %v1733
        %v1735 = vpop.f32.mrb[0].mxu0
        %v1736 = vadd.f32 %v1389, %v1735
        %v1737 = vpop.f32.mrb[0].mxu0
        %v1738 = vadd.f32 %v1385, %v1737
        %v1739 = vpop.f32.mrb[0].mxu0
        %v1740 = vadd.f32 %v1389, %v1739
        %1741 = vmatprep.mubr.bf16.mxu0 0
        %1742 = vmatmul.mubr.bf16.gmra.mrb[0].mxu0 %v1469
        %v1743 = vpop.f32.mrb[0].mxu0
        %v1744 = vadd.f32 %v1385, %v1743
        %v1745 = vpop.f32.mrb[0].mxu0
        %v1746 = vadd.f32 %v1389, %v1745
        %v1747 = vpop.f32.mrb[0].mxu0
        %v1748 = vadd.f32 %v1385, %v1747
        %v1749 = vpop.f32.mrb[0].mxu0
        %v1750 = vadd.f32 %v1389, %v1749
        %1751 = vmatprep.mubr.bf16.mxu0 0
        %1752 = vmatmul.mubr.bf16.gmra.mrb[0].mxu0 %v1471
        %v1753 = vpop.f32.mrb[0].mxu0
        %v1754 = vadd.f32 %v1385, %v1753
        %v1755 = vpop.f32.mrb[0].mxu0
        %v1756 = vadd.f32 %v1389, %v1755
        %v1757 = vpop.f32.mrb[0].mxu0
        %v1758 = vadd.f32 %v1385, %v1757
        %v1759 = vpop.f32.mrb[0].mxu0
        %v1760 = vadd.f32 %v1389, %v1759
        %1761 = vmatprep.mubr.bf16.mxu0 0
        %1762 = vmatmul.mubr.bf16.gmra.mrb[0].mxu0 %v1473
        %v1763 = vpop.f32.mrb[0].mxu0
        %v1764 = vadd.f32 %v1385, %v1763
        %v1765 = vpop.f32.mrb[0].mxu0
        %v1766 = vadd.f32 %v1389, %v1765
        %v1767 = vpop.f32.mrb[0].mxu0
        %v1768 = vadd.f32 %v1385, %v1767
        %v1769 = vpop.f32.mrb[0].mxu0
        %v1770 = vadd.f32 %v1389, %v1769
        %1771 = vmatprep.mubr.bf16.mxu0 0
        %1772 = vmatmul.mubr.bf16.gmra.mrb[0].mxu0 %v1475
        %v1773 = vpop.f32.mrb[0].mxu0
        %v1774 = vadd.f32 %v1385, %v1773
        %v1775 = vpop.f32.mrb[0].mxu0
        %v1776 = vadd.f32 %v1389, %v1775
        %v1777 = vpop.f32.mrb[0].mxu0
        %v1778 = vadd.f32 %v1385, %v1777
        %v1779 = vpop.f32.mrb[0].mxu0
        %v1780 = vadd.f32 %v1389, %v1779
        %1781 = vmatprep.mubr.bf16.mxu0 0
        %1782 = vmatmul.mubr.bf16.gmra.mrb[0].mxu0 %v1477
        %v1783 = vpop.f32.mrb[0].mxu0
        %v1784 = vadd.f32 %v1385, %v1783
        %v1785 = vpop.f32.mrb[0].mxu0
        %v1786 = vadd.f32 %v1389, %v1785
        %v1787 = vpop.f32.mrb[0].mxu0
        %v1788 = vadd.f32 %v1385, %v1787
        %v1789 = vpop.f32.mrb[0].mxu0
        %v1790 = vadd.f32 %v1389, %v1789
        %1791 = vmatprep.mubr.bf16.mxu0 0
        %1792 = vmatmul.mubr.bf16.gmra.mrb[0].mxu0 %v1479
        %v1793 = vpop.f32.mrb[0].mxu0
        %v1794 = vadd.f32 %v1385, %v1793
        %v1795 = vpop.f32.mrb[0].mxu0
        %v1796 = vadd.f32 %v1389, %v1795
        %v1797 = vpop.f32.mrb[0].mxu0
        %v1798 = vadd.f32 %v1385, %v1797
        %v1799 = vpop.f32.mrb[0].mxu0
        %v1800 = vadd.f32 %v1389, %v1799
        %1801 = vmatprep.mubr.bf16.mxu0 0
        %1802 = vmatmul.mubr.bf16.gmra.mrb[0].mxu0 %v1481
        %v1803 = vpop.f32.mrb[0].mxu0
        %v1804 = vadd.f32 %v1385, %v1803
        %v1805 = vpop.f32.mrb[0].mxu0
        %v1806 = vadd.f32 %v1389, %v1805
        %v1807 = vpop.f32.mrb[0].mxu0
        %v1808 = vadd.f32 %v1385, %v1807
        %v1809 = vpop.f32.mrb[0].mxu0
        %v1810 = vadd.f32 %v1389, %v1809
        %1811 = vmatprep.mubr.bf16.mxu0 0
        %1812 = vmatmul.mubr.bf16.gmra.mrb[0].mxu0 %v1483
        %v1813 = vpop.f32.mrb[0].mxu0
        %v1814 = vadd.f32 %v1385, %v1813
        %v1815 = vpop.f32.mrb[0].mxu0
        %v1816 = vadd.f32 %v1389, %v1815
        %v1817 = vpop.f32.mrb[0].mxu0
        %v1818 = vadd.f32 %v1385, %v1817
        %v1819 = vpop.f32.mrb[0].mxu0
        %v1820 = vadd.f32 %v1389, %v1819
        %1821 = vmatprep.mubr.bf16.mxu0 0
        %1822 = vmatmul.mubr.bf16.gmra.mrb[0].mxu0 %v1485
        %v1823 = vpop.f32.mrb[0].mxu0
        %v1824 = vadd.f32 %v1385, %v1823
        %v1825 = vpop.f32.mrb[0].mxu0
        %v1826 = vadd.f32 %v1389, %v1825
        %v1827 = vpop.f32.mrb[0].mxu0
        %v1828 = vadd.f32 %v1385, %v1827
        %v1829 = vpop.f32.mrb[0].mxu0
        %v1830 = vadd.f32 %v1389, %v1829
        %1831 = vmatprep.mubr.bf16.mxu0 0
        %1832 = vmatmul.mubr.bf16.gmra.mrb[0].mxu0 %v1487
        %v1833 = vpop.f32.mrb[0].mxu0
        %v1834 = vadd.f32 %v1385, %v1833
        %v1835 = vpop.f32.mrb[0].mxu0
        %v1836 = vadd.f32 %v1389, %v1835
        %v1837 = vpop.f32.mrb[0].mxu0
        %v1838 = vadd.f32 %v1385, %v1837
        %v1839 = vpop.f32.mrb[0].mxu0
        %v1840 = vadd.f32 %v1389, %v1839
        %1841 = vmatprep.mubr.bf16.mxu0 0
        %1842 = vmatmul.mubr.bf16.gmra.mrb[0].mxu0 %v1489
        %v1843 = vpop.f32.mrb[0].mxu0
        %v1844 = vadd.f32 %v1385, %v1843
        %v1845 = vpop.f32.mrb[0].mxu0
        %v1846 = vadd.f32 %v1389, %v1845
        %v1847 = vpop.f32.mrb[0].mxu0
        %v1848 = vadd.f32 %v1385, %v1847
        %v1849 = vpop.f32.mrb[0].mxu0
        %v1850 = vadd.f32 %v1389, %v1849
        %1851 = vmatprep.mubr.bf16.mxu0 0
        %1852 = vmatmul.mubr.bf16.gmra.mrb[0].mxu0 %v1491
        %v1853 = vpop.f32.mrb[0].mxu0
        %v1854 = vadd.f32 %v1385, %v1853
        %v1855 = vpop.f32.mrb[0].mxu0
        %v1856 = vadd.f32 %v1389, %v1855
        %v1857 = vpop.f32.mrb[0].mxu0
        %v1858 = vadd.f32 %v1385, %v1857
        %v1859 = vpop.f32.mrb[0].mxu0
        %v1860 = vadd.f32 %v1389, %v1859
        %1861 = vmatprep.mubr.bf16.mxu0 0
        %1862 = vmatmul.mubr.bf16.gmra.mrb[0].mxu0 %v1493
        %v1863 = vpop.f32.mrb[0].mxu0
        %v1864 = vadd.f32 %v1385, %v1863
        %v1865 = vpop.f32.mrb[0].mxu0
        %v1866 = vadd.f32 %v1389, %v1865
        %v1867 = vpop.f32.mrb[0].mxu0
        %v1868 = vadd.f32 %v1385, %v1867
        %v1869 = vpop.f32.mrb[0].mxu0
        %v1870 = vadd.f32 %v1389, %v1869
        %1871 = vmatprep.mubr.bf16.mxu0 0
        %1872 = vmatmul.mubr.bf16.gmra.mrb[0].mxu0 %v1495
        %v1873 = vpop.f32.mrb[0].mxu0
        %v1874 = vadd.f32 %v1385, %v1873
        %v1875 = vpop.f32.mrb[0].mxu0
        %v1876 = vadd.f32 %v1389, %v1875
        %v1877 = vpop.f32.mrb[0].mxu0
        %v1878 = vadd.f32 %v1385, %v1877
        %v1879 = vpop.f32.mrb[0].mxu0
        %v1880 = vadd.f32 %v1389, %v1879
        %1881 = vmatprep.mubr.bf16.mxu0 0
        %1882 = vmatmul.mubr.bf16.gmra.mrb[0].mxu0 %v1497
        %v1883 = vpop.f32.mrb[0].mxu0
        %v1884 = vadd.f32 %v1385, %v1883
        %v1885 = vpop.f32.mrb[0].mxu0
        %v1886 = vadd.f32 %v1389, %v1885
        %v1887 = vpop.f32.mrb[0].mxu0
        %v1888 = vadd.f32 %v1385, %v1887
        %v1889 = vpop.f32.mrb[0].mxu0
        %v1890 = vadd.f32 %v1389, %v1889
        %1891 = vmatprep.mubr.bf16.mxu0 0
        %1892 = vmatmul.mubr.bf16.gmra.mrb[0].mxu0 %v1499
        %v1893 = vpop.f32.mrb[0].mxu0
        %v1894 = vadd.f32 %v1385, %v1893
        %v1895 = vpop.f32.mrb[0].mxu0
        %v1896 = vadd.f32 %v1389, %v1895
        %v1897 = vpop.f32.mrb[0].mxu0
        %v1898 = vadd.f32 %v1385, %v1897
        %v1899 = vpop.f32.mrb[0].mxu0
        %v1900 = vadd.f32 %v1389, %v1899
        %1901 = vmatprep.mubr.bf16.mxu0 0
        %1902 = vmatmul.mubr.bf16.gmra.mrb[0].mxu0 %v1501
        %v1903 = vpop.f32.mrb[0].mxu0
        %v1904 = vadd.f32 %v1385, %v1903
        %v1905 = vpop.f32.mrb[0].mxu0
        %v1906 = vadd.f32 %v1389, %v1905
        %v1907 = vpop.f32.mrb[0].mxu0
        %v1908 = vadd.f32 %v1385, %v1907
        %v1909 = vpop.f32.mrb[0].mxu0
        %v1910 = vadd.f32 %v1389, %v1909
        %1911 = vmatprep.mubr.bf16.mxu0 0
        %1912 = vmatmul.mubr.bf16.gmra.mrb[0].mxu0 %v1503
        %v1913 = vpop.f32.mrb[0].mxu0
        %v1914 = vadd.f32 %v1385, %v1913
        %v1915 = vpop.f32.mrb[0].mxu0
        %v1916 = vadd.f32 %v1389, %v1915
        %v1917 = vpop.f32.mrb[0].mxu0
        %v1918 = vadd.f32 %v1385, %v1917
        %v1919 = vpop.f32.mrb[0].mxu0
        %v1920 = vadd.f32 %v1389, %v1919
        %1921 = vmatprep.mubr.bf16.mxu0 0
        %1922 = vmatmul.mubr.bf16.gmra.mrb[0].mxu0 %v1505
        %v1923 = vpop.f32.mrb[0].mxu0
        %v1924 = vadd.f32 %v1385, %v1923
        %v1925 = vpop.f32.mrb[0].mxu0
        %v1926 = vadd.f32 %v1389, %v1925
        %v1927 = vpop.f32.mrb[0].mxu0
        %v1928 = vadd.f32 %v1385, %v1927
        %v1929 = vpop.f32.mrb[0].mxu0
        %v1930 = vadd.f32 %v1389, %v1929
        %1931 = vmatprep.mubr.bf16.mxu0 0
        %1932 = vmatmul.mubr.bf16.gmra.mrb[0].mxu0 %v1507
        %v1933 = vpop.f32.mrb[0].mxu0
        %v1934 = vadd.f32 %v1385, %v1933
        %v1935 = vpop.f32.mrb[0].mxu0
        %v1936 = vadd.f32 %v1389, %v1935
        %v1937 = vpop.f32.mrb[0].mxu0
        %v1938 = vadd.f32 %v1385, %v1937
        %v1939 = vpop.f32.mrb[0].mxu0
        %v1940 = vadd.f32 %v1389, %v1939
        %1941 = vmatprep.mubr.bf16.mxu0 0
        %1942 = vmatmul.mubr.bf16.gmra.mrb[0].mxu0 %v1509
        %v1943 = vpop.f32.mrb[0].mxu0
        %v1944 = vadd.f32 %v1385, %v1943
        %v1945 = vpop.f32.mrb[0].mxu0
        %v1946 = vadd.f32 %v1389, %v1945
        %v1947 = vpop.f32.mrb[0].mxu0
        %v1948 = vadd.f32 %v1385, %v1947
        %v1949 = vpop.f32.mrb[0].mxu0
        %v1950 = vadd.f32 %v1389, %v1949
        %1951 = vmatprep.mubr.bf16.mxu0 0
        %1952 = vmatmul.mubr.bf16.gmra.mrb[0].mxu0 %v1511
        %v1953 = vpop.f32.mrb[0].mxu0
        %v1954 = vadd.f32 %v1385, %v1953
        %v1955 = vpop.f32.mrb[0].mxu0
        %v1956 = vadd.f32 %v1389, %v1955
        %v1957 = vpop.f32.mrb[0].mxu0
        %v1958 = vadd.f32 %v1385, %v1957
        %v1959 = vpop.f32.mrb[0].mxu0
        %v1960 = vadd.f32 %v1389, %v1959
        %1961 = vmatprep.mubr.bf16.mxu0 0
        %1962 = vmatmul.mubr.bf16.gmra.mrb[0].mxu0 %v1513
        %v1963 = vpop.f32.mrb[0].mxu0
        %v1964 = vadd.f32 %v1385, %v1963
        %v1965 = vpop.f32.mrb[0].mxu0
        %v1966 = vadd.f32 %v1389, %v1965
        %v1967 = vpop.f32.mrb[0].mxu0
        %v1968 = vadd.f32 %v1385, %v1967
        %v1969 = vpop.f32.mrb[0].mxu0
        %v1970 = vadd.f32 %v1389, %v1969
        %1971 = vmatprep.mubr.bf16.mxu0 0
        %1972 = vmatmul.mubr.bf16.gmra.mrb[0].mxu0 %v1515
        %v1973 = vpop.f32.mrb[0].mxu0
        %v1974 = vadd.f32 %v1385, %v1973
        %v1975 = vpop.f32.mrb[0].mxu0
        %v1976 = vadd.f32 %v1389, %v1975
        %v1977 = vpop.f32.mrb[0].mxu0
        %v1978 = vadd.f32 %v1385, %v1977
        %v1979 = vpop.f32.mrb[0].mxu0
        %v1980 = vadd.f32 %v1389, %v1979
        %1981 = vmatprep.mubr.bf16.mxu0 0
        %1982 = vmatmul.mubr.bf16.gmra.mrb[0].mxu0 %v1517
        %v1983 = vpop.f32.mrb[0].mxu0
        %v1984 = vadd.f32 %v1385, %v1983
        %v1985 = vpop.f32.mrb[0].mxu0
        %v1986 = vadd.f32 %v1389, %v1985
        %v1987 = vpop.f32.mrb[0].mxu0
        %v1988 = vadd.f32 %v1385, %v1987
        %v1989 = vpop.f32.mrb[0].mxu0
        %v1990 = vadd.f32 %v1389, %v1989
        %1991 = vmatprep.mubr.bf16.mxu0 0
        %1992 = vmatmul.mubr.bf16.gmra.mrb[0].mxu0 %v1519
        %v1993 = vpop.f32.mrb[0].mxu0
        %v1994 = vadd.f32 %v1385, %v1993
        %v1995 = vpop.f32.mrb[0].mxu0
        %v1996 = vadd.f32 %v1389, %v1995
        %v1997 = vpop.f32.mrb[0].mxu0
        %v1998 = vadd.f32 %v1385, %v1997
        %v1999 = vpop.f32.mrb[0].mxu0
        %v2000 = vadd.f32 %v1389, %v1999
        %2001 = vmatprep.mubr.bf16.mxu0 0
        %2002 = vmatmul.mubr.bf16.gmra.mrb[0].mxu0 %v1521
        %v2003 = vpop.f32.mrb[0].mxu0
        %v2004 = vadd.f32 %v1385, %v2003
        %v2005 = vpop.f32.mrb[0].mxu0
        %v2006 = vadd.f32 %v1389, %v2005
        %v2007 = vpop.f32.mrb[0].mxu0
        %v2008 = vadd.f32 %v1385, %v2007
        %v2009 = vpop.f32.mrb[0].mxu0
        %v2010 = vadd.f32 %v1389, %v2009
        %2011 = vmatprep.mubr.bf16.mxu0 0
        %2012 = vmatmul.mubr.bf16.gmra.mrb[0].mxu0 %v1523
        %v2013 = vpop.f32.mrb[0].mxu0
        %v2014 = vadd.f32 %v1385, %v2013
        %v2015 = vpop.f32.mrb[0].mxu0
        %v2016 = vadd.f32 %v1389, %v2015
        %v2017 = vpop.f32.mrb[0].mxu0
        %v2018 = vadd.f32 %v1385, %v2017
        %v2019 = vpop.f32.mrb[0].mxu0
        %v2020 = vadd.f32 %v1389, %v2019
        %2021 = vmatprep.mubr.bf16.mxu0 0
        %2022 = vmatmul.mubr.bf16.gmra.mrb[0].mxu0 %v1525
        %v2023 = vpop.f32.mrb[0].mxu0
        %v2024 = vadd.f32 %v1385, %v2023
        %v2025 = vpop.f32.mrb[0].mxu0
        %v2026 = vadd.f32 %v1389, %v2025
        %v2027 = vpop.f32.mrb[0].mxu0
        %v2028 = vadd.f32 %v1385, %v2027
        %v2029 = vpop.f32.mrb[0].mxu0
        %v2030 = vadd.f32 %v1389, %v2029
        %2031 = vmatprep.mubr.bf16.mxu0 0
        %2032 = vmatmul.mubr.bf16.gmra.mrb[0].mxu0 %v1527
        %v2033 = vpop.f32.mrb[0].mxu0
        %v2034 = vadd.f32 %v1385, %v2033
        %v2035 = vpop.f32.mrb[0].mxu0
        %v2036 = vadd.f32 %v1389, %v2035
        %v2037 = vpop.f32.mrb[0].mxu0
        %v2038 = vadd.f32 %v1385, %v2037
        %v2039 = vpop.f32.mrb[0].mxu0
        %v2040 = vadd.f32 %v1389, %v2039
        %2041 = vdwg.mxu0
        %v2042 = vld [vmem:[%s872] sm:$0xff]
        %v2043 = vld [vmem:[%s872 + $0x8] sm:$0xff]
        %v2044 = vld [vmem:[%s872 + $0x10] sm:$0xff]
        %v2045 = vld [vmem:[%s872 + $0x18] sm:$0xff]
        %v2046 = vld [vmem:[%s872 + $0x20] sm:$0xff]
        %v2047 = vld [vmem:[%s872 + $0x28] sm:$0xff]
        %v2048 = vld [vmem:[%s872 + $0x30] sm:$0xff]
        %v2049 = vld [vmem:[%s872 + $0x38] sm:$0xff]
        %v2050 = vld [vmem:[%s872 + $0x40] sm:$0xff]
        %v2051 = vld [vmem:[%s872 + $0x48] sm:$0xff]
        %v2052 = vld [vmem:[%s872 + $0x50] sm:$0xff]
        %v2053 = vld [vmem:[%s872 + $0x58] sm:$0xff]
        %v2054 = vld [vmem:[%s872 + $0x60] sm:$0xff]
        %v2055 = vld [vmem:[%s872 + $0x68] sm:$0xff]
        %v2056 = vld [vmem:[%s872 + $0x70] sm:$0xff]
        %v2057 = vld [vmem:[%s872 + $0x78] sm:$0xff]
        %v2058 = vpack.c.bf16 %v2043, %v2042
        %v2059 = vpack.c.bf16 %v2045, %v2044
        %v2060 = vpack.c.bf16 %v2047, %v2046
        %v2061 = vpack.c.bf16 %v2049, %v2048
        %v2062 = vpack.c.bf16 %v2051, %v2050
        %v2063 = vpack.c.bf16 %v2053, %v2052
        %v2064 = vpack.c.bf16 %v2055, %v2054
        %v2065 = vpack.c.bf16 %v2057, %v2056
        %s2066 = scalar_lea.vmem %s872, 128 [#allocation4]
        %v2067 = vld [vmem:[%s2066] sm:$0xff]
        %v2068 = vld [vmem:[%s2066 + $0x8] sm:$0xff]
        %v2069 = vld [vmem:[%s2066 + $0x10] sm:$0xff]
        %v2070 = vld [vmem:[%s2066 + $0x18] sm:$0xff]
        %v2071 = vld [vmem:[%s2066 + $0x20] sm:$0xff]
        %v2072 = vld [vmem:[%s2066 + $0x28] sm:$0xff]
        %v2073 = vld [vmem:[%s2066 + $0x30] sm:$0xff]
        %v2074 = vld [vmem:[%s2066 + $0x38] sm:$0xff]
        %v2075 = vld [vmem:[%s2066 + $0x40] sm:$0xff]
        %v2076 = vld [vmem:[%s2066 + $0x48] sm:$0xff]
        %v2077 = vld [vmem:[%s2066 + $0x50] sm:$0xff]
        %v2078 = vld [vmem:[%s2066 + $0x58] sm:$0xff]
        %v2079 = vld [vmem:[%s2066 + $0x60] sm:$0xff]
        %v2080 = vld [vmem:[%s2066 + $0x68] sm:$0xff]
        %v2081 = vld [vmem:[%s2066 + $0x70] sm:$0xff]
        %v2082 = vld [vmem:[%s2066 + $0x78] sm:$0xff]
        %v2083 = vpack.c.bf16 %v2068, %v2067
        %v2084 = vpack.c.bf16 %v2070, %v2069
        %v2085 = vpack.c.bf16 %v2072, %v2071
        %v2086 = vpack.c.bf16 %v2074, %v2073
        %v2087 = vpack.c.bf16 %v2076, %v2075
        %v2088 = vpack.c.bf16 %v2078, %v2077
        %v2089 = vpack.c.bf16 %v2080, %v2079
        %v2090 = vpack.c.bf16 %v2082, %v2081
        %s2091 = scalar_lea.vmem %s872, 256 [#allocation4]
        %v2092 = vld [vmem:[%s2091] sm:$0xff]
        %v2093 = vld [vmem:[%s2091 + $0x8] sm:$0xff]
        %v2094 = vld [vmem:[%s2091 + $0x10] sm:$0xff]
        %v2095 = vld [vmem:[%s2091 + $0x18] sm:$0xff]
        %v2096 = vld [vmem:[%s2091 + $0x20] sm:$0xff]
        %v2097 = vld [vmem:[%s2091 + $0x28] sm:$0xff]
        %v2098 = vld [vmem:[%s2091 + $0x30] sm:$0xff]
        %v2099 = vld [vmem:[%s2091 + $0x38] sm:$0xff]
        %v2100 = vld [vmem:[%s2091 + $0x40] sm:$0xff]
        %v2101 = vld [vmem:[%s2091 + $0x48] sm:$0xff]
        %v2102 = vld [vmem:[%s2091 + $0x50] sm:$0xff]
        %v2103 = vld [vmem:[%s2091 + $0x58] sm:$0xff]
        %v2104 = vld [vmem:[%s2091 + $0x60] sm:$0xff]
        %v2105 = vld [vmem:[%s2091 + $0x68] sm:$0xff]
        %v2106 = vld [vmem:[%s2091 + $0x70] sm:$0xff]
        %v2107 = vld [vmem:[%s2091 + $0x78] sm:$0xff]
        %v2108 = vpack.c.bf16 %v2093, %v2092
        %v2109 = vpack.c.bf16 %v2095, %v2094
        %v2110 = vpack.c.bf16 %v2097, %v2096
        %v2111 = vpack.c.bf16 %v2099, %v2098
        %v2112 = vpack.c.bf16 %v2101, %v2100
        %v2113 = vpack.c.bf16 %v2103, %v2102
        %v2114 = vpack.c.bf16 %v2105, %v2104
        %v2115 = vpack.c.bf16 %v2107, %v2106
        %2140 = vrot.lane.b32.xlu0 %v2108, 32
        %v2141 = vpop.permute.xlu0 %2140
        %2142 = vrot.lane.b32.xlu0 %v2109, 32
        %v2143 = vpop.permute.xlu0 %2142
        %2144 = vrot.lane.b32.xlu0 %v2110, 32
        %v2145 = vpop.permute.xlu0 %2144
        %2146 = vrot.lane.b32.xlu0 %v2111, 32
        %v2147 = vpop.permute.xlu0 %2146
        %2148 = vrot.lane.b32.xlu0 %v2112, 32
        %v2149 = vpop.permute.xlu0 %2148
        %2150 = vrot.lane.b32.xlu0 %v2113, 32
        %v2151 = vpop.permute.xlu0 %2150
        %2152 = vrot.lane.b32.xlu0 %v2114, 32
        %v2153 = vpop.permute.xlu0 %2152
        %2154 = vrot.lane.b32.xlu0 %v2115, 32
        %v2155 = vpop.permute.xlu0 %2154
        %2156 = vrot.lane.b32.xlu0 %v2083, 32
        %v2157 = vpop.permute.xlu0 %2156
        %2158 = vrot.lane.b32.xlu0 %v2084, 32
        %v2159 = vpop.permute.xlu0 %2158
        %2160 = vrot.lane.b32.xlu0 %v2085, 32
        %v2161 = vpop.permute.xlu0 %2160
        %2162 = vrot.lane.b32.xlu0 %v2086, 32
        %v2163 = vpop.permute.xlu0 %2162
        %2164 = vrot.lane.b32.xlu0 %v2087, 32
        %v2165 = vpop.permute.xlu0 %2164
        %2166 = vrot.lane.b32.xlu0 %v2088, 32
        %v2167 = vpop.permute.xlu0 %2166
        %2168 = vrot.lane.b32.xlu0 %v2089, 32
        %v2169 = vpop.permute.xlu0 %2168
        %2170 = vrot.lane.b32.xlu0 %v2090, 32
        %v2171 = vpop.permute.xlu0 %2170
        %2172 = vrot.lane.b32.xlu0 %v2058, 32
        %v2173 = vpop.permute.xlu0 %2172
        %2174 = vrot.lane.b32.xlu0 %v2059, 32
        %v2175 = vpop.permute.xlu0 %2174
        %2176 = vrot.lane.b32.xlu0 %v2060, 32
        %v2177 = vpop.permute.xlu0 %2176
        %2178 = vrot.lane.b32.xlu0 %v2061, 32
        %v2179 = vpop.permute.xlu0 %2178
        %2180 = vrot.lane.b32.xlu0 %v2062, 32
        %v2181 = vpop.permute.xlu0 %2180
        %2182 = vrot.lane.b32.xlu0 %v2063, 32
        %v2183 = vpop.permute.xlu0 %2182
        %2184 = vrot.lane.b32.xlu0 %v2064, 32
        %v2185 = vpop.permute.xlu0 %2184
        %2186 = vrot.lane.b32.xlu0 %v2065, 32
        %v2187 = vpop.permute.xlu0 %2186
        %v2189 = vsel %vm1228, %v943, %v2141
        %v2191 = vsel %vm1228, %v944, %v2143
        %v2193 = vsel %vm1228, %v945, %v2145
        %v2195 = vsel %vm1228, %v946, %v2147
        %v2197 = vsel %vm1228, %v947, %v2149
        %v2199 = vsel %vm1228, %v948, %v2151
        %v2201 = vsel %vm1228, %v949, %v2153
        %v2203 = vsel %vm1228, %v950, %v2155
        %v2206 = vsel %vm1228, %v2058, %v2157
        %v2209 = vsel %vm1228, %v2059, %v2159
        %v2212 = vsel %vm1228, %v2060, %v2161
        %v2215 = vsel %vm1228, %v2061, %v2163
        %v2218 = vsel %vm1228, %v2062, %v2165
        %v2221 = vsel %vm1228, %v2063, %v2167
        %v2224 = vsel %vm1228, %v2064, %v2169
        %v2227 = vsel %vm1228, %v2065, %v2171
        %v2230 = vsel %vm1228, %v2083, %v2173
        %v2233 = vsel %vm1228, %v2084, %v2175
        %v2236 = vsel %vm1228, %v2085, %v2177
        %v2239 = vsel %vm1228, %v2086, %v2179
        %v2242 = vsel %vm1228, %v2087, %v2181
        %v2245 = vsel %vm1228, %v2088, %v2183
        %v2248 = vsel %vm1228, %v2089, %v2185
        %v2251 = vsel %vm1228, %v2090, %v2187
        %v2253 = vsel %vm1228, %v2108, %v1213
        %v2255 = vsel %vm1228, %v2109, %v1215
        %v2257 = vsel %vm1228, %v2110, %v1217
        %v2259 = vsel %vm1228, %v2111, %v1219
        %v2261 = vsel %vm1228, %v2112, %v1221
        %v2263 = vsel %vm1228, %v2113, %v1223
        %v2265 = vsel %vm1228, %v2114, %v1225
        %v2267 = vsel %vm1228, %v2115, %v1227
        %s2268 = scalar_lea.vmem %s3, 64
        %v2269 = vld [vmem:[%s2268] sm:$0xff]
        %v2270 = vld [vmem:[%s2268 + $0x8] sm:$0xff]
        %v2271 = vld [vmem:[%s2268 + $0x10] sm:$0xff]
        %v2272 = vld [vmem:[%s2268 + $0x18] sm:$0xff]
        %v2273 = vld [vmem:[%s2268 + $0x20] sm:$0xff]
        %v2274 = vld [vmem:[%s2268 + $0x28] sm:$0xff]
        %v2275 = vld [vmem:[%s2268 + $0x30] sm:$0xff]
        %v2276 = vld [vmem:[%s2268 + $0x38] sm:$0xff]
        %v2285 = vunpack.c.l.b16 %v2269
        %v2286 = vunpack.c.h.b16 %v2269
        %v2287 = vunpack.c.l.b16 %v2270
        %v2288 = vunpack.c.h.b16 %v2270
        %v2289 = vunpack.c.l.b16 %v2271
        %v2290 = vunpack.c.h.b16 %v2271
        %v2291 = vunpack.c.l.b16 %v2272
        %v2292 = vunpack.c.h.b16 %v2272
        %v2293 = vunpack.c.l.b16 %v2273
        %v2294 = vunpack.c.h.b16 %v2273
        %v2295 = vunpack.c.l.b16 %v2274
        %v2296 = vunpack.c.h.b16 %v2274
        %v2297 = vunpack.c.l.b16 %v2275
        %v2298 = vunpack.c.h.b16 %v2275
        %v2299 = vunpack.c.l.b16 %v2276
        %v2300 = vunpack.c.h.b16 %v2276
        %v2301 = vpack.c.b16 %v2287, %v2285
        %v2302 = vpack.c.b16 %v2288, %v2286
        %v2303 = vpack.c.b16 %v2291, %v2289
        %v2304 = vpack.c.b16 %v2292, %v2290
        %v2305 = vpack.c.b16 %v2295, %v2293
        %v2306 = vpack.c.b16 %v2296, %v2294
        %v2307 = vpack.c.b16 %v2299, %v2297
        %v2308 = vpack.c.b16 %v2300, %v2298
        %v2317 = vsel %vm1432, %v2189, 0
        %v2319 = vsel %vm1432, %v2191, 0
        %v2321 = vsel %vm1432, %v2193, 0
        %v2323 = vsel %vm1432, %v2195, 0
        %v2325 = vsel %vm1432, %v2197, 0
        %v2327 = vsel %vm1432, %v2199, 0
        %v2329 = vsel %vm1432, %v2201, 0
        %v2331 = vsel %vm1432, %v2203, 0
        %v2333 = vsel %vm1432, %v2206, 0
        %v2335 = vsel %vm1432, %v2209, 0
        %v2337 = vsel %vm1432, %v2212, 0
        %v2339 = vsel %vm1432, %v2215, 0
        %v2341 = vsel %vm1432, %v2218, 0
        %v2343 = vsel %vm1432, %v2221, 0
        %v2345 = vsel %vm1432, %v2224, 0
        %v2347 = vsel %vm1432, %v2227, 0
        %v2349 = vsel %vm1432, %v2230, 0
        %v2351 = vsel %vm1432, %v2233, 0
        %v2353 = vsel %vm1432, %v2236, 0
        %v2355 = vsel %vm1432, %v2239, 0
        %v2357 = vsel %vm1432, %v2242, 0
        %v2359 = vsel %vm1432, %v2245, 0
        %v2361 = vsel %vm1432, %v2248, 0
        %v2363 = vsel %vm1432, %v2251, 0
        %v2365 = vsel %vm1432, %v2253, 0
        %v2367 = vsel %vm1432, %v2255, 0
        %v2369 = vsel %vm1432, %v2257, 0
        %v2371 = vsel %vm1432, %v2259, 0
        %v2373 = vsel %vm1432, %v2261, 0
        %v2375 = vsel %vm1432, %v2263, 0
        %v2377 = vsel %vm1432, %v2265, 0
        %v2379 = vsel %vm1432, %v2267, 0
        %2381 = vmatprep.subr.bf16.mxu0 %v2302
        %2382 = vmatpush1.bf16.msra.mxu0 %v2301
        %2383 = vmatprep.subr.bf16.mxu0 %v2304
        %2384 = vmatpush1.bf16.msra.mxu0 %v2303
        %2385 = vmatprep.subr.bf16.mxu0 %v2306
        %2386 = vmatpush1.bf16.msra.mxu0 %v2305
        %2387 = vmatprep.subr.bf16.mxu0 %v2308
        %2388 = vmatpush1.bf16.msra.mxu0 %v2307
        %2389 = vmatprep.subr.bf16.mxu0 0
        %2390 = vmatpush1.bf16.msra.mxu0 0
        %2391 = vmatprep.subr.bf16.mxu0 0
        %2392 = vmatpush1.bf16.msra.mxu0 0
        %2393 = vmatprep.subr.bf16.mxu0 0
        %2394 = vmatpush1.bf16.msra.mxu0 0
        %2395 = vmatprep.subr.bf16.mxu0 0
        %2396 = vmatpush1.bf16.msra.mxu0 0
        %2397 = vmatprep.subr.bf16.mxu0 0
        %2398 = vmatpush1.bf16.msra.mxu0 0
        %2399 = vmatprep.subr.bf16.mxu0 0
        %2400 = vmatpush1.bf16.msra.mxu0 0
        %2401 = vmatprep.subr.bf16.mxu0 0
        %2402 = vmatpush1.bf16.msra.mxu0 0
        %2403 = vmatprep.subr.bf16.mxu0 0
        %2404 = vmatpush1.bf16.msra.mxu0 0
        %2405 = vmatprep.subr.bf16.mxu0 0
        %2406 = vmatpush1.bf16.msra.mxu0 0
        %2407 = vmatprep.subr.bf16.mxu0 0
        %2408 = vmatpush1.bf16.msra.mxu0 0
        %2409 = vmatprep.subr.bf16.mxu0 0
        %2410 = vmatpush1.bf16.msra.mxu0 0
        %2411 = vmatprep.subr.bf16.mxu0 0
        %2412 = vmatpush1.bf16.msra.mxu0 0
        %2413 = vmatprep.mubr.bf16.mxu0 0
        %2414 = vmatmul.mubr.bf16.gmra.mrb[0].mxu0 %v2317
        %v2415 = vpop.f32.mrb[0].mxu0
        %v2416 = vadd.f32 0.0, %v2415
        %v2417 = vpop.f32.mrb[0].mxu0
        %v2418 = vadd.f32 0.0, %v2417
        %v2419 = vpop.f32.mrb[0].mxu0
        %v2420 = vadd.f32 0.0, %v2419
        %v2421 = vpop.f32.mrb[0].mxu0
        %v2422 = vadd.f32 0.0, %v2421
        %2423 = vmatprep.mubr.bf16.mxu0 0
        %2424 = vmatmul.mubr.bf16.gmra.mrb[0].mxu0 %v2319
        %v2425 = vpop.f32.mrb[0].mxu0
        %v2426 = vadd.f32 0.0, %v2425
        %v2427 = vpop.f32.mrb[0].mxu0
        %v2428 = vadd.f32 0.0, %v2427
        %v2429 = vpop.f32.mrb[0].mxu0
        %v2430 = vadd.f32 0.0, %v2429
        %v2431 = vpop.f32.mrb[0].mxu0
        %v2432 = vadd.f32 0.0, %v2431
        %2433 = vmatprep.mubr.bf16.mxu0 0
        %2434 = vmatmul.mubr.bf16.gmra.mrb[0].mxu0 %v2321
        %v2435 = vpop.f32.mrb[0].mxu0
        %v2436 = vadd.f32 0.0, %v2435
        %v2437 = vpop.f32.mrb[0].mxu0
        %v2438 = vadd.f32 0.0, %v2437
        %v2439 = vpop.f32.mrb[0].mxu0
        %v2440 = vadd.f32 0.0, %v2439
        %v2441 = vpop.f32.mrb[0].mxu0
        %v2442 = vadd.f32 0.0, %v2441
        %2443 = vmatprep.mubr.bf16.mxu0 0
        %2444 = vmatmul.mubr.bf16.gmra.mrb[0].mxu0 %v2323
        %v2445 = vpop.f32.mrb[0].mxu0
        %v2446 = vadd.f32 0.0, %v2445
        %v2447 = vpop.f32.mrb[0].mxu0
        %v2448 = vadd.f32 0.0, %v2447
        %v2449 = vpop.f32.mrb[0].mxu0
        %v2450 = vadd.f32 0.0, %v2449
        %v2451 = vpop.f32.mrb[0].mxu0
        %v2452 = vadd.f32 0.0, %v2451
        %2453 = vmatprep.mubr.bf16.mxu0 0
        %2454 = vmatmul.mubr.bf16.gmra.mrb[0].mxu0 %v2325
        %v2455 = vpop.f32.mrb[0].mxu0
        %v2456 = vadd.f32 0.0, %v2455
        %v2457 = vpop.f32.mrb[0].mxu0
        %v2458 = vadd.f32 0.0, %v2457
        %v2459 = vpop.f32.mrb[0].mxu0
        %v2460 = vadd.f32 0.0, %v2459
        %v2461 = vpop.f32.mrb[0].mxu0
        %v2462 = vadd.f32 0.0, %v2461
        %2463 = vmatprep.mubr.bf16.mxu0 0
        %2464 = vmatmul.mubr.bf16.gmra.mrb[0].mxu0 %v2327
        %v2465 = vpop.f32.mrb[0].mxu0
        %v2466 = vadd.f32 0.0, %v2465
        %v2467 = vpop.f32.mrb[0].mxu0
        %v2468 = vadd.f32 0.0, %v2467
        %v2469 = vpop.f32.mrb[0].mxu0
        %v2470 = vadd.f32 0.0, %v2469
        %v2471 = vpop.f32.mrb[0].mxu0
        %v2472 = vadd.f32 0.0, %v2471
        %2473 = vmatprep.mubr.bf16.mxu0 0
        %2474 = vmatmul.mubr.bf16.gmra.mrb[0].mxu0 %v2329
        %v2475 = vpop.f32.mrb[0].mxu0
        %v2476 = vadd.f32 0.0, %v2475
        %v2477 = vpop.f32.mrb[0].mxu0
        %v2478 = vadd.f32 0.0, %v2477
        %v2479 = vpop.f32.mrb[0].mxu0
        %v2480 = vadd.f32 0.0, %v2479
        %v2481 = vpop.f32.mrb[0].mxu0
        %v2482 = vadd.f32 0.0, %v2481
        %2483 = vmatprep.mubr.bf16.mxu0 0
        %2484 = vmatmul.mubr.bf16.gmra.mrb[0].mxu0 %v2331
        %v2485 = vpop.f32.mrb[0].mxu0
        %v2486 = vadd.f32 0.0, %v2485
        %v2487 = vpop.f32.mrb[0].mxu0
        %v2488 = vadd.f32 0.0, %v2487
        %v2489 = vpop.f32.mrb[0].mxu0
        %v2490 = vadd.f32 0.0, %v2489
        %v2491 = vpop.f32.mrb[0].mxu0
        %v2492 = vadd.f32 0.0, %v2491
        %2493 = vmatprep.mubr.bf16.mxu0 0
        %2494 = vmatmul.mubr.bf16.gmra.mrb[0].mxu0 %v2333
        %v2495 = vpop.f32.mrb[0].mxu0
        %v2496 = vadd.f32 0.0, %v2495
        %v2497 = vpop.f32.mrb[0].mxu0
        %v2498 = vadd.f32 0.0, %v2497
        %v2499 = vpop.f32.mrb[0].mxu0
        %v2500 = vadd.f32 0.0, %v2499
        %v2501 = vpop.f32.mrb[0].mxu0
        %v2502 = vadd.f32 0.0, %v2501
        %2503 = vmatprep.mubr.bf16.mxu0 0
        %2504 = vmatmul.mubr.bf16.gmra.mrb[0].mxu0 %v2335
        %v2505 = vpop.f32.mrb[0].mxu0
        %v2506 = vadd.f32 0.0, %v2505
        %v2507 = vpop.f32.mrb[0].mxu0
        %v2508 = vadd.f32 0.0, %v2507
        %v2509 = vpop.f32.mrb[0].mxu0
        %v2510 = vadd.f32 0.0, %v2509
        %v2511 = vpop.f32.mrb[0].mxu0
        %v2512 = vadd.f32 0.0, %v2511
        %2513 = vmatprep.mubr.bf16.mxu0 0
        %2514 = vmatmul.mubr.bf16.gmra.mrb[0].mxu0 %v2337
        %v2515 = vpop.f32.mrb[0].mxu0
        %v2516 = vadd.f32 0.0, %v2515
        %v2517 = vpop.f32.mrb[0].mxu0
        %v2518 = vadd.f32 0.0, %v2517
        %v2519 = vpop.f32.mrb[0].mxu0
        %v2520 = vadd.f32 0.0, %v2519
        %v2521 = vpop.f32.mrb[0].mxu0
        %v2522 = vadd.f32 0.0, %v2521
        %2523 = vmatprep.mubr.bf16.mxu0 0
        %2524 = vmatmul.mubr.bf16.gmra.mrb[0].mxu0 %v2339
        %v2525 = vpop.f32.mrb[0].mxu0
        %v2526 = vadd.f32 0.0, %v2525
        %v2527 = vpop.f32.mrb[0].mxu0
        %v2528 = vadd.f32 0.0, %v2527
        %v2529 = vpop.f32.mrb[0].mxu0
        %v2530 = vadd.f32 0.0, %v2529
        %v2531 = vpop.f32.mrb[0].mxu0
        %v2532 = vadd.f32 0.0, %v2531
        %2533 = vmatprep.mubr.bf16.mxu0 0
        %2534 = vmatmul.mubr.bf16.gmra.mrb[0].mxu0 %v2341
        %v2535 = vpop.f32.mrb[0].mxu0
        %v2536 = vadd.f32 0.0, %v2535
        %v2537 = vpop.f32.mrb[0].mxu0
        %v2538 = vadd.f32 0.0, %v2537
        %v2539 = vpop.f32.mrb[0].mxu0
        %v2540 = vadd.f32 0.0, %v2539
        %v2541 = vpop.f32.mrb[0].mxu0
        %v2542 = vadd.f32 0.0, %v2541
        %2543 = vmatprep.mubr.bf16.mxu0 0
        %2544 = vmatmul.mubr.bf16.gmra.mrb[0].mxu0 %v2343
        %v2545 = vpop.f32.mrb[0].mxu0
        %v2546 = vadd.f32 0.0, %v2545
        %v2547 = vpop.f32.mrb[0].mxu0
        %v2548 = vadd.f32 0.0, %v2547
        %v2549 = vpop.f32.mrb[0].mxu0
        %v2550 = vadd.f32 0.0, %v2549
        %v2551 = vpop.f32.mrb[0].mxu0
        %v2552 = vadd.f32 0.0, %v2551
        %2553 = vmatprep.mubr.bf16.mxu0 0
        %2554 = vmatmul.mubr.bf16.gmra.mrb[0].mxu0 %v2345
        %v2555 = vpop.f32.mrb[0].mxu0
        %v2556 = vadd.f32 0.0, %v2555
        %v2557 = vpop.f32.mrb[0].mxu0
        %v2558 = vadd.f32 0.0, %v2557
        %v2559 = vpop.f32.mrb[0].mxu0
        %v2560 = vadd.f32 0.0, %v2559
        %v2561 = vpop.f32.mrb[0].mxu0
        %v2562 = vadd.f32 0.0, %v2561
        %2563 = vmatprep.mubr.bf16.mxu0 0
        %2564 = vmatmul.mubr.bf16.gmra.mrb[0].mxu0 %v2347
        %v2565 = vpop.f32.mrb[0].mxu0
        %v2566 = vadd.f32 0.0, %v2565
        %v2567 = vpop.f32.mrb[0].mxu0
        %v2568 = vadd.f32 0.0, %v2567
        %v2569 = vpop.f32.mrb[0].mxu0
        %v2570 = vadd.f32 0.0, %v2569
        %v2571 = vpop.f32.mrb[0].mxu0
        %v2572 = vadd.f32 0.0, %v2571
        %2573 = vmatprep.mubr.bf16.mxu0 0
        %2574 = vmatmul.mubr.bf16.gmra.mrb[0].mxu0 %v2349
        %v2575 = vpop.f32.mrb[0].mxu0
        %v2576 = vadd.f32 0.0, %v2575
        %v2577 = vpop.f32.mrb[0].mxu0
        %v2578 = vadd.f32 0.0, %v2577
        %v2579 = vpop.f32.mrb[0].mxu0
        %v2580 = vadd.f32 0.0, %v2579
        %v2581 = vpop.f32.mrb[0].mxu0
        %v2582 = vadd.f32 0.0, %v2581
        %2583 = vmatprep.mubr.bf16.mxu0 0
        %2584 = vmatmul.mubr.bf16.gmra.mrb[0].mxu0 %v2351
        %v2585 = vpop.f32.mrb[0].mxu0
        %v2586 = vadd.f32 0.0, %v2585
        %v2587 = vpop.f32.mrb[0].mxu0
        %v2588 = vadd.f32 0.0, %v2587
        %v2589 = vpop.f32.mrb[0].mxu0
        %v2590 = vadd.f32 0.0, %v2589
        %v2591 = vpop.f32.mrb[0].mxu0
        %v2592 = vadd.f32 0.0, %v2591
        %2593 = vmatprep.mubr.bf16.mxu0 0
        %2594 = vmatmul.mubr.bf16.gmra.mrb[0].mxu0 %v2353
        %v2595 = vpop.f32.mrb[0].mxu0
        %v2596 = vadd.f32 0.0, %v2595
        %v2597 = vpop.f32.mrb[0].mxu0
        %v2598 = vadd.f32 0.0, %v2597
        %v2599 = vpop.f32.mrb[0].mxu0
        %v2600 = vadd.f32 0.0, %v2599
        %v2601 = vpop.f32.mrb[0].mxu0
        %v2602 = vadd.f32 0.0, %v2601
        %2603 = vmatprep.mubr.bf16.mxu0 0
        %2604 = vmatmul.mubr.bf16.gmra.mrb[0].mxu0 %v2355
        %v2605 = vpop.f32.mrb[0].mxu0
        %v2606 = vadd.f32 0.0, %v2605
        %v2607 = vpop.f32.mrb[0].mxu0
        %v2608 = vadd.f32 0.0, %v2607
        %v2609 = vpop.f32.mrb[0].mxu0
        %v2610 = vadd.f32 0.0, %v2609
        %v2611 = vpop.f32.mrb[0].mxu0
        %v2612 = vadd.f32 0.0, %v2611
        %2613 = vmatprep.mubr.bf16.mxu0 0
        %2614 = vmatmul.mubr.bf16.gmra.mrb[0].mxu0 %v2357
        %v2615 = vpop.f32.mrb[0].mxu0
        %v2616 = vadd.f32 0.0, %v2615
        %v2617 = vpop.f32.mrb[0].mxu0
        %v2618 = vadd.f32 0.0, %v2617
        %v2619 = vpop.f32.mrb[0].mxu0
        %v2620 = vadd.f32 0.0, %v2619
        %v2621 = vpop.f32.mrb[0].mxu0
        %v2622 = vadd.f32 0.0, %v2621
        %2623 = vmatprep.mubr.bf16.mxu0 0
        %2624 = vmatmul.mubr.bf16.gmra.mrb[0].mxu0 %v2359
        %v2625 = vpop.f32.mrb[0].mxu0
        %v2626 = vadd.f32 0.0, %v2625
        %v2627 = vpop.f32.mrb[0].mxu0
        %v2628 = vadd.f32 0.0, %v2627
        %v2629 = vpop.f32.mrb[0].mxu0
        %v2630 = vadd.f32 0.0, %v2629
        %v2631 = vpop.f32.mrb[0].mxu0
        %v2632 = vadd.f32 0.0, %v2631
        %2633 = vmatprep.mubr.bf16.mxu0 0
        %2634 = vmatmul.mubr.bf16.gmra.mrb[0].mxu0 %v2361
        %v2635 = vpop.f32.mrb[0].mxu0
        %v2636 = vadd.f32 0.0, %v2635
        %v2637 = vpop.f32.mrb[0].mxu0
        %v2638 = vadd.f32 0.0, %v2637
        %v2639 = vpop.f32.mrb[0].mxu0
        %v2640 = vadd.f32 0.0, %v2639
        %v2641 = vpop.f32.mrb[0].mxu0
        %v2642 = vadd.f32 0.0, %v2641
        %2643 = vmatprep.mubr.bf16.mxu0 0
        %2644 = vmatmul.mubr.bf16.gmra.mrb[0].mxu0 %v2363
        %v2645 = vpop.f32.mrb[0].mxu0
        %v2646 = vadd.f32 0.0, %v2645
        %v2647 = vpop.f32.mrb[0].mxu0
        %v2648 = vadd.f32 0.0, %v2647
        %v2649 = vpop.f32.mrb[0].mxu0
        %v2650 = vadd.f32 0.0, %v2649
        %v2651 = vpop.f32.mrb[0].mxu0
        %v2652 = vadd.f32 0.0, %v2651
        %2653 = vmatprep.mubr.bf16.mxu0 0
        %2654 = vmatmul.mubr.bf16.gmra.mrb[0].mxu0 %v2365
        %v2655 = vpop.f32.mrb[0].mxu0
        %v2656 = vadd.f32 0.0, %v2655
        %v2657 = vpop.f32.mrb[0].mxu0
        %v2658 = vadd.f32 0.0, %v2657
        %v2659 = vpop.f32.mrb[0].mxu0
        %v2660 = vadd.f32 0.0, %v2659
        %v2661 = vpop.f32.mrb[0].mxu0
        %v2662 = vadd.f32 0.0, %v2661
        %2663 = vmatprep.mubr.bf16.mxu0 0
        %2664 = vmatmul.mubr.bf16.gmra.mrb[0].mxu0 %v2367
        %v2665 = vpop.f32.mrb[0].mxu0
        %v2666 = vadd.f32 0.0, %v2665
        %v2667 = vpop.f32.mrb[0].mxu0
        %v2668 = vadd.f32 0.0, %v2667
        %v2669 = vpop.f32.mrb[0].mxu0
        %v2670 = vadd.f32 0.0, %v2669
        %v2671 = vpop.f32.mrb[0].mxu0
        %v2672 = vadd.f32 0.0, %v2671
        %2673 = vmatprep.mubr.bf16.mxu0 0
        %2674 = vmatmul.mubr.bf16.gmra.mrb[0].mxu0 %v2369
        %v2675 = vpop.f32.mrb[0].mxu0
        %v2676 = vadd.f32 0.0, %v2675
        %v2677 = vpop.f32.mrb[0].mxu0
        %v2678 = vadd.f32 0.0, %v2677
        %v2679 = vpop.f32.mrb[0].mxu0
        %v2680 = vadd.f32 0.0, %v2679
        %v2681 = vpop.f32.mrb[0].mxu0
        %v2682 = vadd.f32 0.0, %v2681
        %2683 = vmatprep.mubr.bf16.mxu0 0
        %2684 = vmatmul.mubr.bf16.gmra.mrb[0].mxu0 %v2371
        %v2685 = vpop.f32.mrb[0].mxu0
        %v2686 = vadd.f32 0.0, %v2685
        %v2687 = vpop.f32.mrb[0].mxu0
        %v2688 = vadd.f32 0.0, %v2687
        %v2689 = vpop.f32.mrb[0].mxu0
        %v2690 = vadd.f32 0.0, %v2689
        %v2691 = vpop.f32.mrb[0].mxu0
        %v2692 = vadd.f32 0.0, %v2691
        %2693 = vmatprep.mubr.bf16.mxu0 0
        %2694 = vmatmul.mubr.bf16.gmra.mrb[0].mxu0 %v2373
        %v2695 = vpop.f32.mrb[0].mxu0
        %v2696 = vadd.f32 0.0, %v2695
        %v2697 = vpop.f32.mrb[0].mxu0
        %v2698 = vadd.f32 0.0, %v2697
        %v2699 = vpop.f32.mrb[0].mxu0
        %v2700 = vadd.f32 0.0, %v2699
        %v2701 = vpop.f32.mrb[0].mxu0
        %v2702 = vadd.f32 0.0, %v2701
        %2703 = vmatprep.mubr.bf16.mxu0 0
        %2704 = vmatmul.mubr.bf16.gmra.mrb[0].mxu0 %v2375
        %v2705 = vpop.f32.mrb[0].mxu0
        %v2706 = vadd.f32 0.0, %v2705
        %v2707 = vpop.f32.mrb[0].mxu0
        %v2708 = vadd.f32 0.0, %v2707
        %v2709 = vpop.f32.mrb[0].mxu0
        %v2710 = vadd.f32 0.0, %v2709
        %v2711 = vpop.f32.mrb[0].mxu0
        %v2712 = vadd.f32 0.0, %v2711
        %2713 = vmatprep.mubr.bf16.mxu0 0
        %2714 = vmatmul.mubr.bf16.gmra.mrb[0].mxu0 %v2377
        %v2715 = vpop.f32.mrb[0].mxu0
        %v2716 = vadd.f32 0.0, %v2715
        %v2717 = vpop.f32.mrb[0].mxu0
        %v2718 = vadd.f32 0.0, %v2717
        %v2719 = vpop.f32.mrb[0].mxu0
        %v2720 = vadd.f32 0.0, %v2719
        %v2721 = vpop.f32.mrb[0].mxu0
        %v2722 = vadd.f32 0.0, %v2721
        %2723 = vmatprep.mubr.bf16.mxu0 0
        %2724 = vmatmul.mubr.bf16.gmra.mrb[0].mxu0 %v2379
        %v2725 = vpop.f32.mrb[0].mxu0
        %v2726 = vadd.f32 0.0, %v2725
        %v2727 = vpop.f32.mrb[0].mxu0
        %v2728 = vadd.f32 0.0, %v2727
        %v2729 = vpop.f32.mrb[0].mxu0
        %v2730 = vadd.f32 0.0, %v2729
        %v2731 = vpop.f32.mrb[0].mxu0
        %v2732 = vadd.f32 0.0, %v2731
        %2733 = vdwg.mxu0
        %v2734 = vlaneseq
        %v2735 = vand.u32 %v2734, 127
        %v2736 = vadd.s32 %v2735, 128
        %vm2737 = vcmp.ge.s32.totalorder %v2735, 128
        %vm2738 = vcmp.ge.s32.totalorder %v2736, 128
        %vm2739 = vcmp.lt.s32.totalorder %v2735, 192
        %vm2740 = vcmp.lt.s32.totalorder %v2736, 192
        %vm2741 = vmand %vm2737, %vm2739
        %vm2742 = vmand %vm2738, %vm2740
        %v2743 = vadd.f32 %v1564, %v2416
        %v2744 = vadd.f32 %v1566, %v2418
        %v2745 = vadd.f32 %v1568, %v2420
        %v2746 = vadd.f32 %v1570, %v2422
        %v2747 = vadd.f32 %v1574, %v2426
        %v2748 = vadd.f32 %v1576, %v2428
        %v2749 = vadd.f32 %v1578, %v2430
        %v2750 = vadd.f32 %v1580, %v2432
        %v2751 = vadd.f32 %v1584, %v2436
        %v2752 = vadd.f32 %v1586, %v2438
        %v2753 = vadd.f32 %v1588, %v2440
        %v2754 = vadd.f32 %v1590, %v2442
        %v2755 = vadd.f32 %v1594, %v2446
        %v2756 = vadd.f32 %v1596, %v2448
        %v2757 = vadd.f32 %v1598, %v2450
        %v2758 = vadd.f32 %v1600, %v2452
        %v2759 = vadd.f32 %v1604, %v2456
        %v2760 = vadd.f32 %v1606, %v2458
        %v2761 = vadd.f32 %v1608, %v2460
        %v2762 = vadd.f32 %v1610, %v2462
        %v2763 = vadd.f32 %v1614, %v2466
        %v2764 = vadd.f32 %v1616, %v2468
        %v2765 = vadd.f32 %v1618, %v2470
        %v2766 = vadd.f32 %v1620, %v2472
        %v2767 = vadd.f32 %v1624, %v2476
        %v2768 = vadd.f32 %v1626, %v2478
        %v2769 = vadd.f32 %v1628, %v2480
        %v2770 = vadd.f32 %v1630, %v2482
        %v2771 = vadd.f32 %v1634, %v2486
        %v2772 = vadd.f32 %v1636, %v2488
        %v2773 = vadd.f32 %v1638, %v2490
        %v2774 = vadd.f32 %v1640, %v2492
        %v2783 = vunpack.c.l.b16 %v951
        %v2784 = vunpack.c.h.b16 %v951
        %v2785 = vunpack.c.l.b16 %v952
        %v2786 = vunpack.c.h.b16 %v952
        %v2787 = vunpack.c.l.b16 %v953
        %v2788 = vunpack.c.h.b16 %v953
        %v2789 = vunpack.c.l.b16 %v954
        %v2790 = vunpack.c.h.b16 %v954
        %v2791 = vunpack.c.l.b16 %v955
        %v2792 = vunpack.c.h.b16 %v955
        %v2793 = vunpack.c.l.b16 %v956
        %v2794 = vunpack.c.h.b16 %v956
        %v2795 = vunpack.c.l.b16 %v957
        %v2796 = vunpack.c.h.b16 %v957
        %v2797 = vunpack.c.l.b16 %v958
        %v2798 = vunpack.c.h.b16 %v958
        %v2799 = vpack.c.b16 %v2785, %v2783
        %v2800 = vpack.c.b16 %v2786, %v2784
        %v2801 = vpack.c.b16 %v2789, %v2787
        %v2802 = vpack.c.b16 %v2790, %v2788
        %v2803 = vpack.c.b16 %v2793, %v2791
        %v2804 = vpack.c.b16 %v2794, %v2792
        %v2805 = vpack.c.b16 %v2797, %v2795
        %v2806 = vpack.c.b16 %v2798, %v2796
        %v2816 = vsel %vm1432, 0, 0
        %2818 = vmatprep.subr.bf16.mxu0 %v2800
        %2819 = vmatpush1.bf16.msra.mxu0 %v2799
        %2820 = vmatprep.subr.bf16.mxu0 %v2802
        %2821 = vmatpush1.bf16.msra.mxu0 %v2801
        %2822 = vmatprep.subr.bf16.mxu0 %v2804
        %2823 = vmatpush1.bf16.msra.mxu0 %v2803
        %2824 = vmatprep.subr.bf16.mxu0 %v2806
        %2825 = vmatpush1.bf16.msra.mxu0 %v2805
        %2826 = vmatprep.subr.bf16.mxu0 0
        %2827 = vmatpush1.bf16.msra.mxu0 0
        %2828 = vmatprep.subr.bf16.mxu0 0
        %2829 = vmatpush1.bf16.msra.mxu0 0
        %2830 = vmatprep.subr.bf16.mxu0 0
        %2831 = vmatpush1.bf16.msra.mxu0 0
        %2832 = vmatprep.subr.bf16.mxu0 0
        %2833 = vmatpush1.bf16.msra.mxu0 0
        %2834 = vmatprep.subr.bf16.mxu0 0
        %2835 = vmatpush1.bf16.msra.mxu0 0
        %2836 = vmatprep.subr.bf16.mxu0 0
        %2837 = vmatpush1.bf16.msra.mxu0 0
        %2838 = vmatprep.subr.bf16.mxu0 0
        %2839 = vmatpush1.bf16.msra.mxu0 0
        %2840 = vmatprep.subr.bf16.mxu0 0
        %2841 = vmatpush1.bf16.msra.mxu0 0
        %2842 = vmatprep.subr.bf16.mxu0 0
        %2843 = vmatpush1.bf16.msra.mxu0 0
        %2844 = vmatprep.subr.bf16.mxu0 0
        %2845 = vmatpush1.bf16.msra.mxu0 0
        %2846 = vmatprep.subr.bf16.mxu0 0
        %2847 = vmatpush1.bf16.msra.mxu0 0
        %2848 = vmatprep.subr.bf16.mxu0 0
        %2849 = vmatpush1.bf16.msra.mxu0 0
        %2850 = vmatprep.mubr.bf16.mxu0 0
        %2851 = vmatmul.mubr.bf16.gmra.mrb[0].mxu0 %v2816
        %v2852 = vpop.f32.mrb[0].mxu0
        %v2853 = vadd.f32 0.0, %v2852
        %v2854 = vpop.f32.mrb[0].mxu0
        %v2855 = vadd.f32 0.0, %v2854
        %v2856 = vpop.f32.mrb[0].mxu0
        %v2857 = vadd.f32 0.0, %v2856
        %v2858 = vpop.f32.mrb[0].mxu0
        %v2859 = vadd.f32 0.0, %v2858
        %2860 = vmatprep.mubr.bf16.mxu0 0
        %2861 = vmatmul.mubr.bf16.gmra.mrb[0].mxu0 %v2816
        %v2862 = vpop.f32.mrb[0].mxu0
        %v2863 = vadd.f32 0.0, %v2862
        %v2864 = vpop.f32.mrb[0].mxu0
        %v2865 = vadd.f32 0.0, %v2864
        %v2866 = vpop.f32.mrb[0].mxu0
        %v2867 = vadd.f32 0.0, %v2866
        %v2868 = vpop.f32.mrb[0].mxu0
        %v2869 = vadd.f32 0.0, %v2868
        %2870 = vmatprep.mubr.bf16.mxu0 0
        %2871 = vmatmul.mubr.bf16.gmra.mrb[0].mxu0 %v2816
        %v2872 = vpop.f32.mrb[0].mxu0
        %v2873 = vadd.f32 0.0, %v2872
        %v2874 = vpop.f32.mrb[0].mxu0
        %v2875 = vadd.f32 0.0, %v2874
        %v2876 = vpop.f32.mrb[0].mxu0
        %v2877 = vadd.f32 0.0, %v2876
        %v2878 = vpop.f32.mrb[0].mxu0
        %v2879 = vadd.f32 0.0, %v2878
        %2880 = vmatprep.mubr.bf16.mxu0 0
        %2881 = vmatmul.mubr.bf16.gmra.mrb[0].mxu0 %v2816
        %v2882 = vpop.f32.mrb[0].mxu0
        %v2883 = vadd.f32 0.0, %v2882
        %v2884 = vpop.f32.mrb[0].mxu0
        %v2885 = vadd.f32 0.0, %v2884
        %v2886 = vpop.f32.mrb[0].mxu0
        %v2887 = vadd.f32 0.0, %v2886
        %v2888 = vpop.f32.mrb[0].mxu0
        %v2889 = vadd.f32 0.0, %v2888
        %2890 = vmatprep.mubr.bf16.mxu0 0
        %2891 = vmatmul.mubr.bf16.gmra.mrb[0].mxu0 %v2816
        %v2892 = vpop.f32.mrb[0].mxu0
        %v2893 = vadd.f32 0.0, %v2892
        %v2894 = vpop.f32.mrb[0].mxu0
        %v2895 = vadd.f32 0.0, %v2894
        %v2896 = vpop.f32.mrb[0].mxu0
        %v2897 = vadd.f32 0.0, %v2896
        %v2898 = vpop.f32.mrb[0].mxu0
        %v2899 = vadd.f32 0.0, %v2898
        %2900 = vmatprep.mubr.bf16.mxu0 0
        %2901 = vmatmul.mubr.bf16.gmra.mrb[0].mxu0 %v2816
        %v2902 = vpop.f32.mrb[0].mxu0
        %v2903 = vadd.f32 0.0, %v2902
        %v2904 = vpop.f32.mrb[0].mxu0
        %v2905 = vadd.f32 0.0, %v2904
        %v2906 = vpop.f32.mrb[0].mxu0
        %v2907 = vadd.f32 0.0, %v2906
        %v2908 = vpop.f32.mrb[0].mxu0
        %v2909 = vadd.f32 0.0, %v2908
        %2910 = vmatprep.mubr.bf16.mxu0 0
        %2911 = vmatmul.mubr.bf16.gmra.mrb[0].mxu0 %v2816
        %v2912 = vpop.f32.mrb[0].mxu0
        %v2913 = vadd.f32 0.0, %v2912
        %v2914 = vpop.f32.mrb[0].mxu0
        %v2915 = vadd.f32 0.0, %v2914
        %v2916 = vpop.f32.mrb[0].mxu0
        %v2917 = vadd.f32 0.0, %v2916
        %v2918 = vpop.f32.mrb[0].mxu0
        %v2919 = vadd.f32 0.0, %v2918
        %2920 = vmatprep.mubr.bf16.mxu0 0
        %2921 = vmatmul.mubr.bf16.gmra.mrb[0].mxu0 %v2816
        %v2922 = vpop.f32.mrb[0].mxu0
        %v2923 = vadd.f32 0.0, %v2922
        %v2924 = vpop.f32.mrb[0].mxu0
        %v2925 = vadd.f32 0.0, %v2924
        %v2926 = vpop.f32.mrb[0].mxu0
        %v2927 = vadd.f32 0.0, %v2926
        %v2928 = vpop.f32.mrb[0].mxu0
        %v2929 = vadd.f32 0.0, %v2928
        %2930 = vdwg.mxu0
        %v2931 = vadd.f32 %v2743, %v2853
        %v2932 = vadd.f32 %v2744, %v2855
        %v2933 = vadd.f32 %v2745, %v2857
        %v2934 = vadd.f32 %v2746, %v2859
        %v2935 = vadd.f32 %v2747, %v2863
        %v2936 = vadd.f32 %v2748, %v2865
        %v2937 = vadd.f32 %v2749, %v2867
        %v2938 = vadd.f32 %v2750, %v2869
        %v2939 = vadd.f32 %v2751, %v2873
        %v2940 = vadd.f32 %v2752, %v2875
        %v2941 = vadd.f32 %v2753, %v2877
        %v2942 = vadd.f32 %v2754, %v2879
        %v2943 = vadd.f32 %v2755, %v2883
        %v2944 = vadd.f32 %v2756, %v2885
        %v2945 = vadd.f32 %v2757, %v2887
        %v2946 = vadd.f32 %v2758, %v2889
        %v2947 = vadd.f32 %v2759, %v2893
        %v2948 = vadd.f32 %v2760, %v2895
        %v2949 = vadd.f32 %v2761, %v2897
        %v2950 = vadd.f32 %v2762, %v2899
        %v2951 = vadd.f32 %v2763, %v2903
        %v2952 = vadd.f32 %v2764, %v2905
        %v2953 = vadd.f32 %v2765, %v2907
        %v2954 = vadd.f32 %v2766, %v2909
        %v2955 = vadd.f32 %v2767, %v2913
        %v2956 = vadd.f32 %v2768, %v2915
        %v2957 = vadd.f32 %v2769, %v2917
        %v2958 = vadd.f32 %v2770, %v2919
        %v2959 = vadd.f32 %v2771, %v2923
        %v2960 = vadd.f32 %v2772, %v2925
        %v2961 = vadd.f32 %v2773, %v2927
        %v2962 = vadd.f32 %v2774, %v2929
        %v2963 = vmul.f32 %v2931, 0.5
        %v2964 = vmul.f32 %v2932, 0.5
        %v2965 = vmul.f32 %v2933, 0.5
        %v2966 = vmul.f32 %v2934, 0.5
        %v2967 = vmul.f32 %v2935, 0.5
        %v2968 = vmul.f32 %v2936, 0.5
        %v2969 = vmul.f32 %v2937, 0.5
        %v2970 = vmul.f32 %v2938, 0.5
        %v2971 = vmul.f32 %v2939, 0.5
        %v2972 = vmul.f32 %v2940, 0.5
        %v2973 = vmul.f32 %v2941, 0.5
        %v2974 = vmul.f32 %v2942, 0.5
        %v2975 = vmul.f32 %v2943, 0.5
        %v2976 = vmul.f32 %v2944, 0.5
        %v2977 = vmul.f32 %v2945, 0.5
        %v2978 = vmul.f32 %v2946, 0.5
        %v2979 = vmul.f32 %v2947, 0.5
        %v2980 = vmul.f32 %v2948, 0.5
        %v2981 = vmul.f32 %v2949, 0.5
        %v2982 = vmul.f32 %v2950, 0.5
        %v2983 = vmul.f32 %v2951, 0.5
        %v2984 = vmul.f32 %v2952, 0.5
        %v2985 = vmul.f32 %v2953, 0.5
        %v2986 = vmul.f32 %v2954, 0.5
        %v2987 = vmul.f32 %v2955, 0.5
        %v2988 = vmul.f32 %v2956, 0.5
        %v2989 = vmul.f32 %v2957, 0.5
        %v2990 = vmul.f32 %v2958, 0.5
        %v2991 = vmul.f32 %v2959, 0.5
        %v2992 = vmul.f32 %v2960, 0.5
        %v2993 = vmul.f32 %v2961, 0.5
        %v2994 = vmul.f32 %v2962, 0.5
        %v2995 = vsel %vm2741, %v2931, %v2963
        %v2996 = vsel %vm2742, %v2932, %v2964
        %v2997 = vsel %vm2741, %v2933, %v2965
        %v2998 = vsel %vm2742, %v2934, %v2966
        %v2999 = vsel %vm2741, %v2935, %v2967
        %v3000 = vsel %vm2742, %v2936, %v2968
        %v3001 = vsel %vm2741, %v2937, %v2969
        %v3002 = vsel %vm2742, %v2938, %v2970
        %v3003 = vsel %vm2741, %v2939, %v2971
        %v3004 = vsel %vm2742, %v2940, %v2972
        %v3005 = vsel %vm2741, %v2941, %v2973
        %v3006 = vsel %vm2742, %v2942, %v2974
        %v3007 = vsel %vm2741, %v2943, %v2975
        %v3008 = vsel %vm2742, %v2944, %v2976
        %v3009 = vsel %vm2741, %v2945, %v2977
        %v3010 = vsel %vm2742, %v2946, %v2978
        %v3011 = vsel %vm2741, %v2947, %v2979
        %v3012 = vsel %vm2742, %v2948, %v2980
        %v3013 = vsel %vm2741, %v2949, %v2981
        %v3014 = vsel %vm2742, %v2950, %v2982
        %v3015 = vsel %vm2741, %v2951, %v2983
        %v3016 = vsel %vm2742, %v2952, %v2984
        %v3017 = vsel %vm2741, %v2953, %v2985
        %v3018 = vsel %vm2742, %v2954, %v2986
        %v3019 = vsel %vm2741, %v2955, %v2987
        %v3020 = vsel %vm2742, %v2956, %v2988
        %v3021 = vsel %vm2741, %v2957, %v2989
        %v3022 = vsel %vm2742, %v2958, %v2990
        %v3023 = vsel %vm2741, %v2959, %v2991
        %v3024 = vsel %vm2742, %v2960, %v2992
        %v3025 = vsel %vm2741, %v2961, %v2993
        %v3026 = vsel %vm2742, %v2962, %v2994
        %v3027 = vtanh.pop %v2995
        %v3028 = vtanh.pop %v2996
        %v3029 = vtanh.pop %v2997
        %v3030 = vtanh.pop %v2998
        %v3031 = vtanh.pop %v2999
        %v3032 = vtanh.pop %v3000
        %v3033 = vtanh.pop %v3001
        %v3034 = vtanh.pop %v3002
        %v3035 = vtanh.pop %v3003
        %v3036 = vtanh.pop %v3004
        %v3037 = vtanh.pop %v3005
        %v3038 = vtanh.pop %v3006
        %v3039 = vtanh.pop %v3007
        %v3040 = vtanh.pop %v3008
        %v3041 = vtanh.pop %v3009
        %v3042 = vtanh.pop %v3010
        %v3043 = vtanh.pop %v3011
        %v3044 = vtanh.pop %v3012
        %v3045 = vtanh.pop %v3013
        %v3046 = vtanh.pop %v3014
        %v3047 = vtanh.pop %v3015
        %v3048 = vtanh.pop %v3016
        %v3049 = vtanh.pop %v3017
        %v3050 = vtanh.pop %v3018
        %v3051 = vtanh.pop %v3019
        %v3052 = vtanh.pop %v3020
        %v3053 = vtanh.pop %v3021
        %v3054 = vtanh.pop %v3022
        %v3055 = vtanh.pop %v3023
        %v3056 = vtanh.pop %v3024
        %v3057 = vtanh.pop %v3025
        %v3058 = vtanh.pop %v3026
        %v3059 = vmul.f32 %v3027, 0.5
        %v3060 = vmul.f32 %v3028, 0.5
        %v3061 = vmul.f32 %v3029, 0.5
        %v3062 = vmul.f32 %v3030, 0.5
        %v3063 = vmul.f32 %v3031, 0.5
        %v3064 = vmul.f32 %v3032, 0.5
        %v3065 = vmul.f32 %v3033, 0.5
        %v3066 = vmul.f32 %v3034, 0.5
        %v3067 = vmul.f32 %v3035, 0.5
        %v3068 = vmul.f32 %v3036, 0.5
        %v3069 = vmul.f32 %v3037, 0.5
        %v3070 = vmul.f32 %v3038, 0.5
        %v3071 = vmul.f32 %v3039, 0.5
        %v3072 = vmul.f32 %v3040, 0.5
        %v3073 = vmul.f32 %v3041, 0.5
        %v3074 = vmul.f32 %v3042, 0.5
        %v3075 = vmul.f32 %v3043, 0.5
        %v3076 = vmul.f32 %v3044, 0.5
        %v3077 = vmul.f32 %v3045, 0.5
        %v3078 = vmul.f32 %v3046, 0.5
        %v3079 = vmul.f32 %v3047, 0.5
        %v3080 = vmul.f32 %v3048, 0.5
        %v3081 = vmul.f32 %v3049, 0.5
        %v3082 = vmul.f32 %v3050, 0.5
        %v3083 = vmul.f32 %v3051, 0.5
        %v3084 = vmul.f32 %v3052, 0.5
        %v3085 = vmul.f32 %v3053, 0.5
        %v3086 = vmul.f32 %v3054, 0.5
        %v3087 = vmul.f32 %v3055, 0.5
        %v3088 = vmul.f32 %v3056, 0.5
        %v3089 = vmul.f32 %v3057, 0.5
        %v3090 = vmul.f32 %v3058, 0.5
        %v3091 = vadd.f32 %v3059, 0.5
        %v3092 = vadd.f32 %v3060, 0.5
        %v3093 = vadd.f32 %v3061, 0.5
        %v3094 = vadd.f32 %v3062, 0.5
        %v3095 = vadd.f32 %v3063, 0.5
        %v3096 = vadd.f32 %v3064, 0.5
        %v3097 = vadd.f32 %v3065, 0.5
        %v3098 = vadd.f32 %v3066, 0.5
        %v3099 = vadd.f32 %v3067, 0.5
        %v3100 = vadd.f32 %v3068, 0.5
        %v3101 = vadd.f32 %v3069, 0.5
        %v3102 = vadd.f32 %v3070, 0.5
        %v3103 = vadd.f32 %v3071, 0.5
        %v3104 = vadd.f32 %v3072, 0.5
        %v3105 = vadd.f32 %v3073, 0.5
        %v3106 = vadd.f32 %v3074, 0.5
        %v3107 = vadd.f32 %v3075, 0.5
        %v3108 = vadd.f32 %v3076, 0.5
        %v3109 = vadd.f32 %v3077, 0.5
        %v3110 = vadd.f32 %v3078, 0.5
        %v3111 = vadd.f32 %v3079, 0.5
        %v3112 = vadd.f32 %v3080, 0.5
        %v3113 = vadd.f32 %v3081, 0.5
        %v3114 = vadd.f32 %v3082, 0.5
        %v3115 = vadd.f32 %v3083, 0.5
        %v3116 = vadd.f32 %v3084, 0.5
        %v3117 = vadd.f32 %v3085, 0.5
        %v3118 = vadd.f32 %v3086, 0.5
        %v3119 = vadd.f32 %v3087, 0.5
        %v3120 = vadd.f32 %v3088, 0.5
        %v3121 = vadd.f32 %v3089, 0.5
        %v3122 = vadd.f32 %v3090, 0.5
        %v3123 = vsel %vm2741, %v3027, %v3091
        %v3124 = vsel %vm2742, %v3028, %v3092
        %v3125 = vsel %vm2741, %v3029, %v3093
        %v3126 = vsel %vm2742, %v3030, %v3094
        %v3127 = vsel %vm2741, %v3031, %v3095
        %v3128 = vsel %vm2742, %v3032, %v3096
        %v3129 = vsel %vm2741, %v3033, %v3097
        %v3130 = vsel %vm2742, %v3034, %v3098
        %v3131 = vsel %vm2741, %v3035, %v3099
        %v3132 = vsel %vm2742, %v3036, %v3100
        %v3133 = vsel %vm2741, %v3037, %v3101
        %v3134 = vsel %vm2742, %v3038, %v3102
        %v3135 = vsel %vm2741, %v3039, %v3103
        %v3136 = vsel %vm2742, %v3040, %v3104
        %v3137 = vsel %vm2741, %v3041, %v3105
        %v3138 = vsel %vm2742, %v3042, %v3106
        %v3139 = vsel %vm2741, %v3043, %v3107
        %v3140 = vsel %vm2742, %v3044, %v3108
        %v3141 = vsel %vm2741, %v3045, %v3109
        %v3142 = vsel %vm2742, %v3046, %v3110
        %v3143 = vsel %vm2741, %v3047, %v3111
        %v3144 = vsel %vm2742, %v3048, %v3112
        %v3145 = vsel %vm2741, %v3049, %v3113
        %v3146 = vsel %vm2742, %v3050, %v3114
        %v3147 = vsel %vm2741, %v3051, %v3115
        %v3148 = vsel %vm2742, %v3052, %v3116
        %v3149 = vsel %vm2741, %v3053, %v3117
        %v3150 = vsel %vm2742, %v3054, %v3118
        %v3151 = vsel %vm2741, %v3055, %v3119
        %v3152 = vsel %vm2742, %v3056, %v3120
        %v3153 = vsel %vm2741, %v3057, %v3121
        %v3154 = vsel %vm2742, %v3058, %v3122
        %v3155 = vmul.f32 %v3123, 0.0
        %v3156 = vmul.f32 %v3125, 0.0
        %v3157 = vmul.f32 %v3127, 0.0
        %v3158 = vmul.f32 %v3129, 0.0
        %v3159 = vmul.f32 %v3131, 0.0
        %v3160 = vmul.f32 %v3133, 0.0
        %v3161 = vmul.f32 %v3135, 0.0
        %v3162 = vmul.f32 %v3137, 0.0
        %v3163 = vmul.f32 %v3139, 0.0
        %v3164 = vmul.f32 %v3141, 0.0
        %v3165 = vmul.f32 %v3143, 0.0
        %v3166 = vmul.f32 %v3145, 0.0
        %v3167 = vmul.f32 %v3147, 0.0
        %v3168 = vmul.f32 %v3149, 0.0
        %v3169 = vmul.f32 %v3151, 0.0
        %v3170 = vmul.f32 %v3153, 0.0
        %v3171 = vmul.f32 %v3123, %v3124
        %v3172 = vmul.f32 %v3125, %v3126
        %v3173 = vmul.f32 %v3127, %v3128
        %v3174 = vmul.f32 %v3129, %v3130
        %v3175 = vmul.f32 %v3131, %v3132
        %v3176 = vmul.f32 %v3133, %v3134
        %v3177 = vmul.f32 %v3135, %v3136
        %v3178 = vmul.f32 %v3137, %v3138
        %v3179 = vmul.f32 %v3139, %v3140
        %v3180 = vmul.f32 %v3141, %v3142
        %v3181 = vmul.f32 %v3143, %v3144
        %v3182 = vmul.f32 %v3145, %v3146
        %v3183 = vmul.f32 %v3147, %v3148
        %v3184 = vmul.f32 %v3149, %v3150
        %v3185 = vmul.f32 %v3151, %v3152
        %v3186 = vmul.f32 %v3153, %v3154
        %3203 = vrot.lane.b32.xlu0 %v3171, 64
        %v3204 = vpop.permute.xlu0 %3203
        %3205 = vrot.lane.b32.xlu0 %v3172, 64
        %v3206 = vpop.permute.xlu0 %3205
        %3207 = vrot.lane.b32.xlu0 %v3173, 64
        %v3208 = vpop.permute.xlu0 %3207
        %3209 = vrot.lane.b32.xlu0 %v3174, 64
        %v3210 = vpop.permute.xlu0 %3209
        %3211 = vrot.lane.b32.xlu0 %v3175, 64
        %v3212 = vpop.permute.xlu0 %3211
        %3213 = vrot.lane.b32.xlu0 %v3176, 64
        %v3214 = vpop.permute.xlu0 %3213
        %3215 = vrot.lane.b32.xlu0 %v3177, 64
        %v3216 = vpop.permute.xlu0 %3215
        %3217 = vrot.lane.b32.xlu0 %v3178, 64
        %v3218 = vpop.permute.xlu0 %3217
        %3219 = vrot.lane.b32.xlu0 %v3179, 64
        %v3220 = vpop.permute.xlu0 %3219
        %3221 = vrot.lane.b32.xlu0 %v3180, 64
        %v3222 = vpop.permute.xlu0 %3221
        %3223 = vrot.lane.b32.xlu0 %v3181, 64
        %v3224 = vpop.permute.xlu0 %3223
        %3225 = vrot.lane.b32.xlu0 %v3182, 64
        %v3226 = vpop.permute.xlu0 %3225
        %3227 = vrot.lane.b32.xlu0 %v3183, 64
        %v3228 = vpop.permute.xlu0 %3227
        %3229 = vrot.lane.b32.xlu0 %v3184, 64
        %v3230 = vpop.permute.xlu0 %3229
        %3231 = vrot.lane.b32.xlu0 %v3185, 64
        %v3232 = vpop.permute.xlu0 %3231
        %3233 = vrot.lane.b32.xlu0 %v3186, 64
        %v3234 = vpop.permute.xlu0 %3233
        %v3251 = vadd.f32 %v3155, %v3204
        %v3252 = vadd.f32 %v3156, %v3206
        %v3253 = vadd.f32 %v3157, %v3208
        %v3254 = vadd.f32 %v3158, %v3210
        %v3255 = vadd.f32 %v3159, %v3212
        %v3256 = vadd.f32 %v3160, %v3214
        %v3257 = vadd.f32 %v3161, %v3216
        %v3258 = vadd.f32 %v3162, %v3218
        %v3259 = vadd.f32 %v3163, %v3220
        %v3260 = vadd.f32 %v3164, %v3222
        %v3261 = vadd.f32 %v3165, %v3224
        %v3262 = vadd.f32 %v3166, %v3226
        %v3263 = vadd.f32 %v3167, %v3228
        %v3264 = vadd.f32 %v3168, %v3230
        %v3265 = vadd.f32 %v3169, %v3232
        %v3266 = vadd.f32 %v3170, %v3234
        %v3267 = vtanh.pop %v3251
        %v3268 = vtanh.pop %v3252
        %v3269 = vtanh.pop %v3253
        %v3270 = vtanh.pop %v3254
        %v3271 = vtanh.pop %v3255
        %v3272 = vtanh.pop %v3256
        %v3273 = vtanh.pop %v3257
        %v3274 = vtanh.pop %v3258
        %v3275 = vtanh.pop %v3259
        %v3276 = vtanh.pop %v3260
        %v3277 = vtanh.pop %v3261
        %v3278 = vtanh.pop %v3262
        %v3279 = vtanh.pop %v3263
        %v3280 = vtanh.pop %v3264
        %v3281 = vtanh.pop %v3265
        %v3282 = vtanh.pop %v3266
        %v3283 = vmul.f32 %v3124, %v3267
        %v3284 = vmul.f32 %v3126, %v3268
        %v3285 = vmul.f32 %v3128, %v3269
        %v3286 = vmul.f32 %v3130, %v3270
        %v3287 = vmul.f32 %v3132, %v3271
        %v3288 = vmul.f32 %v3134, %v3272
        %v3289 = vmul.f32 %v3136, %v3273
        %v3290 = vmul.f32 %v3138, %v3274
        %v3291 = vmul.f32 %v3140, %v3275
        %v3292 = vmul.f32 %v3142, %v3276
        %v3293 = vmul.f32 %v3144, %v3277
        %v3294 = vmul.f32 %v3146, %v3278
        %v3295 = vmul.f32 %v3148, %v3279
        %v3296 = vmul.f32 %v3150, %v3280
        %v3297 = vmul.f32 %v3152, %v3281
        %v3298 = vmul.f32 %v3154, %v3282
        %v3299 = vadd.f32 %v3283, 0.0
        %v3300 = vadd.f32 %v3284, 0.0
        %v3301 = vadd.f32 %v3285, 0.0
        %v3302 = vadd.f32 %v3286, 0.0
        %v3303 = vadd.f32 %v3287, 0.0
        %v3304 = vadd.f32 %v3288, 0.0
        %v3305 = vadd.f32 %v3289, 0.0
        %v3306 = vadd.f32 %v3290, 0.0
        %v3307 = vadd.f32 %v3291, 0.0
        %v3308 = vadd.f32 %v3292, 0.0
        %v3309 = vadd.f32 %v3293, 0.0
        %v3310 = vadd.f32 %v3294, 0.0
        %v3311 = vadd.f32 %v3295, 0.0
        %v3312 = vadd.f32 %v3296, 0.0
        %v3313 = vadd.f32 %v3297, 0.0
        %v3314 = vadd.f32 %v3298, 0.0
        %v3315 = vadd.f32 %v1644, %v2496
        %v3316 = vadd.f32 %v1646, %v2498
        %v3317 = vadd.f32 %v1648, %v2500
        %v3318 = vadd.f32 %v1650, %v2502
        %v3319 = vadd.f32 %v1654, %v2506
        %v3320 = vadd.f32 %v1656, %v2508
        %v3321 = vadd.f32 %v1658, %v2510
        %v3322 = vadd.f32 %v1660, %v2512
        %v3323 = vadd.f32 %v1664, %v2516
        %v3324 = vadd.f32 %v1666, %v2518
        %v3325 = vadd.f32 %v1668, %v2520
        %v3326 = vadd.f32 %v1670, %v2522
        %v3327 = vadd.f32 %v1674, %v2526
        %v3328 = vadd.f32 %v1676, %v2528
        %v3329 = vadd.f32 %v1678, %v2530
        %v3330 = vadd.f32 %v1680, %v2532
        %v3331 = vadd.f32 %v1684, %v2536
        %v3332 = vadd.f32 %v1686, %v2538
        %v3333 = vadd.f32 %v1688, %v2540
        %v3334 = vadd.f32 %v1690, %v2542
        %v3335 = vadd.f32 %v1694, %v2546
        %v3336 = vadd.f32 %v1696, %v2548
        %v3337 = vadd.f32 %v1698, %v2550
        %v3338 = vadd.f32 %v1700, %v2552
        %v3339 = vadd.f32 %v1704, %v2556
        %v3340 = vadd.f32 %v1706, %v2558
        %v3341 = vadd.f32 %v1708, %v2560
        %v3342 = vadd.f32 %v1710, %v2562
        %v3343 = vadd.f32 %v1714, %v2566
        %v3344 = vadd.f32 %v1716, %v2568
        %v3345 = vadd.f32 %v1718, %v2570
        %v3346 = vadd.f32 %v1720, %v2572
        %v3347 = vpack.c.bf16 %v3284, %v3283
        %v3348 = vpack.c.bf16 %v3286, %v3285
        %v3349 = vpack.c.bf16 %v3288, %v3287
        %v3350 = vpack.c.bf16 %v3290, %v3289
        %v3351 = vpack.c.bf16 %v3292, %v3291
        %v3352 = vpack.c.bf16 %v3294, %v3293
        %v3353 = vpack.c.bf16 %v3296, %v3295
        %v3354 = vpack.c.bf16 %v3298, %v3297
        %3363 = vrot.lane.b32.xlu0 %v3347, 64
        %v3364 = vpop.permute.xlu0 %3363
        %3365 = vrot.lane.b32.xlu0 %v3348, 64
        %v3366 = vpop.permute.xlu0 %3365
        %3367 = vrot.lane.b32.xlu0 %v3349, 64
        %v3368 = vpop.permute.xlu0 %3367
        %3369 = vrot.lane.b32.xlu0 %v3350, 64
        %v3370 = vpop.permute.xlu0 %3369
        %3371 = vrot.lane.b32.xlu0 %v3351, 64
        %v3372 = vpop.permute.xlu0 %3371
        %3373 = vrot.lane.b32.xlu0 %v3352, 64
        %v3374 = vpop.permute.xlu0 %3373
        %3375 = vrot.lane.b32.xlu0 %v3353, 64
        %v3376 = vpop.permute.xlu0 %3375
        %3377 = vrot.lane.b32.xlu0 %v3354, 64
        %v3378 = vpop.permute.xlu0 %3377
        %v3380 = vsel %vm1432, %v3364, 0
        %v3383 = vsel %vm1432, %v3366, 0
        %v3386 = vsel %vm1432, %v3368, 0
        %v3389 = vsel %vm1432, %v3370, 0
        %v3392 = vsel %vm1432, %v3372, 0
        %v3395 = vsel %vm1432, %v3374, 0
        %v3398 = vsel %vm1432, %v3376, 0
        %v3401 = vsel %vm1432, %v3378, 0
        %3403 = vmatprep.subr.bf16.mxu0 %v2800
        %3404 = vmatpush1.bf16.msra.mxu0 %v2799
        %3405 = vmatprep.subr.bf16.mxu0 %v2802
        %3406 = vmatpush1.bf16.msra.mxu0 %v2801
        %3407 = vmatprep.subr.bf16.mxu0 %v2804
        %3408 = vmatpush1.bf16.msra.mxu0 %v2803
        %3409 = vmatprep.subr.bf16.mxu0 %v2806
        %3410 = vmatpush1.bf16.msra.mxu0 %v2805
        %3411 = vmatprep.subr.bf16.mxu0 0
        %3412 = vmatpush1.bf16.msra.mxu0 0
        %3413 = vmatprep.subr.bf16.mxu0 0
        %3414 = vmatpush1.bf16.msra.mxu0 0
        %3415 = vmatprep.subr.bf16.mxu0 0
        %3416 = vmatpush1.bf16.msra.mxu0 0
        %3417 = vmatprep.subr.bf16.mxu0 0
        %3418 = vmatpush1.bf16.msra.mxu0 0
        %3419 = vmatprep.subr.bf16.mxu0 0
        %3420 = vmatpush1.bf16.msra.mxu0 0
        %3421 = vmatprep.subr.bf16.mxu0 0
        %3422 = vmatpush1.bf16.msra.mxu0 0
        %3423 = vmatprep.subr.bf16.mxu0 0
        %3424 = vmatpush1.bf16.msra.mxu0 0
        %3425 = vmatprep.subr.bf16.mxu0 0
        %3426 = vmatpush1.bf16.msra.mxu0 0
        %3427 = vmatprep.subr.bf16.mxu0 0
        %3428 = vmatpush1.bf16.msra.mxu0 0
        %3429 = vmatprep.subr.bf16.mxu0 0
        %3430 = vmatpush1.bf16.msra.mxu0 0
        %3431 = vmatprep.subr.bf16.mxu0 0
        %3432 = vmatpush1.bf16.msra.mxu0 0
        %3433 = vmatprep.subr.bf16.mxu0 0
        %3434 = vmatpush1.bf16.msra.mxu0 0
        %3435 = vmatprep.mubr.bf16.mxu0 0
        %3436 = vmatmul.mubr.bf16.gmra.mrb[0].mxu0 %v3380
        %v3437 = vpop.f32.mrb[0].mxu0
        %v3438 = vadd.f32 0.0, %v3437
        %v3439 = vpop.f32.mrb[0].mxu0
        %v3440 = vadd.f32 0.0, %v3439
        %v3441 = vpop.f32.mrb[0].mxu0
        %v3442 = vadd.f32 0.0, %v3441
        %v3443 = vpop.f32.mrb[0].mxu0
        %v3444 = vadd.f32 0.0, %v3443
        %3445 = vmatprep.mubr.bf16.mxu0 0
        %3446 = vmatmul.mubr.bf16.gmra.mrb[0].mxu0 %v3383
        %v3447 = vpop.f32.mrb[0].mxu0
        %v3448 = vadd.f32 0.0, %v3447
        %v3449 = vpop.f32.mrb[0].mxu0
        %v3450 = vadd.f32 0.0, %v3449
        %v3451 = vpop.f32.mrb[0].mxu0
        %v3452 = vadd.f32 0.0, %v3451
        %v3453 = vpop.f32.mrb[0].mxu0
        %v3454 = vadd.f32 0.0, %v3453
        %3455 = vmatprep.mubr.bf16.mxu0 0
        %3456 = vmatmul.mubr.bf16.gmra.mrb[0].mxu0 %v3386
        %v3457 = vpop.f32.mrb[0].mxu0
        %v3458 = vadd.f32 0.0, %v3457
        %v3459 = vpop.f32.mrb[0].mxu0
        %v3460 = vadd.f32 0.0, %v3459
        %v3461 = vpop.f32.mrb[0].mxu0
        %v3462 = vadd.f32 0.0, %v3461
        %v3463 = vpop.f32.mrb[0].mxu0
        %v3464 = vadd.f32 0.0, %v3463
        %3465 = vmatprep.mubr.bf16.mxu0 0
        %3466 = vmatmul.mubr.bf16.gmra.mrb[0].mxu0 %v3389
        %v3467 = vpop.f32.mrb[0].mxu0
        %v3468 = vadd.f32 0.0, %v3467
        %v3469 = vpop.f32.mrb[0].mxu0
        %v3470 = vadd.f32 0.0, %v3469
        %v3471 = vpop.f32.mrb[0].mxu0
        %v3472 = vadd.f32 0.0, %v3471
        %v3473 = vpop.f32.mrb[0].mxu0
        %v3474 = vadd.f32 0.0, %v3473
        %3475 = vmatprep.mubr.bf16.mxu0 0
        %3476 = vmatmul.mubr.bf16.gmra.mrb[0].mxu0 %v3392
        %v3477 = vpop.f32.mrb[0].mxu0
        %v3478 = vadd.f32 0.0, %v3477
        %v3479 = vpop.f32.mrb[0].mxu0
        %v3480 = vadd.f32 0.0, %v3479
        %v3481 = vpop.f32.mrb[0].mxu0
        %v3482 = vadd.f32 0.0, %v3481
        %v3483 = vpop.f32.mrb[0].mxu0
        %v3484 = vadd.f32 0.0, %v3483
        %3485 = vmatprep.mubr.bf16.mxu0 0
        %3486 = vmatmul.mubr.bf16.gmra.mrb[0].mxu0 %v3395
        %v3487 = vpop.f32.mrb[0].mxu0
        %v3488 = vadd.f32 0.0, %v3487
        %v3489 = vpop.f32.mrb[0].mxu0
        %v3490 = vadd.f32 0.0, %v3489
        %v3491 = vpop.f32.mrb[0].mxu0
        %v3492 = vadd.f32 0.0, %v3491
        %v3493 = vpop.f32.mrb[0].mxu0
        %v3494 = vadd.f32 0.0, %v3493
        %3495 = vmatprep.mubr.bf16.mxu0 0
        %3496 = vmatmul.mubr.bf16.gmra.mrb[0].mxu0 %v3398
        %v3497 = vpop.f32.mrb[0].mxu0
        %v3498 = vadd.f32 0.0, %v3497
        %v3499 = vpop.f32.mrb[0].mxu0
        %v3500 = vadd.f32 0.0, %v3499
        %v3501 = vpop.f32.mrb[0].mxu0
        %v3502 = vadd.f32 0.0, %v3501
        %v3503 = vpop.f32.mrb[0].mxu0
        %v3504 = vadd.f32 0.0, %v3503
        %3505 = vmatprep.mubr.bf16.mxu0 0
        %3506 = vmatmul.mubr.bf16.gmra.mrb[0].mxu0 %v3401
        %v3507 = vpop.f32.mrb[0].mxu0
        %v3508 = vadd.f32 0.0, %v3507
        %v3509 = vpop.f32.mrb[0].mxu0
        %v3510 = vadd.f32 0.0, %v3509
        %v3511 = vpop.f32.mrb[0].mxu0
        %v3512 = vadd.f32 0.0, %v3511
        %v3513 = vpop.f32.mrb[0].mxu0
        %v3514 = vadd.f32 0.0, %v3513
        %3515 = vdwg.mxu0
        %v3516 = vadd.f32 %v3315, %v3438
        %v3517 = vadd.f32 %v3316, %v3440
        %v3518 = vadd.f32 %v3317, %v3442
        %v3519 = vadd.f32 %v3318, %v3444
        %v3520 = vadd.f32 %v3319, %v3448
        %v3521 = vadd.f32 %v3320, %v3450
        %v3522 = vadd.f32 %v3321, %v3452
        %v3523 = vadd.f32 %v3322, %v3454
        %v3524 = vadd.f32 %v3323, %v3458
        %v3525 = vadd.f32 %v3324, %v3460
        %v3526 = vadd.f32 %v3325, %v3462
        %v3527 = vadd.f32 %v3326, %v3464
        %v3528 = vadd.f32 %v3327, %v3468
        %v3529 = vadd.f32 %v3328, %v3470
        %v3530 = vadd.f32 %v3329, %v3472
        %v3531 = vadd.f32 %v3330, %v3474
        %v3532 = vadd.f32 %v3331, %v3478
        %v3533 = vadd.f32 %v3332, %v3480
        %v3534 = vadd.f32 %v3333, %v3482
        %v3535 = vadd.f32 %v3334, %v3484
        %v3536 = vadd.f32 %v3335, %v3488
        %v3537 = vadd.f32 %v3336, %v3490
        %v3538 = vadd.f32 %v3337, %v3492
        %v3539 = vadd.f32 %v3338, %v3494
        %v3540 = vadd.f32 %v3339, %v3498
        %v3541 = vadd.f32 %v3340, %v3500
        %v3542 = vadd.f32 %v3341, %v3502
        %v3543 = vadd.f32 %v3342, %v3504
        %v3544 = vadd.f32 %v3343, %v3508
        %v3545 = vadd.f32 %v3344, %v3510
        %v3546 = vadd.f32 %v3345, %v3512
        %v3547 = vadd.f32 %v3346, %v3514
        %v3548 = vmul.f32 %v3516, 0.5
        %v3549 = vmul.f32 %v3517, 0.5
        %v3550 = vmul.f32 %v3518, 0.5
        %v3551 = vmul.f32 %v3519, 0.5
        %v3552 = vmul.f32 %v3520, 0.5
        %v3553 = vmul.f32 %v3521, 0.5
        %v3554 = vmul.f32 %v3522, 0.5
        %v3555 = vmul.f32 %v3523, 0.5
        %v3556 = vmul.f32 %v3524, 0.5
        %v3557 = vmul.f32 %v3525, 0.5
        %v3558 = vmul.f32 %v3526, 0.5
        %v3559 = vmul.f32 %v3527, 0.5
        %v3560 = vmul.f32 %v3528, 0.5
        %v3561 = vmul.f32 %v3529, 0.5
        %v3562 = vmul.f32 %v3530, 0.5
        %v3563 = vmul.f32 %v3531, 0.5
        %v3564 = vmul.f32 %v3532, 0.5
        %v3565 = vmul.f32 %v3533, 0.5
        %v3566 = vmul.f32 %v3534, 0.5
        %v3567 = vmul.f32 %v3535, 0.5
        %v3568 = vmul.f32 %v3536, 0.5
        %v3569 = vmul.f32 %v3537, 0.5
        %v3570 = vmul.f32 %v3538, 0.5
        %v3571 = vmul.f32 %v3539, 0.5
        %v3572 = vmul.f32 %v3540, 0.5
        %v3573 = vmul.f32 %v3541, 0.5
        %v3574 = vmul.f32 %v3542, 0.5
        %v3575 = vmul.f32 %v3543, 0.5
        %v3576 = vmul.f32 %v3544, 0.5
        %v3577 = vmul.f32 %v3545, 0.5
        %v3578 = vmul.f32 %v3546, 0.5
        %v3579 = vmul.f32 %v3547, 0.5
        %v3580 = vsel %vm2741, %v3516, %v3548
        %v3581 = vsel %vm2742, %v3517, %v3549
        %v3582 = vsel %vm2741, %v3518, %v3550
        %v3583 = vsel %vm2742, %v3519, %v3551
        %v3584 = vsel %vm2741, %v3520, %v3552
        %v3585 = vsel %vm2742, %v3521, %v3553
        %v3586 = vsel %vm2741, %v3522, %v3554
        %v3587 = vsel %vm2742, %v3523, %v3555
        %v3588 = vsel %vm2741, %v3524, %v3556
        %v3589 = vsel %vm2742, %v3525, %v3557
        %v3590 = vsel %vm2741, %v3526, %v3558
        %v3591 = vsel %vm2742, %v3527, %v3559
        %v3592 = vsel %vm2741, %v3528, %v3560
        %v3593 = vsel %vm2742, %v3529, %v3561
        %v3594 = vsel %vm2741, %v3530, %v3562
        %v3595 = vsel %vm2742, %v3531, %v3563
        %v3596 = vsel %vm2741, %v3532, %v3564
        %v3597 = vsel %vm2742, %v3533, %v3565
        %v3598 = vsel %vm2741, %v3534, %v3566
        %v3599 = vsel %vm2742, %v3535, %v3567
        %v3600 = vsel %vm2741, %v3536, %v3568
        %v3601 = vsel %vm2742, %v3537, %v3569
        %v3602 = vsel %vm2741, %v3538, %v3570
        %v3603 = vsel %vm2742, %v3539, %v3571
        %v3604 = vsel %vm2741, %v3540, %v3572
        %v3605 = vsel %vm2742, %v3541, %v3573
        %v3606 = vsel %vm2741, %v3542, %v3574
        %v3607 = vsel %vm2742, %v3543, %v3575
        %v3608 = vsel %vm2741, %v3544, %v3576
        %v3609 = vsel %vm2742, %v3545, %v3577
        %v3610 = vsel %vm2741, %v3546, %v3578
        %v3611 = vsel %vm2742, %v3547, %v3579
        %v3612 = vtanh.pop %v3580
        %v3613 = vtanh.pop %v3581
        %v3614 = vtanh.pop %v3582
        %v3615 = vtanh.pop %v3583
        %v3616 = vtanh.pop %v3584
        %v3617 = vtanh.pop %v3585
        %v3618 = vtanh.pop %v3586
        %v3619 = vtanh.pop %v3587
        %v3620 = vtanh.pop %v3588
        %v3621 = vtanh.pop %v3589
        %v3622 = vtanh.pop %v3590
        %v3623 = vtanh.pop %v3591
        %v3624 = vtanh.pop %v3592
        %v3625 = vtanh.pop %v3593
        %v3626 = vtanh.pop %v3594
        %v3627 = vtanh.pop %v3595
        %v3628 = vtanh.pop %v3596
        %v3629 = vtanh.pop %v3597
        %v3630 = vtanh.pop %v3598
        %v3631 = vtanh.pop %v3599
        %v3632 = vtanh.pop %v3600
        %v3633 = vtanh.pop %v3601
        %v3634 = vtanh.pop %v3602
        %v3635 = vtanh.pop %v3603
        %v3636 = vtanh.pop %v3604
        %v3637 = vtanh.pop %v3605
        %v3638 = vtanh.pop %v3606
        %v3639 = vtanh.pop %v3607
        %v3640 = vtanh.pop %v3608
        %v3641 = vtanh.pop %v3609
        %v3642 = vtanh.pop %v3610
        %v3643 = vtanh.pop %v3611
        %v3644 = vmul.f32 %v3612, 0.5
        %v3645 = vmul.f32 %v3613, 0.5
        %v3646 = vmul.f32 %v3614, 0.5
        %v3647 = vmul.f32 %v3615, 0.5
        %v3648 = vmul.f32 %v3616, 0.5
        %v3649 = vmul.f32 %v3617, 0.5
        %v3650 = vmul.f32 %v3618, 0.5
        %v3651 = vmul.f32 %v3619, 0.5
        %v3652 = vmul.f32 %v3620, 0.5
        %v3653 = vmul.f32 %v3621, 0.5
        %v3654 = vmul.f32 %v3622, 0.5
        %v3655 = vmul.f32 %v3623, 0.5
        %v3656 = vmul.f32 %v3624, 0.5
        %v3657 = vmul.f32 %v3625, 0.5
        %v3658 = vmul.f32 %v3626, 0.5
        %v3659 = vmul.f32 %v3627, 0.5
        %v3660 = vmul.f32 %v3628, 0.5
        %v3661 = vmul.f32 %v3629, 0.5
        %v3662 = vmul.f32 %v3630, 0.5
        %v3663 = vmul.f32 %v3631, 0.5
        %v3664 = vmul.f32 %v3632, 0.5
        %v3665 = vmul.f32 %v3633, 0.5
        %v3666 = vmul.f32 %v3634, 0.5
        %v3667 = vmul.f32 %v3635, 0.5
        %v3668 = vmul.f32 %v3636, 0.5
        %v3669 = vmul.f32 %v3637, 0.5
        %v3670 = vmul.f32 %v3638, 0.5
        %v3671 = vmul.f32 %v3639, 0.5
        %v3672 = vmul.f32 %v3640, 0.5
        %v3673 = vmul.f32 %v3641, 0.5
        %v3674 = vmul.f32 %v3642, 0.5
        %v3675 = vmul.f32 %v3643, 0.5
        %v3676 = vadd.f32 %v3644, 0.5
        %v3677 = vadd.f32 %v3645, 0.5
        %v3678 = vadd.f32 %v3646, 0.5
        %v3679 = vadd.f32 %v3647, 0.5
        %v3680 = vadd.f32 %v3648, 0.5
        %v3681 = vadd.f32 %v3649, 0.5
        %v3682 = vadd.f32 %v3650, 0.5
        %v3683 = vadd.f32 %v3651, 0.5
        %v3684 = vadd.f32 %v3652, 0.5
        %v3685 = vadd.f32 %v3653, 0.5
        %v3686 = vadd.f32 %v3654, 0.5
        %v3687 = vadd.f32 %v3655, 0.5
        %v3688 = vadd.f32 %v3656, 0.5
        %v3689 = vadd.f32 %v3657, 0.5
        %v3690 = vadd.f32 %v3658, 0.5
        %v3691 = vadd.f32 %v3659, 0.5
        %v3692 = vadd.f32 %v3660, 0.5
        %v3693 = vadd.f32 %v3661, 0.5
        %v3694 = vadd.f32 %v3662, 0.5
        %v3695 = vadd.f32 %v3663, 0.5
        %v3696 = vadd.f32 %v3664, 0.5
        %v3697 = vadd.f32 %v3665, 0.5
        %v3698 = vadd.f32 %v3666, 0.5
        %v3699 = vadd.f32 %v3667, 0.5
        %v3700 = vadd.f32 %v3668, 0.5
        %v3701 = vadd.f32 %v3669, 0.5
        %v3702 = vadd.f32 %v3670, 0.5
        %v3703 = vadd.f32 %v3671, 0.5
        %v3704 = vadd.f32 %v3672, 0.5
        %v3705 = vadd.f32 %v3673, 0.5
        %v3706 = vadd.f32 %v3674, 0.5
        %v3707 = vadd.f32 %v3675, 0.5
        %v3708 = vsel %vm2741, %v3612, %v3676
        %v3709 = vsel %vm2742, %v3613, %v3677
        %v3710 = vsel %vm2741, %v3614, %v3678
        %v3711 = vsel %vm2742, %v3615, %v3679
        %v3712 = vsel %vm2741, %v3616, %v3680
        %v3713 = vsel %vm2742, %v3617, %v3681
        %v3714 = vsel %vm2741, %v3618, %v3682
        %v3715 = vsel %vm2742, %v3619, %v3683
        %v3716 = vsel %vm2741, %v3620, %v3684
        %v3717 = vsel %vm2742, %v3621, %v3685
        %v3718 = vsel %vm2741, %v3622, %v3686
        %v3719 = vsel %vm2742, %v3623, %v3687
        %v3720 = vsel %vm2741, %v3624, %v3688
        %v3721 = vsel %vm2742, %v3625, %v3689
        %v3722 = vsel %vm2741, %v3626, %v3690
        %v3723 = vsel %vm2742, %v3627, %v3691
        %v3724 = vsel %vm2741, %v3628, %v3692
        %v3725 = vsel %vm2742, %v3629, %v3693
        %v3726 = vsel %vm2741, %v3630, %v3694
        %v3727 = vsel %vm2742, %v3631, %v3695
        %v3728 = vsel %vm2741, %v3632, %v3696
        %v3729 = vsel %vm2742, %v3633, %v3697
        %v3730 = vsel %vm2741, %v3634, %v3698
        %v3731 = vsel %vm2742, %v3635, %v3699
        %v3732 = vsel %vm2741, %v3636, %v3700
        %v3733 = vsel %vm2742, %v3637, %v3701
        %v3734 = vsel %vm2741, %v3638, %v3702
        %v3735 = vsel %vm2742, %v3639, %v3703
        %v3736 = vsel %vm2741, %v3640, %v3704
        %v3737 = vsel %vm2742, %v3641, %v3705
        %v3738 = vsel %vm2741, %v3642, %v3706
        %v3739 = vsel %vm2742, %v3643, %v3707
        %v3740 = vmul.f32 %v3708, %v3251
        %v3741 = vmul.f32 %v3710, %v3252
        %v3742 = vmul.f32 %v3712, %v3253
        %v3743 = vmul.f32 %v3714, %v3254
        %v3744 = vmul.f32 %v3716, %v3255
        %v3745 = vmul.f32 %v3718, %v3256
        %v3746 = vmul.f32 %v3720, %v3257
        %v3747 = vmul.f32 %v3722, %v3258
        %v3748 = vmul.f32 %v3724, %v3259
        %v3749 = vmul.f32 %v3726, %v3260
        %v3750 = vmul.f32 %v3728, %v3261
        %v3751 = vmul.f32 %v3730, %v3262
        %v3752 = vmul.f32 %v3732, %v3263
        %v3753 = vmul.f32 %v3734, %v3264
        %v3754 = vmul.f32 %v3736, %v3265
        %v3755 = vmul.f32 %v3738, %v3266
        %v3756 = vmul.f32 %v3708, %v3709
        %v3757 = vmul.f32 %v3710, %v3711
        %v3758 = vmul.f32 %v3712, %v3713
        %v3759 = vmul.f32 %v3714, %v3715
        %v3760 = vmul.f32 %v3716, %v3717
        %v3761 = vmul.f32 %v3718, %v3719
        %v3762 = vmul.f32 %v3720, %v3721
        %v3763 = vmul.f32 %v3722, %v3723
        %v3764 = vmul.f32 %v3724, %v3725
        %v3765 = vmul.f32 %v3726, %v3727
        %v3766 = vmul.f32 %v3728, %v3729
        %v3767 = vmul.f32 %v3730, %v3731
        %v3768 = vmul.f32 %v3732, %v3733
        %v3769 = vmul.f32 %v3734, %v3735
        %v3770 = vmul.f32 %v3736, %v3737
        %v3771 = vmul.f32 %v3738, %v3739
        %3788 = vrot.lane.b32.xlu0 %v3756, 64
        %v3789 = vpop.permute.xlu0 %3788
        %3790 = vrot.lane.b32.xlu0 %v3757, 64
        %v3791 = vpop.permute.xlu0 %3790
        %3792 = vrot.lane.b32.xlu0 %v3758, 64
        %v3793 = vpop.permute.xlu0 %3792
        %3794 = vrot.lane.b32.xlu0 %v3759, 64
        %v3795 = vpop.permute.xlu0 %3794
        %3796 = vrot.lane.b32.xlu0 %v3760, 64
        %v3797 = vpop.permute.xlu0 %3796
        %3798 = vrot.lane.b32.xlu0 %v3761, 64
        %v3799 = vpop.permute.xlu0 %3798
        %3800 = vrot.lane.b32.xlu0 %v3762, 64
        %v3801 = vpop.permute.xlu0 %3800
        %3802 = vrot.lane.b32.xlu0 %v3763, 64
        %v3803 = vpop.permute.xlu0 %3802
        %3804 = vrot.lane.b32.xlu0 %v3764, 64
        %v3805 = vpop.permute.xlu0 %3804
        %3806 = vrot.lane.b32.xlu0 %v3765, 64
        %v3807 = vpop.permute.xlu0 %3806
        %3808 = vrot.lane.b32.xlu0 %v3766, 64
        %v3809 = vpop.permute.xlu0 %3808
        %3810 = vrot.lane.b32.xlu0 %v3767, 64
        %v3811 = vpop.permute.xlu0 %3810
        %3812 = vrot.lane.b32.xlu0 %v3768, 64
        %v3813 = vpop.permute.xlu0 %3812
        %3814 = vrot.lane.b32.xlu0 %v3769, 64
        %v3815 = vpop.permute.xlu0 %3814
        %3816 = vrot.lane.b32.xlu0 %v3770, 64
        %v3817 = vpop.permute.xlu0 %3816
        %3818 = vrot.lane.b32.xlu0 %v3771, 64
        %v3819 = vpop.permute.xlu0 %3818
        %v3836 = vadd.f32 %v3740, %v3789
        %v3837 = vadd.f32 %v3741, %v3791
        %v3838 = vadd.f32 %v3742, %v3793
        %v3839 = vadd.f32 %v3743, %v3795
        %v3840 = vadd.f32 %v3744, %v3797
        %v3841 = vadd.f32 %v3745, %v3799
        %v3842 = vadd.f32 %v3746, %v3801
        %v3843 = vadd.f32 %v3747, %v3803
        %v3844 = vadd.f32 %v3748, %v3805
        %v3845 = vadd.f32 %v3749, %v3807
        %v3846 = vadd.f32 %v3750, %v3809
        %v3847 = vadd.f32 %v3751, %v3811
        %v3848 = vadd.f32 %v3752, %v3813
        %v3849 = vadd.f32 %v3753, %v3815
        %v3850 = vadd.f32 %v3754, %v3817
        %v3851 = vadd.f32 %v3755, %v3819
        %v3852 = vtanh.pop %v3836
        %v3853 = vtanh.pop %v3837
        %v3854 = vtanh.pop %v3838
        %v3855 = vtanh.pop %v3839
        %v3856 = vtanh.pop %v3840
        %v3857 = vtanh.pop %v3841
        %v3858 = vtanh.pop %v3842
        %v3859 = vtanh.pop %v3843
        %v3860 = vtanh.pop %v3844
        %v3861 = vtanh.pop %v3845
        %v3862 = vtanh.pop %v3846
        %v3863 = vtanh.pop %v3847
        %v3864 = vtanh.pop %v3848
        %v3865 = vtanh.pop %v3849
        %v3866 = vtanh.pop %v3850
        %v3867 = vtanh.pop %v3851
        %v3868 = vmul.f32 %v3709, %v3852
        %v3869 = vmul.f32 %v3711, %v3853
        %v3870 = vmul.f32 %v3713, %v3854
        %v3871 = vmul.f32 %v3715, %v3855
        %v3872 = vmul.f32 %v3717, %v3856
        %v3873 = vmul.f32 %v3719, %v3857
        %v3874 = vmul.f32 %v3721, %v3858
        %v3875 = vmul.f32 %v3723, %v3859
        %v3876 = vmul.f32 %v3725, %v3860
        %v3877 = vmul.f32 %v3727, %v3861
        %v3878 = vmul.f32 %v3729, %v3862
        %v3879 = vmul.f32 %v3731, %v3863
        %v3880 = vmul.f32 %v3733, %v3864
        %v3881 = vmul.f32 %v3735, %v3865
        %v3882 = vmul.f32 %v3737, %v3866
        %v3883 = vmul.f32 %v3739, %v3867
        %v3884 = vadd.f32 %v3299, %v3868
        %v3885 = vadd.f32 %v3300, %v3869
        %v3886 = vadd.f32 %v3301, %v3870
        %v3887 = vadd.f32 %v3302, %v3871
        %v3888 = vadd.f32 %v3303, %v3872
        %v3889 = vadd.f32 %v3304, %v3873
        %v3890 = vadd.f32 %v3305, %v3874
        %v3891 = vadd.f32 %v3306, %v3875
        %v3892 = vadd.f32 %v3307, %v3876
        %v3893 = vadd.f32 %v3308, %v3877
        %v3894 = vadd.f32 %v3309, %v3878
        %v3895 = vadd.f32 %v3310, %v3879
        %v3896 = vadd.f32 %v3311, %v3880
        %v3897 = vadd.f32 %v3312, %v3881
        %v3898 = vadd.f32 %v3313, %v3882
        %v3899 = vadd.f32 %v3314, %v3883
        %v3900 = vadd.f32 %v1724, %v2576
        %v3901 = vadd.f32 %v1726, %v2578
        %v3902 = vadd.f32 %v1728, %v2580
        %v3903 = vadd.f32 %v1730, %v2582
        %v3904 = vadd.f32 %v1734, %v2586
        %v3905 = vadd.f32 %v1736, %v2588
        %v3906 = vadd.f32 %v1738, %v2590
        %v3907 = vadd.f32 %v1740, %v2592
        %v3908 = vadd.f32 %v1744, %v2596
        %v3909 = vadd.f32 %v1746, %v2598
        %v3910 = vadd.f32 %v1748, %v2600
        %v3911 = vadd.f32 %v1750, %v2602
        %v3912 = vadd.f32 %v1754, %v2606
        %v3913 = vadd.f32 %v1756, %v2608
        %v3914 = vadd.f32 %v1758, %v2610
        %v3915 = vadd.f32 %v1760, %v2612
        %v3916 = vadd.f32 %v1764, %v2616
        %v3917 = vadd.f32 %v1766, %v2618
        %v3918 = vadd.f32 %v1768, %v2620
        %v3919 = vadd.f32 %v1770, %v2622
        %v3920 = vadd.f32 %v1774, %v2626
        %v3921 = vadd.f32 %v1776, %v2628
        %v3922 = vadd.f32 %v1778, %v2630
        %v3923 = vadd.f32 %v1780, %v2632
        %v3924 = vadd.f32 %v1784, %v2636
        %v3925 = vadd.f32 %v1786, %v2638
        %v3926 = vadd.f32 %v1788, %v2640
        %v3927 = vadd.f32 %v1790, %v2642
        %v3928 = vadd.f32 %v1794, %v2646
        %v3929 = vadd.f32 %v1796, %v2648
        %v3930 = vadd.f32 %v1798, %v2650
        %v3931 = vadd.f32 %v1800, %v2652
        %v3932 = vpack.c.bf16 %v3869, %v3868
        %v3933 = vpack.c.bf16 %v3871, %v3870
        %v3934 = vpack.c.bf16 %v3873, %v3872
        %v3935 = vpack.c.bf16 %v3875, %v3874
        %v3936 = vpack.c.bf16 %v3877, %v3876
        %v3937 = vpack.c.bf16 %v3879, %v3878
        %v3938 = vpack.c.bf16 %v3881, %v3880
        %v3939 = vpack.c.bf16 %v3883, %v3882
        %3948 = vrot.lane.b32.xlu0 %v3932, 64
        %v3949 = vpop.permute.xlu0 %3948
        %3950 = vrot.lane.b32.xlu0 %v3933, 64
        %v3951 = vpop.permute.xlu0 %3950
        %3952 = vrot.lane.b32.xlu0 %v3934, 64
        %v3953 = vpop.permute.xlu0 %3952
        %3954 = vrot.lane.b32.xlu0 %v3935, 64
        %v3955 = vpop.permute.xlu0 %3954
        %3956 = vrot.lane.b32.xlu0 %v3936, 64
        %v3957 = vpop.permute.xlu0 %3956
        %3958 = vrot.lane.b32.xlu0 %v3937, 64
        %v3959 = vpop.permute.xlu0 %3958
        %3960 = vrot.lane.b32.xlu0 %v3938, 64
        %v3961 = vpop.permute.xlu0 %3960
        %3962 = vrot.lane.b32.xlu0 %v3939, 64
        %v3963 = vpop.permute.xlu0 %3962
        %v3965 = vsel %vm1432, %v3949, 0
        %v3968 = vsel %vm1432, %v3951, 0
        %v3971 = vsel %vm1432, %v3953, 0
        %v3974 = vsel %vm1432, %v3955, 0
        %v3977 = vsel %vm1432, %v3957, 0
        %v3980 = vsel %vm1432, %v3959, 0
        %v3983 = vsel %vm1432, %v3961, 0
        %v3986 = vsel %vm1432, %v3963, 0
        %3988 = vmatprep.subr.bf16.mxu0 %v2800
        %3989 = vmatpush1.bf16.msra.mxu0 %v2799
        %3990 = vmatprep.subr.bf16.mxu0 %v2802
        %3991 = vmatpush1.bf16.msra.mxu0 %v2801
        %3992 = vmatprep.subr.bf16.mxu0 %v2804
        %3993 = vmatpush1.bf16.msra.mxu0 %v2803
        %3994 = vmatprep.subr.bf16.mxu0 %v2806
        %3995 = vmatpush1.bf16.msra.mxu0 %v2805
        %3996 = vmatprep.subr.bf16.mxu0 0
        %3997 = vmatpush1.bf16.msra.mxu0 0
        %3998 = vmatprep.subr.bf16.mxu0 0
        %3999 = vmatpush1.bf16.msra.mxu0 0
        %4000 = vmatprep.subr.bf16.mxu0 0
        %4001 = vmatpush1.bf16.msra.mxu0 0
        %4002 = vmatprep.subr.bf16.mxu0 0
        %4003 = vmatpush1.bf16.msra.mxu0 0
        %4004 = vmatprep.subr.bf16.mxu0 0
        %4005 = vmatpush1.bf16.msra.mxu0 0
        %4006 = vmatprep.subr.bf16.mxu0 0
        %4007 = vmatpush1.bf16.msra.mxu0 0
        %4008 = vmatprep.subr.bf16.mxu0 0
        %4009 = vmatpush1.bf16.msra.mxu0 0
        %4010 = vmatprep.subr.bf16.mxu0 0
        %4011 = vmatpush1.bf16.msra.mxu0 0
        %4012 = vmatprep.subr.bf16.mxu0 0
        %4013 = vmatpush1.bf16.msra.mxu0 0
        %4014 = vmatprep.subr.bf16.mxu0 0
        %4015 = vmatpush1.bf16.msra.mxu0 0
        %4016 = vmatprep.subr.bf16.mxu0 0
        %4017 = vmatpush1.bf16.msra.mxu0 0
        %4018 = vmatprep.subr.bf16.mxu0 0
        %4019 = vmatpush1.bf16.msra.mxu0 0
        %4020 = vmatprep.mubr.bf16.mxu0 0
        %4021 = vmatmul.mubr.bf16.gmra.mrb[0].mxu0 %v3965
        %v4022 = vpop.f32.mrb[0].mxu0
        %v4023 = vadd.f32 0.0, %v4022
        %v4024 = vpop.f32.mrb[0].mxu0
        %v4025 = vadd.f32 0.0, %v4024
        %v4026 = vpop.f32.mrb[0].mxu0
        %v4027 = vadd.f32 0.0, %v4026
        %v4028 = vpop.f32.mrb[0].mxu0
        %v4029 = vadd.f32 0.0, %v4028
        %4030 = vmatprep.mubr.bf16.mxu0 0
        %4031 = vmatmul.mubr.bf16.gmra.mrb[0].mxu0 %v3968
        %v4032 = vpop.f32.mrb[0].mxu0
        %v4033 = vadd.f32 0.0, %v4032
        %v4034 = vpop.f32.mrb[0].mxu0
        %v4035 = vadd.f32 0.0, %v4034
        %v4036 = vpop.f32.mrb[0].mxu0
        %v4037 = vadd.f32 0.0, %v4036
        %v4038 = vpop.f32.mrb[0].mxu0
        %v4039 = vadd.f32 0.0, %v4038
        %4040 = vmatprep.mubr.bf16.mxu0 0
        %4041 = vmatmul.mubr.bf16.gmra.mrb[0].mxu0 %v3971
        %v4042 = vpop.f32.mrb[0].mxu0
        %v4043 = vadd.f32 0.0, %v4042
        %v4044 = vpop.f32.mrb[0].mxu0
        %v4045 = vadd.f32 0.0, %v4044
        %v4046 = vpop.f32.mrb[0].mxu0
        %v4047 = vadd.f32 0.0, %v4046
        %v4048 = vpop.f32.mrb[0].mxu0
        %v4049 = vadd.f32 0.0, %v4048
        %4050 = vmatprep.mubr.bf16.mxu0 0
        %4051 = vmatmul.mubr.bf16.gmra.mrb[0].mxu0 %v3974
        %v4052 = vpop.f32.mrb[0].mxu0
        %v4053 = vadd.f32 0.0, %v4052
        %v4054 = vpop.f32.mrb[0].mxu0
        %v4055 = vadd.f32 0.0, %v4054
        %v4056 = vpop.f32.mrb[0].mxu0
        %v4057 = vadd.f32 0.0, %v4056
        %v4058 = vpop.f32.mrb[0].mxu0
        %v4059 = vadd.f32 0.0, %v4058
        %4060 = vmatprep.mubr.bf16.mxu0 0
        %4061 = vmatmul.mubr.bf16.gmra.mrb[0].mxu0 %v3977
        %v4062 = vpop.f32.mrb[0].mxu0
        %v4063 = vadd.f32 0.0, %v4062
        %v4064 = vpop.f32.mrb[0].mxu0
        %v4065 = vadd.f32 0.0, %v4064
        %v4066 = vpop.f32.mrb[0].mxu0
        %v4067 = vadd.f32 0.0, %v4066
        %v4068 = vpop.f32.mrb[0].mxu0
        %v4069 = vadd.f32 0.0, %v4068
        %4070 = vmatprep.mubr.bf16.mxu0 0
        %4071 = vmatmul.mubr.bf16.gmra.mrb[0].mxu0 %v3980
        %v4072 = vpop.f32.mrb[0].mxu0
        %v4073 = vadd.f32 0.0, %v4072
        %v4074 = vpop.f32.mrb[0].mxu0
        %v4075 = vadd.f32 0.0, %v4074
        %v4076 = vpop.f32.mrb[0].mxu0
        %v4077 = vadd.f32 0.0, %v4076
        %v4078 = vpop.f32.mrb[0].mxu0
        %v4079 = vadd.f32 0.0, %v4078
        %4080 = vmatprep.mubr.bf16.mxu0 0
        %4081 = vmatmul.mubr.bf16.gmra.mrb[0].mxu0 %v3983
        %v4082 = vpop.f32.mrb[0].mxu0
        %v4083 = vadd.f32 0.0, %v4082
        %v4084 = vpop.f32.mrb[0].mxu0
        %v4085 = vadd.f32 0.0, %v4084
        %v4086 = vpop.f32.mrb[0].mxu0
        %v4087 = vadd.f32 0.0, %v4086
        %v4088 = vpop.f32.mrb[0].mxu0
        %v4089 = vadd.f32 0.0, %v4088
        %4090 = vmatprep.mubr.bf16.mxu0 0
        %4091 = vmatmul.mubr.bf16.gmra.mrb[0].mxu0 %v3986
        %v4092 = vpop.f32.mrb[0].mxu0
        %v4093 = vadd.f32 0.0, %v4092
        %v4094 = vpop.f32.mrb[0].mxu0
        %v4095 = vadd.f32 0.0, %v4094
        %v4096 = vpop.f32.mrb[0].mxu0
        %v4097 = vadd.f32 0.0, %v4096
        %v4098 = vpop.f32.mrb[0].mxu0
        %v4099 = vadd.f32 0.0, %v4098
        %4100 = vdwg.mxu0
        %v4101 = vadd.f32 %v3900, %v4023
        %v4102 = vadd.f32 %v3901, %v4025
        %v4103 = vadd.f32 %v3902, %v4027
        %v4104 = vadd.f32 %v3903, %v4029
        %v4105 = vadd.f32 %v3904, %v4033
        %v4106 = vadd.f32 %v3905, %v4035
        %v4107 = vadd.f32 %v3906, %v4037
        %v4108 = vadd.f32 %v3907, %v4039
        %v4109 = vadd.f32 %v3908, %v4043
        %v4110 = vadd.f32 %v3909, %v4045
        %v4111 = vadd.f32 %v3910, %v4047
        %v4112 = vadd.f32 %v3911, %v4049
        %v4113 = vadd.f32 %v3912, %v4053
        %v4114 = vadd.f32 %v3913, %v4055
        %v4115 = vadd.f32 %v3914, %v4057
        %v4116 = vadd.f32 %v3915, %v4059
        %v4117 = vadd.f32 %v3916, %v4063
        %v4118 = vadd.f32 %v3917, %v4065
        %v4119 = vadd.f32 %v3918, %v4067
        %v4120 = vadd.f32 %v3919, %v4069
        %v4121 = vadd.f32 %v3920, %v4073
        %v4122 = vadd.f32 %v3921, %v4075
        %v4123 = vadd.f32 %v3922, %v4077
        %v4124 = vadd.f32 %v3923, %v4079
        %v4125 = vadd.f32 %v3924, %v4083
        %v4126 = vadd.f32 %v3925, %v4085
        %v4127 = vadd.f32 %v3926, %v4087
        %v4128 = vadd.f32 %v3927, %v4089
        %v4129 = vadd.f32 %v3928, %v4093
        %v4130 = vadd.f32 %v3929, %v4095
        %v4131 = vadd.f32 %v3930, %v4097
        %v4132 = vadd.f32 %v3931, %v4099
        %v4133 = vmul.f32 %v4101, 0.5
        %v4134 = vmul.f32 %v4102, 0.5
        %v4135 = vmul.f32 %v4103, 0.5
        %v4136 = vmul.f32 %v4104, 0.5
        %v4137 = vmul.f32 %v4105, 0.5
        %v4138 = vmul.f32 %v4106, 0.5
        %v4139 = vmul.f32 %v4107, 0.5
        %v4140 = vmul.f32 %v4108, 0.5
        %v4141 = vmul.f32 %v4109, 0.5
        %v4142 = vmul.f32 %v4110, 0.5
        %v4143 = vmul.f32 %v4111, 0.5
        %v4144 = vmul.f32 %v4112, 0.5
        %v4145 = vmul.f32 %v4113, 0.5
        %v4146 = vmul.f32 %v4114, 0.5
        %v4147 = vmul.f32 %v4115, 0.5
        %v4148 = vmul.f32 %v4116, 0.5
        %v4149 = vmul.f32 %v4117, 0.5
        %v4150 = vmul.f32 %v4118, 0.5
        %v4151 = vmul.f32 %v4119, 0.5
        %v4152 = vmul.f32 %v4120, 0.5
        %v4153 = vmul.f32 %v4121, 0.5
        %v4154 = vmul.f32 %v4122, 0.5
        %v4155 = vmul.f32 %v4123, 0.5
        %v4156 = vmul.f32 %v4124, 0.5
        %v4157 = vmul.f32 %v4125, 0.5
        %v4158 = vmul.f32 %v4126, 0.5
        %v4159 = vmul.f32 %v4127, 0.5
        %v4160 = vmul.f32 %v4128, 0.5
        %v4161 = vmul.f32 %v4129, 0.5
        %v4162 = vmul.f32 %v4130, 0.5
        %v4163 = vmul.f32 %v4131, 0.5
        %v4164 = vmul.f32 %v4132, 0.5
        %v4165 = vsel %vm2741, %v4101, %v4133
        %v4166 = vsel %vm2742, %v4102, %v4134
        %v4167 = vsel %vm2741, %v4103, %v4135
        %v4168 = vsel %vm2742, %v4104, %v4136
        %v4169 = vsel %vm2741, %v4105, %v4137
        %v4170 = vsel %vm2742, %v4106, %v4138
        %v4171 = vsel %vm2741, %v4107, %v4139
        %v4172 = vsel %vm2742, %v4108, %v4140
        %v4173 = vsel %vm2741, %v4109, %v4141
        %v4174 = vsel %vm2742, %v4110, %v4142
        %v4175 = vsel %vm2741, %v4111, %v4143
        %v4176 = vsel %vm2742, %v4112, %v4144
        %v4177 = vsel %vm2741, %v4113, %v4145
        %v4178 = vsel %vm2742, %v4114, %v4146
        %v4179 = vsel %vm2741, %v4115, %v4147
        %v4180 = vsel %vm2742, %v4116, %v4148
        %v4181 = vsel %vm2741, %v4117, %v4149
        %v4182 = vsel %vm2742, %v4118, %v4150
        %v4183 = vsel %vm2741, %v4119, %v4151
        %v4184 = vsel %vm2742, %v4120, %v4152
        %v4185 = vsel %vm2741, %v4121, %v4153
        %v4186 = vsel %vm2742, %v4122, %v4154
        %v4187 = vsel %vm2741, %v4123, %v4155
        %v4188 = vsel %vm2742, %v4124, %v4156
        %v4189 = vsel %vm2741, %v4125, %v4157
        %v4190 = vsel %vm2742, %v4126, %v4158
        %v4191 = vsel %vm2741, %v4127, %v4159
        %v4192 = vsel %vm2742, %v4128, %v4160
        %v4193 = vsel %vm2741, %v4129, %v4161
        %v4194 = vsel %vm2742, %v4130, %v4162
        %v4195 = vsel %vm2741, %v4131, %v4163
        %v4196 = vsel %vm2742, %v4132, %v4164
        %v4197 = vtanh.pop %v4165
        %v4198 = vtanh.pop %v4166
        %v4199 = vtanh.pop %v4167
        %v4200 = vtanh.pop %v4168
        %v4201 = vtanh.pop %v4169
        %v4202 = vtanh.pop %v4170
        %v4203 = vtanh.pop %v4171
        %v4204 = vtanh.pop %v4172
        %v4205 = vtanh.pop %v4173
        %v4206 = vtanh.pop %v4174
        %v4207 = vtanh.pop %v4175
        %v4208 = vtanh.pop %v4176
        %v4209 = vtanh.pop %v4177
        %v4210 = vtanh.pop %v4178
        %v4211 = vtanh.pop %v4179
        %v4212 = vtanh.pop %v4180
        %v4213 = vtanh.pop %v4181
        %v4214 = vtanh.pop %v4182
        %v4215 = vtanh.pop %v4183
        %v4216 = vtanh.pop %v4184
        %v4217 = vtanh.pop %v4185
        %v4218 = vtanh.pop %v4186
        %v4219 = vtanh.pop %v4187
        %v4220 = vtanh.pop %v4188
        %v4221 = vtanh.pop %v4189
        %v4222 = vtanh.pop %v4190
        %v4223 = vtanh.pop %v4191
        %v4224 = vtanh.pop %v4192
        %v4225 = vtanh.pop %v4193
        %v4226 = vtanh.pop %v4194
        %v4227 = vtanh.pop %v4195
        %v4228 = vtanh.pop %v4196
        %v4229 = vmul.f32 %v4197, 0.5
        %v4230 = vmul.f32 %v4198, 0.5
        %v4231 = vmul.f32 %v4199, 0.5
        %v4232 = vmul.f32 %v4200, 0.5
        %v4233 = vmul.f32 %v4201, 0.5
        %v4234 = vmul.f32 %v4202, 0.5
        %v4235 = vmul.f32 %v4203, 0.5
        %v4236 = vmul.f32 %v4204, 0.5
        %v4237 = vmul.f32 %v4205, 0.5
        %v4238 = vmul.f32 %v4206, 0.5
        %v4239 = vmul.f32 %v4207, 0.5
        %v4240 = vmul.f32 %v4208, 0.5
        %v4241 = vmul.f32 %v4209, 0.5
        %v4242 = vmul.f32 %v4210, 0.5
        %v4243 = vmul.f32 %v4211, 0.5
        %v4244 = vmul.f32 %v4212, 0.5
        %v4245 = vmul.f32 %v4213, 0.5
        %v4246 = vmul.f32 %v4214, 0.5
        %v4247 = vmul.f32 %v4215, 0.5
        %v4248 = vmul.f32 %v4216, 0.5
        %v4249 = vmul.f32 %v4217, 0.5
        %v4250 = vmul.f32 %v4218, 0.5
        %v4251 = vmul.f32 %v4219, 0.5
        %v4252 = vmul.f32 %v4220, 0.5
        %v4253 = vmul.f32 %v4221, 0.5
        %v4254 = vmul.f32 %v4222, 0.5
        %v4255 = vmul.f32 %v4223, 0.5
        %v4256 = vmul.f32 %v4224, 0.5
        %v4257 = vmul.f32 %v4225, 0.5
        %v4258 = vmul.f32 %v4226, 0.5
        %v4259 = vmul.f32 %v4227, 0.5
        %v4260 = vmul.f32 %v4228, 0.5
        %v4261 = vadd.f32 %v4229, 0.5
        %v4262 = vadd.f32 %v4230, 0.5
        %v4263 = vadd.f32 %v4231, 0.5
        %v4264 = vadd.f32 %v4232, 0.5
        %v4265 = vadd.f32 %v4233, 0.5
        %v4266 = vadd.f32 %v4234, 0.5
        %v4267 = vadd.f32 %v4235, 0.5
        %v4268 = vadd.f32 %v4236, 0.5
        %v4269 = vadd.f32 %v4237, 0.5
        %v4270 = vadd.f32 %v4238, 0.5
        %v4271 = vadd.f32 %v4239, 0.5
        %v4272 = vadd.f32 %v4240, 0.5
        %v4273 = vadd.f32 %v4241, 0.5
        %v4274 = vadd.f32 %v4242, 0.5
        %v4275 = vadd.f32 %v4243, 0.5
        %v4276 = vadd.f32 %v4244, 0.5
        %v4277 = vadd.f32 %v4245, 0.5
        %v4278 = vadd.f32 %v4246, 0.5
        %v4279 = vadd.f32 %v4247, 0.5
        %v4280 = vadd.f32 %v4248, 0.5
        %v4281 = vadd.f32 %v4249, 0.5
        %v4282 = vadd.f32 %v4250, 0.5
        %v4283 = vadd.f32 %v4251, 0.5
        %v4284 = vadd.f32 %v4252, 0.5
        %v4285 = vadd.f32 %v4253, 0.5
        %v4286 = vadd.f32 %v4254, 0.5
        %v4287 = vadd.f32 %v4255, 0.5
        %v4288 = vadd.f32 %v4256, 0.5
        %v4289 = vadd.f32 %v4257, 0.5
        %v4290 = vadd.f32 %v4258, 0.5
        %v4291 = vadd.f32 %v4259, 0.5
        %v4292 = vadd.f32 %v4260, 0.5
        %v4293 = vsel %vm2741, %v4197, %v4261
        %v4294 = vsel %vm2742, %v4198, %v4262
        %v4295 = vsel %vm2741, %v4199, %v4263
        %v4296 = vsel %vm2742, %v4200, %v4264
        %v4297 = vsel %vm2741, %v4201, %v4265
        %v4298 = vsel %vm2742, %v4202, %v4266
        %v4299 = vsel %vm2741, %v4203, %v4267
        %v4300 = vsel %vm2742, %v4204, %v4268
        %v4301 = vsel %vm2741, %v4205, %v4269
        %v4302 = vsel %vm2742, %v4206, %v4270
        %v4303 = vsel %vm2741, %v4207, %v4271
        %v4304 = vsel %vm2742, %v4208, %v4272
        %v4305 = vsel %vm2741, %v4209, %v4273
        %v4306 = vsel %vm2742, %v4210, %v4274
        %v4307 = vsel %vm2741, %v4211, %v4275
        %v4308 = vsel %vm2742, %v4212, %v4276
        %v4309 = vsel %vm2741, %v4213, %v4277
        %v4310 = vsel %vm2742, %v4214, %v4278
        %v4311 = vsel %vm2741, %v4215, %v4279
        %v4312 = vsel %vm2742, %v4216, %v4280
        %v4313 = vsel %vm2741, %v4217, %v4281
        %v4314 = vsel %vm2742, %v4218, %v4282
        %v4315 = vsel %vm2741, %v4219, %v4283
        %v4316 = vsel %vm2742, %v4220, %v4284
        %v4317 = vsel %vm2741, %v4221, %v4285
        %v4318 = vsel %vm2742, %v4222, %v4286
        %v4319 = vsel %vm2741, %v4223, %v4287
        %v4320 = vsel %vm2742, %v4224, %v4288
        %v4321 = vsel %vm2741, %v4225, %v4289
        %v4322 = vsel %vm2742, %v4226, %v4290
        %v4323 = vsel %vm2741, %v4227, %v4291
        %v4324 = vsel %vm2742, %v4228, %v4292
        %v4325 = vmul.f32 %v4293, %v3836
        %v4326 = vmul.f32 %v4295, %v3837
        %v4327 = vmul.f32 %v4297, %v3838
        %v4328 = vmul.f32 %v4299, %v3839
        %v4329 = vmul.f32 %v4301, %v3840
        %v4330 = vmul.f32 %v4303, %v3841
        %v4331 = vmul.f32 %v4305, %v3842
        %v4332 = vmul.f32 %v4307, %v3843
        %v4333 = vmul.f32 %v4309, %v3844
        %v4334 = vmul.f32 %v4311, %v3845
        %v4335 = vmul.f32 %v4313, %v3846
        %v4336 = vmul.f32 %v4315, %v3847
        %v4337 = vmul.f32 %v4317, %v3848
        %v4338 = vmul.f32 %v4319, %v3849
        %v4339 = vmul.f32 %v4321, %v3850
        %v4340 = vmul.f32 %v4323, %v3851
        %v4341 = vmul.f32 %v4293, %v4294
        %v4342 = vmul.f32 %v4295, %v4296
        %v4343 = vmul.f32 %v4297, %v4298
        %v4344 = vmul.f32 %v4299, %v4300
        %v4345 = vmul.f32 %v4301, %v4302
        %v4346 = vmul.f32 %v4303, %v4304
        %v4347 = vmul.f32 %v4305, %v4306
        %v4348 = vmul.f32 %v4307, %v4308
        %v4349 = vmul.f32 %v4309, %v4310
        %v4350 = vmul.f32 %v4311, %v4312
        %v4351 = vmul.f32 %v4313, %v4314
        %v4352 = vmul.f32 %v4315, %v4316
        %v4353 = vmul.f32 %v4317, %v4318
        %v4354 = vmul.f32 %v4319, %v4320
        %v4355 = vmul.f32 %v4321, %v4322
        %v4356 = vmul.f32 %v4323, %v4324
        %4373 = vrot.lane.b32.xlu0 %v4341, 64
        %v4374 = vpop.permute.xlu0 %4373
        %4375 = vrot.lane.b32.xlu0 %v4342, 64
        %v4376 = vpop.permute.xlu0 %4375
        %4377 = vrot.lane.b32.xlu0 %v4343, 64
        %v4378 = vpop.permute.xlu0 %4377
        %4379 = vrot.lane.b32.xlu0 %v4344, 64
        %v4380 = vpop.permute.xlu0 %4379
        %4381 = vrot.lane.b32.xlu0 %v4345, 64
        %v4382 = vpop.permute.xlu0 %4381
        %4383 = vrot.lane.b32.xlu0 %v4346, 64
        %v4384 = vpop.permute.xlu0 %4383
        %4385 = vrot.lane.b32.xlu0 %v4347, 64
        %v4386 = vpop.permute.xlu0 %4385
        %4387 = vrot.lane.b32.xlu0 %v4348, 64
        %v4388 = vpop.permute.xlu0 %4387
        %4389 = vrot.lane.b32.xlu0 %v4349, 64
        %v4390 = vpop.permute.xlu0 %4389
        %4391 = vrot.lane.b32.xlu0 %v4350, 64
        %v4392 = vpop.permute.xlu0 %4391
        %4393 = vrot.lane.b32.xlu0 %v4351, 64
        %v4394 = vpop.permute.xlu0 %4393
        %4395 = vrot.lane.b32.xlu0 %v4352, 64
        %v4396 = vpop.permute.xlu0 %4395
        %4397 = vrot.lane.b32.xlu0 %v4353, 64
        %v4398 = vpop.permute.xlu0 %4397
        %4399 = vrot.lane.b32.xlu0 %v4354, 64
        %v4400 = vpop.permute.xlu0 %4399
        %4401 = vrot.lane.b32.xlu0 %v4355, 64
        %v4402 = vpop.permute.xlu0 %4401
        %4403 = vrot.lane.b32.xlu0 %v4356, 64
        %v4404 = vpop.permute.xlu0 %4403
        %v4421 = vadd.f32 %v4325, %v4374
        %v4422 = vadd.f32 %v4326, %v4376
        %v4423 = vadd.f32 %v4327, %v4378
        %v4424 = vadd.f32 %v4328, %v4380
        %v4425 = vadd.f32 %v4329, %v4382
        %v4426 = vadd.f32 %v4330, %v4384
        %v4427 = vadd.f32 %v4331, %v4386
        %v4428 = vadd.f32 %v4332, %v4388
        %v4429 = vadd.f32 %v4333, %v4390
        %v4430 = vadd.f32 %v4334, %v4392
        %v4431 = vadd.f32 %v4335, %v4394
        %v4432 = vadd.f32 %v4336, %v4396
        %v4433 = vadd.f32 %v4337, %v4398
        %v4434 = vadd.f32 %v4338, %v4400
        %v4435 = vadd.f32 %v4339, %v4402
        %v4436 = vadd.f32 %v4340, %v4404
        %v4437 = vtanh.pop %v4421
        %v4438 = vtanh.pop %v4422
        %v4439 = vtanh.pop %v4423
        %v4440 = vtanh.pop %v4424
        %v4441 = vtanh.pop %v4425
        %v4442 = vtanh.pop %v4426
        %v4443 = vtanh.pop %v4427
        %v4444 = vtanh.pop %v4428
        %v4445 = vtanh.pop %v4429
        %v4446 = vtanh.pop %v4430
        %v4447 = vtanh.pop %v4431
        %v4448 = vtanh.pop %v4432
        %v4449 = vtanh.pop %v4433
        %v4450 = vtanh.pop %v4434
        %v4451 = vtanh.pop %v4435
        %v4452 = vtanh.pop %v4436
        %v4453 = vmul.f32 %v4294, %v4437
        %v4454 = vmul.f32 %v4296, %v4438
        %v4455 = vmul.f32 %v4298, %v4439
        %v4456 = vmul.f32 %v4300, %v4440
        %v4457 = vmul.f32 %v4302, %v4441
        %v4458 = vmul.f32 %v4304, %v4442
        %v4459 = vmul.f32 %v4306, %v4443
        %v4460 = vmul.f32 %v4308, %v4444
        %v4461 = vmul.f32 %v4310, %v4445
        %v4462 = vmul.f32 %v4312, %v4446
        %v4463 = vmul.f32 %v4314, %v4447
        %v4464 = vmul.f32 %v4316, %v4448
        %v4465 = vmul.f32 %v4318, %v4449
        %v4466 = vmul.f32 %v4320, %v4450
        %v4467 = vmul.f32 %v4322, %v4451
        %v4468 = vmul.f32 %v4324, %v4452
        %v4469 = vadd.f32 %v3884, %v4453
        %v4470 = vadd.f32 %v3885, %v4454
        %v4471 = vadd.f32 %v3886, %v4455
        %v4472 = vadd.f32 %v3887, %v4456
        %v4473 = vadd.f32 %v3888, %v4457
        %v4474 = vadd.f32 %v3889, %v4458
        %v4475 = vadd.f32 %v3890, %v4459
        %v4476 = vadd.f32 %v3891, %v4460
        %v4477 = vadd.f32 %v3892, %v4461
        %v4478 = vadd.f32 %v3893, %v4462
        %v4479 = vadd.f32 %v3894, %v4463
        %v4480 = vadd.f32 %v3895, %v4464
        %v4481 = vadd.f32 %v3896, %v4465
        %v4482 = vadd.f32 %v3897, %v4466
        %v4483 = vadd.f32 %v3898, %v4467
        %v4484 = vadd.f32 %v3899, %v4468
        %v4485 = vadd.f32 %v1804, %v2656
        %v4486 = vadd.f32 %v1806, %v2658
        %v4487 = vadd.f32 %v1808, %v2660
        %v4488 = vadd.f32 %v1810, %v2662
        %v4489 = vadd.f32 %v1814, %v2666
        %v4490 = vadd.f32 %v1816, %v2668
        %v4491 = vadd.f32 %v1818, %v2670
        %v4492 = vadd.f32 %v1820, %v2672
        %v4493 = vadd.f32 %v1824, %v2676
        %v4494 = vadd.f32 %v1826, %v2678
        %v4495 = vadd.f32 %v1828, %v2680
        %v4496 = vadd.f32 %v1830, %v2682
        %v4497 = vadd.f32 %v1834, %v2686
        %v4498 = vadd.f32 %v1836, %v2688
        %v4499 = vadd.f32 %v1838, %v2690
        %v4500 = vadd.f32 %v1840, %v2692
        %v4501 = vadd.f32 %v1844, %v2696
        %v4502 = vadd.f32 %v1846, %v2698
        %v4503 = vadd.f32 %v1848, %v2700
        %v4504 = vadd.f32 %v1850, %v2702
        %v4505 = vadd.f32 %v1854, %v2706
        %v4506 = vadd.f32 %v1856, %v2708
        %v4507 = vadd.f32 %v1858, %v2710
        %v4508 = vadd.f32 %v1860, %v2712
        %v4509 = vadd.f32 %v1864, %v2716
        %v4510 = vadd.f32 %v1866, %v2718
        %v4511 = vadd.f32 %v1868, %v2720
        %v4512 = vadd.f32 %v1870, %v2722
        %v4513 = vadd.f32 %v1874, %v2726
        %v4514 = vadd.f32 %v1876, %v2728
        %v4515 = vadd.f32 %v1878, %v2730
        %v4516 = vadd.f32 %v1880, %v2732
        %v4517 = vpack.c.bf16 %v4454, %v4453
        %v4518 = vpack.c.bf16 %v4456, %v4455
        %v4519 = vpack.c.bf16 %v4458, %v4457
        %v4520 = vpack.c.bf16 %v4460, %v4459
        %v4521 = vpack.c.bf16 %v4462, %v4461
        %v4522 = vpack.c.bf16 %v4464, %v4463
        %v4523 = vpack.c.bf16 %v4466, %v4465
        %v4524 = vpack.c.bf16 %v4468, %v4467
        %4533 = vrot.lane.b32.xlu0 %v4517, 64
        %v4534 = vpop.permute.xlu0 %4533
        %4535 = vrot.lane.b32.xlu0 %v4518, 64
        %v4536 = vpop.permute.xlu0 %4535
        %4537 = vrot.lane.b32.xlu0 %v4519, 64
        %v4538 = vpop.permute.xlu0 %4537
        %4539 = vrot.lane.b32.xlu0 %v4520, 64
        %v4540 = vpop.permute.xlu0 %4539
        %4541 = vrot.lane.b32.xlu0 %v4521, 64
        %v4542 = vpop.permute.xlu0 %4541
        %4543 = vrot.lane.b32.xlu0 %v4522, 64
        %v4544 = vpop.permute.xlu0 %4543
        %4545 = vrot.lane.b32.xlu0 %v4523, 64
        %v4546 = vpop.permute.xlu0 %4545
        %4547 = vrot.lane.b32.xlu0 %v4524, 64
        %v4548 = vpop.permute.xlu0 %4547
        %v4550 = vsel %vm1432, %v4534, 0
        %v4553 = vsel %vm1432, %v4536, 0
        %v4556 = vsel %vm1432, %v4538, 0
        %v4559 = vsel %vm1432, %v4540, 0
        %v4562 = vsel %vm1432, %v4542, 0
        %v4565 = vsel %vm1432, %v4544, 0
        %v4568 = vsel %vm1432, %v4546, 0
        %v4571 = vsel %vm1432, %v4548, 0
        %4573 = vmatprep.subr.bf16.mxu0 %v2800
        %4574 = vmatpush1.bf16.msra.mxu0 %v2799
        %4575 = vmatprep.subr.bf16.mxu0 %v2802
        %4576 = vmatpush1.bf16.msra.mxu0 %v2801
        %4577 = vmatprep.subr.bf16.mxu0 %v2804
        %4578 = vmatpush1.bf16.msra.mxu0 %v2803
        %4579 = vmatprep.subr.bf16.mxu0 %v2806
        %4580 = vmatpush1.bf16.msra.mxu0 %v2805
        %4581 = vmatprep.subr.bf16.mxu0 0
        %4582 = vmatpush1.bf16.msra.mxu0 0
        %4583 = vmatprep.subr.bf16.mxu0 0
        %4584 = vmatpush1.bf16.msra.mxu0 0
        %4585 = vmatprep.subr.bf16.mxu0 0
        %4586 = vmatpush1.bf16.msra.mxu0 0
        %4587 = vmatprep.subr.bf16.mxu0 0
        %4588 = vmatpush1.bf16.msra.mxu0 0
        %4589 = vmatprep.subr.bf16.mxu0 0
        %4590 = vmatpush1.bf16.msra.mxu0 0
        %4591 = vmatprep.subr.bf16.mxu0 0
        %4592 = vmatpush1.bf16.msra.mxu0 0
        %4593 = vmatprep.subr.bf16.mxu0 0
        %4594 = vmatpush1.bf16.msra.mxu0 0
        %4595 = vmatprep.subr.bf16.mxu0 0
        %4596 = vmatpush1.bf16.msra.mxu0 0
        %4597 = vmatprep.subr.bf16.mxu0 0
        %4598 = vmatpush1.bf16.msra.mxu0 0
        %4599 = vmatprep.subr.bf16.mxu0 0
        %4600 = vmatpush1.bf16.msra.mxu0 0
        %4601 = vmatprep.subr.bf16.mxu0 0
        %4602 = vmatpush1.bf16.msra.mxu0 0
        %4603 = vmatprep.subr.bf16.mxu0 0
        %4604 = vmatpush1.bf16.msra.mxu0 0
        %4605 = vmatprep.mubr.bf16.mxu0 0
        %4606 = vmatmul.mubr.bf16.gmra.mrb[0].mxu0 %v4550
        %v4607 = vpop.f32.mrb[0].mxu0
        %v4608 = vadd.f32 0.0, %v4607
        %v4609 = vpop.f32.mrb[0].mxu0
        %v4610 = vadd.f32 0.0, %v4609
        %v4611 = vpop.f32.mrb[0].mxu0
        %v4612 = vadd.f32 0.0, %v4611
        %v4613 = vpop.f32.mrb[0].mxu0
        %v4614 = vadd.f32 0.0, %v4613
        %4615 = vmatprep.mubr.bf16.mxu0 0
        %4616 = vmatmul.mubr.bf16.gmra.mrb[0].mxu0 %v4553
        %v4617 = vpop.f32.mrb[0].mxu0
        %v4618 = vadd.f32 0.0, %v4617
        %v4619 = vpop.f32.mrb[0].mxu0
        %v4620 = vadd.f32 0.0, %v4619
        %v4621 = vpop.f32.mrb[0].mxu0
        %v4622 = vadd.f32 0.0, %v4621
        %v4623 = vpop.f32.mrb[0].mxu0
        %v4624 = vadd.f32 0.0, %v4623
        %4625 = vmatprep.mubr.bf16.mxu0 0
        %4626 = vmatmul.mubr.bf16.gmra.mrb[0].mxu0 %v4556
        %v4627 = vpop.f32.mrb[0].mxu0
        %v4628 = vadd.f32 0.0, %v4627
        %v4629 = vpop.f32.mrb[0].mxu0
        %v4630 = vadd.f32 0.0, %v4629
        %v4631 = vpop.f32.mrb[0].mxu0
        %v4632 = vadd.f32 0.0, %v4631
        %v4633 = vpop.f32.mrb[0].mxu0
        %v4634 = vadd.f32 0.0, %v4633
        %4635 = vmatprep.mubr.bf16.mxu0 0
        %4636 = vmatmul.mubr.bf16.gmra.mrb[0].mxu0 %v4559
        %v4637 = vpop.f32.mrb[0].mxu0
        %v4638 = vadd.f32 0.0, %v4637
        %v4639 = vpop.f32.mrb[0].mxu0
        %v4640 = vadd.f32 0.0, %v4639
        %v4641 = vpop.f32.mrb[0].mxu0
        %v4642 = vadd.f32 0.0, %v4641
        %v4643 = vpop.f32.mrb[0].mxu0
        %v4644 = vadd.f32 0.0, %v4643
        %4645 = vmatprep.mubr.bf16.mxu0 0
        %4646 = vmatmul.mubr.bf16.gmra.mrb[0].mxu0 %v4562
        %v4647 = vpop.f32.mrb[0].mxu0
        %v4648 = vadd.f32 0.0, %v4647
        %v4649 = vpop.f32.mrb[0].mxu0
        %v4650 = vadd.f32 0.0, %v4649
        %v4651 = vpop.f32.mrb[0].mxu0
        %v4652 = vadd.f32 0.0, %v4651
        %v4653 = vpop.f32.mrb[0].mxu0
        %v4654 = vadd.f32 0.0, %v4653
        %4655 = vmatprep.mubr.bf16.mxu0 0
        %4656 = vmatmul.mubr.bf16.gmra.mrb[0].mxu0 %v4565
        %v4657 = vpop.f32.mrb[0].mxu0
        %v4658 = vadd.f32 0.0, %v4657
        %v4659 = vpop.f32.mrb[0].mxu0
        %v4660 = vadd.f32 0.0, %v4659
        %v4661 = vpop.f32.mrb[0].mxu0
        %v4662 = vadd.f32 0.0, %v4661
        %v4663 = vpop.f32.mrb[0].mxu0
        %v4664 = vadd.f32 0.0, %v4663
        %4665 = vmatprep.mubr.bf16.mxu0 0
        %4666 = vmatmul.mubr.bf16.gmra.mrb[0].mxu0 %v4568
        %v4667 = vpop.f32.mrb[0].mxu0
        %v4668 = vadd.f32 0.0, %v4667
        %v4669 = vpop.f32.mrb[0].mxu0
        %v4670 = vadd.f32 0.0, %v4669
        %v4671 = vpop.f32.mrb[0].mxu0
        %v4672 = vadd.f32 0.0, %v4671
        %v4673 = vpop.f32.mrb[0].mxu0
        %v4674 = vadd.f32 0.0, %v4673
        %4675 = vmatprep.mubr.bf16.mxu0 0
        %4676 = vmatmul.mubr.bf16.gmra.mrb[0].mxu0 %v4571
        %v4677 = vpop.f32.mrb[0].mxu0
        %v4678 = vadd.f32 0.0, %v4677
        %v4679 = vpop.f32.mrb[0].mxu0
        %v4680 = vadd.f32 0.0, %v4679
        %v4681 = vpop.f32.mrb[0].mxu0
        %v4682 = vadd.f32 0.0, %v4681
        %v4683 = vpop.f32.mrb[0].mxu0
        %v4684 = vadd.f32 0.0, %v4683
        %4685 = vdwg.mxu0
        %v4686 = vadd.f32 %v4485, %v4608
        %v4687 = vadd.f32 %v4486, %v4610
        %v4688 = vadd.f32 %v4487, %v4612
        %v4689 = vadd.f32 %v4488, %v4614
        %v4690 = vadd.f32 %v4489, %v4618
        %v4691 = vadd.f32 %v4490, %v4620
        %v4692 = vadd.f32 %v4491, %v4622
        %v4693 = vadd.f32 %v4492, %v4624
        %v4694 = vadd.f32 %v4493, %v4628
        %v4695 = vadd.f32 %v4494, %v4630
        %v4696 = vadd.f32 %v4495, %v4632
        %v4697 = vadd.f32 %v4496, %v4634
        %v4698 = vadd.f32 %v4497, %v4638
        %v4699 = vadd.f32 %v4498, %v4640
        %v4700 = vadd.f32 %v4499, %v4642
        %v4701 = vadd.f32 %v4500, %v4644
        %v4702 = vadd.f32 %v4501, %v4648
        %v4703 = vadd.f32 %v4502, %v4650
        %v4704 = vadd.f32 %v4503, %v4652
        %v4705 = vadd.f32 %v4504, %v4654
        %v4706 = vadd.f32 %v4505, %v4658
        %v4707 = vadd.f32 %v4506, %v4660
        %v4708 = vadd.f32 %v4507, %v4662
        %v4709 = vadd.f32 %v4508, %v4664
        %v4710 = vadd.f32 %v4509, %v4668
        %v4711 = vadd.f32 %v4510, %v4670
        %v4712 = vadd.f32 %v4511, %v4672
        %v4713 = vadd.f32 %v4512, %v4674
        %v4714 = vadd.f32 %v4513, %v4678
        %v4715 = vadd.f32 %v4514, %v4680
        %v4716 = vadd.f32 %v4515, %v4682
        %v4717 = vadd.f32 %v4516, %v4684
        %v4718 = vmul.f32 %v4686, 0.5
        %v4719 = vmul.f32 %v4687, 0.5
        %v4720 = vmul.f32 %v4688, 0.5
        %v4721 = vmul.f32 %v4689, 0.5
        %v4722 = vmul.f32 %v4690, 0.5
        %v4723 = vmul.f32 %v4691, 0.5
        %v4724 = vmul.f32 %v4692, 0.5
        %v4725 = vmul.f32 %v4693, 0.5
        %v4726 = vmul.f32 %v4694, 0.5
        %v4727 = vmul.f32 %v4695, 0.5
        %v4728 = vmul.f32 %v4696, 0.5
        %v4729 = vmul.f32 %v4697, 0.5
        %v4730 = vmul.f32 %v4698, 0.5
        %v4731 = vmul.f32 %v4699, 0.5
        %v4732 = vmul.f32 %v4700, 0.5
        %v4733 = vmul.f32 %v4701, 0.5
        %v4734 = vmul.f32 %v4702, 0.5
        %v4735 = vmul.f32 %v4703, 0.5
        %v4736 = vmul.f32 %v4704, 0.5
        %v4737 = vmul.f32 %v4705, 0.5
        %v4738 = vmul.f32 %v4706, 0.5
        %v4739 = vmul.f32 %v4707, 0.5
        %v4740 = vmul.f32 %v4708, 0.5
        %v4741 = vmul.f32 %v4709, 0.5
        %v4742 = vmul.f32 %v4710, 0.5
        %v4743 = vmul.f32 %v4711, 0.5
        %v4744 = vmul.f32 %v4712, 0.5
        %v4745 = vmul.f32 %v4713, 0.5
        %v4746 = vmul.f32 %v4714, 0.5
        %v4747 = vmul.f32 %v4715, 0.5
        %v4748 = vmul.f32 %v4716, 0.5
        %v4749 = vmul.f32 %v4717, 0.5
        %v4750 = vsel %vm2741, %v4686, %v4718
        %v4751 = vsel %vm2742, %v4687, %v4719
        %v4752 = vsel %vm2741, %v4688, %v4720
        %v4753 = vsel %vm2742, %v4689, %v4721
        %v4754 = vsel %vm2741, %v4690, %v4722
        %v4755 = vsel %vm2742, %v4691, %v4723
        %v4756 = vsel %vm2741, %v4692, %v4724
        %v4757 = vsel %vm2742, %v4693, %v4725
        %v4758 = vsel %vm2741, %v4694, %v4726
        %v4759 = vsel %vm2742, %v4695, %v4727
        %v4760 = vsel %vm2741, %v4696, %v4728
        %v4761 = vsel %vm2742, %v4697, %v4729
        %v4762 = vsel %vm2741, %v4698, %v4730
        %v4763 = vsel %vm2742, %v4699, %v4731
        %v4764 = vsel %vm2741, %v4700, %v4732
        %v4765 = vsel %vm2742, %v4701, %v4733
        %v4766 = vsel %vm2741, %v4702, %v4734
        %v4767 = vsel %vm2742, %v4703, %v4735
        %v4768 = vsel %vm2741, %v4704, %v4736
        %v4769 = vsel %vm2742, %v4705, %v4737
        %v4770 = vsel %vm2741, %v4706, %v4738
        %v4771 = vsel %vm2742, %v4707, %v4739
        %v4772 = vsel %vm2741, %v4708, %v4740
        %v4773 = vsel %vm2742, %v4709, %v4741
        %v4774 = vsel %vm2741, %v4710, %v4742
        %v4775 = vsel %vm2742, %v4711, %v4743
        %v4776 = vsel %vm2741, %v4712, %v4744
        %v4777 = vsel %vm2742, %v4713, %v4745
        %v4778 = vsel %vm2741, %v4714, %v4746
        %v4779 = vsel %vm2742, %v4715, %v4747
        %v4780 = vsel %vm2741, %v4716, %v4748
        %v4781 = vsel %vm2742, %v4717, %v4749
        %v4782 = vtanh.pop %v4750
        %v4783 = vtanh.pop %v4751
        %v4784 = vtanh.pop %v4752
        %v4785 = vtanh.pop %v4753
        %v4786 = vtanh.pop %v4754
        %v4787 = vtanh.pop %v4755
        %v4788 = vtanh.pop %v4756
        %v4789 = vtanh.pop %v4757
        %v4790 = vtanh.pop %v4758
        %v4791 = vtanh.pop %v4759
        %v4792 = vtanh.pop %v4760
        %v4793 = vtanh.pop %v4761
        %v4794 = vtanh.pop %v4762
        %v4795 = vtanh.pop %v4763
        %v4796 = vtanh.pop %v4764
        %v4797 = vtanh.pop %v4765
        %v4798 = vtanh.pop %v4766
        %v4799 = vtanh.pop %v4767
        %v4800 = vtanh.pop %v4768
        %v4801 = vtanh.pop %v4769
        %v4802 = vtanh.pop %v4770
        %v4803 = vtanh.pop %v4771
        %v4804 = vtanh.pop %v4772
        %v4805 = vtanh.pop %v4773
        %v4806 = vtanh.pop %v4774
        %v4807 = vtanh.pop %v4775
        %v4808 = vtanh.pop %v4776
        %v4809 = vtanh.pop %v4777
        %v4810 = vtanh.pop %v4778
        %v4811 = vtanh.pop %v4779
        %v4812 = vtanh.pop %v4780
        %v4813 = vtanh.pop %v4781
        %v4814 = vmul.f32 %v4782, 0.5
        %v4815 = vmul.f32 %v4783, 0.5
        %v4816 = vmul.f32 %v4784, 0.5
        %v4817 = vmul.f32 %v4785, 0.5
        %v4818 = vmul.f32 %v4786, 0.5
        %v4819 = vmul.f32 %v4787, 0.5
        %v4820 = vmul.f32 %v4788, 0.5
        %v4821 = vmul.f32 %v4789, 0.5
        %v4822 = vmul.f32 %v4790, 0.5
        %v4823 = vmul.f32 %v4791, 0.5
        %v4824 = vmul.f32 %v4792, 0.5
        %v4825 = vmul.f32 %v4793, 0.5
        %v4826 = vmul.f32 %v4794, 0.5
        %v4827 = vmul.f32 %v4795, 0.5
        %v4828 = vmul.f32 %v4796, 0.5
        %v4829 = vmul.f32 %v4797, 0.5
        %v4830 = vmul.f32 %v4798, 0.5
        %v4831 = vmul.f32 %v4799, 0.5
        %v4832 = vmul.f32 %v4800, 0.5
        %v4833 = vmul.f32 %v4801, 0.5
        %v4834 = vmul.f32 %v4802, 0.5
        %v4835 = vmul.f32 %v4803, 0.5
        %v4836 = vmul.f32 %v4804, 0.5
        %v4837 = vmul.f32 %v4805, 0.5
        %v4838 = vmul.f32 %v4806, 0.5
        %v4839 = vmul.f32 %v4807, 0.5
        %v4840 = vmul.f32 %v4808, 0.5
        %v4841 = vmul.f32 %v4809, 0.5
        %v4842 = vmul.f32 %v4810, 0.5
        %v4843 = vmul.f32 %v4811, 0.5
        %v4844 = vmul.f32 %v4812, 0.5
        %v4845 = vmul.f32 %v4813, 0.5
        %v4846 = vadd.f32 %v4814, 0.5
        %v4847 = vadd.f32 %v4815, 0.5
        %v4848 = vadd.f32 %v4816, 0.5
        %v4849 = vadd.f32 %v4817, 0.5
        %v4850 = vadd.f32 %v4818, 0.5
        %v4851 = vadd.f32 %v4819, 0.5
        %v4852 = vadd.f32 %v4820, 0.5
        %v4853 = vadd.f32 %v4821, 0.5
        %v4854 = vadd.f32 %v4822, 0.5
        %v4855 = vadd.f32 %v4823, 0.5
        %v4856 = vadd.f32 %v4824, 0.5
        %v4857 = vadd.f32 %v4825, 0.5
        %v4858 = vadd.f32 %v4826, 0.5
        %v4859 = vadd.f32 %v4827, 0.5
        %v4860 = vadd.f32 %v4828, 0.5
        %v4861 = vadd.f32 %v4829, 0.5
        %v4862 = vadd.f32 %v4830, 0.5
        %v4863 = vadd.f32 %v4831, 0.5
        %v4864 = vadd.f32 %v4832, 0.5
        %v4865 = vadd.f32 %v4833, 0.5
        %v4866 = vadd.f32 %v4834, 0.5
        %v4867 = vadd.f32 %v4835, 0.5
        %v4868 = vadd.f32 %v4836, 0.5
        %v4869 = vadd.f32 %v4837, 0.5
        %v4870 = vadd.f32 %v4838, 0.5
        %v4871 = vadd.f32 %v4839, 0.5
        %v4872 = vadd.f32 %v4840, 0.5
        %v4873 = vadd.f32 %v4841, 0.5
        %v4874 = vadd.f32 %v4842, 0.5
        %v4875 = vadd.f32 %v4843, 0.5
        %v4876 = vadd.f32 %v4844, 0.5
        %v4877 = vadd.f32 %v4845, 0.5
        %v4878 = vsel %vm2741, %v4782, %v4846
        %v4879 = vsel %vm2742, %v4783, %v4847
        %v4880 = vsel %vm2741, %v4784, %v4848
        %v4881 = vsel %vm2742, %v4785, %v4849
        %v4882 = vsel %vm2741, %v4786, %v4850
        %v4883 = vsel %vm2742, %v4787, %v4851
        %v4884 = vsel %vm2741, %v4788, %v4852
        %v4885 = vsel %vm2742, %v4789, %v4853
        %v4886 = vsel %vm2741, %v4790, %v4854
        %v4887 = vsel %vm2742, %v4791, %v4855
        %v4888 = vsel %vm2741, %v4792, %v4856
        %v4889 = vsel %vm2742, %v4793, %v4857
        %v4890 = vsel %vm2741, %v4794, %v4858
        %v4891 = vsel %vm2742, %v4795, %v4859
        %v4892 = vsel %vm2741, %v4796, %v4860
        %v4893 = vsel %vm2742, %v4797, %v4861
        %v4894 = vsel %vm2741, %v4798, %v4862
        %v4895 = vsel %vm2742, %v4799, %v4863
        %v4896 = vsel %vm2741, %v4800, %v4864
        %v4897 = vsel %vm2742, %v4801, %v4865
        %v4898 = vsel %vm2741, %v4802, %v4866
        %v4899 = vsel %vm2742, %v4803, %v4867
        %v4900 = vsel %vm2741, %v4804, %v4868
        %v4901 = vsel %vm2742, %v4805, %v4869
        %v4902 = vsel %vm2741, %v4806, %v4870
        %v4903 = vsel %vm2742, %v4807, %v4871
        %v4904 = vsel %vm2741, %v4808, %v4872
        %v4905 = vsel %vm2742, %v4809, %v4873
        %v4906 = vsel %vm2741, %v4810, %v4874
        %v4907 = vsel %vm2742, %v4811, %v4875
        %v4908 = vsel %vm2741, %v4812, %v4876
        %v4909 = vsel %vm2742, %v4813, %v4877
        %v4910 = vmul.f32 %v4878, %v4421
        %v4911 = vmul.f32 %v4880, %v4422
        %v4912 = vmul.f32 %v4882, %v4423
        %v4913 = vmul.f32 %v4884, %v4424
        %v4914 = vmul.f32 %v4886, %v4425
        %v4915 = vmul.f32 %v4888, %v4426
        %v4916 = vmul.f32 %v4890, %v4427
        %v4917 = vmul.f32 %v4892, %v4428
        %v4918 = vmul.f32 %v4894, %v4429
        %v4919 = vmul.f32 %v4896, %v4430
        %v4920 = vmul.f32 %v4898, %v4431
        %v4921 = vmul.f32 %v4900, %v4432
        %v4922 = vmul.f32 %v4902, %v4433
        %v4923 = vmul.f32 %v4904, %v4434
        %v4924 = vmul.f32 %v4906, %v4435
        %v4925 = vmul.f32 %v4908, %v4436
        %v4926 = vmul.f32 %v4878, %v4879
        %v4927 = vmul.f32 %v4880, %v4881
        %v4928 = vmul.f32 %v4882, %v4883
        %v4929 = vmul.f32 %v4884, %v4885
        %v4930 = vmul.f32 %v4886, %v4887
        %v4931 = vmul.f32 %v4888, %v4889
        %v4932 = vmul.f32 %v4890, %v4891
        %v4933 = vmul.f32 %v4892, %v4893
        %v4934 = vmul.f32 %v4894, %v4895
        %v4935 = vmul.f32 %v4896, %v4897
        %v4936 = vmul.f32 %v4898, %v4899
        %v4937 = vmul.f32 %v4900, %v4901
        %v4938 = vmul.f32 %v4902, %v4903
        %v4939 = vmul.f32 %v4904, %v4905
        %v4940 = vmul.f32 %v4906, %v4907
        %v4941 = vmul.f32 %v4908, %v4909
        %4958 = vrot.lane.b32.xlu0 %v4926, 64
        %v4959 = vpop.permute.xlu0 %4958
        %4960 = vrot.lane.b32.xlu0 %v4927, 64
        %v4961 = vpop.permute.xlu0 %4960
        %4962 = vrot.lane.b32.xlu0 %v4928, 64
        %v4963 = vpop.permute.xlu0 %4962
        %4964 = vrot.lane.b32.xlu0 %v4929, 64
        %v4965 = vpop.permute.xlu0 %4964
        %4966 = vrot.lane.b32.xlu0 %v4930, 64
        %v4967 = vpop.permute.xlu0 %4966
        %4968 = vrot.lane.b32.xlu0 %v4931, 64
        %v4969 = vpop.permute.xlu0 %4968
        %4970 = vrot.lane.b32.xlu0 %v4932, 64
        %v4971 = vpop.permute.xlu0 %4970
        %4972 = vrot.lane.b32.xlu0 %v4933, 64
        %v4973 = vpop.permute.xlu0 %4972
        %4974 = vrot.lane.b32.xlu0 %v4934, 64
        %v4975 = vpop.permute.xlu0 %4974
        %4976 = vrot.lane.b32.xlu0 %v4935, 64
        %v4977 = vpop.permute.xlu0 %4976
        %4978 = vrot.lane.b32.xlu0 %v4936, 64
        %v4979 = vpop.permute.xlu0 %4978
        %4980 = vrot.lane.b32.xlu0 %v4937, 64
        %v4981 = vpop.permute.xlu0 %4980
        %4982 = vrot.lane.b32.xlu0 %v4938, 64
        %v4983 = vpop.permute.xlu0 %4982
        %4984 = vrot.lane.b32.xlu0 %v4939, 64
        %v4985 = vpop.permute.xlu0 %4984
        %4986 = vrot.lane.b32.xlu0 %v4940, 64
        %v4987 = vpop.permute.xlu0 %4986
        %4988 = vrot.lane.b32.xlu0 %v4941, 64
        %v4989 = vpop.permute.xlu0 %4988
        %v5006 = vadd.f32 %v4910, %v4959
        %v5007 = vadd.f32 %v4911, %v4961
        %v5008 = vadd.f32 %v4912, %v4963
        %v5009 = vadd.f32 %v4913, %v4965
        %v5010 = vadd.f32 %v4914, %v4967
        %v5011 = vadd.f32 %v4915, %v4969
        %v5012 = vadd.f32 %v4916, %v4971
        %v5013 = vadd.f32 %v4917, %v4973
        %v5014 = vadd.f32 %v4918, %v4975
        %v5015 = vadd.f32 %v4919, %v4977
        %v5016 = vadd.f32 %v4920, %v4979
        %v5017 = vadd.f32 %v4921, %v4981
        %v5018 = vadd.f32 %v4922, %v4983
        %v5019 = vadd.f32 %v4923, %v4985
        %v5020 = vadd.f32 %v4924, %v4987
        %v5021 = vadd.f32 %v4925, %v4989
        %v5022 = vtanh.pop %v5006
        %v5023 = vtanh.pop %v5007
        %v5024 = vtanh.pop %v5008
        %v5025 = vtanh.pop %v5009
        %v5026 = vtanh.pop %v5010
        %v5027 = vtanh.pop %v5011
        %v5028 = vtanh.pop %v5012
        %v5029 = vtanh.pop %v5013
        %v5030 = vtanh.pop %v5014
        %v5031 = vtanh.pop %v5015
        %v5032 = vtanh.pop %v5016
        %v5033 = vtanh.pop %v5017
        %v5034 = vtanh.pop %v5018
        %v5035 = vtanh.pop %v5019
        %v5036 = vtanh.pop %v5020
        %v5037 = vtanh.pop %v5021
        %v5038 = vmul.f32 %v4879, %v5022
        %v5039 = vmul.f32 %v4881, %v5023
        %v5040 = vmul.f32 %v4883, %v5024
        %v5041 = vmul.f32 %v4885, %v5025
        %v5042 = vmul.f32 %v4887, %v5026
        %v5043 = vmul.f32 %v4889, %v5027
        %v5044 = vmul.f32 %v4891, %v5028
        %v5045 = vmul.f32 %v4893, %v5029
        %v5046 = vmul.f32 %v4895, %v5030
        %v5047 = vmul.f32 %v4897, %v5031
        %v5048 = vmul.f32 %v4899, %v5032
        %v5049 = vmul.f32 %v4901, %v5033
        %v5050 = vmul.f32 %v4903, %v5034
        %v5051 = vmul.f32 %v4905, %v5035
        %v5052 = vmul.f32 %v4907, %v5036
        %v5053 = vmul.f32 %v4909, %v5037
        %v5054 = vadd.f32 %v4469, %v5038
        %v5055 = vadd.f32 %v4470, %v5039
        %v5056 = vadd.f32 %v4471, %v5040
        %v5057 = vadd.f32 %v4472, %v5041
        %v5058 = vadd.f32 %v4473, %v5042
        %v5059 = vadd.f32 %v4474, %v5043
        %v5060 = vadd.f32 %v4475, %v5044
        %v5061 = vadd.f32 %v4476, %v5045
        %v5062 = vadd.f32 %v4477, %v5046
        %v5063 = vadd.f32 %v4478, %v5047
        %v5064 = vadd.f32 %v4479, %v5048
        %v5065 = vadd.f32 %v4480, %v5049
        %v5066 = vadd.f32 %v4481, %v5050
        %v5067 = vadd.f32 %v4482, %v5051
        %v5068 = vadd.f32 %v4483, %v5052
        %v5069 = vadd.f32 %v4484, %v5053
        %v5070 = vmul.f32 %v5054, 0.25
        %v5071 = vmul.f32 %v5055, 0.25
        %v5072 = vmul.f32 %v5056, 0.25
        %v5073 = vmul.f32 %v5057, 0.25
        %v5074 = vmul.f32 %v5058, 0.25
        %v5075 = vmul.f32 %v5059, 0.25
        %v5076 = vmul.f32 %v5060, 0.25
        %v5077 = vmul.f32 %v5061, 0.25
        %v5078 = vmul.f32 %v5062, 0.25
        %v5079 = vmul.f32 %v5063, 0.25
        %v5080 = vmul.f32 %v5064, 0.25
        %v5081 = vmul.f32 %v5065, 0.25
        %v5082 = vmul.f32 %v5066, 0.25
        %v5083 = vmul.f32 %v5067, 0.25
        %v5084 = vmul.f32 %v5068, 0.25
        %v5085 = vmul.f32 %v5069, 0.25
        %v5086 = vpack.c.bf16 %v5039, %v5038
        %v5087 = vpack.c.bf16 %v5041, %v5040
        %v5088 = vpack.c.bf16 %v5043, %v5042
        %v5089 = vpack.c.bf16 %v5045, %v5044
        %v5090 = vpack.c.bf16 %v5047, %v5046
        %v5091 = vpack.c.bf16 %v5049, %v5048
        %v5092 = vpack.c.bf16 %v5051, %v5050
        %v5093 = vpack.c.bf16 %v5053, %v5052
        %5102 = vrot.lane.b32.xlu0 %v5086, 64
        %v5103 = vpop.permute.xlu0 %5102
        %5104 = vrot.lane.b32.xlu0 %v5087, 64
        %v5105 = vpop.permute.xlu0 %5104
        %5106 = vrot.lane.b32.xlu0 %v5088, 64
        %v5107 = vpop.permute.xlu0 %5106
        %5108 = vrot.lane.b32.xlu0 %v5089, 64
        %v5109 = vpop.permute.xlu0 %5108
        %5110 = vrot.lane.b32.xlu0 %v5090, 64
        %v5111 = vpop.permute.xlu0 %5110
        %5112 = vrot.lane.b32.xlu0 %v5091, 64
        %v5113 = vpop.permute.xlu0 %5112
        %5114 = vrot.lane.b32.xlu0 %v5092, 64
        %v5115 = vpop.permute.xlu0 %5114
        %5116 = vrot.lane.b32.xlu0 %v5093, 64
        %v5117 = vpop.permute.xlu0 %5116
        %v5119 = vsel %vm1432, %v5103, 0
        %v5122 = vsel %vm1432, %v5105, 0
        %v5125 = vsel %vm1432, %v5107, 0
        %v5128 = vsel %vm1432, %v5109, 0
        %v5131 = vsel %vm1432, %v5111, 0
        %v5134 = vsel %vm1432, %v5113, 0
        %v5137 = vsel %vm1432, %v5115, 0
        %v5140 = vsel %vm1432, %v5117, 0
        %5142 = vmatprep.subr.bf16.mxu0 %v2800
        %5143 = vmatpush1.bf16.msra.mxu0 %v2799
        %5144 = vmatprep.subr.bf16.mxu0 %v2802
        %5145 = vmatpush1.bf16.msra.mxu0 %v2801
        %5146 = vmatprep.subr.bf16.mxu0 %v2804
        %5147 = vmatpush1.bf16.msra.mxu0 %v2803
        %5148 = vmatprep.subr.bf16.mxu0 %v2806
        %5149 = vmatpush1.bf16.msra.mxu0 %v2805
        %5150 = vmatprep.subr.bf16.mxu0 0
        %5151 = vmatpush1.bf16.msra.mxu0 0
        %5152 = vmatprep.subr.bf16.mxu0 0
        %5153 = vmatpush1.bf16.msra.mxu0 0
        %5154 = vmatprep.subr.bf16.mxu0 0
        %5155 = vmatpush1.bf16.msra.mxu0 0
        %5156 = vmatprep.subr.bf16.mxu0 0
        %5157 = vmatpush1.bf16.msra.mxu0 0
        %5158 = vmatprep.subr.bf16.mxu0 0
        %5159 = vmatpush1.bf16.msra.mxu0 0
        %5160 = vmatprep.subr.bf16.mxu0 0
        %5161 = vmatpush1.bf16.msra.mxu0 0
        %5162 = vmatprep.subr.bf16.mxu0 0
        %5163 = vmatpush1.bf16.msra.mxu0 0
        %5164 = vmatprep.subr.bf16.mxu0 0
        %5165 = vmatpush1.bf16.msra.mxu0 0
        %5166 = vmatprep.subr.bf16.mxu0 0
        %5167 = vmatpush1.bf16.msra.mxu0 0
        %5168 = vmatprep.subr.bf16.mxu0 0
        %5169 = vmatpush1.bf16.msra.mxu0 0
        %5170 = vmatprep.subr.bf16.mxu0 0
        %5171 = vmatpush1.bf16.msra.mxu0 0
        %5172 = vmatprep.subr.bf16.mxu0 0
        %5173 = vmatpush1.bf16.msra.mxu0 0
        %5174 = vmatprep.mubr.bf16.mxu0 0
        %5175 = vmatmul.mubr.bf16.gmra.mrb[0].mxu0 %v5119
        %v5176 = vpop.f32.mrb[0].mxu0
        %v5177 = vadd.f32 0.0, %v5176
        %v5178 = vpop.f32.mrb[0].mxu0
        %v5179 = vadd.f32 0.0, %v5178
        %v5180 = vpop.f32.mrb[0].mxu0
        %v5181 = vadd.f32 0.0, %v5180
        %v5182 = vpop.f32.mrb[0].mxu0
        %v5183 = vadd.f32 0.0, %v5182
        %5184 = vmatprep.mubr.bf16.mxu0 0
        %5185 = vmatmul.mubr.bf16.gmra.mrb[0].mxu0 %v5122
        %v5186 = vpop.f32.mrb[0].mxu0
        %v5187 = vadd.f32 0.0, %v5186
        %v5188 = vpop.f32.mrb[0].mxu0
        %v5189 = vadd.f32 0.0, %v5188
        %v5190 = vpop.f32.mrb[0].mxu0
        %v5191 = vadd.f32 0.0, %v5190
        %v5192 = vpop.f32.mrb[0].mxu0
        %v5193 = vadd.f32 0.0, %v5192
        %5194 = vmatprep.mubr.bf16.mxu0 0
        %5195 = vmatmul.mubr.bf16.gmra.mrb[0].mxu0 %v5125
        %v5196 = vpop.f32.mrb[0].mxu0
        %v5197 = vadd.f32 0.0, %v5196
        %v5198 = vpop.f32.mrb[0].mxu0
        %v5199 = vadd.f32 0.0, %v5198
        %v5200 = vpop.f32.mrb[0].mxu0
        %v5201 = vadd.f32 0.0, %v5200
        %v5202 = vpop.f32.mrb[0].mxu0
        %v5203 = vadd.f32 0.0, %v5202
        %5204 = vmatprep.mubr.bf16.mxu0 0
        %5205 = vmatmul.mubr.bf16.gmra.mrb[0].mxu0 %v5128
        %v5206 = vpop.f32.mrb[0].mxu0
        %v5207 = vadd.f32 0.0, %v5206
        %v5208 = vpop.f32.mrb[0].mxu0
        %v5209 = vadd.f32 0.0, %v5208
        %v5210 = vpop.f32.mrb[0].mxu0
        %v5211 = vadd.f32 0.0, %v5210
        %v5212 = vpop.f32.mrb[0].mxu0
        %v5213 = vadd.f32 0.0, %v5212
        %5214 = vmatprep.mubr.bf16.mxu0 0
        %5215 = vmatmul.mubr.bf16.gmra.mrb[0].mxu0 %v5131
        %v5216 = vpop.f32.mrb[0].mxu0
        %v5217 = vadd.f32 0.0, %v5216
        %v5218 = vpop.f32.mrb[0].mxu0
        %v5219 = vadd.f32 0.0, %v5218
        %v5220 = vpop.f32.mrb[0].mxu0
        %v5221 = vadd.f32 0.0, %v5220
        %v5222 = vpop.f32.mrb[0].mxu0
        %v5223 = vadd.f32 0.0, %v5222
        %5224 = vmatprep.mubr.bf16.mxu0 0
        %5225 = vmatmul.mubr.bf16.gmra.mrb[0].mxu0 %v5134
        %v5226 = vpop.f32.mrb[0].mxu0
        %v5227 = vadd.f32 0.0, %v5226
        %v5228 = vpop.f32.mrb[0].mxu0
        %v5229 = vadd.f32 0.0, %v5228
        %v5230 = vpop.f32.mrb[0].mxu0
        %v5231 = vadd.f32 0.0, %v5230
        %v5232 = vpop.f32.mrb[0].mxu0
        %v5233 = vadd.f32 0.0, %v5232
        %5234 = vmatprep.mubr.bf16.mxu0 0
        %5235 = vmatmul.mubr.bf16.gmra.mrb[0].mxu0 %v5137
        %v5236 = vpop.f32.mrb[0].mxu0
        %v5237 = vadd.f32 0.0, %v5236
        %v5238 = vpop.f32.mrb[0].mxu0
        %v5239 = vadd.f32 0.0, %v5238
        %v5240 = vpop.f32.mrb[0].mxu0
        %v5241 = vadd.f32 0.0, %v5240
        %v5242 = vpop.f32.mrb[0].mxu0
        %v5243 = vadd.f32 0.0, %v5242
        %5244 = vmatprep.mubr.bf16.mxu0 0
        %5245 = vmatmul.mubr.bf16.gmra.mrb[0].mxu0 %v5140
        %v5246 = vpop.f32.mrb[0].mxu0
        %v5247 = vadd.f32 0.0, %v5246
        %v5248 = vpop.f32.mrb[0].mxu0
        %v5249 = vadd.f32 0.0, %v5248
        %v5250 = vpop.f32.mrb[0].mxu0
        %v5251 = vadd.f32 0.0, %v5250
        %v5252 = vpop.f32.mrb[0].mxu0
        %v5253 = vadd.f32 0.0, %v5252
        %5254 = vdwg.mxu0
        %v5255 = vadd.f32 %v1884, %v5177
        %v5256 = vadd.f32 %v1886, %v5179
        %v5257 = vadd.f32 %v1888, %v5181
        %v5258 = vadd.f32 %v1890, %v5183
        %v5259 = vadd.f32 %v1894, %v5187
        %v5260 = vadd.f32 %v1896, %v5189
        %v5261 = vadd.f32 %v1898, %v5191
        %v5262 = vadd.f32 %v1900, %v5193
        %v5263 = vadd.f32 %v1904, %v5197
        %v5264 = vadd.f32 %v1906, %v5199
        %v5265 = vadd.f32 %v1908, %v5201
        %v5266 = vadd.f32 %v1910, %v5203
        %v5267 = vadd.f32 %v1914, %v5207
        %v5268 = vadd.f32 %v1916, %v5209
        %v5269 = vadd.f32 %v1918, %v5211
        %v5270 = vadd.f32 %v1920, %v5213
        %v5271 = vadd.f32 %v1924, %v5217
        %v5272 = vadd.f32 %v1926, %v5219
        %v5273 = vadd.f32 %v1928, %v5221
        %v5274 = vadd.f32 %v1930, %v5223
        %v5275 = vadd.f32 %v1934, %v5227
        %v5276 = vadd.f32 %v1936, %v5229
        %v5277 = vadd.f32 %v1938, %v5231
        %v5278 = vadd.f32 %v1940, %v5233
        %v5279 = vadd.f32 %v1944, %v5237
        %v5280 = vadd.f32 %v1946, %v5239
        %v5281 = vadd.f32 %v1948, %v5241
        %v5282 = vadd.f32 %v1950, %v5243
        %v5283 = vadd.f32 %v1954, %v5247
        %v5284 = vadd.f32 %v1956, %v5249
        %v5285 = vadd.f32 %v1958, %v5251
        %v5286 = vadd.f32 %v1960, %v5253
        %v5287 = vmul.f32 %v5255, 0.5
        %v5288 = vmul.f32 %v5256, 0.5
        %v5289 = vmul.f32 %v5257, 0.5
        %v5290 = vmul.f32 %v5258, 0.5
        %v5291 = vmul.f32 %v5259, 0.5
        %v5292 = vmul.f32 %v5260, 0.5
        %v5293 = vmul.f32 %v5261, 0.5
        %v5294 = vmul.f32 %v5262, 0.5
        %v5295 = vmul.f32 %v5263, 0.5
        %v5296 = vmul.f32 %v5264, 0.5
        %v5297 = vmul.f32 %v5265, 0.5
        %v5298 = vmul.f32 %v5266, 0.5
        %v5299 = vmul.f32 %v5267, 0.5
        %v5300 = vmul.f32 %v5268, 0.5
        %v5301 = vmul.f32 %v5269, 0.5
        %v5302 = vmul.f32 %v5270, 0.5
        %v5303 = vmul.f32 %v5271, 0.5
        %v5304 = vmul.f32 %v5272, 0.5
        %v5305 = vmul.f32 %v5273, 0.5
        %v5306 = vmul.f32 %v5274, 0.5
        %v5307 = vmul.f32 %v5275, 0.5
        %v5308 = vmul.f32 %v5276, 0.5
        %v5309 = vmul.f32 %v5277, 0.5
        %v5310 = vmul.f32 %v5278, 0.5
        %v5311 = vmul.f32 %v5279, 0.5
        %v5312 = vmul.f32 %v5280, 0.5
        %v5313 = vmul.f32 %v5281, 0.5
        %v5314 = vmul.f32 %v5282, 0.5
        %v5315 = vmul.f32 %v5283, 0.5
        %v5316 = vmul.f32 %v5284, 0.5
        %v5317 = vmul.f32 %v5285, 0.5
        %v5318 = vmul.f32 %v5286, 0.5
        %v5319 = vsel %vm2741, %v5255, %v5287
        %v5320 = vsel %vm2742, %v5256, %v5288
        %v5321 = vsel %vm2741, %v5257, %v5289
        %v5322 = vsel %vm2742, %v5258, %v5290
        %v5323 = vsel %vm2741, %v5259, %v5291
        %v5324 = vsel %vm2742, %v5260, %v5292
        %v5325 = vsel %vm2741, %v5261, %v5293
        %v5326 = vsel %vm2742, %v5262, %v5294
        %v5327 = vsel %vm2741, %v5263, %v5295
        %v5328 = vsel %vm2742, %v5264, %v5296
        %v5329 = vsel %vm2741, %v5265, %v5297
        %v5330 = vsel %vm2742, %v5266, %v5298
        %v5331 = vsel %vm2741, %v5267, %v5299
        %v5332 = vsel %vm2742, %v5268, %v5300
        %v5333 = vsel %vm2741, %v5269, %v5301
        %v5334 = vsel %vm2742, %v5270, %v5302
        %v5335 = vsel %vm2741, %v5271, %v5303
        %v5336 = vsel %vm2742, %v5272, %v5304
        %v5337 = vsel %vm2741, %v5273, %v5305
        %v5338 = vsel %vm2742, %v5274, %v5306
        %v5339 = vsel %vm2741, %v5275, %v5307
        %v5340 = vsel %vm2742, %v5276, %v5308
        %v5341 = vsel %vm2741, %v5277, %v5309
        %v5342 = vsel %vm2742, %v5278, %v5310
        %v5343 = vsel %vm2741, %v5279, %v5311
        %v5344 = vsel %vm2742, %v5280, %v5312
        %v5345 = vsel %vm2741, %v5281, %v5313
        %v5346 = vsel %vm2742, %v5282, %v5314
        %v5347 = vsel %vm2741, %v5283, %v5315
        %v5348 = vsel %vm2742, %v5284, %v5316
        %v5349 = vsel %vm2741, %v5285, %v5317
        %v5350 = vsel %vm2742, %v5286, %v5318
        %v5351 = vtanh.pop %v5319
        %v5352 = vtanh.pop %v5320
        %v5353 = vtanh.pop %v5321
        %v5354 = vtanh.pop %v5322
        %v5355 = vtanh.pop %v5323
        %v5356 = vtanh.pop %v5324
        %v5357 = vtanh.pop %v5325
        %v5358 = vtanh.pop %v5326
        %v5359 = vtanh.pop %v5327
        %v5360 = vtanh.pop %v5328
        %v5361 = vtanh.pop %v5329
        %v5362 = vtanh.pop %v5330
        %v5363 = vtanh.pop %v5331
        %v5364 = vtanh.pop %v5332
        %v5365 = vtanh.pop %v5333
        %v5366 = vtanh.pop %v5334
        %v5367 = vtanh.pop %v5335
        %v5368 = vtanh.pop %v5336
        %v5369 = vtanh.pop %v5337
        %v5370 = vtanh.pop %v5338
        %v5371 = vtanh.pop %v5339
        %v5372 = vtanh.pop %v5340
        %v5373 = vtanh.pop %v5341
        %v5374 = vtanh.pop %v5342
        %v5375 = vtanh.pop %v5343
        %v5376 = vtanh.pop %v5344
        %v5377 = vtanh.pop %v5345
        %v5378 = vtanh.pop %v5346
        %v5379 = vtanh.pop %v5347
        %v5380 = vtanh.pop %v5348
        %v5381 = vtanh.pop %v5349
        %v5382 = vtanh.pop %v5350
        %v5383 = vmul.f32 %v5351, 0.5
        %v5384 = vmul.f32 %v5352, 0.5
        %v5385 = vmul.f32 %v5353, 0.5
        %v5386 = vmul.f32 %v5354, 0.5
        %v5387 = vmul.f32 %v5355, 0.5
        %v5388 = vmul.f32 %v5356, 0.5
        %v5389 = vmul.f32 %v5357, 0.5
        %v5390 = vmul.f32 %v5358, 0.5
        %v5391 = vmul.f32 %v5359, 0.5
        %v5392 = vmul.f32 %v5360, 0.5
        %v5393 = vmul.f32 %v5361, 0.5
        %v5394 = vmul.f32 %v5362, 0.5
        %v5395 = vmul.f32 %v5363, 0.5
        %v5396 = vmul.f32 %v5364, 0.5
        %v5397 = vmul.f32 %v5365, 0.5
        %v5398 = vmul.f32 %v5366, 0.5
        %v5399 = vmul.f32 %v5367, 0.5
        %v5400 = vmul.f32 %v5368, 0.5
        %v5401 = vmul.f32 %v5369, 0.5
        %v5402 = vmul.f32 %v5370, 0.5
        %v5403 = vmul.f32 %v5371, 0.5
        %v5404 = vmul.f32 %v5372, 0.5
        %v5405 = vmul.f32 %v5373, 0.5
        %v5406 = vmul.f32 %v5374, 0.5
        %v5407 = vmul.f32 %v5375, 0.5
        %v5408 = vmul.f32 %v5376, 0.5
        %v5409 = vmul.f32 %v5377, 0.5
        %v5410 = vmul.f32 %v5378, 0.5
        %v5411 = vmul.f32 %v5379, 0.5
        %v5412 = vmul.f32 %v5380, 0.5
        %v5413 = vmul.f32 %v5381, 0.5
        %v5414 = vmul.f32 %v5382, 0.5
        %v5415 = vadd.f32 %v5383, 0.5
        %v5416 = vadd.f32 %v5384, 0.5
        %v5417 = vadd.f32 %v5385, 0.5
        %v5418 = vadd.f32 %v5386, 0.5
        %v5419 = vadd.f32 %v5387, 0.5
        %v5420 = vadd.f32 %v5388, 0.5
        %v5421 = vadd.f32 %v5389, 0.5
        %v5422 = vadd.f32 %v5390, 0.5
        %v5423 = vadd.f32 %v5391, 0.5
        %v5424 = vadd.f32 %v5392, 0.5
        %v5425 = vadd.f32 %v5393, 0.5
        %v5426 = vadd.f32 %v5394, 0.5
        %v5427 = vadd.f32 %v5395, 0.5
        %v5428 = vadd.f32 %v5396, 0.5
        %v5429 = vadd.f32 %v5397, 0.5
        %v5430 = vadd.f32 %v5398, 0.5
        %v5431 = vadd.f32 %v5399, 0.5
        %v5432 = vadd.f32 %v5400, 0.5
        %v5433 = vadd.f32 %v5401, 0.5
        %v5434 = vadd.f32 %v5402, 0.5
        %v5435 = vadd.f32 %v5403, 0.5
        %v5436 = vadd.f32 %v5404, 0.5
        %v5437 = vadd.f32 %v5405, 0.5
        %v5438 = vadd.f32 %v5406, 0.5
        %v5439 = vadd.f32 %v5407, 0.5
        %v5440 = vadd.f32 %v5408, 0.5
        %v5441 = vadd.f32 %v5409, 0.5
        %v5442 = vadd.f32 %v5410, 0.5
        %v5443 = vadd.f32 %v5411, 0.5
        %v5444 = vadd.f32 %v5412, 0.5
        %v5445 = vadd.f32 %v5413, 0.5
        %v5446 = vadd.f32 %v5414, 0.5
        %v5447 = vsel %vm2741, %v5351, %v5415
        %v5448 = vsel %vm2742, %v5352, %v5416
        %v5449 = vsel %vm2741, %v5353, %v5417
        %v5450 = vsel %vm2742, %v5354, %v5418
        %v5451 = vsel %vm2741, %v5355, %v5419
        %v5452 = vsel %vm2742, %v5356, %v5420
        %v5453 = vsel %vm2741, %v5357, %v5421
        %v5454 = vsel %vm2742, %v5358, %v5422
        %v5455 = vsel %vm2741, %v5359, %v5423
        %v5456 = vsel %vm2742, %v5360, %v5424
        %v5457 = vsel %vm2741, %v5361, %v5425
        %v5458 = vsel %vm2742, %v5362, %v5426
        %v5459 = vsel %vm2741, %v5363, %v5427
        %v5460 = vsel %vm2742, %v5364, %v5428
        %v5461 = vsel %vm2741, %v5365, %v5429
        %v5462 = vsel %vm2742, %v5366, %v5430
        %v5463 = vsel %vm2741, %v5367, %v5431
        %v5464 = vsel %vm2742, %v5368, %v5432
        %v5465 = vsel %vm2741, %v5369, %v5433
        %v5466 = vsel %vm2742, %v5370, %v5434
        %v5467 = vsel %vm2741, %v5371, %v5435
        %v5468 = vsel %vm2742, %v5372, %v5436
        %v5469 = vsel %vm2741, %v5373, %v5437
        %v5470 = vsel %vm2742, %v5374, %v5438
        %v5471 = vsel %vm2741, %v5375, %v5439
        %v5472 = vsel %vm2742, %v5376, %v5440
        %v5473 = vsel %vm2741, %v5377, %v5441
        %v5474 = vsel %vm2742, %v5378, %v5442
        %v5475 = vsel %vm2741, %v5379, %v5443
        %v5476 = vsel %vm2742, %v5380, %v5444
        %v5477 = vsel %vm2741, %v5381, %v5445
        %v5478 = vsel %vm2742, %v5382, %v5446
        %v5479 = vmul.f32 %v5447, %v5006
        %v5480 = vmul.f32 %v5449, %v5007
        %v5481 = vmul.f32 %v5451, %v5008
        %v5482 = vmul.f32 %v5453, %v5009
        %v5483 = vmul.f32 %v5455, %v5010
        %v5484 = vmul.f32 %v5457, %v5011
        %v5485 = vmul.f32 %v5459, %v5012
        %v5486 = vmul.f32 %v5461, %v5013
        %v5487 = vmul.f32 %v5463, %v5014
        %v5488 = vmul.f32 %v5465, %v5015
        %v5489 = vmul.f32 %v5467, %v5016
        %v5490 = vmul.f32 %v5469, %v5017
        %v5491 = vmul.f32 %v5471, %v5018
        %v5492 = vmul.f32 %v5473, %v5019
        %v5493 = vmul.f32 %v5475, %v5020
        %v5494 = vmul.f32 %v5477, %v5021
        %v5495 = vmul.f32 %v5447, %v5448
        %v5496 = vmul.f32 %v5449, %v5450
        %v5497 = vmul.f32 %v5451, %v5452
        %v5498 = vmul.f32 %v5453, %v5454
        %v5499 = vmul.f32 %v5455, %v5456
        %v5500 = vmul.f32 %v5457, %v5458
        %v5501 = vmul.f32 %v5459, %v5460
        %v5502 = vmul.f32 %v5461, %v5462
        %v5503 = vmul.f32 %v5463, %v5464
        %v5504 = vmul.f32 %v5465, %v5466
        %v5505 = vmul.f32 %v5467, %v5468
        %v5506 = vmul.f32 %v5469, %v5470
        %v5507 = vmul.f32 %v5471, %v5472
        %v5508 = vmul.f32 %v5473, %v5474
        %v5509 = vmul.f32 %v5475, %v5476
        %v5510 = vmul.f32 %v5477, %v5478
        %5527 = vrot.lane.b32.xlu0 %v5495, 64
        %v5528 = vpop.permute.xlu0 %5527
        %5529 = vrot.lane.b32.xlu0 %v5496, 64
        %v5530 = vpop.permute.xlu0 %5529
        %5531 = vrot.lane.b32.xlu0 %v5497, 64
        %v5532 = vpop.permute.xlu0 %5531
        %5533 = vrot.lane.b32.xlu0 %v5498, 64
        %v5534 = vpop.permute.xlu0 %5533
        %5535 = vrot.lane.b32.xlu0 %v5499, 64
        %v5536 = vpop.permute.xlu0 %5535
        %5537 = vrot.lane.b32.xlu0 %v5500, 64
        %v5538 = vpop.permute.xlu0 %5537
        %5539 = vrot.lane.b32.xlu0 %v5501, 64
        %v5540 = vpop.permute.xlu0 %5539
        %5541 = vrot.lane.b32.xlu0 %v5502, 64
        %v5542 = vpop.permute.xlu0 %5541
        %5543 = vrot.lane.b32.xlu0 %v5503, 64
        %v5544 = vpop.permute.xlu0 %5543
        %5545 = vrot.lane.b32.xlu0 %v5504, 64
        %v5546 = vpop.permute.xlu0 %5545
        %5547 = vrot.lane.b32.xlu0 %v5505, 64
        %v5548 = vpop.permute.xlu0 %5547
        %5549 = vrot.lane.b32.xlu0 %v5506, 64
        %v5550 = vpop.permute.xlu0 %5549
        %5551 = vrot.lane.b32.xlu0 %v5507, 64
        %v5552 = vpop.permute.xlu0 %5551
        %5553 = vrot.lane.b32.xlu0 %v5508, 64
        %v5554 = vpop.permute.xlu0 %5553
        %5555 = vrot.lane.b32.xlu0 %v5509, 64
        %v5556 = vpop.permute.xlu0 %5555
        %5557 = vrot.lane.b32.xlu0 %v5510, 64
        %v5558 = vpop.permute.xlu0 %5557
        %v5575 = vadd.f32 %v5479, %v5528
        %v5576 = vadd.f32 %v5480, %v5530
        %v5577 = vadd.f32 %v5481, %v5532
        %v5578 = vadd.f32 %v5482, %v5534
        %v5579 = vadd.f32 %v5483, %v5536
        %v5580 = vadd.f32 %v5484, %v5538
        %v5581 = vadd.f32 %v5485, %v5540
        %v5582 = vadd.f32 %v5486, %v5542
        %v5583 = vadd.f32 %v5487, %v5544
        %v5584 = vadd.f32 %v5488, %v5546
        %v5585 = vadd.f32 %v5489, %v5548
        %v5586 = vadd.f32 %v5490, %v5550
        %v5587 = vadd.f32 %v5491, %v5552
        %v5588 = vadd.f32 %v5492, %v5554
        %v5589 = vadd.f32 %v5493, %v5556
        %v5590 = vadd.f32 %v5494, %v5558
        %v5591 = vtanh.pop %v5575
        %v5592 = vtanh.pop %v5576
        %v5593 = vtanh.pop %v5577
        %v5594 = vtanh.pop %v5578
        %v5595 = vtanh.pop %v5579
        %v5596 = vtanh.pop %v5580
        %v5597 = vtanh.pop %v5581
        %v5598 = vtanh.pop %v5582
        %v5599 = vtanh.pop %v5583
        %v5600 = vtanh.pop %v5584
        %v5601 = vtanh.pop %v5585
        %v5602 = vtanh.pop %v5586
        %v5603 = vtanh.pop %v5587
        %v5604 = vtanh.pop %v5588
        %v5605 = vtanh.pop %v5589
        %v5606 = vtanh.pop %v5590
        %v5607 = vmul.f32 %v5448, %v5591
        %v5608 = vmul.f32 %v5450, %v5592
        %v5609 = vmul.f32 %v5452, %v5593
        %v5610 = vmul.f32 %v5454, %v5594
        %v5611 = vmul.f32 %v5456, %v5595
        %v5612 = vmul.f32 %v5458, %v5596
        %v5613 = vmul.f32 %v5460, %v5597
        %v5614 = vmul.f32 %v5462, %v5598
        %v5615 = vmul.f32 %v5464, %v5599
        %v5616 = vmul.f32 %v5466, %v5600
        %v5617 = vmul.f32 %v5468, %v5601
        %v5618 = vmul.f32 %v5470, %v5602
        %v5619 = vmul.f32 %v5472, %v5603
        %v5620 = vmul.f32 %v5474, %v5604
        %v5621 = vmul.f32 %v5476, %v5605
        %v5622 = vmul.f32 %v5478, %v5606
        %v5623 = vadd.f32 %v5054, %v5607
        %v5624 = vadd.f32 %v5055, %v5608
        %v5625 = vadd.f32 %v5056, %v5609
        %v5626 = vadd.f32 %v5057, %v5610
        %v5627 = vadd.f32 %v5058, %v5611
        %v5628 = vadd.f32 %v5059, %v5612
        %v5629 = vadd.f32 %v5060, %v5613
        %v5630 = vadd.f32 %v5061, %v5614
        %v5631 = vadd.f32 %v5062, %v5615
        %v5632 = vadd.f32 %v5063, %v5616
        %v5633 = vadd.f32 %v5064, %v5617
        %v5634 = vadd.f32 %v5065, %v5618
        %v5635 = vadd.f32 %v5066, %v5619
        %v5636 = vadd.f32 %v5067, %v5620
        %v5637 = vadd.f32 %v5068, %v5621
        %v5638 = vadd.f32 %v5069, %v5622
        %v5639 = vpack.c.bf16 %v5608, %v5607
        %v5640 = vpack.c.bf16 %v5610, %v5609
        %v5641 = vpack.c.bf16 %v5612, %v5611
        %v5642 = vpack.c.bf16 %v5614, %v5613
        %v5643 = vpack.c.bf16 %v5616, %v5615
        %v5644 = vpack.c.bf16 %v5618, %v5617
        %v5645 = vpack.c.bf16 %v5620, %v5619
        %v5646 = vpack.c.bf16 %v5622, %v5621
        %5655 = vrot.lane.b32.xlu0 %v5639, 64
        %v5656 = vpop.permute.xlu0 %5655
        %5657 = vrot.lane.b32.xlu0 %v5640, 64
        %v5658 = vpop.permute.xlu0 %5657
        %5659 = vrot.lane.b32.xlu0 %v5641, 64
        %v5660 = vpop.permute.xlu0 %5659
        %5661 = vrot.lane.b32.xlu0 %v5642, 64
        %v5662 = vpop.permute.xlu0 %5661
        %5663 = vrot.lane.b32.xlu0 %v5643, 64
        %v5664 = vpop.permute.xlu0 %5663
        %5665 = vrot.lane.b32.xlu0 %v5644, 64
        %v5666 = vpop.permute.xlu0 %5665
        %5667 = vrot.lane.b32.xlu0 %v5645, 64
        %v5668 = vpop.permute.xlu0 %5667
        %5669 = vrot.lane.b32.xlu0 %v5646, 64
        %v5670 = vpop.permute.xlu0 %5669
        %v5672 = vsel %vm1432, %v5656, 0
        %v5675 = vsel %vm1432, %v5658, 0
        %v5678 = vsel %vm1432, %v5660, 0
        %v5681 = vsel %vm1432, %v5662, 0
        %v5684 = vsel %vm1432, %v5664, 0
        %v5687 = vsel %vm1432, %v5666, 0
        %v5690 = vsel %vm1432, %v5668, 0
        %v5693 = vsel %vm1432, %v5670, 0
        %5695 = vmatprep.subr.bf16.mxu0 %v2800
        %5696 = vmatpush1.bf16.msra.mxu0 %v2799
        %5697 = vmatprep.subr.bf16.mxu0 %v2802
        %5698 = vmatpush1.bf16.msra.mxu0 %v2801
        %5699 = vmatprep.subr.bf16.mxu0 %v2804
        %5700 = vmatpush1.bf16.msra.mxu0 %v2803
        %5701 = vmatprep.subr.bf16.mxu0 %v2806
        %5702 = vmatpush1.bf16.msra.mxu0 %v2805
        %5703 = vmatprep.subr.bf16.mxu0 0
        %5704 = vmatpush1.bf16.msra.mxu0 0
        %5705 = vmatprep.subr.bf16.mxu0 0
        %5706 = vmatpush1.bf16.msra.mxu0 0
        %5707 = vmatprep.subr.bf16.mxu0 0
        %5708 = vmatpush1.bf16.msra.mxu0 0
        %5709 = vmatprep.subr.bf16.mxu0 0
        %5710 = vmatpush1.bf16.msra.mxu0 0
        %5711 = vmatprep.subr.bf16.mxu0 0
        %5712 = vmatpush1.bf16.msra.mxu0 0
        %5713 = vmatprep.subr.bf16.mxu0 0
        %5714 = vmatpush1.bf16.msra.mxu0 0
        %5715 = vmatprep.subr.bf16.mxu0 0
        %5716 = vmatpush1.bf16.msra.mxu0 0
        %5717 = vmatprep.subr.bf16.mxu0 0
        %5718 = vmatpush1.bf16.msra.mxu0 0
        %5719 = vmatprep.subr.bf16.mxu0 0
        %5720 = vmatpush1.bf16.msra.mxu0 0
        %5721 = vmatprep.subr.bf16.mxu0 0
        %5722 = vmatpush1.bf16.msra.mxu0 0
        %5723 = vmatprep.subr.bf16.mxu0 0
        %5724 = vmatpush1.bf16.msra.mxu0 0
        %5725 = vmatprep.subr.bf16.mxu0 0
        %5726 = vmatpush1.bf16.msra.mxu0 0
        %5727 = vmatprep.mubr.bf16.mxu0 0
        %5728 = vmatmul.mubr.bf16.gmra.mrb[0].mxu0 %v5672
        %v5729 = vpop.f32.mrb[0].mxu0
        %v5730 = vadd.f32 0.0, %v5729
        %v5731 = vpop.f32.mrb[0].mxu0
        %v5732 = vadd.f32 0.0, %v5731
        %v5733 = vpop.f32.mrb[0].mxu0
        %v5734 = vadd.f32 0.0, %v5733
        %v5735 = vpop.f32.mrb[0].mxu0
        %v5736 = vadd.f32 0.0, %v5735
        %5737 = vmatprep.mubr.bf16.mxu0 0
        %5738 = vmatmul.mubr.bf16.gmra.mrb[0].mxu0 %v5675
        %v5739 = vpop.f32.mrb[0].mxu0
        %v5740 = vadd.f32 0.0, %v5739
        %v5741 = vpop.f32.mrb[0].mxu0
        %v5742 = vadd.f32 0.0, %v5741
        %v5743 = vpop.f32.mrb[0].mxu0
        %v5744 = vadd.f32 0.0, %v5743
        %v5745 = vpop.f32.mrb[0].mxu0
        %v5746 = vadd.f32 0.0, %v5745
        %5747 = vmatprep.mubr.bf16.mxu0 0
        %5748 = vmatmul.mubr.bf16.gmra.mrb[0].mxu0 %v5678
        %v5749 = vpop.f32.mrb[0].mxu0
        %v5750 = vadd.f32 0.0, %v5749
        %v5751 = vpop.f32.mrb[0].mxu0
        %v5752 = vadd.f32 0.0, %v5751
        %v5753 = vpop.f32.mrb[0].mxu0
        %v5754 = vadd.f32 0.0, %v5753
        %v5755 = vpop.f32.mrb[0].mxu0
        %v5756 = vadd.f32 0.0, %v5755
        %5757 = vmatprep.mubr.bf16.mxu0 0
        %5758 = vmatmul.mubr.bf16.gmra.mrb[0].mxu0 %v5681
        %v5759 = vpop.f32.mrb[0].mxu0
        %v5760 = vadd.f32 0.0, %v5759
        %v5761 = vpop.f32.mrb[0].mxu0
        %v5762 = vadd.f32 0.0, %v5761
        %v5763 = vpop.f32.mrb[0].mxu0
        %v5764 = vadd.f32 0.0, %v5763
        %v5765 = vpop.f32.mrb[0].mxu0
        %v5766 = vadd.f32 0.0, %v5765
        %5767 = vmatprep.mubr.bf16.mxu0 0
        %5768 = vmatmul.mubr.bf16.gmra.mrb[0].mxu0 %v5684
        %v5769 = vpop.f32.mrb[0].mxu0
        %v5770 = vadd.f32 0.0, %v5769
        %v5771 = vpop.f32.mrb[0].mxu0
        %v5772 = vadd.f32 0.0, %v5771
        %v5773 = vpop.f32.mrb[0].mxu0
        %v5774 = vadd.f32 0.0, %v5773
        %v5775 = vpop.f32.mrb[0].mxu0
        %v5776 = vadd.f32 0.0, %v5775
        %5777 = vmatprep.mubr.bf16.mxu0 0
        %5778 = vmatmul.mubr.bf16.gmra.mrb[0].mxu0 %v5687
        %v5779 = vpop.f32.mrb[0].mxu0
        %v5780 = vadd.f32 0.0, %v5779
        %v5781 = vpop.f32.mrb[0].mxu0
        %v5782 = vadd.f32 0.0, %v5781
        %v5783 = vpop.f32.mrb[0].mxu0
        %v5784 = vadd.f32 0.0, %v5783
        %v5785 = vpop.f32.mrb[0].mxu0
        %v5786 = vadd.f32 0.0, %v5785
        %5787 = vmatprep.mubr.bf16.mxu0 0
        %5788 = vmatmul.mubr.bf16.gmra.mrb[0].mxu0 %v5690
        %v5789 = vpop.f32.mrb[0].mxu0
        %v5790 = vadd.f32 0.0, %v5789
        %v5791 = vpop.f32.mrb[0].mxu0
        %v5792 = vadd.f32 0.0, %v5791
        %v5793 = vpop.f32.mrb[0].mxu0
        %v5794 = vadd.f32 0.0, %v5793
        %v5795 = vpop.f32.mrb[0].mxu0
        %v5796 = vadd.f32 0.0, %v5795
        %5797 = vmatprep.mubr.bf16.mxu0 0
        %5798 = vmatmul.mubr.bf16.gmra.mrb[0].mxu0 %v5693
        %v5799 = vpop.f32.mrb[0].mxu0
        %v5800 = vadd.f32 0.0, %v5799
        %v5801 = vpop.f32.mrb[0].mxu0
        %v5802 = vadd.f32 0.0, %v5801
        %v5803 = vpop.f32.mrb[0].mxu0
        %v5804 = vadd.f32 0.0, %v5803
        %v5805 = vpop.f32.mrb[0].mxu0
        %v5806 = vadd.f32 0.0, %v5805
        %5807 = vdwg.mxu0
        %v5808 = vadd.f32 %v1964, %v5730
        %v5809 = vadd.f32 %v1966, %v5732
        %v5810 = vadd.f32 %v1968, %v5734
        %v5811 = vadd.f32 %v1970, %v5736
        %v5812 = vadd.f32 %v1974, %v5740
        %v5813 = vadd.f32 %v1976, %v5742
        %v5814 = vadd.f32 %v1978, %v5744
        %v5815 = vadd.f32 %v1980, %v5746
        %v5816 = vadd.f32 %v1984, %v5750
        %v5817 = vadd.f32 %v1986, %v5752
        %v5818 = vadd.f32 %v1988, %v5754
        %v5819 = vadd.f32 %v1990, %v5756
        %v5820 = vadd.f32 %v1994, %v5760
        %v5821 = vadd.f32 %v1996, %v5762
        %v5822 = vadd.f32 %v1998, %v5764
        %v5823 = vadd.f32 %v2000, %v5766
        %v5824 = vadd.f32 %v2004, %v5770
        %v5825 = vadd.f32 %v2006, %v5772
        %v5826 = vadd.f32 %v2008, %v5774
        %v5827 = vadd.f32 %v2010, %v5776
        %v5828 = vadd.f32 %v2014, %v5780
        %v5829 = vadd.f32 %v2016, %v5782
        %v5830 = vadd.f32 %v2018, %v5784
        %v5831 = vadd.f32 %v2020, %v5786
        %v5832 = vadd.f32 %v2024, %v5790
        %v5833 = vadd.f32 %v2026, %v5792
        %v5834 = vadd.f32 %v2028, %v5794
        %v5835 = vadd.f32 %v2030, %v5796
        %v5836 = vadd.f32 %v2034, %v5800
        %v5837 = vadd.f32 %v2036, %v5802
        %v5838 = vadd.f32 %v2038, %v5804
        %v5839 = vadd.f32 %v2040, %v5806
        %v5840 = vmul.f32 %v5808, 0.5
        %v5841 = vmul.f32 %v5809, 0.5
        %v5842 = vmul.f32 %v5810, 0.5
        %v5843 = vmul.f32 %v5811, 0.5
        %v5844 = vmul.f32 %v5812, 0.5
        %v5845 = vmul.f32 %v5813, 0.5
        %v5846 = vmul.f32 %v5814, 0.5
        %v5847 = vmul.f32 %v5815, 0.5
        %v5848 = vmul.f32 %v5816, 0.5
        %v5849 = vmul.f32 %v5817, 0.5
        %v5850 = vmul.f32 %v5818, 0.5
        %v5851 = vmul.f32 %v5819, 0.5
        %v5852 = vmul.f32 %v5820, 0.5
        %v5853 = vmul.f32 %v5821, 0.5
        %v5854 = vmul.f32 %v5822, 0.5
        %v5855 = vmul.f32 %v5823, 0.5
        %v5856 = vmul.f32 %v5824, 0.5
        %v5857 = vmul.f32 %v5825, 0.5
        %v5858 = vmul.f32 %v5826, 0.5
        %v5859 = vmul.f32 %v5827, 0.5
        %v5860 = vmul.f32 %v5828, 0.5
        %v5861 = vmul.f32 %v5829, 0.5
        %v5862 = vmul.f32 %v5830, 0.5
        %v5863 = vmul.f32 %v5831, 0.5
        %v5864 = vmul.f32 %v5832, 0.5
        %v5865 = vmul.f32 %v5833, 0.5
        %v5866 = vmul.f32 %v5834, 0.5
        %v5867 = vmul.f32 %v5835, 0.5
        %v5868 = vmul.f32 %v5836, 0.5
        %v5869 = vmul.f32 %v5837, 0.5
        %v5870 = vmul.f32 %v5838, 0.5
        %v5871 = vmul.f32 %v5839, 0.5
        %v5872 = vsel %vm2741, %v5808, %v5840
        %v5873 = vsel %vm2742, %v5809, %v5841
        %v5874 = vsel %vm2741, %v5810, %v5842
        %v5875 = vsel %vm2742, %v5811, %v5843
        %v5876 = vsel %vm2741, %v5812, %v5844
        %v5877 = vsel %vm2742, %v5813, %v5845
        %v5878 = vsel %vm2741, %v5814, %v5846
        %v5879 = vsel %vm2742, %v5815, %v5847
        %v5880 = vsel %vm2741, %v5816, %v5848
        %v5881 = vsel %vm2742, %v5817, %v5849
        %v5882 = vsel %vm2741, %v5818, %v5850
        %v5883 = vsel %vm2742, %v5819, %v5851
        %v5884 = vsel %vm2741, %v5820, %v5852
        %v5885 = vsel %vm2742, %v5821, %v5853
        %v5886 = vsel %vm2741, %v5822, %v5854
        %v5887 = vsel %vm2742, %v5823, %v5855
        %v5888 = vsel %vm2741, %v5824, %v5856
        %v5889 = vsel %vm2742, %v5825, %v5857
        %v5890 = vsel %vm2741, %v5826, %v5858
        %v5891 = vsel %vm2742, %v5827, %v5859
        %v5892 = vsel %vm2741, %v5828, %v5860
        %v5893 = vsel %vm2742, %v5829, %v5861
        %v5894 = vsel %vm2741, %v5830, %v5862
        %v5895 = vsel %vm2742, %v5831, %v5863
        %v5896 = vsel %vm2741, %v5832, %v5864
        %v5897 = vsel %vm2742, %v5833, %v5865
        %v5898 = vsel %vm2741, %v5834, %v5866
        %v5899 = vsel %vm2742, %v5835, %v5867
        %v5900 = vsel %vm2741, %v5836, %v5868
        %v5901 = vsel %vm2742, %v5837, %v5869
        %v5902 = vsel %vm2741, %v5838, %v5870
        %v5903 = vsel %vm2742, %v5839, %v5871
        %v5904 = vtanh.pop %v5872
        %v5905 = vtanh.pop %v5873
        %v5906 = vtanh.pop %v5874
        %v5907 = vtanh.pop %v5875
        %v5908 = vtanh.pop %v5876
        %v5909 = vtanh.pop %v5877
        %v5910 = vtanh.pop %v5878
        %v5911 = vtanh.pop %v5879
        %v5912 = vtanh.pop %v5880
        %v5913 = vtanh.pop %v5881
        %v5914 = vtanh.pop %v5882
        %v5915 = vtanh.pop %v5883
        %v5916 = vtanh.pop %v5884
        %v5917 = vtanh.pop %v5885
        %v5918 = vtanh.pop %v5886
        %v5919 = vtanh.pop %v5887
        %v5920 = vtanh.pop %v5888
        %v5921 = vtanh.pop %v5889
        %v5922 = vtanh.pop %v5890
        %v5923 = vtanh.pop %v5891
        %v5924 = vtanh.pop %v5892
        %v5925 = vtanh.pop %v5893
        %v5926 = vtanh.pop %v5894
        %v5927 = vtanh.pop %v5895
        %v5928 = vtanh.pop %v5896
        %v5929 = vtanh.pop %v5897
        %v5930 = vtanh.pop %v5898
        %v5931 = vtanh.pop %v5899
        %v5932 = vtanh.pop %v5900
        %v5933 = vtanh.pop %v5901
        %v5934 = vtanh.pop %v5902
        %v5935 = vtanh.pop %v5903
        %v5936 = vmul.f32 %v5904, 0.5
        %v5937 = vmul.f32 %v5905, 0.5
        %v5938 = vmul.f32 %v5906, 0.5
        %v5939 = vmul.f32 %v5907, 0.5
        %v5940 = vmul.f32 %v5908, 0.5
        %v5941 = vmul.f32 %v5909, 0.5
        %v5942 = vmul.f32 %v5910, 0.5
        %v5943 = vmul.f32 %v5911, 0.5
        %v5944 = vmul.f32 %v5912, 0.5
        %v5945 = vmul.f32 %v5913, 0.5
        %v5946 = vmul.f32 %v5914, 0.5
        %v5947 = vmul.f32 %v5915, 0.5
        %v5948 = vmul.f32 %v5916, 0.5
        %v5949 = vmul.f32 %v5917, 0.5
        %v5950 = vmul.f32 %v5918, 0.5
        %v5951 = vmul.f32 %v5919, 0.5
        %v5952 = vmul.f32 %v5920, 0.5
        %v5953 = vmul.f32 %v5921, 0.5
        %v5954 = vmul.f32 %v5922, 0.5
        %v5955 = vmul.f32 %v5923, 0.5
        %v5956 = vmul.f32 %v5924, 0.5
        %v5957 = vmul.f32 %v5925, 0.5
        %v5958 = vmul.f32 %v5926, 0.5
        %v5959 = vmul.f32 %v5927, 0.5
        %v5960 = vmul.f32 %v5928, 0.5
        %v5961 = vmul.f32 %v5929, 0.5
        %v5962 = vmul.f32 %v5930, 0.5
        %v5963 = vmul.f32 %v5931, 0.5
        %v5964 = vmul.f32 %v5932, 0.5
        %v5965 = vmul.f32 %v5933, 0.5
        %v5966 = vmul.f32 %v5934, 0.5
        %v5967 = vmul.f32 %v5935, 0.5
        %v5968 = vadd.f32 %v5936, 0.5
        %v5969 = vadd.f32 %v5937, 0.5
        %v5970 = vadd.f32 %v5938, 0.5
        %v5971 = vadd.f32 %v5939, 0.5
        %v5972 = vadd.f32 %v5940, 0.5
        %v5973 = vadd.f32 %v5941, 0.5
        %v5974 = vadd.f32 %v5942, 0.5
        %v5975 = vadd.f32 %v5943, 0.5
        %v5976 = vadd.f32 %v5944, 0.5
        %v5977 = vadd.f32 %v5945, 0.5
        %v5978 = vadd.f32 %v5946, 0.5
        %v5979 = vadd.f32 %v5947, 0.5
        %v5980 = vadd.f32 %v5948, 0.5
        %v5981 = vadd.f32 %v5949, 0.5
        %v5982 = vadd.f32 %v5950, 0.5
        %v5983 = vadd.f32 %v5951, 0.5
        %v5984 = vadd.f32 %v5952, 0.5
        %v5985 = vadd.f32 %v5953, 0.5
        %v5986 = vadd.f32 %v5954, 0.5
        %v5987 = vadd.f32 %v5955, 0.5
        %v5988 = vadd.f32 %v5956, 0.5
        %v5989 = vadd.f32 %v5957, 0.5
        %v5990 = vadd.f32 %v5958, 0.5
        %v5991 = vadd.f32 %v5959, 0.5
        %v5992 = vadd.f32 %v5960, 0.5
        %v5993 = vadd.f32 %v5961, 0.5
        %v5994 = vadd.f32 %v5962, 0.5
        %v5995 = vadd.f32 %v5963, 0.5
        %v5996 = vadd.f32 %v5964, 0.5
        %v5997 = vadd.f32 %v5965, 0.5
        %v5998 = vadd.f32 %v5966, 0.5
        %v5999 = vadd.f32 %v5967, 0.5
        %v6000 = vsel %vm2741, %v5904, %v5968
        %v6001 = vsel %vm2742, %v5905, %v5969
        %v6002 = vsel %vm2741, %v5906, %v5970
        %v6003 = vsel %vm2742, %v5907, %v5971
        %v6004 = vsel %vm2741, %v5908, %v5972
        %v6005 = vsel %vm2742, %v5909, %v5973
        %v6006 = vsel %vm2741, %v5910, %v5974
        %v6007 = vsel %vm2742, %v5911, %v5975
        %v6008 = vsel %vm2741, %v5912, %v5976
        %v6009 = vsel %vm2742, %v5913, %v5977
        %v6010 = vsel %vm2741, %v5914, %v5978
        %v6011 = vsel %vm2742, %v5915, %v5979
        %v6012 = vsel %vm2741, %v5916, %v5980
        %v6013 = vsel %vm2742, %v5917, %v5981
        %v6014 = vsel %vm2741, %v5918, %v5982
        %v6015 = vsel %vm2742, %v5919, %v5983
        %v6016 = vsel %vm2741, %v5920, %v5984
        %v6017 = vsel %vm2742, %v5921, %v5985
        %v6018 = vsel %vm2741, %v5922, %v5986
        %v6019 = vsel %vm2742, %v5923, %v5987
        %v6020 = vsel %vm2741, %v5924, %v5988
        %v6021 = vsel %vm2742, %v5925, %v5989
        %v6022 = vsel %vm2741, %v5926, %v5990
        %v6023 = vsel %vm2742, %v5927, %v5991
        %v6024 = vsel %vm2741, %v5928, %v5992
        %v6025 = vsel %vm2742, %v5929, %v5993
        %v6026 = vsel %vm2741, %v5930, %v5994
        %v6027 = vsel %vm2742, %v5931, %v5995
        %v6028 = vsel %vm2741, %v5932, %v5996
        %v6029 = vsel %vm2742, %v5933, %v5997
        %v6030 = vsel %vm2741, %v5934, %v5998
        %v6031 = vsel %vm2742, %v5935, %v5999
        %v6032 = vmul.f32 %v6000, %v5575
        %v6033 = vmul.f32 %v6002, %v5576
        %v6034 = vmul.f32 %v6004, %v5577
        %v6035 = vmul.f32 %v6006, %v5578
        %v6036 = vmul.f32 %v6008, %v5579
        %v6037 = vmul.f32 %v6010, %v5580
        %v6038 = vmul.f32 %v6012, %v5581
        %v6039 = vmul.f32 %v6014, %v5582
        %v6040 = vmul.f32 %v6016, %v5583
        %v6041 = vmul.f32 %v6018, %v5584
        %v6042 = vmul.f32 %v6020, %v5585
        %v6043 = vmul.f32 %v6022, %v5586
        %v6044 = vmul.f32 %v6024, %v5587
        %v6045 = vmul.f32 %v6026, %v5588
        %v6046 = vmul.f32 %v6028, %v5589
        %v6047 = vmul.f32 %v6030, %v5590
        %v6048 = vmul.f32 %v6000, %v6001
        %v6049 = vmul.f32 %v6002, %v6003
        %v6050 = vmul.f32 %v6004, %v6005
        %v6051 = vmul.f32 %v6006, %v6007
        %v6052 = vmul.f32 %v6008, %v6009
        %v6053 = vmul.f32 %v6010, %v6011
        %v6054 = vmul.f32 %v6012, %v6013
        %v6055 = vmul.f32 %v6014, %v6015
        %v6056 = vmul.f32 %v6016, %v6017
        %v6057 = vmul.f32 %v6018, %v6019
        %v6058 = vmul.f32 %v6020, %v6021
        %v6059 = vmul.f32 %v6022, %v6023
        %v6060 = vmul.f32 %v6024, %v6025
        %v6061 = vmul.f32 %v6026, %v6027
        %v6062 = vmul.f32 %v6028, %v6029
        %v6063 = vmul.f32 %v6030, %v6031
        %6080 = vrot.lane.b32.xlu0 %v6048, 64
        %v6081 = vpop.permute.xlu0 %6080
        %6082 = vrot.lane.b32.xlu0 %v6049, 64
        %v6083 = vpop.permute.xlu0 %6082
        %6084 = vrot.lane.b32.xlu0 %v6050, 64
        %v6085 = vpop.permute.xlu0 %6084
        %6086 = vrot.lane.b32.xlu0 %v6051, 64
        %v6087 = vpop.permute.xlu0 %6086
        %6088 = vrot.lane.b32.xlu0 %v6052, 64
        %v6089 = vpop.permute.xlu0 %6088
        %6090 = vrot.lane.b32.xlu0 %v6053, 64
        %v6091 = vpop.permute.xlu0 %6090
        %6092 = vrot.lane.b32.xlu0 %v6054, 64
        %v6093 = vpop.permute.xlu0 %6092
        %6094 = vrot.lane.b32.xlu0 %v6055, 64
        %v6095 = vpop.permute.xlu0 %6094
        %6096 = vrot.lane.b32.xlu0 %v6056, 64
        %v6097 = vpop.permute.xlu0 %6096
        %6098 = vrot.lane.b32.xlu0 %v6057, 64
        %v6099 = vpop.permute.xlu0 %6098
        %6100 = vrot.lane.b32.xlu0 %v6058, 64
        %v6101 = vpop.permute.xlu0 %6100
        %6102 = vrot.lane.b32.xlu0 %v6059, 64
        %v6103 = vpop.permute.xlu0 %6102
        %6104 = vrot.lane.b32.xlu0 %v6060, 64
        %v6105 = vpop.permute.xlu0 %6104
        %6106 = vrot.lane.b32.xlu0 %v6061, 64
        %v6107 = vpop.permute.xlu0 %6106
        %6108 = vrot.lane.b32.xlu0 %v6062, 64
        %v6109 = vpop.permute.xlu0 %6108
        %6110 = vrot.lane.b32.xlu0 %v6063, 64
        %v6111 = vpop.permute.xlu0 %6110
        %v6128 = vadd.f32 %v6032, %v6081
        %v6129 = vadd.f32 %v6033, %v6083
        %v6130 = vadd.f32 %v6034, %v6085
        %v6131 = vadd.f32 %v6035, %v6087
        %v6132 = vadd.f32 %v6036, %v6089
        %v6133 = vadd.f32 %v6037, %v6091
        %v6134 = vadd.f32 %v6038, %v6093
        %v6135 = vadd.f32 %v6039, %v6095
        %v6136 = vadd.f32 %v6040, %v6097
        %v6137 = vadd.f32 %v6041, %v6099
        %v6138 = vadd.f32 %v6042, %v6101
        %v6139 = vadd.f32 %v6043, %v6103
        %v6140 = vadd.f32 %v6044, %v6105
        %v6141 = vadd.f32 %v6045, %v6107
        %v6142 = vadd.f32 %v6046, %v6109
        %v6143 = vadd.f32 %v6047, %v6111
        %v6144 = vtanh.pop %v6128
        %v6145 = vtanh.pop %v6129
        %v6146 = vtanh.pop %v6130
        %v6147 = vtanh.pop %v6131
        %v6148 = vtanh.pop %v6132
        %v6149 = vtanh.pop %v6133
        %v6150 = vtanh.pop %v6134
        %v6151 = vtanh.pop %v6135
        %v6152 = vtanh.pop %v6136
        %v6153 = vtanh.pop %v6137
        %v6154 = vtanh.pop %v6138
        %v6155 = vtanh.pop %v6139
        %v6156 = vtanh.pop %v6140
        %v6157 = vtanh.pop %v6141
        %v6158 = vtanh.pop %v6142
        %v6159 = vtanh.pop %v6143
        %v6160 = vmul.f32 %v6001, %v6144
        %v6161 = vmul.f32 %v6003, %v6145
        %v6162 = vmul.f32 %v6005, %v6146
        %v6163 = vmul.f32 %v6007, %v6147
        %v6164 = vmul.f32 %v6009, %v6148
        %v6165 = vmul.f32 %v6011, %v6149
        %v6166 = vmul.f32 %v6013, %v6150
        %v6167 = vmul.f32 %v6015, %v6151
        %v6168 = vmul.f32 %v6017, %v6152
        %v6169 = vmul.f32 %v6019, %v6153
        %v6170 = vmul.f32 %v6021, %v6154
        %v6171 = vmul.f32 %v6023, %v6155
        %v6172 = vmul.f32 %v6025, %v6156
        %v6173 = vmul.f32 %v6027, %v6157
        %v6174 = vmul.f32 %v6029, %v6158
        %v6175 = vmul.f32 %v6031, %v6159
        %v6176 = vadd.f32 %v5623, %v6160
        %v6177 = vadd.f32 %v5624, %v6161
        %v6178 = vadd.f32 %v5625, %v6162
        %v6179 = vadd.f32 %v5626, %v6163
        %v6180 = vadd.f32 %v5627, %v6164
        %v6181 = vadd.f32 %v5628, %v6165
        %v6182 = vadd.f32 %v5629, %v6166
        %v6183 = vadd.f32 %v5630, %v6167
        %v6184 = vadd.f32 %v5631, %v6168
        %v6185 = vadd.f32 %v5632, %v6169
        %v6186 = vadd.f32 %v5633, %v6170
        %v6187 = vadd.f32 %v5634, %v6171
        %v6188 = vadd.f32 %v5635, %v6172
        %v6189 = vadd.f32 %v5636, %v6173
        %v6190 = vadd.f32 %v5637, %v6174
        %v6191 = vadd.f32 %v5638, %v6175
        %v6192 = vmul.f32 %v6176, 0.16666667
        %v6193 = vmul.f32 %v6177, 0.16666667
        %v6194 = vmul.f32 %v6178, 0.16666667
        %v6195 = vmul.f32 %v6179, 0.16666667
        %v6196 = vmul.f32 %v6180, 0.16666667
        %v6197 = vmul.f32 %v6181, 0.16666667
        %v6198 = vmul.f32 %v6182, 0.16666667
        %v6199 = vmul.f32 %v6183, 0.16666667
        %v6200 = vmul.f32 %v6184, 0.16666667
        %v6201 = vmul.f32 %v6185, 0.16666667
        %v6202 = vmul.f32 %v6186, 0.16666667
        %v6203 = vmul.f32 %v6187, 0.16666667
        %v6204 = vmul.f32 %v6188, 0.16666667
        %v6205 = vmul.f32 %v6189, 0.16666667
        %v6206 = vmul.f32 %v6190, 0.16666667
        %v6207 = vmul.f32 %v6191, 0.16666667
        %v6208 = vld [vmem:[%s6] sm:$0x1]
        %s6209 = sld [smem:[#allocation2]]
        %v6211 = vlaneseq
        %v6212 = vshrl.u32 %v6211, 7
        %v6213 = vsub.s32 0, %v6212
        %v6214 = vrot.slane %v6208, %v6213
        %v6216 = vmul.f32 %v927, %v6214
        %v6217 = vmul.f32 %v928, %v6214
        %v6218 = vmul.f32 %v929, %v6214
        %v6219 = vmul.f32 %v930, %v6214
        %v6220 = vmul.f32 %v931, %v6214
        %v6221 = vmul.f32 %v932, %v6214
        %v6222 = vmul.f32 %v933, %v6214
        %v6223 = vmul.f32 %v934, %v6214
        %v6224 = vmul.f32 %v935, %v6214
        %v6225 = vmul.f32 %v936, %v6214
        %v6226 = vmul.f32 %v937, %v6214
        %v6227 = vmul.f32 %v938, %v6214
        %v6228 = vmul.f32 %v939, %v6214
        %v6229 = vmul.f32 %v940, %v6214
        %v6230 = vmul.f32 %v941, %v6214
        %v6231 = vmul.f32 %v942, %v6214
        %v6232 = vsel %vm1228, %v6216, 0.0
        %6233 = vadd.xlane.f32.xlu0 %v6232
        %v6234 = vpop.xlane.xlu0 %6233
        %v6235 = vsel %vm1228, %v6217, 0.0
        %6236 = vadd.xlane.f32.xlu0 %v6235
        %v6237 = vpop.xlane.xlu0 %6236
        %v6238 = vsel %vm1228, %v6218, 0.0
        %6239 = vadd.xlane.f32.xlu0 %v6238
        %v6240 = vpop.xlane.xlu0 %6239
        %v6241 = vsel %vm1228, %v6219, 0.0
        %6242 = vadd.xlane.f32.xlu0 %v6241
        %v6243 = vpop.xlane.xlu0 %6242
        %v6244 = vsel %vm1228, %v6220, 0.0
        %6245 = vadd.xlane.f32.xlu0 %v6244
        %v6246 = vpop.xlane.xlu0 %6245
        %v6247 = vsel %vm1228, %v6221, 0.0
        %6248 = vadd.xlane.f32.xlu0 %v6247
        %v6249 = vpop.xlane.xlu0 %6248
        %v6250 = vsel %vm1228, %v6222, 0.0
        %6251 = vadd.xlane.f32.xlu0 %v6250
        %v6252 = vpop.xlane.xlu0 %6251
        %v6253 = vsel %vm1228, %v6223, 0.0
        %6254 = vadd.xlane.f32.xlu0 %v6253
        %v6255 = vpop.xlane.xlu0 %6254
        %v6256 = vsel %vm1228, %v6224, 0.0
        %6257 = vadd.xlane.f32.xlu0 %v6256
        %v6258 = vpop.xlane.xlu0 %6257
        %v6259 = vsel %vm1228, %v6225, 0.0
        %6260 = vadd.xlane.f32.xlu0 %v6259
        %v6261 = vpop.xlane.xlu0 %6260
        %v6262 = vsel %vm1228, %v6226, 0.0
        %6263 = vadd.xlane.f32.xlu0 %v6262
        %v6264 = vpop.xlane.xlu0 %6263
        %v6265 = vsel %vm1228, %v6227, 0.0
        %6266 = vadd.xlane.f32.xlu0 %v6265
        %v6267 = vpop.xlane.xlu0 %6266
        %v6268 = vsel %vm1228, %v6228, 0.0
        %6269 = vadd.xlane.f32.xlu0 %v6268
        %v6270 = vpop.xlane.xlu0 %6269
        %v6271 = vsel %vm1228, %v6229, 0.0
        %6272 = vadd.xlane.f32.xlu0 %v6271
        %v6273 = vpop.xlane.xlu0 %6272
        %v6274 = vsel %vm1228, %v6230, 0.0
        %6275 = vadd.xlane.f32.xlu0 %v6274
        %v6276 = vpop.xlane.xlu0 %6275
        %v6277 = vsel %vm1228, %v6231, 0.0
        %6278 = vadd.xlane.f32.xlu0 %v6277
        %v6279 = vpop.xlane.xlu0 %6278
        %6280 = vrot.lane.b32.xlu0 %v6214, 32
        %v6281 = vpop.permute.xlu0 %6280
        %v6283 = vmul.f32 %v6192, %v6281
        %v6284 = vmul.f32 %v6193, %v6281
        %v6285 = vmul.f32 %v6194, %v6281
        %v6286 = vmul.f32 %v6195, %v6281
        %v6287 = vmul.f32 %v6196, %v6281
        %v6288 = vmul.f32 %v6197, %v6281
        %v6289 = vmul.f32 %v6198, %v6281
        %v6290 = vmul.f32 %v6199, %v6281
        %v6291 = vmul.f32 %v6200, %v6281
        %v6292 = vmul.f32 %v6201, %v6281
        %v6293 = vmul.f32 %v6202, %v6281
        %v6294 = vmul.f32 %v6203, %v6281
        %v6295 = vmul.f32 %v6204, %v6281
        %v6296 = vmul.f32 %v6205, %v6281
        %v6297 = vmul.f32 %v6206, %v6281
        %v6298 = vmul.f32 %v6207, %v6281
        %6315 = vrot.lane.b32.xlu0 %v6283, 64
        %v6316 = vpop.permute.xlu0 %6315
        %6317 = vrot.lane.b32.xlu0 %v6284, 64
        %v6318 = vpop.permute.xlu0 %6317
        %6319 = vrot.lane.b32.xlu0 %v6285, 64
        %v6320 = vpop.permute.xlu0 %6319
        %6321 = vrot.lane.b32.xlu0 %v6286, 64
        %v6322 = vpop.permute.xlu0 %6321
        %6323 = vrot.lane.b32.xlu0 %v6287, 64
        %v6324 = vpop.permute.xlu0 %6323
        %6325 = vrot.lane.b32.xlu0 %v6288, 64
        %v6326 = vpop.permute.xlu0 %6325
        %6327 = vrot.lane.b32.xlu0 %v6289, 64
        %v6328 = vpop.permute.xlu0 %6327
        %6329 = vrot.lane.b32.xlu0 %v6290, 64
        %v6330 = vpop.permute.xlu0 %6329
        %6331 = vrot.lane.b32.xlu0 %v6291, 64
        %v6332 = vpop.permute.xlu0 %6331
        %6333 = vrot.lane.b32.xlu0 %v6292, 64
        %v6334 = vpop.permute.xlu0 %6333
        %6335 = vrot.lane.b32.xlu0 %v6293, 64
        %v6336 = vpop.permute.xlu0 %6335
        %6337 = vrot.lane.b32.xlu0 %v6294, 64
        %v6338 = vpop.permute.xlu0 %6337
        %6339 = vrot.lane.b32.xlu0 %v6295, 64
        %v6340 = vpop.permute.xlu0 %6339
        %6341 = vrot.lane.b32.xlu0 %v6296, 64
        %v6342 = vpop.permute.xlu0 %6341
        %6343 = vrot.lane.b32.xlu0 %v6297, 64
        %v6344 = vpop.permute.xlu0 %6343
        %6345 = vrot.lane.b32.xlu0 %v6298, 64
        %v6346 = vpop.permute.xlu0 %6345
        %v6363 = vsel %vm1228, %v6316, 0.0
        %6364 = vadd.xlane.f32.xlu0 %v6363
        %v6365 = vpop.xlane.xlu0 %6364
        %v6366 = vsel %vm1228, %v6318, 0.0
        %6367 = vadd.xlane.f32.xlu0 %v6366
        %v6368 = vpop.xlane.xlu0 %6367
        %v6369 = vsel %vm1228, %v6320, 0.0
        %6370 = vadd.xlane.f32.xlu0 %v6369
        %v6371 = vpop.xlane.xlu0 %6370
        %v6372 = vsel %vm1228, %v6322, 0.0
        %6373 = vadd.xlane.f32.xlu0 %v6372
        %v6374 = vpop.xlane.xlu0 %6373
        %v6375 = vsel %vm1228, %v6324, 0.0
        %6376 = vadd.xlane.f32.xlu0 %v6375
        %v6377 = vpop.xlane.xlu0 %6376
        %v6378 = vsel %vm1228, %v6326, 0.0
        %6379 = vadd.xlane.f32.xlu0 %v6378
        %v6380 = vpop.xlane.xlu0 %6379
        %v6381 = vsel %vm1228, %v6328, 0.0
        %6382 = vadd.xlane.f32.xlu0 %v6381
        %v6383 = vpop.xlane.xlu0 %6382
        %v6384 = vsel %vm1228, %v6330, 0.0
        %6385 = vadd.xlane.f32.xlu0 %v6384
        %v6386 = vpop.xlane.xlu0 %6385
        %v6387 = vsel %vm1228, %v6332, 0.0
        %6388 = vadd.xlane.f32.xlu0 %v6387
        %v6389 = vpop.xlane.xlu0 %6388
        %v6390 = vsel %vm1228, %v6334, 0.0
        %6391 = vadd.xlane.f32.xlu0 %v6390
        %v6392 = vpop.xlane.xlu0 %6391
        %v6393 = vsel %vm1228, %v6336, 0.0
        %6394 = vadd.xlane.f32.xlu0 %v6393
        %v6395 = vpop.xlane.xlu0 %6394
        %v6396 = vsel %vm1228, %v6338, 0.0
        %6397 = vadd.xlane.f32.xlu0 %v6396
        %v6398 = vpop.xlane.xlu0 %6397
        %v6399 = vsel %vm1228, %v6340, 0.0
        %6400 = vadd.xlane.f32.xlu0 %v6399
        %v6401 = vpop.xlane.xlu0 %6400
        %v6402 = vsel %vm1228, %v6342, 0.0
        %6403 = vadd.xlane.f32.xlu0 %v6402
        %v6404 = vpop.xlane.xlu0 %6403
        %v6405 = vsel %vm1228, %v6344, 0.0
        %6406 = vadd.xlane.f32.xlu0 %v6405
        %v6407 = vpop.xlane.xlu0 %6406
        %v6408 = vsel %vm1228, %v6346, 0.0
        %6409 = vadd.xlane.f32.xlu0 %v6408
        %v6410 = vpop.xlane.xlu0 %6409
        %v6411 = vadd.f32 %v6234, %v6365
        %v6412 = vadd.f32 %v6237, %v6368
        %v6413 = vadd.f32 %v6240, %v6371
        %v6414 = vadd.f32 %v6243, %v6374
        %v6415 = vadd.f32 %v6246, %v6377
        %v6416 = vadd.f32 %v6249, %v6380
        %v6417 = vadd.f32 %v6252, %v6383
        %v6418 = vadd.f32 %v6255, %v6386
        %v6419 = vadd.f32 %v6258, %v6389
        %v6420 = vadd.f32 %v6261, %v6392
        %v6421 = vadd.f32 %v6264, %v6395
        %v6422 = vadd.f32 %v6267, %v6398
        %v6423 = vadd.f32 %v6270, %v6401
        %v6424 = vadd.f32 %v6273, %v6404
        %v6425 = vadd.f32 %v6276, %v6407
        %v6426 = vadd.f32 %v6279, %v6410
        %v6427 = vstv %s6209
        %v6428 = vadd.f32 %v6411, %v6427
        %v6429 = vadd.f32 %v6412, %v6427
        %v6430 = vadd.f32 %v6413, %v6427
        %v6431 = vadd.f32 %v6414, %v6427
        %v6432 = vadd.f32 %v6415, %v6427
        %v6433 = vadd.f32 %v6416, %v6427
        %v6434 = vadd.f32 %v6417, %v6427
        %v6435 = vadd.f32 %v6418, %v6427
        %v6436 = vadd.f32 %v6419, %v6427
        %v6437 = vadd.f32 %v6420, %v6427
        %v6438 = vadd.f32 %v6421, %v6427
        %v6439 = vadd.f32 %v6422, %v6427
        %v6440 = vadd.f32 %v6423, %v6427
        %v6441 = vadd.f32 %v6424, %v6427
        %v6442 = vadd.f32 %v6425, %v6427
        %v6443 = vadd.f32 %v6426, %v6427
        %vm6444 = vcmp.ge.f32.partialorder %v6428, 0.0
        %vm6445 = vcmp.ge.f32.partialorder %v6429, 0.0
        %vm6446 = vcmp.ge.f32.partialorder %v6430, 0.0
        %vm6447 = vcmp.ge.f32.partialorder %v6431, 0.0
        %vm6448 = vcmp.ge.f32.partialorder %v6432, 0.0
        %vm6449 = vcmp.ge.f32.partialorder %v6433, 0.0
        %vm6450 = vcmp.ge.f32.partialorder %v6434, 0.0
        %vm6451 = vcmp.ge.f32.partialorder %v6435, 0.0
        %vm6452 = vcmp.ge.f32.partialorder %v6436, 0.0
        %vm6453 = vcmp.ge.f32.partialorder %v6437, 0.0
        %vm6454 = vcmp.ge.f32.partialorder %v6438, 0.0
        %vm6455 = vcmp.ge.f32.partialorder %v6439, 0.0
        %vm6456 = vcmp.ge.f32.partialorder %v6440, 0.0
        %vm6457 = vcmp.ge.f32.partialorder %v6441, 0.0
        %vm6458 = vcmp.ge.f32.partialorder %v6442, 0.0
        %vm6459 = vcmp.ge.f32.partialorder %v6443, 0.0
        %v6460 = vmul.f32 %v6428, 0.01
        %v6461 = vmul.f32 %v6429, 0.01
        %v6462 = vmul.f32 %v6430, 0.01
        %v6463 = vmul.f32 %v6431, 0.01
        %v6464 = vmul.f32 %v6432, 0.01
        %v6465 = vmul.f32 %v6433, 0.01
        %v6466 = vmul.f32 %v6434, 0.01
        %v6467 = vmul.f32 %v6435, 0.01
        %v6468 = vmul.f32 %v6436, 0.01
        %v6469 = vmul.f32 %v6437, 0.01
        %v6470 = vmul.f32 %v6438, 0.01
        %v6471 = vmul.f32 %v6439, 0.01
        %v6472 = vmul.f32 %v6440, 0.01
        %v6473 = vmul.f32 %v6441, 0.01
        %v6474 = vmul.f32 %v6442, 0.01
        %v6475 = vmul.f32 %v6443, 0.01
        %v6476 = vsel %vm6444, %v6428, %v6460
        %v6477 = vsel %vm6445, %v6429, %v6461
        %v6478 = vsel %vm6446, %v6430, %v6462
        %v6479 = vsel %vm6447, %v6431, %v6463
        %v6480 = vsel %vm6448, %v6432, %v6464
        %v6481 = vsel %vm6449, %v6433, %v6465
        %v6482 = vsel %vm6450, %v6434, %v6466
        %v6483 = vsel %vm6451, %v6435, %v6467
        %v6484 = vsel %vm6452, %v6436, %v6468
        %v6485 = vsel %vm6453, %v6437, %v6469
        %v6486 = vsel %vm6454, %v6438, %v6470
        %v6487 = vsel %vm6455, %v6439, %v6471
        %v6488 = vsel %vm6456, %v6440, %v6472
        %v6489 = vsel %vm6457, %v6441, %v6473
        %v6490 = vsel %vm6458, %v6442, %v6474
        %v6491 = vsel %vm6459, %v6443, %v6475
        %6492 = vrot.lane.b32.xlu0 %v6214, 64
        %v6493 = vpop.permute.xlu0 %6492
        %v6495 = vmul.f32 %v5070, %v6493
        %v6496 = vmul.f32 %v5071, %v6493
        %v6497 = vmul.f32 %v5072, %v6493
        %v6498 = vmul.f32 %v5073, %v6493
        %v6499 = vmul.f32 %v5074, %v6493
        %v6500 = vmul.f32 %v5075, %v6493
        %v6501 = vmul.f32 %v5076, %v6493
        %v6502 = vmul.f32 %v5077, %v6493
        %v6503 = vmul.f32 %v5078, %v6493
        %v6504 = vmul.f32 %v5079, %v6493
        %v6505 = vmul.f32 %v5080, %v6493
        %v6506 = vmul.f32 %v5081, %v6493
        %v6507 = vmul.f32 %v5082, %v6493
        %v6508 = vmul.f32 %v5083, %v6493
        %v6509 = vmul.f32 %v5084, %v6493
        %v6510 = vmul.f32 %v5085, %v6493
        %6527 = vrot.lane.b32.xlu0 %v6495, 32
        %v6528 = vpop.permute.xlu0 %6527
        %6529 = vrot.lane.b32.xlu0 %v6496, 32
        %v6530 = vpop.permute.xlu0 %6529
        %6531 = vrot.lane.b32.xlu0 %v6497, 32
        %v6532 = vpop.permute.xlu0 %6531
        %6533 = vrot.lane.b32.xlu0 %v6498, 32
        %v6534 = vpop.permute.xlu0 %6533
        %6535 = vrot.lane.b32.xlu0 %v6499, 32
        %v6536 = vpop.permute.xlu0 %6535
        %6537 = vrot.lane.b32.xlu0 %v6500, 32
        %v6538 = vpop.permute.xlu0 %6537
        %6539 = vrot.lane.b32.xlu0 %v6501, 32
        %v6540 = vpop.permute.xlu0 %6539
        %6541 = vrot.lane.b32.xlu0 %v6502, 32
        %v6542 = vpop.permute.xlu0 %6541
        %6543 = vrot.lane.b32.xlu0 %v6503, 32
        %v6544 = vpop.permute.xlu0 %6543
        %6545 = vrot.lane.b32.xlu0 %v6504, 32
        %v6546 = vpop.permute.xlu0 %6545
        %6547 = vrot.lane.b32.xlu0 %v6505, 32
        %v6548 = vpop.permute.xlu0 %6547
        %6549 = vrot.lane.b32.xlu0 %v6506, 32
        %v6550 = vpop.permute.xlu0 %6549
        %6551 = vrot.lane.b32.xlu0 %v6507, 32
        %v6552 = vpop.permute.xlu0 %6551
        %6553 = vrot.lane.b32.xlu0 %v6508, 32
        %v6554 = vpop.permute.xlu0 %6553
        %6555 = vrot.lane.b32.xlu0 %v6509, 32
        %v6556 = vpop.permute.xlu0 %6555
        %6557 = vrot.lane.b32.xlu0 %v6510, 32
        %v6558 = vpop.permute.xlu0 %6557
        %v6575 = vsel %vm1228, %v6528, 0.0
        %6576 = vadd.xlane.f32.xlu0 %v6575
        %v6577 = vpop.xlane.xlu0 %6576
        %v6578 = vsel %vm1228, %v6530, 0.0
        %6579 = vadd.xlane.f32.xlu0 %v6578
        %v6580 = vpop.xlane.xlu0 %6579
        %v6581 = vsel %vm1228, %v6532, 0.0
        %6582 = vadd.xlane.f32.xlu0 %v6581
        %v6583 = vpop.xlane.xlu0 %6582
        %v6584 = vsel %vm1228, %v6534, 0.0
        %6585 = vadd.xlane.f32.xlu0 %v6584
        %v6586 = vpop.xlane.xlu0 %6585
        %v6587 = vsel %vm1228, %v6536, 0.0
        %6588 = vadd.xlane.f32.xlu0 %v6587
        %v6589 = vpop.xlane.xlu0 %6588
        %v6590 = vsel %vm1228, %v6538, 0.0
        %6591 = vadd.xlane.f32.xlu0 %v6590
        %v6592 = vpop.xlane.xlu0 %6591
        %v6593 = vsel %vm1228, %v6540, 0.0
        %6594 = vadd.xlane.f32.xlu0 %v6593
        %v6595 = vpop.xlane.xlu0 %6594
        %v6596 = vsel %vm1228, %v6542, 0.0
        %6597 = vadd.xlane.f32.xlu0 %v6596
        %v6598 = vpop.xlane.xlu0 %6597
        %v6599 = vsel %vm1228, %v6544, 0.0
        %6600 = vadd.xlane.f32.xlu0 %v6599
        %v6601 = vpop.xlane.xlu0 %6600
        %v6602 = vsel %vm1228, %v6546, 0.0
        %6603 = vadd.xlane.f32.xlu0 %v6602
        %v6604 = vpop.xlane.xlu0 %6603
        %v6605 = vsel %vm1228, %v6548, 0.0
        %6606 = vadd.xlane.f32.xlu0 %v6605
        %v6607 = vpop.xlane.xlu0 %6606
        %v6608 = vsel %vm1228, %v6550, 0.0
        %6609 = vadd.xlane.f32.xlu0 %v6608
        %v6610 = vpop.xlane.xlu0 %6609
        %v6611 = vsel %vm1228, %v6552, 0.0
        %6612 = vadd.xlane.f32.xlu0 %v6611
        %v6613 = vpop.xlane.xlu0 %6612
        %v6614 = vsel %vm1228, %v6554, 0.0
        %6615 = vadd.xlane.f32.xlu0 %v6614
        %v6616 = vpop.xlane.xlu0 %6615
        %v6617 = vsel %vm1228, %v6556, 0.0
        %6618 = vadd.xlane.f32.xlu0 %v6617
        %v6619 = vpop.xlane.xlu0 %6618
        %v6620 = vsel %vm1228, %v6558, 0.0
        %6621 = vadd.xlane.f32.xlu0 %v6620
        %v6622 = vpop.xlane.xlu0 %6621
        %v6623 = vadd.f32 %v6234, %v6577
        %v6624 = vadd.f32 %v6237, %v6580
        %v6625 = vadd.f32 %v6240, %v6583
        %v6626 = vadd.f32 %v6243, %v6586
        %v6627 = vadd.f32 %v6246, %v6589
        %v6628 = vadd.f32 %v6249, %v6592
        %v6629 = vadd.f32 %v6252, %v6595
        %v6630 = vadd.f32 %v6255, %v6598
        %v6631 = vadd.f32 %v6258, %v6601
        %v6632 = vadd.f32 %v6261, %v6604
        %v6633 = vadd.f32 %v6264, %v6607
        %v6634 = vadd.f32 %v6267, %v6610
        %v6635 = vadd.f32 %v6270, %v6613
        %v6636 = vadd.f32 %v6273, %v6616
        %v6637 = vadd.f32 %v6276, %v6619
        %v6638 = vadd.f32 %v6279, %v6622
        %v6639 = vadd.f32 %v6623, %v6427
        %v6640 = vadd.f32 %v6624, %v6427
        %v6641 = vadd.f32 %v6625, %v6427
        %v6642 = vadd.f32 %v6626, %v6427
        %v6643 = vadd.f32 %v6627, %v6427
        %v6644 = vadd.f32 %v6628, %v6427
        %v6645 = vadd.f32 %v6629, %v6427
        %v6646 = vadd.f32 %v6630, %v6427
        %v6647 = vadd.f32 %v6631, %v6427
        %v6648 = vadd.f32 %v6632, %v6427
        %v6649 = vadd.f32 %v6633, %v6427
        %v6650 = vadd.f32 %v6634, %v6427
        %v6651 = vadd.f32 %v6635, %v6427
        %v6652 = vadd.f32 %v6636, %v6427
        %v6653 = vadd.f32 %v6637, %v6427
        %v6654 = vadd.f32 %v6638, %v6427
        %vm6655 = vcmp.ge.f32.partialorder %v6639, 0.0
        %vm6656 = vcmp.ge.f32.partialorder %v6640, 0.0
        %vm6657 = vcmp.ge.f32.partialorder %v6641, 0.0
        %vm6658 = vcmp.ge.f32.partialorder %v6642, 0.0
        %vm6659 = vcmp.ge.f32.partialorder %v6643, 0.0
        %vm6660 = vcmp.ge.f32.partialorder %v6644, 0.0
        %vm6661 = vcmp.ge.f32.partialorder %v6645, 0.0
        %vm6662 = vcmp.ge.f32.partialorder %v6646, 0.0
        %vm6663 = vcmp.ge.f32.partialorder %v6647, 0.0
        %vm6664 = vcmp.ge.f32.partialorder %v6648, 0.0
        %vm6665 = vcmp.ge.f32.partialorder %v6649, 0.0
        %vm6666 = vcmp.ge.f32.partialorder %v6650, 0.0
        %vm6667 = vcmp.ge.f32.partialorder %v6651, 0.0
        %vm6668 = vcmp.ge.f32.partialorder %v6652, 0.0
        %vm6669 = vcmp.ge.f32.partialorder %v6653, 0.0
        %vm6670 = vcmp.ge.f32.partialorder %v6654, 0.0
        %v6671 = vmul.f32 %v6639, 0.01
        %v6672 = vmul.f32 %v6640, 0.01
        %v6673 = vmul.f32 %v6641, 0.01
        %v6674 = vmul.f32 %v6642, 0.01
        %v6675 = vmul.f32 %v6643, 0.01
        %v6676 = vmul.f32 %v6644, 0.01
        %v6677 = vmul.f32 %v6645, 0.01
        %v6678 = vmul.f32 %v6646, 0.01
        %v6679 = vmul.f32 %v6647, 0.01
        %v6680 = vmul.f32 %v6648, 0.01
        %v6681 = vmul.f32 %v6649, 0.01
        %v6682 = vmul.f32 %v6650, 0.01
        %v6683 = vmul.f32 %v6651, 0.01
        %v6684 = vmul.f32 %v6652, 0.01
        %v6685 = vmul.f32 %v6653, 0.01
        %v6686 = vmul.f32 %v6654, 0.01
        %v6687 = vsel %vm6655, %v6639, %v6671
        %v6688 = vsel %vm6656, %v6640, %v6672
        %v6689 = vsel %vm6657, %v6641, %v6673
        %v6690 = vsel %vm6658, %v6642, %v6674
        %v6691 = vsel %vm6659, %v6643, %v6675
        %v6692 = vsel %vm6660, %v6644, %v6676
        %v6693 = vsel %vm6661, %v6645, %v6677
        %v6694 = vsel %vm6662, %v6646, %v6678
        %v6695 = vsel %vm6663, %v6647, %v6679
        %v6696 = vsel %vm6664, %v6648, %v6680
        %v6697 = vsel %vm6665, %v6649, %v6681
        %v6698 = vsel %vm6666, %v6650, %v6682
        %v6699 = vsel %vm6667, %v6651, %v6683
        %v6700 = vsel %vm6668, %v6652, %v6684
        %v6701 = vsel %vm6669, %v6653, %v6685
        %v6702 = vsel %vm6670, %v6654, %v6686
        %6703 = vrot.lane.b32.xlu0 %v6214, 96
        %v6704 = vpop.permute.xlu0 %6703
        %v6706 = vmul.f32 %v927, %v6704
        %v6707 = vmul.f32 %v928, %v6704
        %v6708 = vmul.f32 %v929, %v6704
        %v6709 = vmul.f32 %v930, %v6704
        %v6710 = vmul.f32 %v931, %v6704
        %v6711 = vmul.f32 %v932, %v6704
        %v6712 = vmul.f32 %v933, %v6704
        %v6713 = vmul.f32 %v934, %v6704
        %v6714 = vmul.f32 %v935, %v6704
        %v6715 = vmul.f32 %v936, %v6704
        %v6716 = vmul.f32 %v937, %v6704
        %v6717 = vmul.f32 %v938, %v6704
        %v6718 = vmul.f32 %v939, %v6704
        %v6719 = vmul.f32 %v940, %v6704
        %v6720 = vmul.f32 %v941, %v6704
        %v6721 = vmul.f32 %v942, %v6704
        %v6722 = vsel %vm1228, %v6706, 0.0
        %6723 = vadd.xlane.f32.xlu0 %v6722
        %v6724 = vpop.xlane.xlu0 %6723
        %v6725 = vsel %vm1228, %v6707, 0.0
        %6726 = vadd.xlane.f32.xlu0 %v6725
        %v6727 = vpop.xlane.xlu0 %6726
        %v6728 = vsel %vm1228, %v6708, 0.0
        %6729 = vadd.xlane.f32.xlu0 %v6728
        %v6730 = vpop.xlane.xlu0 %6729
        %v6731 = vsel %vm1228, %v6709, 0.0
        %6732 = vadd.xlane.f32.xlu0 %v6731
        %v6733 = vpop.xlane.xlu0 %6732
        %v6734 = vsel %vm1228, %v6710, 0.0
        %6735 = vadd.xlane.f32.xlu0 %v6734
        %v6736 = vpop.xlane.xlu0 %6735
        %v6737 = vsel %vm1228, %v6711, 0.0
        %6738 = vadd.xlane.f32.xlu0 %v6737
        %v6739 = vpop.xlane.xlu0 %6738
        %v6740 = vsel %vm1228, %v6712, 0.0
        %6741 = vadd.xlane.f32.xlu0 %v6740
        %v6742 = vpop.xlane.xlu0 %6741
        %v6743 = vsel %vm1228, %v6713, 0.0
        %6744 = vadd.xlane.f32.xlu0 %v6743
        %v6745 = vpop.xlane.xlu0 %6744
        %v6746 = vsel %vm1228, %v6714, 0.0
        %6747 = vadd.xlane.f32.xlu0 %v6746
        %v6748 = vpop.xlane.xlu0 %6747
        %v6749 = vsel %vm1228, %v6715, 0.0
        %6750 = vadd.xlane.f32.xlu0 %v6749
        %v6751 = vpop.xlane.xlu0 %6750
        %v6752 = vsel %vm1228, %v6716, 0.0
        %6753 = vadd.xlane.f32.xlu0 %v6752
        %v6754 = vpop.xlane.xlu0 %6753
        %v6755 = vsel %vm1228, %v6717, 0.0
        %6756 = vadd.xlane.f32.xlu0 %v6755
        %v6757 = vpop.xlane.xlu0 %6756
        %v6758 = vsel %vm1228, %v6718, 0.0
        %6759 = vadd.xlane.f32.xlu0 %v6758
        %v6760 = vpop.xlane.xlu0 %6759
        %v6761 = vsel %vm1228, %v6719, 0.0
        %6762 = vadd.xlane.f32.xlu0 %v6761
        %v6763 = vpop.xlane.xlu0 %6762
        %v6764 = vsel %vm1228, %v6720, 0.0
        %6765 = vadd.xlane.f32.xlu0 %v6764
        %v6766 = vpop.xlane.xlu0 %6765
        %v6767 = vsel %vm1228, %v6721, 0.0
        %6768 = vadd.xlane.f32.xlu0 %v6767
        %v6769 = vpop.xlane.xlu0 %6768
        %v6770 = vadd.f32 %v6234, %v6724
        %v6771 = vadd.f32 %v6237, %v6727
        %v6772 = vadd.f32 %v6240, %v6730
        %v6773 = vadd.f32 %v6243, %v6733
        %v6774 = vadd.f32 %v6246, %v6736
        %v6775 = vadd.f32 %v6249, %v6739
        %v6776 = vadd.f32 %v6252, %v6742
        %v6777 = vadd.f32 %v6255, %v6745
        %v6778 = vadd.f32 %v6258, %v6748
        %v6779 = vadd.f32 %v6261, %v6751
        %v6780 = vadd.f32 %v6264, %v6754
        %v6781 = vadd.f32 %v6267, %v6757
        %v6782 = vadd.f32 %v6270, %v6760
        %v6783 = vadd.f32 %v6273, %v6763
        %v6784 = vadd.f32 %v6276, %v6766
        %v6785 = vadd.f32 %v6279, %v6769
        %v6786 = vadd.f32 %v6770, %v6427
        %v6787 = vadd.f32 %v6771, %v6427
        %v6788 = vadd.f32 %v6772, %v6427
        %v6789 = vadd.f32 %v6773, %v6427
        %v6790 = vadd.f32 %v6774, %v6427
        %v6791 = vadd.f32 %v6775, %v6427
        %v6792 = vadd.f32 %v6776, %v6427
        %v6793 = vadd.f32 %v6777, %v6427
        %v6794 = vadd.f32 %v6778, %v6427
        %v6795 = vadd.f32 %v6779, %v6427
        %v6796 = vadd.f32 %v6780, %v6427
        %v6797 = vadd.f32 %v6781, %v6427
        %v6798 = vadd.f32 %v6782, %v6427
        %v6799 = vadd.f32 %v6783, %v6427
        %v6800 = vadd.f32 %v6784, %v6427
        %v6801 = vadd.f32 %v6785, %v6427
        %vm6802 = vcmp.ge.f32.partialorder %v6786, 0.0
        %vm6803 = vcmp.ge.f32.partialorder %v6787, 0.0
        %vm6804 = vcmp.ge.f32.partialorder %v6788, 0.0
        %vm6805 = vcmp.ge.f32.partialorder %v6789, 0.0
        %vm6806 = vcmp.ge.f32.partialorder %v6790, 0.0
        %vm6807 = vcmp.ge.f32.partialorder %v6791, 0.0
        %vm6808 = vcmp.ge.f32.partialorder %v6792, 0.0
        %vm6809 = vcmp.ge.f32.partialorder %v6793, 0.0
        %vm6810 = vcmp.ge.f32.partialorder %v6794, 0.0
        %vm6811 = vcmp.ge.f32.partialorder %v6795, 0.0
        %vm6812 = vcmp.ge.f32.partialorder %v6796, 0.0
        %vm6813 = vcmp.ge.f32.partialorder %v6797, 0.0
        %vm6814 = vcmp.ge.f32.partialorder %v6798, 0.0
        %vm6815 = vcmp.ge.f32.partialorder %v6799, 0.0
        %vm6816 = vcmp.ge.f32.partialorder %v6800, 0.0
        %vm6817 = vcmp.ge.f32.partialorder %v6801, 0.0
        %v6818 = vmul.f32 %v6786, 0.01
        %v6819 = vmul.f32 %v6787, 0.01
        %v6820 = vmul.f32 %v6788, 0.01
        %v6821 = vmul.f32 %v6789, 0.01
        %v6822 = vmul.f32 %v6790, 0.01
        %v6823 = vmul.f32 %v6791, 0.01
        %v6824 = vmul.f32 %v6792, 0.01
        %v6825 = vmul.f32 %v6793, 0.01
        %v6826 = vmul.f32 %v6794, 0.01
        %v6827 = vmul.f32 %v6795, 0.01
        %v6828 = vmul.f32 %v6796, 0.01
        %v6829 = vmul.f32 %v6797, 0.01
        %v6830 = vmul.f32 %v6798, 0.01
        %v6831 = vmul.f32 %v6799, 0.01
        %v6832 = vmul.f32 %v6800, 0.01
        %v6833 = vmul.f32 %v6801, 0.01
        %v6834 = vsel %vm6802, %v6786, %v6818
        %v6835 = vsel %vm6803, %v6787, %v6819
        %v6836 = vsel %vm6804, %v6788, %v6820
        %v6837 = vsel %vm6805, %v6789, %v6821
        %v6838 = vsel %vm6806, %v6790, %v6822
        %v6839 = vsel %vm6807, %v6791, %v6823
        %v6840 = vsel %vm6808, %v6792, %v6824
        %v6841 = vsel %vm6809, %v6793, %v6825
        %v6842 = vsel %vm6810, %v6794, %v6826
        %v6843 = vsel %vm6811, %v6795, %v6827
        %v6844 = vsel %vm6812, %v6796, %v6828
        %v6845 = vsel %vm6813, %v6797, %v6829
        %v6846 = vsel %vm6814, %v6798, %v6830
        %v6847 = vsel %vm6815, %v6799, %v6831
        %v6848 = vsel %vm6816, %v6800, %v6832
        %v6849 = vsel %vm6817, %v6801, %v6833
        %v6850 = vmax.f32 %v6476, %v6687
        %v6851 = vmax.f32 %v6477, %v6688
        %v6852 = vmax.f32 %v6478, %v6689
        %v6853 = vmax.f32 %v6479, %v6690
        %v6854 = vmax.f32 %v6480, %v6691
        %v6855 = vmax.f32 %v6481, %v6692
        %v6856 = vmax.f32 %v6482, %v6693
        %v6857 = vmax.f32 %v6483, %v6694
        %v6858 = vmax.f32 %v6484, %v6695
        %v6859 = vmax.f32 %v6485, %v6696
        %v6860 = vmax.f32 %v6486, %v6697
        %v6861 = vmax.f32 %v6487, %v6698
        %v6862 = vmax.f32 %v6488, %v6699
        %v6863 = vmax.f32 %v6489, %v6700
        %v6864 = vmax.f32 %v6490, %v6701
        %v6865 = vmax.f32 %v6491, %v6702
        %v6866 = vmax.f32 %v6850, %v6834
        %v6867 = vmax.f32 %v6851, %v6835
        %v6868 = vmax.f32 %v6852, %v6836
        %v6869 = vmax.f32 %v6853, %v6837
        %v6870 = vmax.f32 %v6854, %v6838
        %v6871 = vmax.f32 %v6855, %v6839
        %v6872 = vmax.f32 %v6856, %v6840
        %v6873 = vmax.f32 %v6857, %v6841
        %v6874 = vmax.f32 %v6858, %v6842
        %v6875 = vmax.f32 %v6859, %v6843
        %v6876 = vmax.f32 %v6860, %v6844
        %v6877 = vmax.f32 %v6861, %v6845
        %v6878 = vmax.f32 %v6862, %v6846
        %v6879 = vmax.f32 %v6863, %v6847
        %v6880 = vmax.f32 %v6864, %v6848
        %v6881 = vmax.f32 %v6865, %v6849
        %v6882 = vsub.f32 %v6476, %v6866
        %v6883 = vsub.f32 %v6477, %v6867
        %v6884 = vsub.f32 %v6478, %v6868
        %v6885 = vsub.f32 %v6479, %v6869
        %v6886 = vsub.f32 %v6480, %v6870
        %v6887 = vsub.f32 %v6481, %v6871
        %v6888 = vsub.f32 %v6482, %v6872
        %v6889 = vsub.f32 %v6483, %v6873
        %v6890 = vsub.f32 %v6484, %v6874
        %v6891 = vsub.f32 %v6485, %v6875
        %v6892 = vsub.f32 %v6486, %v6876
        %v6893 = vsub.f32 %v6487, %v6877
        %v6894 = vsub.f32 %v6488, %v6878
        %v6895 = vsub.f32 %v6489, %v6879
        %v6896 = vsub.f32 %v6490, %v6880
        %v6897 = vsub.f32 %v6491, %v6881
        %v6898 = vmul.f32 %v6882, 1.442695
        %v6899 = vpow.pop %v6898
        %v6900 = vmul.f32 %v6883, 1.442695
        %v6901 = vpow.pop %v6900
        %v6902 = vmul.f32 %v6884, 1.442695
        %v6903 = vpow.pop %v6902
        %v6904 = vmul.f32 %v6885, 1.442695
        %v6905 = vpow.pop %v6904
        %v6906 = vmul.f32 %v6886, 1.442695
        %v6907 = vpow.pop %v6906
        %v6908 = vmul.f32 %v6887, 1.442695
        %v6909 = vpow.pop %v6908
        %v6910 = vmul.f32 %v6888, 1.442695
        %v6911 = vpow.pop %v6910
        %v6912 = vmul.f32 %v6889, 1.442695
        %v6913 = vpow.pop %v6912
        %v6914 = vmul.f32 %v6890, 1.442695
        %v6915 = vpow.pop %v6914
        %v6916 = vmul.f32 %v6891, 1.442695
        %v6917 = vpow.pop %v6916
        %v6918 = vmul.f32 %v6892, 1.442695
        %v6919 = vpow.pop %v6918
        %v6920 = vmul.f32 %v6893, 1.442695
        %v6921 = vpow.pop %v6920
        %v6922 = vmul.f32 %v6894, 1.442695
        %v6923 = vpow.pop %v6922
        %v6924 = vmul.f32 %v6895, 1.442695
        %v6925 = vpow.pop %v6924
        %v6926 = vmul.f32 %v6896, 1.442695
        %v6927 = vpow.pop %v6926
        %v6928 = vmul.f32 %v6897, 1.442695
        %v6929 = vpow.pop %v6928
        %v6930 = vsub.f32 %v6687, %v6866
        %v6931 = vsub.f32 %v6688, %v6867
        %v6932 = vsub.f32 %v6689, %v6868
        %v6933 = vsub.f32 %v6690, %v6869
        %v6934 = vsub.f32 %v6691, %v6870
        %v6935 = vsub.f32 %v6692, %v6871
        %v6936 = vsub.f32 %v6693, %v6872
        %v6937 = vsub.f32 %v6694, %v6873
        %v6938 = vsub.f32 %v6695, %v6874
        %v6939 = vsub.f32 %v6696, %v6875
        %v6940 = vsub.f32 %v6697, %v6876
        %v6941 = vsub.f32 %v6698, %v6877
        %v6942 = vsub.f32 %v6699, %v6878
        %v6943 = vsub.f32 %v6700, %v6879
        %v6944 = vsub.f32 %v6701, %v6880
        %v6945 = vsub.f32 %v6702, %v6881
        %v6946 = vmul.f32 %v6930, 1.442695
        %v6947 = vpow.pop %v6946
        %v6948 = vmul.f32 %v6931, 1.442695
        %v6949 = vpow.pop %v6948
        %v6950 = vmul.f32 %v6932, 1.442695
        %v6951 = vpow.pop %v6950
        %v6952 = vmul.f32 %v6933, 1.442695
        %v6953 = vpow.pop %v6952
        %v6954 = vmul.f32 %v6934, 1.442695
        %v6955 = vpow.pop %v6954
        %v6956 = vmul.f32 %v6935, 1.442695
        %v6957 = vpow.pop %v6956
        %v6958 = vmul.f32 %v6936, 1.442695
        %v6959 = vpow.pop %v6958
        %v6960 = vmul.f32 %v6937, 1.442695
        %v6961 = vpow.pop %v6960
        %v6962 = vmul.f32 %v6938, 1.442695
        %v6963 = vpow.pop %v6962
        %v6964 = vmul.f32 %v6939, 1.442695
        %v6965 = vpow.pop %v6964
        %v6966 = vmul.f32 %v6940, 1.442695
        %v6967 = vpow.pop %v6966
        %v6968 = vmul.f32 %v6941, 1.442695
        %v6969 = vpow.pop %v6968
        %v6970 = vmul.f32 %v6942, 1.442695
        %v6971 = vpow.pop %v6970
        %v6972 = vmul.f32 %v6943, 1.442695
        %v6973 = vpow.pop %v6972
        %v6974 = vmul.f32 %v6944, 1.442695
        %v6975 = vpow.pop %v6974
        %v6976 = vmul.f32 %v6945, 1.442695
        %v6977 = vpow.pop %v6976
        %v6978 = vsub.f32 %v6834, %v6866
        %v6979 = vsub.f32 %v6835, %v6867
        %v6980 = vsub.f32 %v6836, %v6868
        %v6981 = vsub.f32 %v6837, %v6869
        %v6982 = vsub.f32 %v6838, %v6870
        %v6983 = vsub.f32 %v6839, %v6871
        %v6984 = vsub.f32 %v6840, %v6872
        %v6985 = vsub.f32 %v6841, %v6873
        %v6986 = vsub.f32 %v6842, %v6874
        %v6987 = vsub.f32 %v6843, %v6875
        %v6988 = vsub.f32 %v6844, %v6876
        %v6989 = vsub.f32 %v6845, %v6877
        %v6990 = vsub.f32 %v6846, %v6878
        %v6991 = vsub.f32 %v6847, %v6879
        %v6992 = vsub.f32 %v6848, %v6880
        %v6993 = vsub.f32 %v6849, %v6881
        %v6994 = vmul.f32 %v6978, 1.442695
        %v6995 = vpow.pop %v6994
        %v6996 = vmul.f32 %v6979, 1.442695
        %v6997 = vpow.pop %v6996
        %v6998 = vmul.f32 %v6980, 1.442695
        %v6999 = vpow.pop %v6998
        %v7000 = vmul.f32 %v6981, 1.442695
        %v7001 = vpow.pop %v7000
        %v7002 = vmul.f32 %v6982, 1.442695
        %v7003 = vpow.pop %v7002
        %v7004 = vmul.f32 %v6983, 1.442695
        %v7005 = vpow.pop %v7004
        %v7006 = vmul.f32 %v6984, 1.442695
        %v7007 = vpow.pop %v7006
        %v7008 = vmul.f32 %v6985, 1.442695
        %v7009 = vpow.pop %v7008
        %v7010 = vmul.f32 %v6986, 1.442695
        %v7011 = vpow.pop %v7010
        %v7012 = vmul.f32 %v6987, 1.442695
        %v7013 = vpow.pop %v7012
        %v7014 = vmul.f32 %v6988, 1.442695
        %v7015 = vpow.pop %v7014
        %v7016 = vmul.f32 %v6989, 1.442695
        %v7017 = vpow.pop %v7016
        %v7018 = vmul.f32 %v6990, 1.442695
        %v7019 = vpow.pop %v7018
        %v7020 = vmul.f32 %v6991, 1.442695
        %v7021 = vpow.pop %v7020
        %v7022 = vmul.f32 %v6992, 1.442695
        %v7023 = vpow.pop %v7022
        %v7024 = vmul.f32 %v6993, 1.442695
        %v7025 = vpow.pop %v7024
        %v7026 = vadd.f32 %v6899, %v6947
        %v7027 = vadd.f32 %v6901, %v6949
        %v7028 = vadd.f32 %v6903, %v6951
        %v7029 = vadd.f32 %v6905, %v6953
        %v7030 = vadd.f32 %v6907, %v6955
        %v7031 = vadd.f32 %v6909, %v6957
        %v7032 = vadd.f32 %v6911, %v6959
        %v7033 = vadd.f32 %v6913, %v6961
        %v7034 = vadd.f32 %v6915, %v6963
        %v7035 = vadd.f32 %v6917, %v6965
        %v7036 = vadd.f32 %v6919, %v6967
        %v7037 = vadd.f32 %v6921, %v6969
        %v7038 = vadd.f32 %v6923, %v6971
        %v7039 = vadd.f32 %v6925, %v6973
        %v7040 = vadd.f32 %v6927, %v6975
        %v7041 = vadd.f32 %v6929, %v6977
        %v7042 = vadd.f32 %v7026, %v6995
        %v7043 = vadd.f32 %v7027, %v6997
        %v7044 = vadd.f32 %v7028, %v6999
        %v7045 = vadd.f32 %v7029, %v7001
        %v7046 = vadd.f32 %v7030, %v7003
        %v7047 = vadd.f32 %v7031, %v7005
        %v7048 = vadd.f32 %v7032, %v7007
        %v7049 = vadd.f32 %v7033, %v7009
        %v7050 = vadd.f32 %v7034, %v7011
        %v7051 = vadd.f32 %v7035, %v7013
        %v7052 = vadd.f32 %v7036, %v7015
        %v7053 = vadd.f32 %v7037, %v7017
        %v7054 = vadd.f32 %v7038, %v7019
        %v7055 = vadd.f32 %v7039, %v7021
        %v7056 = vadd.f32 %v7040, %v7023
        %v7057 = vadd.f32 %v7041, %v7025
        %v7058 = vrcp.pop %v7042
        %v7059 = vrcp.pop %v7043
        %v7060 = vrcp.pop %v7044
        %v7061 = vrcp.pop %v7045
        %v7062 = vrcp.pop %v7046
        %v7063 = vrcp.pop %v7047
        %v7064 = vrcp.pop %v7048
        %v7065 = vrcp.pop %v7049
        %v7066 = vrcp.pop %v7050
        %v7067 = vrcp.pop %v7051
        %v7068 = vrcp.pop %v7052
        %v7069 = vrcp.pop %v7053
        %v7070 = vrcp.pop %v7054
        %v7071 = vrcp.pop %v7055
        %v7072 = vrcp.pop %v7056
        %v7073 = vrcp.pop %v7057
        %v7074 = vmul.f32 %v6899, %v7058
        %v7075 = vmul.f32 %v6901, %v7059
        %v7076 = vmul.f32 %v6903, %v7060
        %v7077 = vmul.f32 %v6905, %v7061
        %v7078 = vmul.f32 %v6907, %v7062
        %v7079 = vmul.f32 %v6909, %v7063
        %v7080 = vmul.f32 %v6911, %v7064
        %v7081 = vmul.f32 %v6913, %v7065
        %v7082 = vmul.f32 %v6915, %v7066
        %v7083 = vmul.f32 %v6917, %v7067
        %v7084 = vmul.f32 %v6919, %v7068
        %v7085 = vmul.f32 %v6921, %v7069
        %v7086 = vmul.f32 %v6923, %v7070
        %v7087 = vmul.f32 %v6925, %v7071
        %v7088 = vmul.f32 %v6927, %v7072
        %v7089 = vmul.f32 %v6929, %v7073
        %v7090 = vmul.f32 %v7074, %v6192
        %v7091 = vmul.f32 %v7075, %v6193
        %v7092 = vmul.f32 %v7076, %v6194
        %v7093 = vmul.f32 %v7077, %v6195
        %v7094 = vmul.f32 %v7078, %v6196
        %v7095 = vmul.f32 %v7079, %v6197
        %v7096 = vmul.f32 %v7080, %v6198
        %v7097 = vmul.f32 %v7081, %v6199
        %v7098 = vmul.f32 %v7082, %v6200
        %v7099 = vmul.f32 %v7083, %v6201
        %v7100 = vmul.f32 %v7084, %v6202
        %v7101 = vmul.f32 %v7085, %v6203
        %v7102 = vmul.f32 %v7086, %v6204
        %v7103 = vmul.f32 %v7087, %v6205
        %v7104 = vmul.f32 %v7088, %v6206
        %v7105 = vmul.f32 %v7089, %v6207
        %v7106 = vadd.f32 %v7090, 0.0
        %v7107 = vadd.f32 %v7091, 0.0
        %v7108 = vadd.f32 %v7092, 0.0
        %v7109 = vadd.f32 %v7093, 0.0
        %v7110 = vadd.f32 %v7094, 0.0
        %v7111 = vadd.f32 %v7095, 0.0
        %v7112 = vadd.f32 %v7096, 0.0
        %v7113 = vadd.f32 %v7097, 0.0
        %v7114 = vadd.f32 %v7098, 0.0
        %v7115 = vadd.f32 %v7099, 0.0
        %v7116 = vadd.f32 %v7100, 0.0
        %v7117 = vadd.f32 %v7101, 0.0
        %v7118 = vadd.f32 %v7102, 0.0
        %v7119 = vadd.f32 %v7103, 0.0
        %v7120 = vadd.f32 %v7104, 0.0
        %v7121 = vadd.f32 %v7105, 0.0
        %v7122 = vmul.f32 %v6947, %v7058
        %v7123 = vmul.f32 %v6949, %v7059
        %v7124 = vmul.f32 %v6951, %v7060
        %v7125 = vmul.f32 %v6953, %v7061
        %v7126 = vmul.f32 %v6955, %v7062
        %v7127 = vmul.f32 %v6957, %v7063
        %v7128 = vmul.f32 %v6959, %v7064
        %v7129 = vmul.f32 %v6961, %v7065
        %v7130 = vmul.f32 %v6963, %v7066
        %v7131 = vmul.f32 %v6965, %v7067
        %v7132 = vmul.f32 %v6967, %v7068
        %v7133 = vmul.f32 %v6969, %v7069
        %v7134 = vmul.f32 %v6971, %v7070
        %v7135 = vmul.f32 %v6973, %v7071
        %v7136 = vmul.f32 %v6975, %v7072
        %v7137 = vmul.f32 %v6977, %v7073
        %v7138 = vmul.f32 %v7122, %v5070
        %v7139 = vmul.f32 %v7123, %v5071
        %v7140 = vmul.f32 %v7124, %v5072
        %v7141 = vmul.f32 %v7125, %v5073
        %v7142 = vmul.f32 %v7126, %v5074
        %v7143 = vmul.f32 %v7127, %v5075
        %v7144 = vmul.f32 %v7128, %v5076
        %v7145 = vmul.f32 %v7129, %v5077
        %v7146 = vmul.f32 %v7130, %v5078
        %v7147 = vmul.f32 %v7131, %v5079
        %v7148 = vmul.f32 %v7132, %v5080
        %v7149 = vmul.f32 %v7133, %v5081
        %v7150 = vmul.f32 %v7134, %v5082
        %v7151 = vmul.f32 %v7135, %v5083
        %v7152 = vmul.f32 %v7136, %v5084
        %v7153 = vmul.f32 %v7137, %v5085
        %7170 = vrot.lane.b32.xlu0 %v7138, 96
        %v7171 = vpop.permute.xlu0 %7170
        %7172 = vrot.lane.b32.xlu0 %v7139, 96
        %v7173 = vpop.permute.xlu0 %7172
        %7174 = vrot.lane.b32.xlu0 %v7140, 96
        %v7175 = vpop.permute.xlu0 %7174
        %7176 = vrot.lane.b32.xlu0 %v7141, 96
        %v7177 = vpop.permute.xlu0 %7176
        %7178 = vrot.lane.b32.xlu0 %v7142, 96
        %v7179 = vpop.permute.xlu0 %7178
        %7180 = vrot.lane.b32.xlu0 %v7143, 96
        %v7181 = vpop.permute.xlu0 %7180
        %7182 = vrot.lane.b32.xlu0 %v7144, 96
        %v7183 = vpop.permute.xlu0 %7182
        %7184 = vrot.lane.b32.xlu0 %v7145, 96
        %v7185 = vpop.permute.xlu0 %7184
        %7186 = vrot.lane.b32.xlu0 %v7146, 96
        %v7187 = vpop.permute.xlu0 %7186
        %7188 = vrot.lane.b32.xlu0 %v7147, 96
        %v7189 = vpop.permute.xlu0 %7188
        %7190 = vrot.lane.b32.xlu0 %v7148, 96
        %v7191 = vpop.permute.xlu0 %7190
        %7192 = vrot.lane.b32.xlu0 %v7149, 96
        %v7193 = vpop.permute.xlu0 %7192
        %7194 = vrot.lane.b32.xlu0 %v7150, 96
        %v7195 = vpop.permute.xlu0 %7194
        %7196 = vrot.lane.b32.xlu0 %v7151, 96
        %v7197 = vpop.permute.xlu0 %7196
        %7198 = vrot.lane.b32.xlu0 %v7152, 96
        %v7199 = vpop.permute.xlu0 %7198
        %7200 = vrot.lane.b32.xlu0 %v7153, 96
        %v7201 = vpop.permute.xlu0 %7200
        %v7218 = vadd.f32 %v7106, %v7171
        %v7219 = vadd.f32 %v7107, %v7173
        %v7220 = vadd.f32 %v7108, %v7175
        %v7221 = vadd.f32 %v7109, %v7177
        %v7222 = vadd.f32 %v7110, %v7179
        %v7223 = vadd.f32 %v7111, %v7181
        %v7224 = vadd.f32 %v7112, %v7183
        %v7225 = vadd.f32 %v7113, %v7185
        %v7226 = vadd.f32 %v7114, %v7187
        %v7227 = vadd.f32 %v7115, %v7189
        %v7228 = vadd.f32 %v7116, %v7191
        %v7229 = vadd.f32 %v7117, %v7193
        %v7230 = vadd.f32 %v7118, %v7195
        %v7231 = vadd.f32 %v7119, %v7197
        %v7232 = vadd.f32 %v7120, %v7199
        %v7233 = vadd.f32 %v7121, %v7201
        %v7234 = vmul.f32 %v6995, %v7058
        %v7235 = vmul.f32 %v6997, %v7059
        %v7236 = vmul.f32 %v6999, %v7060
        %v7237 = vmul.f32 %v7001, %v7061
        %v7238 = vmul.f32 %v7003, %v7062
        %v7239 = vmul.f32 %v7005, %v7063
        %v7240 = vmul.f32 %v7007, %v7064
        %v7241 = vmul.f32 %v7009, %v7065
        %v7242 = vmul.f32 %v7011, %v7066
        %v7243 = vmul.f32 %v7013, %v7067
        %v7244 = vmul.f32 %v7015, %v7068
        %v7245 = vmul.f32 %v7017, %v7069
        %v7246 = vmul.f32 %v7019, %v7070
        %v7247 = vmul.f32 %v7021, %v7071
        %v7248 = vmul.f32 %v7023, %v7072
        %v7249 = vmul.f32 %v7025, %v7073
        %v7250 = vmul.f32 %v7234, %v927
        %v7251 = vmul.f32 %v7235, %v928
        %v7252 = vmul.f32 %v7236, %v929
        %v7253 = vmul.f32 %v7237, %v930
        %v7254 = vmul.f32 %v7238, %v931
        %v7255 = vmul.f32 %v7239, %v932
        %v7256 = vmul.f32 %v7240, %v933
        %v7257 = vmul.f32 %v7241, %v934
        %v7258 = vmul.f32 %v7242, %v935
        %v7259 = vmul.f32 %v7243, %v936
        %v7260 = vmul.f32 %v7244, %v937
        %v7261 = vmul.f32 %v7245, %v938
        %v7262 = vmul.f32 %v7246, %v939
        %v7263 = vmul.f32 %v7247, %v940
        %v7264 = vmul.f32 %v7248, %v941
        %v7265 = vmul.f32 %v7249, %v942
        %7282 = vrot.lane.b32.xlu0 %v7250, 64
        %v7283 = vpop.permute.xlu0 %7282
        %7284 = vrot.lane.b32.xlu0 %v7251, 64
        %v7285 = vpop.permute.xlu0 %7284
        %7286 = vrot.lane.b32.xlu0 %v7252, 64
        %v7287 = vpop.permute.xlu0 %7286
        %7288 = vrot.lane.b32.xlu0 %v7253, 64
        %v7289 = vpop.permute.xlu0 %7288
        %7290 = vrot.lane.b32.xlu0 %v7254, 64
        %v7291 = vpop.permute.xlu0 %7290
        %7292 = vrot.lane.b32.xlu0 %v7255, 64
        %v7293 = vpop.permute.xlu0 %7292
        %7294 = vrot.lane.b32.xlu0 %v7256, 64
        %v7295 = vpop.permute.xlu0 %7294
        %7296 = vrot.lane.b32.xlu0 %v7257, 64
        %v7297 = vpop.permute.xlu0 %7296
        %7298 = vrot.lane.b32.xlu0 %v7258, 64
        %v7299 = vpop.permute.xlu0 %7298
        %7300 = vrot.lane.b32.xlu0 %v7259, 64
        %v7301 = vpop.permute.xlu0 %7300
        %7302 = vrot.lane.b32.xlu0 %v7260, 64
        %v7303 = vpop.permute.xlu0 %7302
        %7304 = vrot.lane.b32.xlu0 %v7261, 64
        %v7305 = vpop.permute.xlu0 %7304
        %7306 = vrot.lane.b32.xlu0 %v7262, 64
        %v7307 = vpop.permute.xlu0 %7306
        %7308 = vrot.lane.b32.xlu0 %v7263, 64
        %v7309 = vpop.permute.xlu0 %7308
        %7310 = vrot.lane.b32.xlu0 %v7264, 64
        %v7311 = vpop.permute.xlu0 %7310
        %7312 = vrot.lane.b32.xlu0 %v7265, 64
        %v7313 = vpop.permute.xlu0 %7312
        %v7330 = vadd.f32 %v7218, %v7283
        %v7331 = vadd.f32 %v7219, %v7285
        %v7332 = vadd.f32 %v7220, %v7287
        %v7333 = vadd.f32 %v7221, %v7289
        %v7334 = vadd.f32 %v7222, %v7291
        %v7335 = vadd.f32 %v7223, %v7293
        %v7336 = vadd.f32 %v7224, %v7295
        %v7337 = vadd.f32 %v7225, %v7297
        %v7338 = vadd.f32 %v7226, %v7299
        %v7339 = vadd.f32 %v7227, %v7301
        %v7340 = vadd.f32 %v7228, %v7303
        %v7341 = vadd.f32 %v7229, %v7305
        %v7342 = vadd.f32 %v7230, %v7307
        %v7343 = vadd.f32 %v7231, %v7309
        %v7344 = vadd.f32 %v7232, %v7311
        %v7345 = vadd.f32 %v7233, %v7313
        %7362 = vrot.lane.b32.xlu0 %v7330, 64
        %v7363 = vpop.permute.xlu0 %7362
        %7364 = vrot.lane.b32.xlu0 %v7331, 64
        %v7365 = vpop.permute.xlu0 %7364
        %7366 = vrot.lane.b32.xlu0 %v7332, 64
        %v7367 = vpop.permute.xlu0 %7366
        %7368 = vrot.lane.b32.xlu0 %v7333, 64
        %v7369 = vpop.permute.xlu0 %7368
        %7370 = vrot.lane.b32.xlu0 %v7334, 64
        %v7371 = vpop.permute.xlu0 %7370
        %7372 = vrot.lane.b32.xlu0 %v7335, 64
        %v7373 = vpop.permute.xlu0 %7372
        %7374 = vrot.lane.b32.xlu0 %v7336, 64
        %v7375 = vpop.permute.xlu0 %7374
        %7376 = vrot.lane.b32.xlu0 %v7337, 64
        %v7377 = vpop.permute.xlu0 %7376
        %7378 = vrot.lane.b32.xlu0 %v7338, 64
        %v7379 = vpop.permute.xlu0 %7378
        %7380 = vrot.lane.b32.xlu0 %v7339, 64
        %v7381 = vpop.permute.xlu0 %7380
        %7382 = vrot.lane.b32.xlu0 %v7340, 64
        %v7383 = vpop.permute.xlu0 %7382
        %7384 = vrot.lane.b32.xlu0 %v7341, 64
        %v7385 = vpop.permute.xlu0 %7384
        %7386 = vrot.lane.b32.xlu0 %v7342, 64
        %v7387 = vpop.permute.xlu0 %7386
        %7388 = vrot.lane.b32.xlu0 %v7343, 64
        %v7389 = vpop.permute.xlu0 %7388
        %7390 = vrot.lane.b32.xlu0 %v7344, 64
        %v7391 = vpop.permute.xlu0 %7390
        %7392 = vrot.lane.b32.xlu0 %v7345, 64
        %v7393 = vpop.permute.xlu0 %7392
        %7410 = vst.msk [vmem:[%s924] sm:$0xff] %vm1228, %v7363
        %7411 = vst.msk [vmem:[%s924 + $0x8] sm:$0xff] %vm1228, %v7365
        %7412 = vst.msk [vmem:[%s924 + $0x10] sm:$0xff] %vm1228, %v7367
        %7413 = vst.msk [vmem:[%s924 + $0x18] sm:$0xff] %vm1228, %v7369
        %7414 = vst.msk [vmem:[%s924 + $0x20] sm:$0xff] %vm1228, %v7371
        %7415 = vst.msk [vmem:[%s924 + $0x28] sm:$0xff] %vm1228, %v7373
        %7416 = vst.msk [vmem:[%s924 + $0x30] sm:$0xff] %vm1228, %v7375
        %7417 = vst.msk [vmem:[%s924 + $0x38] sm:$0xff] %vm1228, %v7377
        %7418 = vst.msk [vmem:[%s924 + $0x40] sm:$0xff] %vm1228, %v7379
        %7419 = vst.msk [vmem:[%s924 + $0x48] sm:$0xff] %vm1228, %v7381
        %7420 = vst.msk [vmem:[%s924 + $0x50] sm:$0xff] %vm1228, %v7383
        %7421 = vst.msk [vmem:[%s924 + $0x58] sm:$0xff] %vm1228, %v7385
        %7422 = vst.msk [vmem:[%s924 + $0x60] sm:$0xff] %vm1228, %v7387
        %7423 = vst.msk [vmem:[%s924 + $0x68] sm:$0xff] %vm1228, %v7389
        %7424 = vst.msk [vmem:[%s924 + $0x70] sm:$0xff] %vm1228, %v7391
        %7425 = vst.msk [vmem:[%s924 + $0x78] sm:$0xff] %vm1228, %v7393
        %s7426 = smul.u32 16, %s20
        %p7427 = scmp.lt.s32.totalorder %s7426, 31
        %s7428 = scalar_select %p7427, %s7426, 31
        %s7429 = smul.addr %s7428, 8
        %s7430 = scalar_lea.vmem %s8, %s7429
        // Predicated region
        $region129: #{hetgnn_forward.1} parent=119 // pred_check
          %p7431 = pneg %p221
        $region130: #{hetgnn_forward.1} parent=119 // pred_check_branch
          %7433 = sbr.rel (%p7431) target = $region132
        $region131: #{hetgnn_forward.1} parent=119 // pred_region
          %s7434 = smul.u32 16, %s20
        $region132: #{hetgnn_forward.1} parent=119 // pred_fallthru
          _
      $region120: #{hetgnn_forward.1} parent=5 // pred_fallthru
        _
      %p7435 = scmp.le.s32.totalorder 2, %s15
      // Predicated region
      $region133: #{hetgnn_forward.1} parent=5 // pred_check
        %p7436 = pneg %p7435
      $region134: #{hetgnn_forward.1} parent=5 // pred_check_branch
        %7438 = sbr.rel (%p7436) target = $region136
      $region135: #{hetgnn_forward.1} parent=5 // pred_region
        %s7439 = ssub.s32 %s15, 2
        // Predicated region
        $region137: #{hetgnn_forward.1} parent=135 // pred_check
          %p7440 = pneg %p227
        $region138: #{hetgnn_forward.1} parent=135 // pred_check_branch
          %7442 = sbr.rel (%p7440) target = $region140
        $region139: #{hetgnn_forward.1} parent=135 // pred_region
          %s7443 = smul.u32 16, %s21
          %p7444 = scmp.lt.s32.totalorder %s7443, 31
          %s7445 = scalar_select %p7444, %s7443, 31
          %s7446 = smul.addr %s7445, 8
          %s7447 = scalar_lea.vmem %s8, %s7446
        $region140: #{hetgnn_forward.1} parent=135 // pred_fallthru
          _
      $region136: #{hetgnn_forward.1} parent=5 // pred_fallthru
        _
    $region6: #{hetgnn_forward.1} parent=1 // loop_footer
      %s19 = sadd.s32 1, %s15
    $region7: #{hetgnn_forward.1} parent=1 // loop_footer_branch
      %14 = sbr.rel target = $region3
    $region8: #{hetgnn_forward.1} parent=1 // loop_exit
      _

</llo_original>
